<compile_context>
chip_gen: v7x
topology: tpu7x:2x2x1
jax: 0.10.0
libtpu: 0.0.40
codegen_flags: <defaults>
</compile_context>

<pallas_src>
import functools
import math

import jax
import jax.numpy as jnp
from jax.experimental import pallas as pl
from jax.experimental.pallas import tpu as pltpu

LN_EPS = 1e-5        # torch.nn.LayerNorm default
NEG_INF = -1e30      # additive key-padding mask value


# ----------------------------------------------------------------------------
# Fused whole-network kernel (single invocation, everything resident in VMEM)
# ----------------------------------------------------------------------------
def _make_kernel(nhead):
    def kernel(x_ref, mask_ref,
               lin_w_ref, lin_b_ref, n1_g_ref, n1_b_ref,
               q_w_ref, q_b_ref, k_w_ref, k_b_ref, v_w_ref, v_b_ref,
               o_w_ref, o_b_ref,
               f1_w_ref, f1_b_ref, f2_w_ref, f2_b_ref,
               ln1_g_ref, ln1_b_ref, ln2_g_ref, ln2_b_ref,
               out_ref):
        B, S, Din = x_ref.shape
        D = lin_w_ref.shape[1]
        L = q_w_ref.shape[0]
        dh = D // nhead
        scale = 1.0 / math.sqrt(dh)

        def layer_norm(x2d, g, b):
            mu = jnp.mean(x2d, axis=-1, keepdims=True)
            xc = x2d - mu
            var = jnp.mean(xc * xc, axis=-1, keepdims=True)
            return xc * jax.lax.rsqrt(var + LN_EPS) * g + b

        # input linear + first LayerNorm, activations kept as (B*S, D) rows
        x2d = x_ref[...].reshape(B * S, Din)
        h = jnp.dot(x2d, lin_w_ref[...], preferred_element_type=jnp.float32)
        h = h + lin_b_ref[...]
        h = layer_norm(h, n1_g_ref[...], n1_b_ref[...])

        mask = mask_ref[...]                    # (B, 1, S) additive, 0 / -1e30

        for l in range(L):                      # static unroll over layers
            # ---------------- multi-head self-attention -----------------
            attn = None
            for hh in range(nhead):             # static unroll over heads
                q = jnp.dot(h, q_w_ref[l, hh],
                            preferred_element_type=jnp.float32) + q_b_ref[l, hh]
                k = jnp.dot(h, k_w_ref[l, hh],
                            preferred_element_type=jnp.float32) + k_b_ref[l, hh]
                v = jnp.dot(h, v_w_ref[l, hh],
                            preferred_element_type=jnp.float32) + v_b_ref[l, hh]
                q3 = q.reshape(B, S, dh)
                k3 = k.reshape(B, S, dh)
                v3 = v.reshape(B, S, dh)

                s = jnp.einsum('bqd,bkd->bqk', q3, k3,
                               preferred_element_type=jnp.float32) * scale
                s = s + mask                    # key-padding mask (broadcast)
                s = s - jnp.max(s, axis=-1, keepdims=True)
                p = jnp.exp(s)
                p = p / jnp.sum(p, axis=-1, keepdims=True)

                oh = jnp.einsum('bqk,bkd->bqd', p, v3,
                                preferred_element_type=jnp.float32)
                # per-head slice of the output projection -> sum over heads
                contrib = jnp.dot(oh.reshape(B * S, dh), o_w_ref[l, hh],
                                  preferred_element_type=jnp.float32)
                attn = contrib if attn is None else attn + contrib
            attn = attn + o_b_ref[l]
            # dropout1: identity (inference)
            h = layer_norm(h + attn, ln1_g_ref[l], ln1_b_ref[l])

            # ------------------------- FFN -------------------------------
            f = jnp.dot(h, f1_w_ref[l],
                        preferred_element_type=jnp.float32) + f1_b_ref[l]
            f = jnp.maximum(f, 0.0)             # relu; inner dropout identity
            f = jnp.dot(f, f2_w_ref[l],
                        preferred_element_type=jnp.float32) + f2_b_ref[l]
            # dropout2: identity (inference)
            h = layer_norm(h + f, ln2_g_ref[l], ln2_b_ref[l])

        out_ref[...] = h.reshape(B, S, D).astype(out_ref.dtype)

    return kernel


def self_attention_forward_pallas(src, n_wins, params, *, nhead):
    """src: (B, S, input_size) f32, n_wins: (B,) int32 valid lengths."""
    B, S, _ = src.shape
    D = params['lin_w'].shape[1]

    # additive key-padding mask (B, 1, S): 0 for valid keys, -1e30 for padding
    valid = jnp.arange(S, dtype=jnp.int32)[None, :] < n_wins[:, None].astype(jnp.int32)
    mask = jnp.where(valid, 0.0, NEG_INF).astype(jnp.float32)[:, None, :]

    args = (
        src, mask,
        params['lin_w'], params['lin_b'], params['n1_g'], params['n1_b'],
        params['q_w'], params['q_b'], params['k_w'], params['k_b'],
        params['v_w'], params['v_b'], params['o_w'], params['o_b'],
        params['f1_w'], params['f1_b'], params['f2_w'], params['f2_b'],
        params['ln1_g'], params['ln1_b'], params['ln2_g'], params['ln2_b'],
    )

    vmem = pl.BlockSpec(memory_space=pltpu.MemorySpace.VMEM)
    out = pl.pallas_call(
        _make_kernel(nhead),
        out_shape=jax.ShapeDtypeStruct((B, S, D), src.dtype),
        in_specs=[vmem] * len(args),
        out_specs=vmem,
    )(*args)
    return out   # (B, S, d_model); n_wins is passed through unchanged


# ----------------------------------------------------------------------------
# Plain-JAX reference (same math, same parameter layout)
# ----------------------------------------------------------------------------
def self_attention_forward_reference(src, n_wins, params, nhead):
    B, S, _ = src.shape
    D = params['lin_w'].shape[1]
    L = params['q_w'].shape[0]
    dh = D // nhead

    def layer_norm(x, g, b):
        mu = jnp.mean(x, axis=-1, keepdims=True)
        var = jnp.mean((x - mu) ** 2, axis=-1, keepdims=True)
        return (x - mu) / jnp.sqrt(var + LN_EPS) * g + b

    h = src @ params['lin_w'] + params['lin_b']
    h = layer_norm(h, params['n1_g'], params['n1_b'])

    valid = jnp.arange(S)[None, :] < n_wins[:, None]
    mask = jnp.where(valid, 0.0, NEG_INF).astype(jnp.float32)[:, None, :]  # (B,1,S)

    for l in range(L):
        attn = jnp.zeros_like(h)
        for hh in range(nhead):
            q = h @ params['q_w'][l, hh] + params['q_b'][l, hh]
            k = h @ params['k_w'][l, hh] + params['k_b'][l, hh]
            v = h @ params['v_w'][l, hh] + params['v_b'][l, hh]
            s = jnp.einsum('bqd,bkd->bqk', q, k) / math.sqrt(dh) + mask
            p = jax.nn.softmax(s, axis=-1)
            o = jnp.einsum('bqk,bkd->bqd', p, v)
            attn = attn + o @ params['o_w'][l, hh]
        attn = attn + params['o_b'][l]
        h = layer_norm(h + attn, params['ln1_g'][l], params['ln1_b'][l])

        f = jax.nn.relu(h @ params['f1_w'][l] + params['f1_b'][l])
        f = f @ params['f2_w'][l] + params['f2_b'][l]
        h = layer_norm(h + f, params['ln2_g'][l], params['ln2_b'][l])
    return h


# ----------------------------------------------------------------------------
# Deterministic synthetic parameters, generated directly in kernel layout
# (weights stored (in, out); q/k/v/out-projection pre-split per head).
# ----------------------------------------------------------------------------
def make_params(key, input_size, d_model, nhead, num_layers, sa_h):
    dh = d_model // nhead
    L, H = num_layers, nhead
    keys = iter(jax.random.split(key, 24))

    def uni(shape, fan_in):
        bound = 1.0 / math.sqrt(fan_in)
        return jax.random.uniform(next(keys), shape, jnp.float32, -bound, bound)

    def ln_pair(shape):
        g = 1.0 + 0.1 * jax.random.normal(next(keys), shape, jnp.float32)
        b = 0.1 * jax.random.normal(next(keys), shape, jnp.float32)
        return g, b

    p = {}
    p['lin_w'] = uni((input_size, d_model), input_size)
    p['lin_b'] = uni((1, d_model), input_size)
    p['n1_g'], p['n1_b'] = ln_pair((1, d_model))

    # per-head slices of the MHA in_proj / out_proj weights (pre-transposed)
    p['q_w'] = uni((L, H, d_model, dh), d_model)
    p['q_b'] = uni((L, H, 1, dh), d_model)
    p['k_w'] = uni((L, H, d_model, dh), d_model)
    p['k_b'] = uni((L, H, 1, dh), d_model)
    p['v_w'] = uni((L, H, d_model, dh), d_model)
    p['v_b'] = uni((L, H, 1, dh), d_model)
    p['o_w'] = uni((L, H, dh, d_model), d_model)
    p['o_b'] = uni((L, 1, d_model), d_model)

    p['f1_w'] = uni((L, d_model, sa_h), d_model)
    p['f1_b'] = uni((L, 1, sa_h), d_model)
    p['f2_w'] = uni((L, sa_h, d_model), sa_h)
    p['f2_b'] = uni((L, 1, d_model), sa_h)

    p['ln1_g'], p['ln1_b'] = ln_pair((L, 1, d_model))
    p['ln2_g'], p['ln2_b'] = ln_pair((L, 1, d_model))
    return p


# ----------------------------------------------------------------------------
if __name__ == "__main__":
    B, S = 2, 16
    INPUT_SIZE = 64
    D_MODEL = 128
    NHEAD = 4
    NUM_LAYERS = 2
    SA_H = 256

    key = jax.random.PRNGKey(0)
    k_x, k_p = jax.random.split(key)

    src = jax.random.normal(k_x, (B, S, INPUT_SIZE), dtype=jnp.float32)
    n_wins = jnp.array([S, 11], dtype=jnp.int32)   # valid lengths per batch row
    params = make_params(k_p, INPUT_SIZE, D_MODEL, NHEAD, NUM_LAYERS, SA_H)

    fwd = jax.jit(functools.partial(self_attention_forward_pallas, nhead=NHEAD))
    out = jax.block_until_ready(fwd(src, n_wins, params))

    ref = self_attention_forward_reference(src, n_wins, params, NHEAD)
    assert out.shape == (B, S, D_MODEL)
    max_err = float(jnp.max(jnp.abs(out - ref)))
    assert jnp.allclose(out, ref, rtol=5e-3, atol=5e-3), (
        "mismatch vs reference: max abs err = %g" % max_err
    )

    print("KERNEL_OK")
</pallas_src>

<mosaic_0001>
module attributes {stable_mosaic.version = 11 : i64} {
  func.func @kernel(%arg0: memref<2x16x64xf32, #tpu.memory_space<vmem>>, %arg1: memref<2x1x16xf32, #tpu.memory_space<vmem>>, %arg2: memref<64x128xf32, #tpu.memory_space<vmem>>, %arg3: memref<1x128xf32, #tpu.memory_space<vmem>>, %arg4: memref<1x128xf32, #tpu.memory_space<vmem>>, %arg5: memref<1x128xf32, #tpu.memory_space<vmem>>, %arg6: memref<2x4x128x32xf32, #tpu.memory_space<vmem>>, %arg7: memref<2x4x1x32xf32, #tpu.memory_space<vmem>>, %arg8: memref<2x4x128x32xf32, #tpu.memory_space<vmem>>, %arg9: memref<2x4x1x32xf32, #tpu.memory_space<vmem>>, %arg10: memref<2x4x128x32xf32, #tpu.memory_space<vmem>>, %arg11: memref<2x4x1x32xf32, #tpu.memory_space<vmem>>, %arg12: memref<2x4x32x128xf32, #tpu.memory_space<vmem>>, %arg13: memref<2x1x128xf32, #tpu.memory_space<vmem>>, %arg14: memref<2x128x256xf32, #tpu.memory_space<vmem>>, %arg15: memref<2x1x256xf32, #tpu.memory_space<vmem>>, %arg16: memref<2x256x128xf32, #tpu.memory_space<vmem>>, %arg17: memref<2x1x128xf32, #tpu.memory_space<vmem>>, %arg18: memref<2x1x128xf32, #tpu.memory_space<vmem>>, %arg19: memref<2x1x128xf32, #tpu.memory_space<vmem>>, %arg20: memref<2x1x128xf32, #tpu.memory_space<vmem>>, %arg21: memref<2x1x128xf32, #tpu.memory_space<vmem>>, %arg22: memref<2x16x128xf32, #tpu.memory_space<vmem>>) attributes {dimension_semantics = [], scalar_prefetch = 0 : i64, scratch_operands = 0 : i64, tpu.core_type = #tpu.core_type<tc>} {
    %c0 = arith.constant 0 : index
    %c0_0 = arith.constant 0 : index
    %c0_1 = arith.constant 0 : index
    %0 = vector.load %arg0[%c0, %c0_0, %c0_1] : memref<2x16x64xf32, #tpu.memory_space<vmem>>, vector<2x16x64xf32>
    %1 = vector.shape_cast %0 : vector<2x16x64xf32> to vector<32x64xf32>
    %c0_2 = arith.constant 0 : index
    %c0_3 = arith.constant 0 : index
    %2 = vector.load %arg2[%c0_2, %c0_3] : memref<64x128xf32, #tpu.memory_space<vmem>>, vector<64x128xf32>
    %cst = arith.constant dense<0.000000e+00> : vector<32x128xf32>
    %3 = tpu.matmul %1, %2, %cst {dimension_numbers = #tpu.dot_dimension_numbers<[1], [0], [0], [1], [0, 0, 1, 1], [], []>} : vector<32x64xf32>, vector<64x128xf32>, vector<32x128xf32> -> vector<32x128xf32>
    %c0_4 = arith.constant 0 : index
    %c0_5 = arith.constant 0 : index
    %4 = vector.load %arg3[%c0_4, %c0_5] : memref<1x128xf32, #tpu.memory_space<vmem>>, vector<1x128xf32>
    %5 = vector.broadcast %4 : vector<1x128xf32> to vector<32x128xf32>
    %6 = arith.addf %3, %5 : vector<32x128xf32>
    %c0_6 = arith.constant 0 : index
    %c0_7 = arith.constant 0 : index
    %7 = vector.load %arg4[%c0_6, %c0_7] : memref<1x128xf32, #tpu.memory_space<vmem>>, vector<1x128xf32>
    %c0_8 = arith.constant 0 : index
    %c0_9 = arith.constant 0 : index
    %8 = vector.load %arg5[%c0_8, %c0_9] : memref<1x128xf32, #tpu.memory_space<vmem>>, vector<1x128xf32>
    %cst_10 = arith.constant dense<0.000000e+00> : vector<32xf32>
    %9 = vector.multi_reduction <add>, %6, %cst_10 [1] : vector<32x128xf32> to vector<32xf32>
    %10 = vector.shape_cast %9 : vector<32xf32> to vector<32x1xf32>
    %cst_11 = arith.constant 1.280000e+02 : f32
    %11 = vector.broadcast %cst_11 : f32 to vector<32x1xf32>
    %12 = arith.divf %10, %11 : vector<32x1xf32>
    %13 = vector.broadcast %12 : vector<32x1xf32> to vector<32x128xf32>
    %14 = arith.subf %6, %13 : vector<32x128xf32>
    %15 = arith.mulf %14, %14 : vector<32x128xf32>
    %cst_12 = arith.constant dense<0.000000e+00> : vector<32xf32>
    %16 = vector.multi_reduction <add>, %15, %cst_12 [1] : vector<32x128xf32> to vector<32xf32>
    %17 = vector.shape_cast %16 : vector<32xf32> to vector<32x1xf32>
    %cst_13 = arith.constant 1.280000e+02 : f32
    %18 = vector.broadcast %cst_13 : f32 to vector<32x1xf32>
    %19 = arith.divf %17, %18 : vector<32x1xf32>
    %cst_14 = arith.constant 9.99999974E-6 : f32
    %20 = vector.broadcast %cst_14 : f32 to vector<32x1xf32>
    %21 = arith.addf %19, %20 : vector<32x1xf32>
    %22 = math.rsqrt %21 : vector<32x1xf32>
    %23 = vector.broadcast %22 : vector<32x1xf32> to vector<32x128xf32>
    %24 = arith.mulf %14, %23 : vector<32x128xf32>
    %25 = vector.broadcast %7 : vector<1x128xf32> to vector<32x128xf32>
    %26 = arith.mulf %24, %25 : vector<32x128xf32>
    %27 = vector.broadcast %8 : vector<1x128xf32> to vector<32x128xf32>
    %28 = arith.addf %26, %27 : vector<32x128xf32>
    %c0_15 = arith.constant 0 : index
    %c0_16 = arith.constant 0 : index
    %c0_17 = arith.constant 0 : index
    %29 = vector.load %arg1[%c0_15, %c0_16, %c0_17] : memref<2x1x16xf32, #tpu.memory_space<vmem>>, vector<2x1x16xf32>
    %c0_18 = arith.constant 0 : index
    %c0_19 = arith.constant 0 : index
    %c0_20 = arith.constant 0 : index
    %c0_21 = arith.constant 0 : index
    %30 = vector.load %arg6[%c0_18, %c0_19, %c0_20, %c0_21] : memref<2x4x128x32xf32, #tpu.memory_space<vmem>>, vector<1x1x128x32xf32>
    %31 = vector.shape_cast %30 : vector<1x1x128x32xf32> to vector<128x32xf32>
    %cst_22 = arith.constant dense<0.000000e+00> : vector<32x32xf32>
    %32 = tpu.matmul %28, %31, %cst_22 {dimension_numbers = #tpu.dot_dimension_numbers<[1], [0], [0], [1], [0, 0, 1, 1], [], []>} : vector<32x128xf32>, vector<128x32xf32>, vector<32x32xf32> -> vector<32x32xf32>
    %c0_23 = arith.constant 0 : index
    %c0_24 = arith.constant 0 : index
    %c0_25 = arith.constant 0 : index
    %c0_26 = arith.constant 0 : index
    %33 = vector.load %arg7[%c0_23, %c0_24, %c0_25, %c0_26] : memref<2x4x1x32xf32, #tpu.memory_space<vmem>>, vector<1x1x1x32xf32>
    %34 = vector.shape_cast %33 : vector<1x1x1x32xf32> to vector<1x32xf32>
    %35 = vector.broadcast %34 : vector<1x32xf32> to vector<32x32xf32>
    %36 = arith.addf %32, %35 : vector<32x32xf32>
    %c0_27 = arith.constant 0 : index
    %c0_28 = arith.constant 0 : index
    %c0_29 = arith.constant 0 : index
    %c0_30 = arith.constant 0 : index
    %37 = vector.load %arg8[%c0_27, %c0_28, %c0_29, %c0_30] : memref<2x4x128x32xf32, #tpu.memory_space<vmem>>, vector<1x1x128x32xf32>
    %38 = vector.shape_cast %37 : vector<1x1x128x32xf32> to vector<128x32xf32>
    %cst_31 = arith.constant dense<0.000000e+00> : vector<32x32xf32>
    %39 = tpu.matmul %28, %38, %cst_31 {dimension_numbers = #tpu.dot_dimension_numbers<[1], [0], [0], [1], [0, 0, 1, 1], [], []>} : vector<32x128xf32>, vector<128x32xf32>, vector<32x32xf32> -> vector<32x32xf32>
    %c0_32 = arith.constant 0 : index
    %c0_33 = arith.constant 0 : index
    %c0_34 = arith.constant 0 : index
    %c0_35 = arith.constant 0 : index
    %40 = vector.load %arg9[%c0_32, %c0_33, %c0_34, %c0_35] : memref<2x4x1x32xf32, #tpu.memory_space<vmem>>, vector<1x1x1x32xf32>
    %41 = vector.shape_cast %40 : vector<1x1x1x32xf32> to vector<1x32xf32>
    %42 = vector.broadcast %41 : vector<1x32xf32> to vector<32x32xf32>
    %43 = arith.addf %39, %42 : vector<32x32xf32>
    %c0_36 = arith.constant 0 : index
    %c0_37 = arith.constant 0 : index
    %c0_38 = arith.constant 0 : index
    %c0_39 = arith.constant 0 : index
    %44 = vector.load %arg10[%c0_36, %c0_37, %c0_38, %c0_39] : memref<2x4x128x32xf32, #tpu.memory_space<vmem>>, vector<1x1x128x32xf32>
    %45 = vector.shape_cast %44 : vector<1x1x128x32xf32> to vector<128x32xf32>
    %cst_40 = arith.constant dense<0.000000e+00> : vector<32x32xf32>
    %46 = tpu.matmul %28, %45, %cst_40 {dimension_numbers = #tpu.dot_dimension_numbers<[1], [0], [0], [1], [0, 0, 1, 1], [], []>} : vector<32x128xf32>, vector<128x32xf32>, vector<32x32xf32> -> vector<32x32xf32>
    %c0_41 = arith.constant 0 : index
    %c0_42 = arith.constant 0 : index
    %c0_43 = arith.constant 0 : index
    %c0_44 = arith.constant 0 : index
    %47 = vector.load %arg11[%c0_41, %c0_42, %c0_43, %c0_44] : memref<2x4x1x32xf32, #tpu.memory_space<vmem>>, vector<1x1x1x32xf32>
    %48 = vector.shape_cast %47 : vector<1x1x1x32xf32> to vector<1x32xf32>
    %49 = vector.broadcast %48 : vector<1x32xf32> to vector<32x32xf32>
    %50 = arith.addf %46, %49 : vector<32x32xf32>
    %51 = vector.shape_cast %36 : vector<32x32xf32> to vector<2x16x32xf32>
    %52 = vector.shape_cast %43 : vector<32x32xf32> to vector<2x16x32xf32>
    %53 = vector.shape_cast %50 : vector<32x32xf32> to vector<2x16x32xf32>
    "tpu.trace_start"() <{level = 10 : i32, message = "bqd,bkd->bqk"}> : () -> ()
    %cst_45 = arith.constant dense<0.000000e+00> : vector<2x16x16xf32>
    %54 = tpu.matmul %51, %52, %cst_45 {dimension_numbers = #tpu.dot_dimension_numbers<[2], [2], [1], [1], [0, 0, 0, 1, 1, 1], [0], [0]>} : vector<2x16x32xf32>, vector<2x16x32xf32>, vector<2x16x16xf32> -> vector<2x16x16xf32>
    "tpu.trace_stop"() : () -> ()
    %cst_46 = arith.constant 0.176776692 : f32
    %55 = vector.broadcast %cst_46 : f32 to vector<2x16x16xf32>
    %56 = arith.mulf %54, %55 : vector<2x16x16xf32>
    %57 = vector.broadcast %29 : vector<2x1x16xf32> to vector<2x16x16xf32>
    %58 = arith.addf %56, %57 : vector<2x16x16xf32>
    %cst_47 = arith.constant dense<0xFF800000> : vector<2x16xf32>
    %59 = vector.multi_reduction <maximumf>, %58, %cst_47 [2] : vector<2x16x16xf32> to vector<2x16xf32>
    %60 = vector.shape_cast %59 : vector<2x16xf32> to vector<2x16x1xf32>
    %61 = vector.broadcast %60 : vector<2x16x1xf32> to vector<2x16x16xf32>
    %62 = arith.subf %58, %61 : vector<2x16x16xf32>
    %63 = math.exp %62 : vector<2x16x16xf32>
    %cst_48 = arith.constant dense<0.000000e+00> : vector<2x16xf32>
    %64 = vector.multi_reduction <add>, %63, %cst_48 [2] : vector<2x16x16xf32> to vector<2x16xf32>
    %65 = vector.shape_cast %64 : vector<2x16xf32> to vector<2x16x1xf32>
    %66 = vector.broadcast %65 : vector<2x16x1xf32> to vector<2x16x16xf32>
    %67 = arith.divf %63, %66 : vector<2x16x16xf32>
    "tpu.trace_start"() <{level = 10 : i32, message = "bqk,bkd->bqd"}> : () -> ()
    %cst_49 = arith.constant dense<0.000000e+00> : vector<2x16x32xf32>
    %68 = tpu.matmul %67, %53, %cst_49 {dimension_numbers = #tpu.dot_dimension_numbers<[2], [1], [1], [2], [0, 0, 0, 1, 1, 2], [0], [0]>} : vector<2x16x16xf32>, vector<2x16x32xf32>, vector<2x16x32xf32> -> vector<2x16x32xf32>
    "tpu.trace_stop"() : () -> ()
    %69 = vector.shape_cast %68 : vector<2x16x32xf32> to vector<32x32xf32>
    %c0_50 = arith.constant 0 : index
    %c0_51 = arith.constant 0 : index
    %c0_52 = arith.constant 0 : index
    %c0_53 = arith.constant 0 : index
    %70 = vector.load %arg12[%c0_50, %c0_51, %c0_52, %c0_53] : memref<2x4x32x128xf32, #tpu.memory_space<vmem>>, vector<1x1x32x128xf32>
    %71 = vector.shape_cast %70 : vector<1x1x32x128xf32> to vector<32x128xf32>
    %cst_54 = arith.constant dense<0.000000e+00> : vector<32x128xf32>
    %72 = tpu.matmul %69, %71, %cst_54 {dimension_numbers = #tpu.dot_dimension_numbers<[1], [0], [0], [1], [0, 0, 1, 1], [], []>} : vector<32x32xf32>, vector<32x128xf32>, vector<32x128xf32> -> vector<32x128xf32>
    %c0_55 = arith.constant 0 : index
    %c1 = arith.constant 1 : index
    %c0_56 = arith.constant 0 : index
    %c0_57 = arith.constant 0 : index
    %73 = vector.load %arg6[%c0_55, %c1, %c0_56, %c0_57] : memref<2x4x128x32xf32, #tpu.memory_space<vmem>>, vector<1x1x128x32xf32>
    %74 = vector.shape_cast %73 : vector<1x1x128x32xf32> to vector<128x32xf32>
    %cst_58 = arith.constant dense<0.000000e+00> : vector<32x32xf32>
    %75 = tpu.matmul %28, %74, %cst_58 {dimension_numbers = #tpu.dot_dimension_numbers<[1], [0], [0], [1], [0, 0, 1, 1], [], []>} : vector<32x128xf32>, vector<128x32xf32>, vector<32x32xf32> -> vector<32x32xf32>
    %c0_59 = arith.constant 0 : index
    %c1_60 = arith.constant 1 : index
    %c0_61 = arith.constant 0 : index
    %c0_62 = arith.constant 0 : index
    %76 = vector.load %arg7[%c0_59, %c1_60, %c0_61, %c0_62] : memref<2x4x1x32xf32, #tpu.memory_space<vmem>>, vector<1x1x1x32xf32>
    %77 = vector.shape_cast %76 : vector<1x1x1x32xf32> to vector<1x32xf32>
    %78 = vector.broadcast %77 : vector<1x32xf32> to vector<32x32xf32>
    %79 = arith.addf %75, %78 : vector<32x32xf32>
    %c0_63 = arith.constant 0 : index
    %c1_64 = arith.constant 1 : index
    %c0_65 = arith.constant 0 : index
    %c0_66 = arith.constant 0 : index
    %80 = vector.load %arg8[%c0_63, %c1_64, %c0_65, %c0_66] : memref<2x4x128x32xf32, #tpu.memory_space<vmem>>, vector<1x1x128x32xf32>
    %81 = vector.shape_cast %80 : vector<1x1x128x32xf32> to vector<128x32xf32>
    %cst_67 = arith.constant dense<0.000000e+00> : vector<32x32xf32>
    %82 = tpu.matmul %28, %81, %cst_67 {dimension_numbers = #tpu.dot_dimension_numbers<[1], [0], [0], [1], [0, 0, 1, 1], [], []>} : vector<32x128xf32>, vector<128x32xf32>, vector<32x32xf32> -> vector<32x32xf32>
    %c0_68 = arith.constant 0 : index
    %c1_69 = arith.constant 1 : index
    %c0_70 = arith.constant 0 : index
    %c0_71 = arith.constant 0 : index
    %83 = vector.load %arg9[%c0_68, %c1_69, %c0_70, %c0_71] : memref<2x4x1x32xf32, #tpu.memory_space<vmem>>, vector<1x1x1x32xf32>
    %84 = vector.shape_cast %83 : vector<1x1x1x32xf32> to vector<1x32xf32>
    %85 = vector.broadcast %84 : vector<1x32xf32> to vector<32x32xf32>
    %86 = arith.addf %82, %85 : vector<32x32xf32>
    %c0_72 = arith.constant 0 : index
    %c1_73 = arith.constant 1 : index
    %c0_74 = arith.constant 0 : index
    %c0_75 = arith.constant 0 : index
    %87 = vector.load %arg10[%c0_72, %c1_73, %c0_74, %c0_75] : memref<2x4x128x32xf32, #tpu.memory_space<vmem>>, vector<1x1x128x32xf32>
    %88 = vector.shape_cast %87 : vector<1x1x128x32xf32> to vector<128x32xf32>
    %cst_76 = arith.constant dense<0.000000e+00> : vector<32x32xf32>
    %89 = tpu.matmul %28, %88, %cst_76 {dimension_numbers = #tpu.dot_dimension_numbers<[1], [0], [0], [1], [0, 0, 1, 1], [], []>} : vector<32x128xf32>, vector<128x32xf32>, vector<32x32xf32> -> vector<32x32xf32>
    %c0_77 = arith.constant 0 : index
    %c1_78 = arith.constant 1 : index
    %c0_79 = arith.constant 0 : index
    %c0_80 = arith.constant 0 : index
    %90 = vector.load %arg11[%c0_77, %c1_78, %c0_79, %c0_80] : memref<2x4x1x32xf32, #tpu.memory_space<vmem>>, vector<1x1x1x32xf32>
    %91 = vector.shape_cast %90 : vector<1x1x1x32xf32> to vector<1x32xf32>
    %92 = vector.broadcast %91 : vector<1x32xf32> to vector<32x32xf32>
    %93 = arith.addf %89, %92 : vector<32x32xf32>
    %94 = vector.shape_cast %79 : vector<32x32xf32> to vector<2x16x32xf32>
    %95 = vector.shape_cast %86 : vector<32x32xf32> to vector<2x16x32xf32>
    %96 = vector.shape_cast %93 : vector<32x32xf32> to vector<2x16x32xf32>
    "tpu.trace_start"() <{level = 10 : i32, message = "bqd,bkd->bqk"}> : () -> ()
    %cst_81 = arith.constant dense<0.000000e+00> : vector<2x16x16xf32>
    %97 = tpu.matmul %94, %95, %cst_81 {dimension_numbers = #tpu.dot_dimension_numbers<[2], [2], [1], [1], [0, 0, 0, 1, 1, 1], [0], [0]>} : vector<2x16x32xf32>, vector<2x16x32xf32>, vector<2x16x16xf32> -> vector<2x16x16xf32>
    "tpu.trace_stop"() : () -> ()
    %cst_82 = arith.constant 0.176776692 : f32
    %98 = vector.broadcast %cst_82 : f32 to vector<2x16x16xf32>
    %99 = arith.mulf %97, %98 : vector<2x16x16xf32>
    %100 = vector.broadcast %29 : vector<2x1x16xf32> to vector<2x16x16xf32>
    %101 = arith.addf %99, %100 : vector<2x16x16xf32>
    %cst_83 = arith.constant dense<0xFF800000> : vector<2x16xf32>
    %102 = vector.multi_reduction <maximumf>, %101, %cst_83 [2] : vector<2x16x16xf32> to vector<2x16xf32>
    %103 = vector.shape_cast %102 : vector<2x16xf32> to vector<2x16x1xf32>
    %104 = vector.broadcast %103 : vector<2x16x1xf32> to vector<2x16x16xf32>
    %105 = arith.subf %101, %104 : vector<2x16x16xf32>
    %106 = math.exp %105 : vector<2x16x16xf32>
    %cst_84 = arith.constant dense<0.000000e+00> : vector<2x16xf32>
    %107 = vector.multi_reduction <add>, %106, %cst_84 [2] : vector<2x16x16xf32> to vector<2x16xf32>
    %108 = vector.shape_cast %107 : vector<2x16xf32> to vector<2x16x1xf32>
    %109 = vector.broadcast %108 : vector<2x16x1xf32> to vector<2x16x16xf32>
    %110 = arith.divf %106, %109 : vector<2x16x16xf32>
    "tpu.trace_start"() <{level = 10 : i32, message = "bqk,bkd->bqd"}> : () -> ()
    %cst_85 = arith.constant dense<0.000000e+00> : vector<2x16x32xf32>
    %111 = tpu.matmul %110, %96, %cst_85 {dimension_numbers = #tpu.dot_dimension_numbers<[2], [1], [1], [2], [0, 0, 0, 1, 1, 2], [0], [0]>} : vector<2x16x16xf32>, vector<2x16x32xf32>, vector<2x16x32xf32> -> vector<2x16x32xf32>
    "tpu.trace_stop"() : () -> ()
    %112 = vector.shape_cast %111 : vector<2x16x32xf32> to vector<32x32xf32>
    %c0_86 = arith.constant 0 : index
    %c1_87 = arith.constant 1 : index
    %c0_88 = arith.constant 0 : index
    %c0_89 = arith.constant 0 : index
    %113 = vector.load %arg12[%c0_86, %c1_87, %c0_88, %c0_89] : memref<2x4x32x128xf32, #tpu.memory_space<vmem>>, vector<1x1x32x128xf32>
    %114 = vector.shape_cast %113 : vector<1x1x32x128xf32> to vector<32x128xf32>
    %cst_90 = arith.constant dense<0.000000e+00> : vector<32x128xf32>
    %115 = tpu.matmul %112, %114, %cst_90 {dimension_numbers = #tpu.dot_dimension_numbers<[1], [0], [0], [1], [0, 0, 1, 1], [], []>} : vector<32x32xf32>, vector<32x128xf32>, vector<32x128xf32> -> vector<32x128xf32>
    %116 = arith.addf %72, %115 : vector<32x128xf32>
    %c0_91 = arith.constant 0 : index
    %c2 = arith.constant 2 : index
    %c0_92 = arith.constant 0 : index
    %c0_93 = arith.constant 0 : index
    %117 = vector.load %arg6[%c0_91, %c2, %c0_92, %c0_93] : memref<2x4x128x32xf32, #tpu.memory_space<vmem>>, vector<1x1x128x32xf32>
    %118 = vector.shape_cast %117 : vector<1x1x128x32xf32> to vector<128x32xf32>
    %cst_94 = arith.constant dense<0.000000e+00> : vector<32x32xf32>
    %119 = tpu.matmul %28, %118, %cst_94 {dimension_numbers = #tpu.dot_dimension_numbers<[1], [0], [0], [1], [0, 0, 1, 1], [], []>} : vector<32x128xf32>, vector<128x32xf32>, vector<32x32xf32> -> vector<32x32xf32>
    %c0_95 = arith.constant 0 : index
    %c2_96 = arith.constant 2 : index
    %c0_97 = arith.constant 0 : index
    %c0_98 = arith.constant 0 : index
    %120 = vector.load %arg7[%c0_95, %c2_96, %c0_97, %c0_98] : memref<2x4x1x32xf32, #tpu.memory_space<vmem>>, vector<1x1x1x32xf32>
    %121 = vector.shape_cast %120 : vector<1x1x1x32xf32> to vector<1x32xf32>
    %122 = vector.broadcast %121 : vector<1x32xf32> to vector<32x32xf32>
    %123 = arith.addf %119, %122 : vector<32x32xf32>
    %c0_99 = arith.constant 0 : index
    %c2_100 = arith.constant 2 : index
    %c0_101 = arith.constant 0 : index
    %c0_102 = arith.constant 0 : index
    %124 = vector.load %arg8[%c0_99, %c2_100, %c0_101, %c0_102] : memref<2x4x128x32xf32, #tpu.memory_space<vmem>>, vector<1x1x128x32xf32>
    %125 = vector.shape_cast %124 : vector<1x1x128x32xf32> to vector<128x32xf32>
    %cst_103 = arith.constant dense<0.000000e+00> : vector<32x32xf32>
    %126 = tpu.matmul %28, %125, %cst_103 {dimension_numbers = #tpu.dot_dimension_numbers<[1], [0], [0], [1], [0, 0, 1, 1], [], []>} : vector<32x128xf32>, vector<128x32xf32>, vector<32x32xf32> -> vector<32x32xf32>
    %c0_104 = arith.constant 0 : index
    %c2_105 = arith.constant 2 : index
    %c0_106 = arith.constant 0 : index
    %c0_107 = arith.constant 0 : index
    %127 = vector.load %arg9[%c0_104, %c2_105, %c0_106, %c0_107] : memref<2x4x1x32xf32, #tpu.memory_space<vmem>>, vector<1x1x1x32xf32>
    %128 = vector.shape_cast %127 : vector<1x1x1x32xf32> to vector<1x32xf32>
    %129 = vector.broadcast %128 : vector<1x32xf32> to vector<32x32xf32>
    %130 = arith.addf %126, %129 : vector<32x32xf32>
    %c0_108 = arith.constant 0 : index
    %c2_109 = arith.constant 2 : index
    %c0_110 = arith.constant 0 : index
    %c0_111 = arith.constant 0 : index
    %131 = vector.load %arg10[%c0_108, %c2_109, %c0_110, %c0_111] : memref<2x4x128x32xf32, #tpu.memory_space<vmem>>, vector<1x1x128x32xf32>
    %132 = vector.shape_cast %131 : vector<1x1x128x32xf32> to vector<128x32xf32>
    %cst_112 = arith.constant dense<0.000000e+00> : vector<32x32xf32>
    %133 = tpu.matmul %28, %132, %cst_112 {dimension_numbers = #tpu.dot_dimension_numbers<[1], [0], [0], [1], [0, 0, 1, 1], [], []>} : vector<32x128xf32>, vector<128x32xf32>, vector<32x32xf32> -> vector<32x32xf32>
    %c0_113 = arith.constant 0 : index
    %c2_114 = arith.constant 2 : index
    %c0_115 = arith.constant 0 : index
    %c0_116 = arith.constant 0 : index
    %134 = vector.load %arg11[%c0_113, %c2_114, %c0_115, %c0_116] : memref<2x4x1x32xf32, #tpu.memory_space<vmem>>, vector<1x1x1x32xf32>
    %135 = vector.shape_cast %134 : vector<1x1x1x32xf32> to vector<1x32xf32>
    %136 = vector.broadcast %135 : vector<1x32xf32> to vector<32x32xf32>
    %137 = arith.addf %133, %136 : vector<32x32xf32>
    %138 = vector.shape_cast %123 : vector<32x32xf32> to vector<2x16x32xf32>
    %139 = vector.shape_cast %130 : vector<32x32xf32> to vector<2x16x32xf32>
    %140 = vector.shape_cast %137 : vector<32x32xf32> to vector<2x16x32xf32>
    "tpu.trace_start"() <{level = 10 : i32, message = "bqd,bkd->bqk"}> : () -> ()
    %cst_117 = arith.constant dense<0.000000e+00> : vector<2x16x16xf32>
    %141 = tpu.matmul %138, %139, %cst_117 {dimension_numbers = #tpu.dot_dimension_numbers<[2], [2], [1], [1], [0, 0, 0, 1, 1, 1], [0], [0]>} : vector<2x16x32xf32>, vector<2x16x32xf32>, vector<2x16x16xf32> -> vector<2x16x16xf32>
    "tpu.trace_stop"() : () -> ()
    %cst_118 = arith.constant 0.176776692 : f32
    %142 = vector.broadcast %cst_118 : f32 to vector<2x16x16xf32>
    %143 = arith.mulf %141, %142 : vector<2x16x16xf32>
    %144 = vector.broadcast %29 : vector<2x1x16xf32> to vector<2x16x16xf32>
    %145 = arith.addf %143, %144 : vector<2x16x16xf32>
    %cst_119 = arith.constant dense<0xFF800000> : vector<2x16xf32>
    %146 = vector.multi_reduction <maximumf>, %145, %cst_119 [2] : vector<2x16x16xf32> to vector<2x16xf32>
    %147 = vector.shape_cast %146 : vector<2x16xf32> to vector<2x16x1xf32>
    %148 = vector.broadcast %147 : vector<2x16x1xf32> to vector<2x16x16xf32>
    %149 = arith.subf %145, %148 : vector<2x16x16xf32>
    %150 = math.exp %149 : vector<2x16x16xf32>
    %cst_120 = arith.constant dense<0.000000e+00> : vector<2x16xf32>
    %151 = vector.multi_reduction <add>, %150, %cst_120 [2] : vector<2x16x16xf32> to vector<2x16xf32>
    %152 = vector.shape_cast %151 : vector<2x16xf32> to vector<2x16x1xf32>
    %153 = vector.broadcast %152 : vector<2x16x1xf32> to vector<2x16x16xf32>
    %154 = arith.divf %150, %153 : vector<2x16x16xf32>
    "tpu.trace_start"() <{level = 10 : i32, message = "bqk,bkd->bqd"}> : () -> ()
    %cst_121 = arith.constant dense<0.000000e+00> : vector<2x16x32xf32>
    %155 = tpu.matmul %154, %140, %cst_121 {dimension_numbers = #tpu.dot_dimension_numbers<[2], [1], [1], [2], [0, 0, 0, 1, 1, 2], [0], [0]>} : vector<2x16x16xf32>, vector<2x16x32xf32>, vector<2x16x32xf32> -> vector<2x16x32xf32>
    "tpu.trace_stop"() : () -> ()
    %156 = vector.shape_cast %155 : vector<2x16x32xf32> to vector<32x32xf32>
    %c0_122 = arith.constant 0 : index
    %c2_123 = arith.constant 2 : index
    %c0_124 = arith.constant 0 : index
    %c0_125 = arith.constant 0 : index
    %157 = vector.load %arg12[%c0_122, %c2_123, %c0_124, %c0_125] : memref<2x4x32x128xf32, #tpu.memory_space<vmem>>, vector<1x1x32x128xf32>
    %158 = vector.shape_cast %157 : vector<1x1x32x128xf32> to vector<32x128xf32>
    %cst_126 = arith.constant dense<0.000000e+00> : vector<32x128xf32>
    %159 = tpu.matmul %156, %158, %cst_126 {dimension_numbers = #tpu.dot_dimension_numbers<[1], [0], [0], [1], [0, 0, 1, 1], [], []>} : vector<32x32xf32>, vector<32x128xf32>, vector<32x128xf32> -> vector<32x128xf32>
    %160 = arith.addf %116, %159 : vector<32x128xf32>
    %c0_127 = arith.constant 0 : index
    %c3 = arith.constant 3 : index
    %c0_128 = arith.constant 0 : index
    %c0_129 = arith.constant 0 : index
    %161 = vector.load %arg6[%c0_127, %c3, %c0_128, %c0_129] : memref<2x4x128x32xf32, #tpu.memory_space<vmem>>, vector<1x1x128x32xf32>
    %162 = vector.shape_cast %161 : vector<1x1x128x32xf32> to vector<128x32xf32>
    %cst_130 = arith.constant dense<0.000000e+00> : vector<32x32xf32>
    %163 = tpu.matmul %28, %162, %cst_130 {dimension_numbers = #tpu.dot_dimension_numbers<[1], [0], [0], [1], [0, 0, 1, 1], [], []>} : vector<32x128xf32>, vector<128x32xf32>, vector<32x32xf32> -> vector<32x32xf32>
    %c0_131 = arith.constant 0 : index
    %c3_132 = arith.constant 3 : index
    %c0_133 = arith.constant 0 : index
    %c0_134 = arith.constant 0 : index
    %164 = vector.load %arg7[%c0_131, %c3_132, %c0_133, %c0_134] : memref<2x4x1x32xf32, #tpu.memory_space<vmem>>, vector<1x1x1x32xf32>
    %165 = vector.shape_cast %164 : vector<1x1x1x32xf32> to vector<1x32xf32>
    %166 = vector.broadcast %165 : vector<1x32xf32> to vector<32x32xf32>
    %167 = arith.addf %163, %166 : vector<32x32xf32>
    %c0_135 = arith.constant 0 : index
    %c3_136 = arith.constant 3 : index
    %c0_137 = arith.constant 0 : index
    %c0_138 = arith.constant 0 : index
    %168 = vector.load %arg8[%c0_135, %c3_136, %c0_137, %c0_138] : memref<2x4x128x32xf32, #tpu.memory_space<vmem>>, vector<1x1x128x32xf32>
    %169 = vector.shape_cast %168 : vector<1x1x128x32xf32> to vector<128x32xf32>
    %cst_139 = arith.constant dense<0.000000e+00> : vector<32x32xf32>
    %170 = tpu.matmul %28, %169, %cst_139 {dimension_numbers = #tpu.dot_dimension_numbers<[1], [0], [0], [1], [0, 0, 1, 1], [], []>} : vector<32x128xf32>, vector<128x32xf32>, vector<32x32xf32> -> vector<32x32xf32>
    %c0_140 = arith.constant 0 : index
    %c3_141 = arith.constant 3 : index
    %c0_142 = arith.constant 0 : index
    %c0_143 = arith.constant 0 : index
    %171 = vector.load %arg9[%c0_140, %c3_141, %c0_142, %c0_143] : memref<2x4x1x32xf32, #tpu.memory_space<vmem>>, vector<1x1x1x32xf32>
    %172 = vector.shape_cast %171 : vector<1x1x1x32xf32> to vector<1x32xf32>
    %173 = vector.broadcast %172 : vector<1x32xf32> to vector<32x32xf32>
    %174 = arith.addf %170, %173 : vector<32x32xf32>
    %c0_144 = arith.constant 0 : index
    %c3_145 = arith.constant 3 : index
    %c0_146 = arith.constant 0 : index
    %c0_147 = arith.constant 0 : index
    %175 = vector.load %arg10[%c0_144, %c3_145, %c0_146, %c0_147] : memref<2x4x128x32xf32, #tpu.memory_space<vmem>>, vector<1x1x128x32xf32>
    %176 = vector.shape_cast %175 : vector<1x1x128x32xf32> to vector<128x32xf32>
    %cst_148 = arith.constant dense<0.000000e+00> : vector<32x32xf32>
    %177 = tpu.matmul %28, %176, %cst_148 {dimension_numbers = #tpu.dot_dimension_numbers<[1], [0], [0], [1], [0, 0, 1, 1], [], []>} : vector<32x128xf32>, vector<128x32xf32>, vector<32x32xf32> -> vector<32x32xf32>
    %c0_149 = arith.constant 0 : index
    %c3_150 = arith.constant 3 : index
    %c0_151 = arith.constant 0 : index
    %c0_152 = arith.constant 0 : index
    %178 = vector.load %arg11[%c0_149, %c3_150, %c0_151, %c0_152] : memref<2x4x1x32xf32, #tpu.memory_space<vmem>>, vector<1x1x1x32xf32>
    %179 = vector.shape_cast %178 : vector<1x1x1x32xf32> to vector<1x32xf32>
    %180 = vector.broadcast %179 : vector<1x32xf32> to vector<32x32xf32>
    %181 = arith.addf %177, %180 : vector<32x32xf32>
    %182 = vector.shape_cast %167 : vector<32x32xf32> to vector<2x16x32xf32>
    %183 = vector.shape_cast %174 : vector<32x32xf32> to vector<2x16x32xf32>
    %184 = vector.shape_cast %181 : vector<32x32xf32> to vector<2x16x32xf32>
    "tpu.trace_start"() <{level = 10 : i32, message = "bqd,bkd->bqk"}> : () -> ()
    %cst_153 = arith.constant dense<0.000000e+00> : vector<2x16x16xf32>
    %185 = tpu.matmul %182, %183, %cst_153 {dimension_numbers = #tpu.dot_dimension_numbers<[2], [2], [1], [1], [0, 0, 0, 1, 1, 1], [0], [0]>} : vector<2x16x32xf32>, vector<2x16x32xf32>, vector<2x16x16xf32> -> vector<2x16x16xf32>
    "tpu.trace_stop"() : () -> ()
    %cst_154 = arith.constant 0.176776692 : f32
    %186 = vector.broadcast %cst_154 : f32 to vector<2x16x16xf32>
    %187 = arith.mulf %185, %186 : vector<2x16x16xf32>
    %188 = vector.broadcast %29 : vector<2x1x16xf32> to vector<2x16x16xf32>
    %189 = arith.addf %187, %188 : vector<2x16x16xf32>
    %cst_155 = arith.constant dense<0xFF800000> : vector<2x16xf32>
    %190 = vector.multi_reduction <maximumf>, %189, %cst_155 [2] : vector<2x16x16xf32> to vector<2x16xf32>
    %191 = vector.shape_cast %190 : vector<2x16xf32> to vector<2x16x1xf32>
    %192 = vector.broadcast %191 : vector<2x16x1xf32> to vector<2x16x16xf32>
    %193 = arith.subf %189, %192 : vector<2x16x16xf32>
    %194 = math.exp %193 : vector<2x16x16xf32>
    %cst_156 = arith.constant dense<0.000000e+00> : vector<2x16xf32>
    %195 = vector.multi_reduction <add>, %194, %cst_156 [2] : vector<2x16x16xf32> to vector<2x16xf32>
    %196 = vector.shape_cast %195 : vector<2x16xf32> to vector<2x16x1xf32>
    %197 = vector.broadcast %196 : vector<2x16x1xf32> to vector<2x16x16xf32>
    %198 = arith.divf %194, %197 : vector<2x16x16xf32>
    "tpu.trace_start"() <{level = 10 : i32, message = "bqk,bkd->bqd"}> : () -> ()
    %cst_157 = arith.constant dense<0.000000e+00> : vector<2x16x32xf32>
    %199 = tpu.matmul %198, %184, %cst_157 {dimension_numbers = #tpu.dot_dimension_numbers<[2], [1], [1], [2], [0, 0, 0, 1, 1, 2], [0], [0]>} : vector<2x16x16xf32>, vector<2x16x32xf32>, vector<2x16x32xf32> -> vector<2x16x32xf32>
    "tpu.trace_stop"() : () -> ()
    %200 = vector.shape_cast %199 : vector<2x16x32xf32> to vector<32x32xf32>
    %c0_158 = arith.constant 0 : index
    %c3_159 = arith.constant 3 : index
    %c0_160 = arith.constant 0 : index
    %c0_161 = arith.constant 0 : index
    %201 = vector.load %arg12[%c0_158, %c3_159, %c0_160, %c0_161] : memref<2x4x32x128xf32, #tpu.memory_space<vmem>>, vector<1x1x32x128xf32>
    %202 = vector.shape_cast %201 : vector<1x1x32x128xf32> to vector<32x128xf32>
    %cst_162 = arith.constant dense<0.000000e+00> : vector<32x128xf32>
    %203 = tpu.matmul %200, %202, %cst_162 {dimension_numbers = #tpu.dot_dimension_numbers<[1], [0], [0], [1], [0, 0, 1, 1], [], []>} : vector<32x32xf32>, vector<32x128xf32>, vector<32x128xf32> -> vector<32x128xf32>
    %204 = arith.addf %160, %203 : vector<32x128xf32>
    %c0_163 = arith.constant 0 : index
    %c0_164 = arith.constant 0 : index
    %c0_165 = arith.constant 0 : index
    %205 = vector.load %arg13[%c0_163, %c0_164, %c0_165] : memref<2x1x128xf32, #tpu.memory_space<vmem>>, vector<1x1x128xf32>
    %206 = vector.shape_cast %205 : vector<1x1x128xf32> to vector<1x128xf32>
    %207 = vector.broadcast %206 : vector<1x128xf32> to vector<32x128xf32>
    %208 = arith.addf %204, %207 : vector<32x128xf32>
    %209 = arith.addf %28, %208 : vector<32x128xf32>
    %c0_166 = arith.constant 0 : index
    %c0_167 = arith.constant 0 : index
    %c0_168 = arith.constant 0 : index
    %210 = vector.load %arg18[%c0_166, %c0_167, %c0_168] : memref<2x1x128xf32, #tpu.memory_space<vmem>>, vector<1x1x128xf32>
    %211 = vector.shape_cast %210 : vector<1x1x128xf32> to vector<1x128xf32>
    %c0_169 = arith.constant 0 : index
    %c0_170 = arith.constant 0 : index
    %c0_171 = arith.constant 0 : index
    %212 = vector.load %arg19[%c0_169, %c0_170, %c0_171] : memref<2x1x128xf32, #tpu.memory_space<vmem>>, vector<1x1x128xf32>
    %213 = vector.shape_cast %212 : vector<1x1x128xf32> to vector<1x128xf32>
    %cst_172 = arith.constant dense<0.000000e+00> : vector<32xf32>
    %214 = vector.multi_reduction <add>, %209, %cst_172 [1] : vector<32x128xf32> to vector<32xf32>
    %215 = vector.shape_cast %214 : vector<32xf32> to vector<32x1xf32>
    %cst_173 = arith.constant 1.280000e+02 : f32
    %216 = vector.broadcast %cst_173 : f32 to vector<32x1xf32>
    %217 = arith.divf %215, %216 : vector<32x1xf32>
    %218 = vector.broadcast %217 : vector<32x1xf32> to vector<32x128xf32>
    %219 = arith.subf %209, %218 : vector<32x128xf32>
    %220 = arith.mulf %219, %219 : vector<32x128xf32>
    %cst_174 = arith.constant dense<0.000000e+00> : vector<32xf32>
    %221 = vector.multi_reduction <add>, %220, %cst_174 [1] : vector<32x128xf32> to vector<32xf32>
    %222 = vector.shape_cast %221 : vector<32xf32> to vector<32x1xf32>
    %cst_175 = arith.constant 1.280000e+02 : f32
    %223 = vector.broadcast %cst_175 : f32 to vector<32x1xf32>
    %224 = arith.divf %222, %223 : vector<32x1xf32>
    %cst_176 = arith.constant 9.99999974E-6 : f32
    %225 = vector.broadcast %cst_176 : f32 to vector<32x1xf32>
    %226 = arith.addf %224, %225 : vector<32x1xf32>
    %227 = math.rsqrt %226 : vector<32x1xf32>
    %228 = vector.broadcast %227 : vector<32x1xf32> to vector<32x128xf32>
    %229 = arith.mulf %219, %228 : vector<32x128xf32>
    %230 = vector.broadcast %211 : vector<1x128xf32> to vector<32x128xf32>
    %231 = arith.mulf %229, %230 : vector<32x128xf32>
    %232 = vector.broadcast %213 : vector<1x128xf32> to vector<32x128xf32>
    %233 = arith.addf %231, %232 : vector<32x128xf32>
    %c0_177 = arith.constant 0 : index
    %c0_178 = arith.constant 0 : index
    %c0_179 = arith.constant 0 : index
    %234 = vector.load %arg14[%c0_177, %c0_178, %c0_179] : memref<2x128x256xf32, #tpu.memory_space<vmem>>, vector<1x128x256xf32>
    %235 = vector.shape_cast %234 : vector<1x128x256xf32> to vector<128x256xf32>
    %cst_180 = arith.constant dense<0.000000e+00> : vector<32x256xf32>
    %236 = tpu.matmul %233, %235, %cst_180 {dimension_numbers = #tpu.dot_dimension_numbers<[1], [0], [0], [1], [0, 0, 1, 1], [], []>} : vector<32x128xf32>, vector<128x256xf32>, vector<32x256xf32> -> vector<32x256xf32>
    %c0_181 = arith.constant 0 : index
    %c0_182 = arith.constant 0 : index
    %c0_183 = arith.constant 0 : index
    %237 = vector.load %arg15[%c0_181, %c0_182, %c0_183] : memref<2x1x256xf32, #tpu.memory_space<vmem>>, vector<1x1x256xf32>
    %238 = vector.shape_cast %237 : vector<1x1x256xf32> to vector<1x256xf32>
    %239 = vector.broadcast %238 : vector<1x256xf32> to vector<32x256xf32>
    %240 = arith.addf %236, %239 : vector<32x256xf32>
    %cst_184 = arith.constant 0.000000e+00 : f32
    %241 = vector.broadcast %cst_184 : f32 to vector<32x256xf32>
    %242 = arith.maximumf %240, %241 : vector<32x256xf32>
    %c0_185 = arith.constant 0 : index
    %c0_186 = arith.constant 0 : index
    %c0_187 = arith.constant 0 : index
    %243 = vector.load %arg16[%c0_185, %c0_186, %c0_187] : memref<2x256x128xf32, #tpu.memory_space<vmem>>, vector<1x256x128xf32>
    %244 = vector.shape_cast %243 : vector<1x256x128xf32> to vector<256x128xf32>
    %cst_188 = arith.constant dense<0.000000e+00> : vector<32x128xf32>
    %245 = tpu.matmul %242, %244, %cst_188 {dimension_numbers = #tpu.dot_dimension_numbers<[1], [0], [0], [1], [0, 0, 1, 1], [], []>} : vector<32x256xf32>, vector<256x128xf32>, vector<32x128xf32> -> vector<32x128xf32>
    %c0_189 = arith.constant 0 : index
    %c0_190 = arith.constant 0 : index
    %c0_191 = arith.constant 0 : index
    %246 = vector.load %arg17[%c0_189, %c0_190, %c0_191] : memref<2x1x128xf32, #tpu.memory_space<vmem>>, vector<1x1x128xf32>
    %247 = vector.shape_cast %246 : vector<1x1x128xf32> to vector<1x128xf32>
    %248 = vector.broadcast %247 : vector<1x128xf32> to vector<32x128xf32>
    %249 = arith.addf %245, %248 : vector<32x128xf32>
    %250 = arith.addf %233, %249 : vector<32x128xf32>
    %c0_192 = arith.constant 0 : index
    %c0_193 = arith.constant 0 : index
    %c0_194 = arith.constant 0 : index
    %251 = vector.load %arg20[%c0_192, %c0_193, %c0_194] : memref<2x1x128xf32, #tpu.memory_space<vmem>>, vector<1x1x128xf32>
    %252 = vector.shape_cast %251 : vector<1x1x128xf32> to vector<1x128xf32>
    %c0_195 = arith.constant 0 : index
    %c0_196 = arith.constant 0 : index
    %c0_197 = arith.constant 0 : index
    %253 = vector.load %arg21[%c0_195, %c0_196, %c0_197] : memref<2x1x128xf32, #tpu.memory_space<vmem>>, vector<1x1x128xf32>
    %254 = vector.shape_cast %253 : vector<1x1x128xf32> to vector<1x128xf32>
    %cst_198 = arith.constant dense<0.000000e+00> : vector<32xf32>
    %255 = vector.multi_reduction <add>, %250, %cst_198 [1] : vector<32x128xf32> to vector<32xf32>
    %256 = vector.shape_cast %255 : vector<32xf32> to vector<32x1xf32>
    %cst_199 = arith.constant 1.280000e+02 : f32
    %257 = vector.broadcast %cst_199 : f32 to vector<32x1xf32>
    %258 = arith.divf %256, %257 : vector<32x1xf32>
    %259 = vector.broadcast %258 : vector<32x1xf32> to vector<32x128xf32>
    %260 = arith.subf %250, %259 : vector<32x128xf32>
    %261 = arith.mulf %260, %260 : vector<32x128xf32>
    %cst_200 = arith.constant dense<0.000000e+00> : vector<32xf32>
    %262 = vector.multi_reduction <add>, %261, %cst_200 [1] : vector<32x128xf32> to vector<32xf32>
    %263 = vector.shape_cast %262 : vector<32xf32> to vector<32x1xf32>
    %cst_201 = arith.constant 1.280000e+02 : f32
    %264 = vector.broadcast %cst_201 : f32 to vector<32x1xf32>
    %265 = arith.divf %263, %264 : vector<32x1xf32>
    %cst_202 = arith.constant 9.99999974E-6 : f32
    %266 = vector.broadcast %cst_202 : f32 to vector<32x1xf32>
    %267 = arith.addf %265, %266 : vector<32x1xf32>
    %268 = math.rsqrt %267 : vector<32x1xf32>
    %269 = vector.broadcast %268 : vector<32x1xf32> to vector<32x128xf32>
    %270 = arith.mulf %260, %269 : vector<32x128xf32>
    %271 = vector.broadcast %252 : vector<1x128xf32> to vector<32x128xf32>
    %272 = arith.mulf %270, %271 : vector<32x128xf32>
    %273 = vector.broadcast %254 : vector<1x128xf32> to vector<32x128xf32>
    %274 = arith.addf %272, %273 : vector<32x128xf32>
    %c1_203 = arith.constant 1 : index
    %c0_204 = arith.constant 0 : index
    %c0_205 = arith.constant 0 : index
    %c0_206 = arith.constant 0 : index
    %275 = vector.load %arg6[%c1_203, %c0_204, %c0_205, %c0_206] : memref<2x4x128x32xf32, #tpu.memory_space<vmem>>, vector<1x1x128x32xf32>
    %276 = vector.shape_cast %275 : vector<1x1x128x32xf32> to vector<128x32xf32>
    %cst_207 = arith.constant dense<0.000000e+00> : vector<32x32xf32>
    %277 = tpu.matmul %274, %276, %cst_207 {dimension_numbers = #tpu.dot_dimension_numbers<[1], [0], [0], [1], [0, 0, 1, 1], [], []>} : vector<32x128xf32>, vector<128x32xf32>, vector<32x32xf32> -> vector<32x32xf32>
    %c1_208 = arith.constant 1 : index
    %c0_209 = arith.constant 0 : index
    %c0_210 = arith.constant 0 : index
    %c0_211 = arith.constant 0 : index
    %278 = vector.load %arg7[%c1_208, %c0_209, %c0_210, %c0_211] : memref<2x4x1x32xf32, #tpu.memory_space<vmem>>, vector<1x1x1x32xf32>
    %279 = vector.shape_cast %278 : vector<1x1x1x32xf32> to vector<1x32xf32>
    %280 = vector.broadcast %279 : vector<1x32xf32> to vector<32x32xf32>
    %281 = arith.addf %277, %280 : vector<32x32xf32>
    %c1_212 = arith.constant 1 : index
    %c0_213 = arith.constant 0 : index
    %c0_214 = arith.constant 0 : index
    %c0_215 = arith.constant 0 : index
    %282 = vector.load %arg8[%c1_212, %c0_213, %c0_214, %c0_215] : memref<2x4x128x32xf32, #tpu.memory_space<vmem>>, vector<1x1x128x32xf32>
    %283 = vector.shape_cast %282 : vector<1x1x128x32xf32> to vector<128x32xf32>
    %cst_216 = arith.constant dense<0.000000e+00> : vector<32x32xf32>
    %284 = tpu.matmul %274, %283, %cst_216 {dimension_numbers = #tpu.dot_dimension_numbers<[1], [0], [0], [1], [0, 0, 1, 1], [], []>} : vector<32x128xf32>, vector<128x32xf32>, vector<32x32xf32> -> vector<32x32xf32>
    %c1_217 = arith.constant 1 : index
    %c0_218 = arith.constant 0 : index
    %c0_219 = arith.constant 0 : index
    %c0_220 = arith.constant 0 : index
    %285 = vector.load %arg9[%c1_217, %c0_218, %c0_219, %c0_220] : memref<2x4x1x32xf32, #tpu.memory_space<vmem>>, vector<1x1x1x32xf32>
    %286 = vector.shape_cast %285 : vector<1x1x1x32xf32> to vector<1x32xf32>
    %287 = vector.broadcast %286 : vector<1x32xf32> to vector<32x32xf32>
    %288 = arith.addf %284, %287 : vector<32x32xf32>
    %c1_221 = arith.constant 1 : index
    %c0_222 = arith.constant 0 : index
    %c0_223 = arith.constant 0 : index
    %c0_224 = arith.constant 0 : index
    %289 = vector.load %arg10[%c1_221, %c0_222, %c0_223, %c0_224] : memref<2x4x128x32xf32, #tpu.memory_space<vmem>>, vector<1x1x128x32xf32>
    %290 = vector.shape_cast %289 : vector<1x1x128x32xf32> to vector<128x32xf32>
    %cst_225 = arith.constant dense<0.000000e+00> : vector<32x32xf32>
    %291 = tpu.matmul %274, %290, %cst_225 {dimension_numbers = #tpu.dot_dimension_numbers<[1], [0], [0], [1], [0, 0, 1, 1], [], []>} : vector<32x128xf32>, vector<128x32xf32>, vector<32x32xf32> -> vector<32x32xf32>
    %c1_226 = arith.constant 1 : index
    %c0_227 = arith.constant 0 : index
    %c0_228 = arith.constant 0 : index
    %c0_229 = arith.constant 0 : index
    %292 = vector.load %arg11[%c1_226, %c0_227, %c0_228, %c0_229] : memref<2x4x1x32xf32, #tpu.memory_space<vmem>>, vector<1x1x1x32xf32>
    %293 = vector.shape_cast %292 : vector<1x1x1x32xf32> to vector<1x32xf32>
    %294 = vector.broadcast %293 : vector<1x32xf32> to vector<32x32xf32>
    %295 = arith.addf %291, %294 : vector<32x32xf32>
    %296 = vector.shape_cast %281 : vector<32x32xf32> to vector<2x16x32xf32>
    %297 = vector.shape_cast %288 : vector<32x32xf32> to vector<2x16x32xf32>
    %298 = vector.shape_cast %295 : vector<32x32xf32> to vector<2x16x32xf32>
    "tpu.trace_start"() <{level = 10 : i32, message = "bqd,bkd->bqk"}> : () -> ()
    %cst_230 = arith.constant dense<0.000000e+00> : vector<2x16x16xf32>
    %299 = tpu.matmul %296, %297, %cst_230 {dimension_numbers = #tpu.dot_dimension_numbers<[2], [2], [1], [1], [0, 0, 0, 1, 1, 1], [0], [0]>} : vector<2x16x32xf32>, vector<2x16x32xf32>, vector<2x16x16xf32> -> vector<2x16x16xf32>
    "tpu.trace_stop"() : () -> ()
    %cst_231 = arith.constant 0.176776692 : f32
    %300 = vector.broadcast %cst_231 : f32 to vector<2x16x16xf32>
    %301 = arith.mulf %299, %300 : vector<2x16x16xf32>
    %302 = vector.broadcast %29 : vector<2x1x16xf32> to vector<2x16x16xf32>
    %303 = arith.addf %301, %302 : vector<2x16x16xf32>
    %cst_232 = arith.constant dense<0xFF800000> : vector<2x16xf32>
    %304 = vector.multi_reduction <maximumf>, %303, %cst_232 [2] : vector<2x16x16xf32> to vector<2x16xf32>
    %305 = vector.shape_cast %304 : vector<2x16xf32> to vector<2x16x1xf32>
    %306 = vector.broadcast %305 : vector<2x16x1xf32> to vector<2x16x16xf32>
    %307 = arith.subf %303, %306 : vector<2x16x16xf32>
    %308 = math.exp %307 : vector<2x16x16xf32>
    %cst_233 = arith.constant dense<0.000000e+00> : vector<2x16xf32>
    %309 = vector.multi_reduction <add>, %308, %cst_233 [2] : vector<2x16x16xf32> to vector<2x16xf32>
    %310 = vector.shape_cast %309 : vector<2x16xf32> to vector<2x16x1xf32>
    %311 = vector.broadcast %310 : vector<2x16x1xf32> to vector<2x16x16xf32>
    %312 = arith.divf %308, %311 : vector<2x16x16xf32>
    "tpu.trace_start"() <{level = 10 : i32, message = "bqk,bkd->bqd"}> : () -> ()
    %cst_234 = arith.constant dense<0.000000e+00> : vector<2x16x32xf32>
    %313 = tpu.matmul %312, %298, %cst_234 {dimension_numbers = #tpu.dot_dimension_numbers<[2], [1], [1], [2], [0, 0, 0, 1, 1, 2], [0], [0]>} : vector<2x16x16xf32>, vector<2x16x32xf32>, vector<2x16x32xf32> -> vector<2x16x32xf32>
    "tpu.trace_stop"() : () -> ()
    %314 = vector.shape_cast %313 : vector<2x16x32xf32> to vector<32x32xf32>
    %c1_235 = arith.constant 1 : index
    %c0_236 = arith.constant 0 : index
    %c0_237 = arith.constant 0 : index
    %c0_238 = arith.constant 0 : index
    %315 = vector.load %arg12[%c1_235, %c0_236, %c0_237, %c0_238] : memref<2x4x32x128xf32, #tpu.memory_space<vmem>>, vector<1x1x32x128xf32>
    %316 = vector.shape_cast %315 : vector<1x1x32x128xf32> to vector<32x128xf32>
    %cst_239 = arith.constant dense<0.000000e+00> : vector<32x128xf32>
    %317 = tpu.matmul %314, %316, %cst_239 {dimension_numbers = #tpu.dot_dimension_numbers<[1], [0], [0], [1], [0, 0, 1, 1], [], []>} : vector<32x32xf32>, vector<32x128xf32>, vector<32x128xf32> -> vector<32x128xf32>
    %c1_240 = arith.constant 1 : index
    %c1_241 = arith.constant 1 : index
    %c0_242 = arith.constant 0 : index
    %c0_243 = arith.constant 0 : index
    %318 = vector.load %arg6[%c1_240, %c1_241, %c0_242, %c0_243] : memref<2x4x128x32xf32, #tpu.memory_space<vmem>>, vector<1x1x128x32xf32>
    %319 = vector.shape_cast %318 : vector<1x1x128x32xf32> to vector<128x32xf32>
    %cst_244 = arith.constant dense<0.000000e+00> : vector<32x32xf32>
    %320 = tpu.matmul %274, %319, %cst_244 {dimension_numbers = #tpu.dot_dimension_numbers<[1], [0], [0], [1], [0, 0, 1, 1], [], []>} : vector<32x128xf32>, vector<128x32xf32>, vector<32x32xf32> -> vector<32x32xf32>
    %c1_245 = arith.constant 1 : index
    %c1_246 = arith.constant 1 : index
    %c0_247 = arith.constant 0 : index
    %c0_248 = arith.constant 0 : index
    %321 = vector.load %arg7[%c1_245, %c1_246, %c0_247, %c0_248] : memref<2x4x1x32xf32, #tpu.memory_space<vmem>>, vector<1x1x1x32xf32>
    %322 = vector.shape_cast %321 : vector<1x1x1x32xf32> to vector<1x32xf32>
    %323 = vector.broadcast %322 : vector<1x32xf32> to vector<32x32xf32>
    %324 = arith.addf %320, %323 : vector<32x32xf32>
    %c1_249 = arith.constant 1 : index
    %c1_250 = arith.constant 1 : index
    %c0_251 = arith.constant 0 : index
    %c0_252 = arith.constant 0 : index
    %325 = vector.load %arg8[%c1_249, %c1_250, %c0_251, %c0_252] : memref<2x4x128x32xf32, #tpu.memory_space<vmem>>, vector<1x1x128x32xf32>
    %326 = vector.shape_cast %325 : vector<1x1x128x32xf32> to vector<128x32xf32>
    %cst_253 = arith.constant dense<0.000000e+00> : vector<32x32xf32>
    %327 = tpu.matmul %274, %326, %cst_253 {dimension_numbers = #tpu.dot_dimension_numbers<[1], [0], [0], [1], [0, 0, 1, 1], [], []>} : vector<32x128xf32>, vector<128x32xf32>, vector<32x32xf32> -> vector<32x32xf32>
    %c1_254 = arith.constant 1 : index
    %c1_255 = arith.constant 1 : index
    %c0_256 = arith.constant 0 : index
    %c0_257 = arith.constant 0 : index
    %328 = vector.load %arg9[%c1_254, %c1_255, %c0_256, %c0_257] : memref<2x4x1x32xf32, #tpu.memory_space<vmem>>, vector<1x1x1x32xf32>
    %329 = vector.shape_cast %328 : vector<1x1x1x32xf32> to vector<1x32xf32>
    %330 = vector.broadcast %329 : vector<1x32xf32> to vector<32x32xf32>
    %331 = arith.addf %327, %330 : vector<32x32xf32>
    %c1_258 = arith.constant 1 : index
    %c1_259 = arith.constant 1 : index
    %c0_260 = arith.constant 0 : index
    %c0_261 = arith.constant 0 : index
    %332 = vector.load %arg10[%c1_258, %c1_259, %c0_260, %c0_261] : memref<2x4x128x32xf32, #tpu.memory_space<vmem>>, vector<1x1x128x32xf32>
    %333 = vector.shape_cast %332 : vector<1x1x128x32xf32> to vector<128x32xf32>
    %cst_262 = arith.constant dense<0.000000e+00> : vector<32x32xf32>
    %334 = tpu.matmul %274, %333, %cst_262 {dimension_numbers = #tpu.dot_dimension_numbers<[1], [0], [0], [1], [0, 0, 1, 1], [], []>} : vector<32x128xf32>, vector<128x32xf32>, vector<32x32xf32> -> vector<32x32xf32>
    %c1_263 = arith.constant 1 : index
    %c1_264 = arith.constant 1 : index
    %c0_265 = arith.constant 0 : index
    %c0_266 = arith.constant 0 : index
    %335 = vector.load %arg11[%c1_263, %c1_264, %c0_265, %c0_266] : memref<2x4x1x32xf32, #tpu.memory_space<vmem>>, vector<1x1x1x32xf32>
    %336 = vector.shape_cast %335 : vector<1x1x1x32xf32> to vector<1x32xf32>
    %337 = vector.broadcast %336 : vector<1x32xf32> to vector<32x32xf32>
    %338 = arith.addf %334, %337 : vector<32x32xf32>
    %339 = vector.shape_cast %324 : vector<32x32xf32> to vector<2x16x32xf32>
    %340 = vector.shape_cast %331 : vector<32x32xf32> to vector<2x16x32xf32>
    %341 = vector.shape_cast %338 : vector<32x32xf32> to vector<2x16x32xf32>
    "tpu.trace_start"() <{level = 10 : i32, message = "bqd,bkd->bqk"}> : () -> ()
    %cst_267 = arith.constant dense<0.000000e+00> : vector<2x16x16xf32>
    %342 = tpu.matmul %339, %340, %cst_267 {dimension_numbers = #tpu.dot_dimension_numbers<[2], [2], [1], [1], [0, 0, 0, 1, 1, 1], [0], [0]>} : vector<2x16x32xf32>, vector<2x16x32xf32>, vector<2x16x16xf32> -> vector<2x16x16xf32>
    "tpu.trace_stop"() : () -> ()
    %cst_268 = arith.constant 0.176776692 : f32
    %343 = vector.broadcast %cst_268 : f32 to vector<2x16x16xf32>
    %344 = arith.mulf %342, %343 : vector<2x16x16xf32>
    %345 = vector.broadcast %29 : vector<2x1x16xf32> to vector<2x16x16xf32>
    %346 = arith.addf %344, %345 : vector<2x16x16xf32>
    %cst_269 = arith.constant dense<0xFF800000> : vector<2x16xf32>
    %347 = vector.multi_reduction <maximumf>, %346, %cst_269 [2] : vector<2x16x16xf32> to vector<2x16xf32>
    %348 = vector.shape_cast %347 : vector<2x16xf32> to vector<2x16x1xf32>
    %349 = vector.broadcast %348 : vector<2x16x1xf32> to vector<2x16x16xf32>
    %350 = arith.subf %346, %349 : vector<2x16x16xf32>
    %351 = math.exp %350 : vector<2x16x16xf32>
    %cst_270 = arith.constant dense<0.000000e+00> : vector<2x16xf32>
    %352 = vector.multi_reduction <add>, %351, %cst_270 [2] : vector<2x16x16xf32> to vector<2x16xf32>
    %353 = vector.shape_cast %352 : vector<2x16xf32> to vector<2x16x1xf32>
    %354 = vector.broadcast %353 : vector<2x16x1xf32> to vector<2x16x16xf32>
    %355 = arith.divf %351, %354 : vector<2x16x16xf32>
    "tpu.trace_start"() <{level = 10 : i32, message = "bqk,bkd->bqd"}> : () -> ()
    %cst_271 = arith.constant dense<0.000000e+00> : vector<2x16x32xf32>
    %356 = tpu.matmul %355, %341, %cst_271 {dimension_numbers = #tpu.dot_dimension_numbers<[2], [1], [1], [2], [0, 0, 0, 1, 1, 2], [0], [0]>} : vector<2x16x16xf32>, vector<2x16x32xf32>, vector<2x16x32xf32> -> vector<2x16x32xf32>
    "tpu.trace_stop"() : () -> ()
    %357 = vector.shape_cast %356 : vector<2x16x32xf32> to vector<32x32xf32>
    %c1_272 = arith.constant 1 : index
    %c1_273 = arith.constant 1 : index
    %c0_274 = arith.constant 0 : index
    %c0_275 = arith.constant 0 : index
    %358 = vector.load %arg12[%c1_272, %c1_273, %c0_274, %c0_275] : memref<2x4x32x128xf32, #tpu.memory_space<vmem>>, vector<1x1x32x128xf32>
    %359 = vector.shape_cast %358 : vector<1x1x32x128xf32> to vector<32x128xf32>
    %cst_276 = arith.constant dense<0.000000e+00> : vector<32x128xf32>
    %360 = tpu.matmul %357, %359, %cst_276 {dimension_numbers = #tpu.dot_dimension_numbers<[1], [0], [0], [1], [0, 0, 1, 1], [], []>} : vector<32x32xf32>, vector<32x128xf32>, vector<32x128xf32> -> vector<32x128xf32>
    %361 = arith.addf %317, %360 : vector<32x128xf32>
    %c1_277 = arith.constant 1 : index
    %c2_278 = arith.constant 2 : index
    %c0_279 = arith.constant 0 : index
    %c0_280 = arith.constant 0 : index
    %362 = vector.load %arg6[%c1_277, %c2_278, %c0_279, %c0_280] : memref<2x4x128x32xf32, #tpu.memory_space<vmem>>, vector<1x1x128x32xf32>
    %363 = vector.shape_cast %362 : vector<1x1x128x32xf32> to vector<128x32xf32>
    %cst_281 = arith.constant dense<0.000000e+00> : vector<32x32xf32>
    %364 = tpu.matmul %274, %363, %cst_281 {dimension_numbers = #tpu.dot_dimension_numbers<[1], [0], [0], [1], [0, 0, 1, 1], [], []>} : vector<32x128xf32>, vector<128x32xf32>, vector<32x32xf32> -> vector<32x32xf32>
    %c1_282 = arith.constant 1 : index
    %c2_283 = arith.constant 2 : index
    %c0_284 = arith.constant 0 : index
    %c0_285 = arith.constant 0 : index
    %365 = vector.load %arg7[%c1_282, %c2_283, %c0_284, %c0_285] : memref<2x4x1x32xf32, #tpu.memory_space<vmem>>, vector<1x1x1x32xf32>
    %366 = vector.shape_cast %365 : vector<1x1x1x32xf32> to vector<1x32xf32>
    %367 = vector.broadcast %366 : vector<1x32xf32> to vector<32x32xf32>
    %368 = arith.addf %364, %367 : vector<32x32xf32>
    %c1_286 = arith.constant 1 : index
    %c2_287 = arith.constant 2 : index
    %c0_288 = arith.constant 0 : index
    %c0_289 = arith.constant 0 : index
    %369 = vector.load %arg8[%c1_286, %c2_287, %c0_288, %c0_289] : memref<2x4x128x32xf32, #tpu.memory_space<vmem>>, vector<1x1x128x32xf32>
    %370 = vector.shape_cast %369 : vector<1x1x128x32xf32> to vector<128x32xf32>
    %cst_290 = arith.constant dense<0.000000e+00> : vector<32x32xf32>
    %371 = tpu.matmul %274, %370, %cst_290 {dimension_numbers = #tpu.dot_dimension_numbers<[1], [0], [0], [1], [0, 0, 1, 1], [], []>} : vector<32x128xf32>, vector<128x32xf32>, vector<32x32xf32> -> vector<32x32xf32>
    %c1_291 = arith.constant 1 : index
    %c2_292 = arith.constant 2 : index
    %c0_293 = arith.constant 0 : index
    %c0_294 = arith.constant 0 : index
    %372 = vector.load %arg9[%c1_291, %c2_292, %c0_293, %c0_294] : memref<2x4x1x32xf32, #tpu.memory_space<vmem>>, vector<1x1x1x32xf32>
    %373 = vector.shape_cast %372 : vector<1x1x1x32xf32> to vector<1x32xf32>
    %374 = vector.broadcast %373 : vector<1x32xf32> to vector<32x32xf32>
    %375 = arith.addf %371, %374 : vector<32x32xf32>
    %c1_295 = arith.constant 1 : index
    %c2_296 = arith.constant 2 : index
    %c0_297 = arith.constant 0 : index
    %c0_298 = arith.constant 0 : index
    %376 = vector.load %arg10[%c1_295, %c2_296, %c0_297, %c0_298] : memref<2x4x128x32xf32, #tpu.memory_space<vmem>>, vector<1x1x128x32xf32>
    %377 = vector.shape_cast %376 : vector<1x1x128x32xf32> to vector<128x32xf32>
    %cst_299 = arith.constant dense<0.000000e+00> : vector<32x32xf32>
    %378 = tpu.matmul %274, %377, %cst_299 {dimension_numbers = #tpu.dot_dimension_numbers<[1], [0], [0], [1], [0, 0, 1, 1], [], []>} : vector<32x128xf32>, vector<128x32xf32>, vector<32x32xf32> -> vector<32x32xf32>
    %c1_300 = arith.constant 1 : index
    %c2_301 = arith.constant 2 : index
    %c0_302 = arith.constant 0 : index
    %c0_303 = arith.constant 0 : index
    %379 = vector.load %arg11[%c1_300, %c2_301, %c0_302, %c0_303] : memref<2x4x1x32xf32, #tpu.memory_space<vmem>>, vector<1x1x1x32xf32>
    %380 = vector.shape_cast %379 : vector<1x1x1x32xf32> to vector<1x32xf32>
    %381 = vector.broadcast %380 : vector<1x32xf32> to vector<32x32xf32>
    %382 = arith.addf %378, %381 : vector<32x32xf32>
    %383 = vector.shape_cast %368 : vector<32x32xf32> to vector<2x16x32xf32>
    %384 = vector.shape_cast %375 : vector<32x32xf32> to vector<2x16x32xf32>
    %385 = vector.shape_cast %382 : vector<32x32xf32> to vector<2x16x32xf32>
    "tpu.trace_start"() <{level = 10 : i32, message = "bqd,bkd->bqk"}> : () -> ()
    %cst_304 = arith.constant dense<0.000000e+00> : vector<2x16x16xf32>
    %386 = tpu.matmul %383, %384, %cst_304 {dimension_numbers = #tpu.dot_dimension_numbers<[2], [2], [1], [1], [0, 0, 0, 1, 1, 1], [0], [0]>} : vector<2x16x32xf32>, vector<2x16x32xf32>, vector<2x16x16xf32> -> vector<2x16x16xf32>
    "tpu.trace_stop"() : () -> ()
    %cst_305 = arith.constant 0.176776692 : f32
    %387 = vector.broadcast %cst_305 : f32 to vector<2x16x16xf32>
    %388 = arith.mulf %386, %387 : vector<2x16x16xf32>
    %389 = vector.broadcast %29 : vector<2x1x16xf32> to vector<2x16x16xf32>
    %390 = arith.addf %388, %389 : vector<2x16x16xf32>
    %cst_306 = arith.constant dense<0xFF800000> : vector<2x16xf32>
    %391 = vector.multi_reduction <maximumf>, %390, %cst_306 [2] : vector<2x16x16xf32> to vector<2x16xf32>
    %392 = vector.shape_cast %391 : vector<2x16xf32> to vector<2x16x1xf32>
    %393 = vector.broadcast %392 : vector<2x16x1xf32> to vector<2x16x16xf32>
    %394 = arith.subf %390, %393 : vector<2x16x16xf32>
    %395 = math.exp %394 : vector<2x16x16xf32>
    %cst_307 = arith.constant dense<0.000000e+00> : vector<2x16xf32>
    %396 = vector.multi_reduction <add>, %395, %cst_307 [2] : vector<2x16x16xf32> to vector<2x16xf32>
    %397 = vector.shape_cast %396 : vector<2x16xf32> to vector<2x16x1xf32>
    %398 = vector.broadcast %397 : vector<2x16x1xf32> to vector<2x16x16xf32>
    %399 = arith.divf %395, %398 : vector<2x16x16xf32>
    "tpu.trace_start"() <{level = 10 : i32, message = "bqk,bkd->bqd"}> : () -> ()
    %cst_308 = arith.constant dense<0.000000e+00> : vector<2x16x32xf32>
    %400 = tpu.matmul %399, %385, %cst_308 {dimension_numbers = #tpu.dot_dimension_numbers<[2], [1], [1], [2], [0, 0, 0, 1, 1, 2], [0], [0]>} : vector<2x16x16xf32>, vector<2x16x32xf32>, vector<2x16x32xf32> -> vector<2x16x32xf32>
    "tpu.trace_stop"() : () -> ()
    %401 = vector.shape_cast %400 : vector<2x16x32xf32> to vector<32x32xf32>
    %c1_309 = arith.constant 1 : index
    %c2_310 = arith.constant 2 : index
    %c0_311 = arith.constant 0 : index
    %c0_312 = arith.constant 0 : index
    %402 = vector.load %arg12[%c1_309, %c2_310, %c0_311, %c0_312] : memref<2x4x32x128xf32, #tpu.memory_space<vmem>>, vector<1x1x32x128xf32>
    %403 = vector.shape_cast %402 : vector<1x1x32x128xf32> to vector<32x128xf32>
    %cst_313 = arith.constant dense<0.000000e+00> : vector<32x128xf32>
    %404 = tpu.matmul %401, %403, %cst_313 {dimension_numbers = #tpu.dot_dimension_numbers<[1], [0], [0], [1], [0, 0, 1, 1], [], []>} : vector<32x32xf32>, vector<32x128xf32>, vector<32x128xf32> -> vector<32x128xf32>
    %405 = arith.addf %361, %404 : vector<32x128xf32>
    %c1_314 = arith.constant 1 : index
    %c3_315 = arith.constant 3 : index
    %c0_316 = arith.constant 0 : index
    %c0_317 = arith.constant 0 : index
    %406 = vector.load %arg6[%c1_314, %c3_315, %c0_316, %c0_317] : memref<2x4x128x32xf32, #tpu.memory_space<vmem>>, vector<1x1x128x32xf32>
    %407 = vector.shape_cast %406 : vector<1x1x128x32xf32> to vector<128x32xf32>
    %cst_318 = arith.constant dense<0.000000e+00> : vector<32x32xf32>
    %408 = tpu.matmul %274, %407, %cst_318 {dimension_numbers = #tpu.dot_dimension_numbers<[1], [0], [0], [1], [0, 0, 1, 1], [], []>} : vector<32x128xf32>, vector<128x32xf32>, vector<32x32xf32> -> vector<32x32xf32>
    %c1_319 = arith.constant 1 : index
    %c3_320 = arith.constant 3 : index
    %c0_321 = arith.constant 0 : index
    %c0_322 = arith.constant 0 : index
    %409 = vector.load %arg7[%c1_319, %c3_320, %c0_321, %c0_322] : memref<2x4x1x32xf32, #tpu.memory_space<vmem>>, vector<1x1x1x32xf32>
    %410 = vector.shape_cast %409 : vector<1x1x1x32xf32> to vector<1x32xf32>
    %411 = vector.broadcast %410 : vector<1x32xf32> to vector<32x32xf32>
    %412 = arith.addf %408, %411 : vector<32x32xf32>
    %c1_323 = arith.constant 1 : index
    %c3_324 = arith.constant 3 : index
    %c0_325 = arith.constant 0 : index
    %c0_326 = arith.constant 0 : index
    %413 = vector.load %arg8[%c1_323, %c3_324, %c0_325, %c0_326] : memref<2x4x128x32xf32, #tpu.memory_space<vmem>>, vector<1x1x128x32xf32>
    %414 = vector.shape_cast %413 : vector<1x1x128x32xf32> to vector<128x32xf32>
    %cst_327 = arith.constant dense<0.000000e+00> : vector<32x32xf32>
    %415 = tpu.matmul %274, %414, %cst_327 {dimension_numbers = #tpu.dot_dimension_numbers<[1], [0], [0], [1], [0, 0, 1, 1], [], []>} : vector<32x128xf32>, vector<128x32xf32>, vector<32x32xf32> -> vector<32x32xf32>
    %c1_328 = arith.constant 1 : index
    %c3_329 = arith.constant 3 : index
    %c0_330 = arith.constant 0 : index
    %c0_331 = arith.constant 0 : index
    %416 = vector.load %arg9[%c1_328, %c3_329, %c0_330, %c0_331] : memref<2x4x1x32xf32, #tpu.memory_space<vmem>>, vector<1x1x1x32xf32>
    %417 = vector.shape_cast %416 : vector<1x1x1x32xf32> to vector<1x32xf32>
    %418 = vector.broadcast %417 : vector<1x32xf32> to vector<32x32xf32>
    %419 = arith.addf %415, %418 : vector<32x32xf32>
    %c1_332 = arith.constant 1 : index
    %c3_333 = arith.constant 3 : index
    %c0_334 = arith.constant 0 : index
    %c0_335 = arith.constant 0 : index
    %420 = vector.load %arg10[%c1_332, %c3_333, %c0_334, %c0_335] : memref<2x4x128x32xf32, #tpu.memory_space<vmem>>, vector<1x1x128x32xf32>
    %421 = vector.shape_cast %420 : vector<1x1x128x32xf32> to vector<128x32xf32>
    %cst_336 = arith.constant dense<0.000000e+00> : vector<32x32xf32>
    %422 = tpu.matmul %274, %421, %cst_336 {dimension_numbers = #tpu.dot_dimension_numbers<[1], [0], [0], [1], [0, 0, 1, 1], [], []>} : vector<32x128xf32>, vector<128x32xf32>, vector<32x32xf32> -> vector<32x32xf32>
    %c1_337 = arith.constant 1 : index
    %c3_338 = arith.constant 3 : index
    %c0_339 = arith.constant 0 : index
    %c0_340 = arith.constant 0 : index
    %423 = vector.load %arg11[%c1_337, %c3_338, %c0_339, %c0_340] : memref<2x4x1x32xf32, #tpu.memory_space<vmem>>, vector<1x1x1x32xf32>
    %424 = vector.shape_cast %423 : vector<1x1x1x32xf32> to vector<1x32xf32>
    %425 = vector.broadcast %424 : vector<1x32xf32> to vector<32x32xf32>
    %426 = arith.addf %422, %425 : vector<32x32xf32>
    %427 = vector.shape_cast %412 : vector<32x32xf32> to vector<2x16x32xf32>
    %428 = vector.shape_cast %419 : vector<32x32xf32> to vector<2x16x32xf32>
    %429 = vector.shape_cast %426 : vector<32x32xf32> to vector<2x16x32xf32>
    "tpu.trace_start"() <{level = 10 : i32, message = "bqd,bkd->bqk"}> : () -> ()
    %cst_341 = arith.constant dense<0.000000e+00> : vector<2x16x16xf32>
    %430 = tpu.matmul %427, %428, %cst_341 {dimension_numbers = #tpu.dot_dimension_numbers<[2], [2], [1], [1], [0, 0, 0, 1, 1, 1], [0], [0]>} : vector<2x16x32xf32>, vector<2x16x32xf32>, vector<2x16x16xf32> -> vector<2x16x16xf32>
    "tpu.trace_stop"() : () -> ()
    %cst_342 = arith.constant 0.176776692 : f32
    %431 = vector.broadcast %cst_342 : f32 to vector<2x16x16xf32>
    %432 = arith.mulf %430, %431 : vector<2x16x16xf32>
    %433 = vector.broadcast %29 : vector<2x1x16xf32> to vector<2x16x16xf32>
    %434 = arith.addf %432, %433 : vector<2x16x16xf32>
    %cst_343 = arith.constant dense<0xFF800000> : vector<2x16xf32>
    %435 = vector.multi_reduction <maximumf>, %434, %cst_343 [2] : vector<2x16x16xf32> to vector<2x16xf32>
    %436 = vector.shape_cast %435 : vector<2x16xf32> to vector<2x16x1xf32>
    %437 = vector.broadcast %436 : vector<2x16x1xf32> to vector<2x16x16xf32>
    %438 = arith.subf %434, %437 : vector<2x16x16xf32>
    %439 = math.exp %438 : vector<2x16x16xf32>
    %cst_344 = arith.constant dense<0.000000e+00> : vector<2x16xf32>
    %440 = vector.multi_reduction <add>, %439, %cst_344 [2] : vector<2x16x16xf32> to vector<2x16xf32>
    %441 = vector.shape_cast %440 : vector<2x16xf32> to vector<2x16x1xf32>
    %442 = vector.broadcast %441 : vector<2x16x1xf32> to vector<2x16x16xf32>
    %443 = arith.divf %439, %442 : vector<2x16x16xf32>
    "tpu.trace_start"() <{level = 10 : i32, message = "bqk,bkd->bqd"}> : () -> ()
    %cst_345 = arith.constant dense<0.000000e+00> : vector<2x16x32xf32>
    %444 = tpu.matmul %443, %429, %cst_345 {dimension_numbers = #tpu.dot_dimension_numbers<[2], [1], [1], [2], [0, 0, 0, 1, 1, 2], [0], [0]>} : vector<2x16x16xf32>, vector<2x16x32xf32>, vector<2x16x32xf32> -> vector<2x16x32xf32>
    "tpu.trace_stop"() : () -> ()
    %445 = vector.shape_cast %444 : vector<2x16x32xf32> to vector<32x32xf32>
    %c1_346 = arith.constant 1 : index
    %c3_347 = arith.constant 3 : index
    %c0_348 = arith.constant 0 : index
    %c0_349 = arith.constant 0 : index
    %446 = vector.load %arg12[%c1_346, %c3_347, %c0_348, %c0_349] : memref<2x4x32x128xf32, #tpu.memory_space<vmem>>, vector<1x1x32x128xf32>
    %447 = vector.shape_cast %446 : vector<1x1x32x128xf32> to vector<32x128xf32>
    %cst_350 = arith.constant dense<0.000000e+00> : vector<32x128xf32>
    %448 = tpu.matmul %445, %447, %cst_350 {dimension_numbers = #tpu.dot_dimension_numbers<[1], [0], [0], [1], [0, 0, 1, 1], [], []>} : vector<32x32xf32>, vector<32x128xf32>, vector<32x128xf32> -> vector<32x128xf32>
    %449 = arith.addf %405, %448 : vector<32x128xf32>
    %c1_351 = arith.constant 1 : index
    %c0_352 = arith.constant 0 : index
    %c0_353 = arith.constant 0 : index
    %450 = vector.load %arg13[%c1_351, %c0_352, %c0_353] : memref<2x1x128xf32, #tpu.memory_space<vmem>>, vector<1x1x128xf32>
    %451 = vector.shape_cast %450 : vector<1x1x128xf32> to vector<1x128xf32>
    %452 = vector.broadcast %451 : vector<1x128xf32> to vector<32x128xf32>
    %453 = arith.addf %449, %452 : vector<32x128xf32>
    %454 = arith.addf %274, %453 : vector<32x128xf32>
    %c1_354 = arith.constant 1 : index
    %c0_355 = arith.constant 0 : index
    %c0_356 = arith.constant 0 : index
    %455 = vector.load %arg18[%c1_354, %c0_355, %c0_356] : memref<2x1x128xf32, #tpu.memory_space<vmem>>, vector<1x1x128xf32>
    %456 = vector.shape_cast %455 : vector<1x1x128xf32> to vector<1x128xf32>
    %c1_357 = arith.constant 1 : index
    %c0_358 = arith.constant 0 : index
    %c0_359 = arith.constant 0 : index
    %457 = vector.load %arg19[%c1_357, %c0_358, %c0_359] : memref<2x1x128xf32, #tpu.memory_space<vmem>>, vector<1x1x128xf32>
    %458 = vector.shape_cast %457 : vector<1x1x128xf32> to vector<1x128xf32>
    %cst_360 = arith.constant dense<0.000000e+00> : vector<32xf32>
    %459 = vector.multi_reduction <add>, %454, %cst_360 [1] : vector<32x128xf32> to vector<32xf32>
    %460 = vector.shape_cast %459 : vector<32xf32> to vector<32x1xf32>
    %cst_361 = arith.constant 1.280000e+02 : f32
    %461 = vector.broadcast %cst_361 : f32 to vector<32x1xf32>
    %462 = arith.divf %460, %461 : vector<32x1xf32>
    %463 = vector.broadcast %462 : vector<32x1xf32> to vector<32x128xf32>
    %464 = arith.subf %454, %463 : vector<32x128xf32>
    %465 = arith.mulf %464, %464 : vector<32x128xf32>
    %cst_362 = arith.constant dense<0.000000e+00> : vector<32xf32>
    %466 = vector.multi_reduction <add>, %465, %cst_362 [1] : vector<32x128xf32> to vector<32xf32>
    %467 = vector.shape_cast %466 : vector<32xf32> to vector<32x1xf32>
    %cst_363 = arith.constant 1.280000e+02 : f32
    %468 = vector.broadcast %cst_363 : f32 to vector<32x1xf32>
    %469 = arith.divf %467, %468 : vector<32x1xf32>
    %cst_364 = arith.constant 9.99999974E-6 : f32
    %470 = vector.broadcast %cst_364 : f32 to vector<32x1xf32>
    %471 = arith.addf %469, %470 : vector<32x1xf32>
    %472 = math.rsqrt %471 : vector<32x1xf32>
    %473 = vector.broadcast %472 : vector<32x1xf32> to vector<32x128xf32>
    %474 = arith.mulf %464, %473 : vector<32x128xf32>
    %475 = vector.broadcast %456 : vector<1x128xf32> to vector<32x128xf32>
    %476 = arith.mulf %474, %475 : vector<32x128xf32>
    %477 = vector.broadcast %458 : vector<1x128xf32> to vector<32x128xf32>
    %478 = arith.addf %476, %477 : vector<32x128xf32>
    %c1_365 = arith.constant 1 : index
    %c0_366 = arith.constant 0 : index
    %c0_367 = arith.constant 0 : index
    %479 = vector.load %arg14[%c1_365, %c0_366, %c0_367] : memref<2x128x256xf32, #tpu.memory_space<vmem>>, vector<1x128x256xf32>
    %480 = vector.shape_cast %479 : vector<1x128x256xf32> to vector<128x256xf32>
    %cst_368 = arith.constant dense<0.000000e+00> : vector<32x256xf32>
    %481 = tpu.matmul %478, %480, %cst_368 {dimension_numbers = #tpu.dot_dimension_numbers<[1], [0], [0], [1], [0, 0, 1, 1], [], []>} : vector<32x128xf32>, vector<128x256xf32>, vector<32x256xf32> -> vector<32x256xf32>
    %c1_369 = arith.constant 1 : index
    %c0_370 = arith.constant 0 : index
    %c0_371 = arith.constant 0 : index
    %482 = vector.load %arg15[%c1_369, %c0_370, %c0_371] : memref<2x1x256xf32, #tpu.memory_space<vmem>>, vector<1x1x256xf32>
    %483 = vector.shape_cast %482 : vector<1x1x256xf32> to vector<1x256xf32>
    %484 = vector.broadcast %483 : vector<1x256xf32> to vector<32x256xf32>
    %485 = arith.addf %481, %484 : vector<32x256xf32>
    %cst_372 = arith.constant 0.000000e+00 : f32
    %486 = vector.broadcast %cst_372 : f32 to vector<32x256xf32>
    %487 = arith.maximumf %485, %486 : vector<32x256xf32>
    %c1_373 = arith.constant 1 : index
    %c0_374 = arith.constant 0 : index
    %c0_375 = arith.constant 0 : index
    %488 = vector.load %arg16[%c1_373, %c0_374, %c0_375] : memref<2x256x128xf32, #tpu.memory_space<vmem>>, vector<1x256x128xf32>
    %489 = vector.shape_cast %488 : vector<1x256x128xf32> to vector<256x128xf32>
    %cst_376 = arith.constant dense<0.000000e+00> : vector<32x128xf32>
    %490 = tpu.matmul %487, %489, %cst_376 {dimension_numbers = #tpu.dot_dimension_numbers<[1], [0], [0], [1], [0, 0, 1, 1], [], []>} : vector<32x256xf32>, vector<256x128xf32>, vector<32x128xf32> -> vector<32x128xf32>
    %c1_377 = arith.constant 1 : index
    %c0_378 = arith.constant 0 : index
    %c0_379 = arith.constant 0 : index
    %491 = vector.load %arg17[%c1_377, %c0_378, %c0_379] : memref<2x1x128xf32, #tpu.memory_space<vmem>>, vector<1x1x128xf32>
    %492 = vector.shape_cast %491 : vector<1x1x128xf32> to vector<1x128xf32>
    %493 = vector.broadcast %492 : vector<1x128xf32> to vector<32x128xf32>
    %494 = arith.addf %490, %493 : vector<32x128xf32>
    %495 = arith.addf %478, %494 : vector<32x128xf32>
    %c1_380 = arith.constant 1 : index
    %c0_381 = arith.constant 0 : index
    %c0_382 = arith.constant 0 : index
    %496 = vector.load %arg20[%c1_380, %c0_381, %c0_382] : memref<2x1x128xf32, #tpu.memory_space<vmem>>, vector<1x1x128xf32>
    %497 = vector.shape_cast %496 : vector<1x1x128xf32> to vector<1x128xf32>
    %c1_383 = arith.constant 1 : index
    %c0_384 = arith.constant 0 : index
    %c0_385 = arith.constant 0 : index
    %498 = vector.load %arg21[%c1_383, %c0_384, %c0_385] : memref<2x1x128xf32, #tpu.memory_space<vmem>>, vector<1x1x128xf32>
    %499 = vector.shape_cast %498 : vector<1x1x128xf32> to vector<1x128xf32>
    %cst_386 = arith.constant dense<0.000000e+00> : vector<32xf32>
    %500 = vector.multi_reduction <add>, %495, %cst_386 [1] : vector<32x128xf32> to vector<32xf32>
    %501 = vector.shape_cast %500 : vector<32xf32> to vector<32x1xf32>
    %cst_387 = arith.constant 1.280000e+02 : f32
    %502 = vector.broadcast %cst_387 : f32 to vector<32x1xf32>
    %503 = arith.divf %501, %502 : vector<32x1xf32>
    %504 = vector.broadcast %503 : vector<32x1xf32> to vector<32x128xf32>
    %505 = arith.subf %495, %504 : vector<32x128xf32>
    %506 = arith.mulf %505, %505 : vector<32x128xf32>
    %cst_388 = arith.constant dense<0.000000e+00> : vector<32xf32>
    %507 = vector.multi_reduction <add>, %506, %cst_388 [1] : vector<32x128xf32> to vector<32xf32>
    %508 = vector.shape_cast %507 : vector<32xf32> to vector<32x1xf32>
    %cst_389 = arith.constant 1.280000e+02 : f32
    %509 = vector.broadcast %cst_389 : f32 to vector<32x1xf32>
    %510 = arith.divf %508, %509 : vector<32x1xf32>
    %cst_390 = arith.constant 9.99999974E-6 : f32
    %511 = vector.broadcast %cst_390 : f32 to vector<32x1xf32>
    %512 = arith.addf %510, %511 : vector<32x1xf32>
    %513 = math.rsqrt %512 : vector<32x1xf32>
    %514 = vector.broadcast %513 : vector<32x1xf32> to vector<32x128xf32>
    %515 = arith.mulf %505, %514 : vector<32x128xf32>
    %516 = vector.broadcast %497 : vector<1x128xf32> to vector<32x128xf32>
    %517 = arith.mulf %515, %516 : vector<32x128xf32>
    %518 = vector.broadcast %499 : vector<1x128xf32> to vector<32x128xf32>
    %519 = arith.addf %517, %518 : vector<32x128xf32>
    %520 = vector.shape_cast %519 : vector<32x128xf32> to vector<2x16x128xf32>
    %c0_391 = arith.constant 0 : index
    %c0_392 = arith.constant 0 : index
    %c0_393 = arith.constant 0 : index
    %521 = vector.load %arg22[%c0_391, %c0_392, %c0_393] : memref<2x16x128xf32, #tpu.memory_space<vmem>>, vector<2x16x128xf32>
    tpu.vector_store %arg22[%c0_391, %c0_392, %c0_393], %520 {strides = array<i32>} : memref<2x16x128xf32, #tpu.memory_space<vmem>>, vector<2x16x128xf32>,
    return
  }
}

</mosaic_0001>

<llo_original>
// kernel: self_attention_forward_pallas.1
$region0: #{self_attention_forward_pallas.1}
  #allocation0 [shape = 'u32[]', space=smem, size = 0x4, offset = 0x4, fixed_abs, tag = 'smem constant byte address 0x4 - core index']
  #allocation1 [shape = 'u32[144,128]{1,0:T(1,128)}', space=vmem, size = 0x12000, scoped, tag = 'internal scratch']
  %s0 = inlined_call_operand.vmem [shape: f32[2,16,64], index: 0, kind: input, shape index: {}]
  %s1 = inlined_call_operand.vmem [shape: f32[2,1,16], index: 1, kind: input, shape index: {}]
  %s2 = inlined_call_operand.vmem [shape: f32[64,128], index: 2, kind: input, shape index: {}]
  %s3 = inlined_call_operand.vmem [shape: f32[1,128], index: 3, kind: input, shape index: {}]
  %s4 = inlined_call_operand.vmem [shape: f32[1,128], index: 4, kind: input, shape index: {}]
  %s5 = inlined_call_operand.vmem [shape: f32[1,128], index: 5, kind: input, shape index: {}]
  %s6 = inlined_call_operand.vmem [shape: f32[2,4,128,32], index: 6, kind: input, shape index: {}]
  %s7 = inlined_call_operand.vmem [shape: f32[2,4,1,32], index: 7, kind: input, shape index: {}]
  %s8 = inlined_call_operand.vmem [shape: f32[2,4,128,32], index: 8, kind: input, shape index: {}]
  %s9 = inlined_call_operand.vmem [shape: f32[2,4,1,32], index: 9, kind: input, shape index: {}]
  %s10 = inlined_call_operand.vmem [shape: f32[2,4,128,32], index: 10, kind: input, shape index: {}]
  %s11 = inlined_call_operand.vmem [shape: f32[2,4,1,32], index: 11, kind: input, shape index: {}]
  %s12 = inlined_call_operand.vmem [shape: f32[2,4,32,128], index: 12, kind: input, shape index: {}]
  %s13 = inlined_call_operand.vmem [shape: f32[2,1,128], index: 13, kind: input, shape index: {}]
  %s14 = inlined_call_operand.vmem [shape: f32[2,128,256], index: 14, kind: input, shape index: {}]
  %s15 = inlined_call_operand.vmem [shape: f32[2,1,256], index: 15, kind: input, shape index: {}]
  %s16 = inlined_call_operand.vmem [shape: f32[2,256,128], index: 16, kind: input, shape index: {}]
  %s17 = inlined_call_operand.vmem [shape: f32[2,1,128], index: 17, kind: input, shape index: {}]
  %s18 = inlined_call_operand.vmem [shape: f32[2,1,128], index: 18, kind: input, shape index: {}]
  %s19 = inlined_call_operand.vmem [shape: f32[2,1,128], index: 19, kind: input, shape index: {}]
  %s20 = inlined_call_operand.vmem [shape: f32[2,1,128], index: 20, kind: input, shape index: {}]
  %s21 = inlined_call_operand.vmem [shape: f32[2,1,128], index: 21, kind: input, shape index: {}]
  %s22 = inlined_call_operand.hbm [shape: f32[2,16,128], index: 22, kind: output, shape index: {}]
  %s23 = sld [smem:[#allocation0]]
  $region98: #{self_attention_forward_pallas.1} parent=0
    _
  %s25 = ssub.s32 1, %s23
  %s26 = scalar_select 0, %s25, %s23
  $region1: #{self_attention_forward_pallas.1} parent=0
    #allocation2 [shape = 'u8[16384]{0}', space=vmem, size = 0x4000, scoped, tag = 'output window, operand 0, single buffered']
    #allocation3 [shape = 's32[1]{0}', space=sflag, size = 0x4, scoped, tag = 'scoped memory for self_attention_forward_pallas.1']
    %27 = vsyncpa [#allocation3], 0
    // Predicated region
    $region2: #{self_attention_forward_pallas.1} parent=1 // pred_check
      _
    $region3: #{self_attention_forward_pallas.1} parent=1 // pred_check_branch
      %29 = sbr.rel (0) target = $region5
    $region4: #{self_attention_forward_pallas.1} parent=1 // pred_region
      _
    $region5: #{self_attention_forward_pallas.1} parent=1 // pred_fallthru
      _
    // Predicated region
    $region6: #{self_attention_forward_pallas.1} parent=1 // pred_check
      _
    $region7: #{self_attention_forward_pallas.1} parent=1 // pred_check_branch
      %31 = sbr.rel (0) target = $region9
    $region8: #{self_attention_forward_pallas.1} parent=1 // pred_region
      _
    $region9: #{self_attention_forward_pallas.1} parent=1 // pred_fallthru
      _
    // Predicated region
    $region10: #{self_attention_forward_pallas.1} parent=1 // pred_check
      _
    $region11: #{self_attention_forward_pallas.1} parent=1 // pred_check_branch
      %33 = sbr.rel (0) target = $region13
    $region12: #{self_attention_forward_pallas.1} parent=1 // pred_region
      _
    $region13: #{self_attention_forward_pallas.1} parent=1 // pred_fallthru
      _
    // Predicated region
    $region14: #{self_attention_forward_pallas.1} parent=1 // pred_check
      _
    $region15: #{self_attention_forward_pallas.1} parent=1 // pred_check_branch
      %35 = sbr.rel (0) target = $region17
    $region16: #{self_attention_forward_pallas.1} parent=1 // pred_region
      _
    $region17: #{self_attention_forward_pallas.1} parent=1 // pred_fallthru
      _
    // Predicated region
    $region18: #{self_attention_forward_pallas.1} parent=1 // pred_check
      _
    $region19: #{self_attention_forward_pallas.1} parent=1 // pred_check_branch
      %37 = sbr.rel (0) target = $region21
    $region20: #{self_attention_forward_pallas.1} parent=1 // pred_region
      _
    $region21: #{self_attention_forward_pallas.1} parent=1 // pred_fallthru
      _
    // Predicated region
    $region22: #{self_attention_forward_pallas.1} parent=1 // pred_check
      _
    $region23: #{self_attention_forward_pallas.1} parent=1 // pred_check_branch
      %39 = sbr.rel (0) target = $region25
    $region24: #{self_attention_forward_pallas.1} parent=1 // pred_region
      _
    $region25: #{self_attention_forward_pallas.1} parent=1 // pred_fallthru
      _
    // Predicated region
    $region26: #{self_attention_forward_pallas.1} parent=1 // pred_check
      _
    $region27: #{self_attention_forward_pallas.1} parent=1 // pred_check_branch
      %41 = sbr.rel (0) target = $region29
    $region28: #{self_attention_forward_pallas.1} parent=1 // pred_region
      _
    $region29: #{self_attention_forward_pallas.1} parent=1 // pred_fallthru
      _
    // Predicated region
    $region30: #{self_attention_forward_pallas.1} parent=1 // pred_check
      _
    $region31: #{self_attention_forward_pallas.1} parent=1 // pred_check_branch
      %43 = sbr.rel (0) target = $region33
    $region32: #{self_attention_forward_pallas.1} parent=1 // pred_region
      _
    $region33: #{self_attention_forward_pallas.1} parent=1 // pred_fallthru
      _
    // Predicated region
    $region34: #{self_attention_forward_pallas.1} parent=1 // pred_check
      _
    $region35: #{self_attention_forward_pallas.1} parent=1 // pred_check_branch
      %45 = sbr.rel (0) target = $region37
    $region36: #{self_attention_forward_pallas.1} parent=1 // pred_region
      _
    $region37: #{self_attention_forward_pallas.1} parent=1 // pred_fallthru
      _
    // Predicated region
    $region38: #{self_attention_forward_pallas.1} parent=1 // pred_check
      _
    $region39: #{self_attention_forward_pallas.1} parent=1 // pred_check_branch
      %47 = sbr.rel (0) target = $region41
    $region40: #{self_attention_forward_pallas.1} parent=1 // pred_region
      _
    $region41: #{self_attention_forward_pallas.1} parent=1 // pred_fallthru
      _
    // Predicated region
    $region42: #{self_attention_forward_pallas.1} parent=1 // pred_check
      _
    $region43: #{self_attention_forward_pallas.1} parent=1 // pred_check_branch
      %49 = sbr.rel (0) target = $region45
    $region44: #{self_attention_forward_pallas.1} parent=1 // pred_region
      _
    $region45: #{self_attention_forward_pallas.1} parent=1 // pred_fallthru
      _
    // Predicated region
    $region46: #{self_attention_forward_pallas.1} parent=1 // pred_check
      _
    $region47: #{self_attention_forward_pallas.1} parent=1 // pred_check_branch
      %51 = sbr.rel (0) target = $region49
    $region48: #{self_attention_forward_pallas.1} parent=1 // pred_region
      _
    $region49: #{self_attention_forward_pallas.1} parent=1 // pred_fallthru
      _
    // Predicated region
    $region50: #{self_attention_forward_pallas.1} parent=1 // pred_check
      _
    $region51: #{self_attention_forward_pallas.1} parent=1 // pred_check_branch
      %53 = sbr.rel (0) target = $region53
    $region52: #{self_attention_forward_pallas.1} parent=1 // pred_region
      _
    $region53: #{self_attention_forward_pallas.1} parent=1 // pred_fallthru
      _
    // Predicated region
    $region54: #{self_attention_forward_pallas.1} parent=1 // pred_check
      _
    $region55: #{self_attention_forward_pallas.1} parent=1 // pred_check_branch
      %55 = sbr.rel (0) target = $region57
    $region56: #{self_attention_forward_pallas.1} parent=1 // pred_region
      _
    $region57: #{self_attention_forward_pallas.1} parent=1 // pred_fallthru
      _
    // Predicated region
    $region58: #{self_attention_forward_pallas.1} parent=1 // pred_check
      _
    $region59: #{self_attention_forward_pallas.1} parent=1 // pred_check_branch
      %57 = sbr.rel (0) target = $region61
    $region60: #{self_attention_forward_pallas.1} parent=1 // pred_region
      _
    $region61: #{self_attention_forward_pallas.1} parent=1 // pred_fallthru
      _
    // Predicated region
    $region62: #{self_attention_forward_pallas.1} parent=1 // pred_check
      _
    $region63: #{self_attention_forward_pallas.1} parent=1 // pred_check_branch
      %59 = sbr.rel (0) target = $region65
    $region64: #{self_attention_forward_pallas.1} parent=1 // pred_region
      _
    $region65: #{self_attention_forward_pallas.1} parent=1 // pred_fallthru
      _
    // Predicated region
    $region66: #{self_attention_forward_pallas.1} parent=1 // pred_check
      _
    $region67: #{self_attention_forward_pallas.1} parent=1 // pred_check_branch
      %61 = sbr.rel (0) target = $region69
    $region68: #{self_attention_forward_pallas.1} parent=1 // pred_region
      _
    $region69: #{self_attention_forward_pallas.1} parent=1 // pred_fallthru
      _
    // Predicated region
    $region70: #{self_attention_forward_pallas.1} parent=1 // pred_check
      _
    $region71: #{self_attention_forward_pallas.1} parent=1 // pred_check_branch
      %63 = sbr.rel (0) target = $region73
    $region72: #{self_attention_forward_pallas.1} parent=1 // pred_region
      _
    $region73: #{self_attention_forward_pallas.1} parent=1 // pred_fallthru
      _
    // Predicated region
    $region74: #{self_attention_forward_pallas.1} parent=1 // pred_check
      _
    $region75: #{self_attention_forward_pallas.1} parent=1 // pred_check_branch
      %65 = sbr.rel (0) target = $region77
    $region76: #{self_attention_forward_pallas.1} parent=1 // pred_region
      _
    $region77: #{self_attention_forward_pallas.1} parent=1 // pred_fallthru
      _
    // Predicated region
    $region78: #{self_attention_forward_pallas.1} parent=1 // pred_check
      _
    $region79: #{self_attention_forward_pallas.1} parent=1 // pred_check_branch
      %67 = sbr.rel (0) target = $region81
    $region80: #{self_attention_forward_pallas.1} parent=1 // pred_region
      _
    $region81: #{self_attention_forward_pallas.1} parent=1 // pred_fallthru
      _
    // Predicated region
    $region82: #{self_attention_forward_pallas.1} parent=1 // pred_check
      _
    $region83: #{self_attention_forward_pallas.1} parent=1 // pred_check_branch
      %69 = sbr.rel (0) target = $region85
    $region84: #{self_attention_forward_pallas.1} parent=1 // pred_region
      _
    $region85: #{self_attention_forward_pallas.1} parent=1 // pred_fallthru
      _
    // Predicated region
    $region86: #{self_attention_forward_pallas.1} parent=1 // pred_check
      _
    $region87: #{self_attention_forward_pallas.1} parent=1 // pred_check_branch
      %71 = sbr.rel (0) target = $region89
    $region88: #{self_attention_forward_pallas.1} parent=1 // pred_region
      _
    $region89: #{self_attention_forward_pallas.1} parent=1 // pred_fallthru
      _
    %v72 = vld [vmem:[%s0] sm:$0xff]
    %v73 = vld [vmem:[%s0 + $0x8] sm:$0xff]
    %v74 = vld [vmem:[%s0 + $0x10] sm:$0xff]
    %v75 = vld [vmem:[%s0 + $0x18] sm:$0xff]
    %v76 = vld [vmem:[%s2] sm:$0xff]
    %v77 = vld [vmem:[%s2 + $0x8] sm:$0xff]
    %v78 = vld [vmem:[%s2 + $0x10] sm:$0xff]
    %v79 = vld [vmem:[%s2 + $0x18] sm:$0xff]
    %v80 = vld [vmem:[%s2 + $0x20] sm:$0xff]
    %v81 = vld [vmem:[%s2 + $0x28] sm:$0xff]
    %v82 = vld [vmem:[%s2 + $0x30] sm:$0xff]
    %v83 = vld [vmem:[%s2 + $0x38] sm:$0xff]
    %v84 = vld [vmem:[%s3] sm:$0x1]
    %v86 = vlaneseq
    %v87 = vshrl.u32 %v86, 7
    %v88 = vsub.s32 0, %v87
    %v89 = vrot.slane %v84, %v88
    %vm91 = vcmask 523264
    %v93 = vsel %vm91, %v72, 0
    %v96 = vsel %vm91, %v73, 0
    %v99 = vsel %vm91, %v74, 0
    %v102 = vsel %vm91, %v75, 0
    %104 = vmatprep.subr.mxu0 0.0
    %105 = vmatpush1.msra.mxu0 %v76
    %106 = vmatprep.subr.mxu0 0.0
    %107 = vmatpush1.msra.mxu0 %v77
    %108 = vmatprep.subr.mxu0 0.0
    %109 = vmatpush1.msra.mxu0 %v78
    %110 = vmatprep.subr.mxu0 0.0
    %111 = vmatpush1.msra.mxu0 %v79
    %112 = vmatprep.subr.mxu0 0.0
    %113 = vmatpush1.msra.mxu0 %v80
    %114 = vmatprep.subr.mxu0 0.0
    %115 = vmatpush1.msra.mxu0 %v81
    %116 = vmatprep.subr.mxu0 0.0
    %117 = vmatpush1.msra.mxu0 %v82
    %118 = vmatprep.subr.mxu0 0.0
    %119 = vmatpush1.msra.mxu0 %v83
    %120 = vmatprep.subr.mxu0 0.0
    %121 = vmatpush1.msra.mxu0 0.0
    %122 = vmatprep.subr.mxu0 0.0
    %123 = vmatpush1.msra.mxu0 0.0
    %124 = vmatprep.subr.mxu0 0.0
    %125 = vmatpush1.msra.mxu0 0.0
    %126 = vmatprep.subr.mxu0 0.0
    %127 = vmatpush1.msra.mxu0 0.0
    %128 = vmatprep.subr.mxu0 0.0
    %129 = vmatpush1.msra.mxu0 0.0
    %130 = vmatprep.subr.mxu0 0.0
    %131 = vmatpush1.msra.mxu0 0.0
    %132 = vmatprep.subr.mxu0 0.0
    %133 = vmatpush1.msra.mxu0 0.0
    %134 = vmatprep.subr.mxu0 0.0
    %135 = vmatpush1.msra.mxu0 0.0
    %136 = vmatprep.subr.mxu0 0.0
    %137 = vmatpush1.msra.mxu0 0.0
    %138 = vmatprep.subr.mxu0 0.0
    %139 = vmatpush1.msra.mxu0 0.0
    %140 = vmatprep.subr.mxu0 0.0
    %141 = vmatpush1.msra.mxu0 0.0
    %142 = vmatprep.subr.mxu0 0.0
    %143 = vmatpush1.msra.mxu0 0.0
    %144 = vmatprep.subr.mxu0 0.0
    %145 = vmatpush1.msra.mxu0 0.0
    %146 = vmatprep.subr.mxu0 0.0
    %147 = vmatpush1.msra.mxu0 0.0
    %148 = vmatprep.subr.mxu0 0.0
    %149 = vmatpush1.msra.mxu0 0.0
    %150 = vmatprep.subr.mxu0 0.0
    %151 = vmatpush1.msra.mxu0 0.0
    %152 = vmatprep.subr.mxu0 0.0
    %153 = vmatpush1.msra.mxu0 0.0
    %154 = vmatprep.subr.mxu0 0.0
    %155 = vmatpush1.msra.mxu0 0.0
    %156 = vmatprep.subr.mxu0 0.0
    %157 = vmatpush1.msra.mxu0 0.0
    %158 = vmatprep.subr.mxu0 0.0
    %159 = vmatpush1.msra.mxu0 0.0
    %160 = vmatprep.subr.mxu0 0.0
    %161 = vmatpush1.msra.mxu0 0.0
    %162 = vmatprep.subr.mxu0 0.0
    %163 = vmatpush1.msra.mxu0 0.0
    %164 = vmatprep.subr.mxu0 0.0
    %165 = vmatpush1.msra.mxu0 0.0
    %166 = vmatprep.subr.mxu0 0.0
    %167 = vmatpush1.msra.mxu0 0.0
    %168 = vmatprep.mubr.f32.mxu0 0.0
    %169 = vmatmul.mubr.f32.gmra.mrb[0].mxu0 %v93
    %v170 = vpop.f32.mrb[0].mxu0
    %v171 = vadd.f32 %v89, %v170
    %v172 = vpop.f32.mrb[0].mxu0
    %173 = vmatprep.mubr.f32.mxu0 0.0
    %174 = vmatmul.mubr.f32.gmra.mrb[0].mxu0 %v96
    %v175 = vpop.f32.mrb[0].mxu0
    %v176 = vadd.f32 %v89, %v175
    %v177 = vpop.f32.mrb[0].mxu0
    %178 = vmatprep.mubr.f32.mxu0 0.0
    %179 = vmatmul.mubr.f32.gmra.mrb[0].mxu0 %v99
    %v180 = vpop.f32.mrb[0].mxu0
    %v181 = vadd.f32 %v89, %v180
    %v182 = vpop.f32.mrb[0].mxu0
    %183 = vmatprep.mubr.f32.mxu0 0.0
    %184 = vmatmul.mubr.f32.gmra.mrb[0].mxu0 %v102
    %v185 = vpop.f32.mrb[0].mxu0
    %v186 = vadd.f32 %v89, %v185
    %v187 = vpop.f32.mrb[0].mxu0
    %188 = vdwg.mxu0
    %v189 = vld [vmem:[%s4] sm:$0x1]
    %v190 = vld [vmem:[%s5] sm:$0x1]
    %191 = vadd.xlane.f32.xlu0 %v171
    %v192 = vpop.xlane.xlu0 %191
    %193 = vadd.xlane.f32.xlu0 %v176
    %v194 = vpop.xlane.xlu0 %193
    %195 = vadd.xlane.f32.xlu0 %v181
    %v196 = vpop.xlane.xlu0 %195
    %197 = vadd.xlane.f32.xlu0 %v186
    %v198 = vpop.xlane.xlu0 %197
    %v199 = vrcp.pop 128.0
    %v200 = vmul.f32 %v192, %v199
    %v201 = vmul.f32 %v194, %v199
    %v202 = vmul.f32 %v196, %v199
    %v203 = vmul.f32 %v198, %v199
    %v204 = vsub.f32 %v171, %v200
    %v205 = vsub.f32 %v176, %v201
    %v206 = vsub.f32 %v181, %v202
    %v207 = vsub.f32 %v186, %v203
    %v208 = vmul.f32 %v204, %v204
    %v209 = vmul.f32 %v205, %v205
    %v210 = vmul.f32 %v206, %v206
    %v211 = vmul.f32 %v207, %v207
    %212 = vadd.xlane.f32.xlu0 %v208
    %v213 = vpop.xlane.xlu0 %212
    %214 = vadd.xlane.f32.xlu0 %v209
    %v215 = vpop.xlane.xlu0 %214
    %216 = vadd.xlane.f32.xlu0 %v210
    %v217 = vpop.xlane.xlu0 %216
    %218 = vadd.xlane.f32.xlu0 %v211
    %v219 = vpop.xlane.xlu0 %218
    %v220 = vmul.f32 %v213, %v199
    %v221 = vmul.f32 %v215, %v199
    %v222 = vmul.f32 %v217, %v199
    %v223 = vmul.f32 %v219, %v199
    %v224 = vadd.f32 %v220, 1e-05
    %v225 = vadd.f32 %v221, 1e-05
    %v226 = vadd.f32 %v222, 1e-05
    %v227 = vadd.f32 %v223, 1e-05
    %v228 = vrsqrt.pop %v224
    %v229 = vrsqrt.pop %v225
    %v230 = vrsqrt.pop %v226
    %v231 = vrsqrt.pop %v227
    %v232 = vmul.f32 %v204, %v228
    %v233 = vmul.f32 %v205, %v229
    %v234 = vmul.f32 %v206, %v230
    %v235 = vmul.f32 %v207, %v231
    %v237 = vlaneseq
    %v238 = vshrl.u32 %v237, 7
    %v239 = vsub.s32 0, %v238
    %v240 = vrot.slane %v189, %v239
    %v242 = vmul.f32 %v232, %v240
    %v243 = vmul.f32 %v233, %v240
    %v244 = vmul.f32 %v234, %v240
    %v245 = vmul.f32 %v235, %v240
    %v247 = vlaneseq
    %v248 = vshrl.u32 %v247, 7
    %v249 = vsub.s32 0, %v248
    %v250 = vrot.slane %v190, %v249
    %v252 = vadd.f32 %v242, %v250
    %v253 = vadd.f32 %v243, %v250
    %v254 = vadd.f32 %v244, %v250
    %v255 = vadd.f32 %v245, %v250
    %v256 = vld [vmem:[%s1] sm:$0x1]
    %v257 = vld [vmem:[%s1 + $0x1] sm:$0x1]
    %v258 = vld [vmem:[%s6] sm:$0xff]
    %v259 = vld [vmem:[%s6 + $0x8] sm:$0xff]
    %v260 = vld [vmem:[%s6 + $0x10] sm:$0xff]
    %v261 = vld [vmem:[%s6 + $0x18] sm:$0xff]
    %v262 = vld [vmem:[%s6 + $0x20] sm:$0xff]
    %v263 = vld [vmem:[%s6 + $0x28] sm:$0xff]
    %v264 = vld [vmem:[%s6 + $0x30] sm:$0xff]
    %v265 = vld [vmem:[%s6 + $0x38] sm:$0xff]
    %v266 = vld [vmem:[%s6 + $0x40] sm:$0xff]
    %v267 = vld [vmem:[%s6 + $0x48] sm:$0xff]
    %v268 = vld [vmem:[%s6 + $0x50] sm:$0xff]
    %v269 = vld [vmem:[%s6 + $0x58] sm:$0xff]
    %v270 = vld [vmem:[%s6 + $0x60] sm:$0xff]
    %v271 = vld [vmem:[%s6 + $0x68] sm:$0xff]
    %v272 = vld [vmem:[%s6 + $0x70] sm:$0xff]
    %v273 = vld [vmem:[%s6 + $0x78] sm:$0xff]
    %v274 = vld [vmem:[%s7] sm:$0x1]
    %v276 = vlaneseq
    %v277 = vshrl.u32 %v276, 7
    %v278 = vsub.s32 0, %v277
    %v279 = vrot.slane %v274, %v278
    %281 = vmatprep.subr.mxu0 0.0
    %282 = vmatpush1.msra.mxu0 %v258
    %283 = vmatprep.subr.mxu0 0.0
    %284 = vmatpush1.msra.mxu0 %v259
    %285 = vmatprep.subr.mxu0 0.0
    %286 = vmatpush1.msra.mxu0 %v260
    %287 = vmatprep.subr.mxu0 0.0
    %288 = vmatpush1.msra.mxu0 %v261
    %289 = vmatprep.subr.mxu0 0.0
    %290 = vmatpush1.msra.mxu0 %v262
    %291 = vmatprep.subr.mxu0 0.0
    %292 = vmatpush1.msra.mxu0 %v263
    %293 = vmatprep.subr.mxu0 0.0
    %294 = vmatpush1.msra.mxu0 %v264
    %295 = vmatprep.subr.mxu0 0.0
    %296 = vmatpush1.msra.mxu0 %v265
    %297 = vmatprep.subr.mxu0 0.0
    %298 = vmatpush1.msra.mxu0 %v266
    %299 = vmatprep.subr.mxu0 0.0
    %300 = vmatpush1.msra.mxu0 %v267
    %301 = vmatprep.subr.mxu0 0.0
    %302 = vmatpush1.msra.mxu0 %v268
    %303 = vmatprep.subr.mxu0 0.0
    %304 = vmatpush1.msra.mxu0 %v269
    %305 = vmatprep.subr.mxu0 0.0
    %306 = vmatpush1.msra.mxu0 %v270
    %307 = vmatprep.subr.mxu0 0.0
    %308 = vmatpush1.msra.mxu0 %v271
    %309 = vmatprep.subr.mxu0 0.0
    %310 = vmatpush1.msra.mxu0 %v272
    %311 = vmatprep.subr.mxu0 0.0
    %312 = vmatpush1.msra.mxu0 %v273
    %313 = vmatprep.subr.mxu0 0.0
    %314 = vmatpush1.msra.mxu0 0.0
    %315 = vmatprep.subr.mxu0 0.0
    %316 = vmatpush1.msra.mxu0 0.0
    %317 = vmatprep.subr.mxu0 0.0
    %318 = vmatpush1.msra.mxu0 0.0
    %319 = vmatprep.subr.mxu0 0.0
    %320 = vmatpush1.msra.mxu0 0.0
    %321 = vmatprep.subr.mxu0 0.0
    %322 = vmatpush1.msra.mxu0 0.0
    %323 = vmatprep.subr.mxu0 0.0
    %324 = vmatpush1.msra.mxu0 0.0
    %325 = vmatprep.subr.mxu0 0.0
    %326 = vmatpush1.msra.mxu0 0.0
    %327 = vmatprep.subr.mxu0 0.0
    %328 = vmatpush1.msra.mxu0 0.0
    %329 = vmatprep.subr.mxu0 0.0
    %330 = vmatpush1.msra.mxu0 0.0
    %331 = vmatprep.subr.mxu0 0.0
    %332 = vmatpush1.msra.mxu0 0.0
    %333 = vmatprep.subr.mxu0 0.0
    %334 = vmatpush1.msra.mxu0 0.0
    %335 = vmatprep.subr.mxu0 0.0
    %336 = vmatpush1.msra.mxu0 0.0
    %337 = vmatprep.subr.mxu0 0.0
    %338 = vmatpush1.msra.mxu0 0.0
    %339 = vmatprep.subr.mxu0 0.0
    %340 = vmatpush1.msra.mxu0 0.0
    %341 = vmatprep.subr.mxu0 0.0
    %342 = vmatpush1.msra.mxu0 0.0
    %343 = vmatprep.subr.mxu0 0.0
    %344 = vmatpush1.msra.mxu0 0.0
    %345 = vmatprep.mubr.f32.mxu0 0.0
    %346 = vmatmul.mubr.f32.gmra.mrb[0].mxu0 %v252
    %v347 = vpop.f32.mrb[0].mxu0
    %v348 = vadd.f32 %v279, %v347
    %v349 = vpop.f32.mrb[0].mxu0
    %350 = vmatprep.mubr.f32.mxu0 0.0
    %351 = vmatmul.mubr.f32.gmra.mrb[0].mxu0 %v253
    %v352 = vpop.f32.mrb[0].mxu0
    %v353 = vadd.f32 %v279, %v352
    %v354 = vpop.f32.mrb[0].mxu0
    %355 = vmatprep.mubr.f32.mxu0 0.0
    %356 = vmatmul.mubr.f32.gmra.mrb[0].mxu0 %v254
    %v357 = vpop.f32.mrb[0].mxu0
    %v358 = vadd.f32 %v279, %v357
    %v359 = vpop.f32.mrb[0].mxu0
    %360 = vmatprep.mubr.f32.mxu0 0.0
    %361 = vmatmul.mubr.f32.gmra.mrb[0].mxu0 %v255
    %v362 = vpop.f32.mrb[0].mxu0
    %v363 = vadd.f32 %v279, %v362
    %v364 = vpop.f32.mrb[0].mxu0
    %365 = vdwg.mxu0
    %v366 = vld [vmem:[%s8] sm:$0xff]
    %v367 = vld [vmem:[%s8 + $0x8] sm:$0xff]
    %v368 = vld [vmem:[%s8 + $0x10] sm:$0xff]
    %v369 = vld [vmem:[%s8 + $0x18] sm:$0xff]
    %v370 = vld [vmem:[%s8 + $0x20] sm:$0xff]
    %v371 = vld [vmem:[%s8 + $0x28] sm:$0xff]
    %v372 = vld [vmem:[%s8 + $0x30] sm:$0xff]
    %v373 = vld [vmem:[%s8 + $0x38] sm:$0xff]
    %v374 = vld [vmem:[%s8 + $0x40] sm:$0xff]
    %v375 = vld [vmem:[%s8 + $0x48] sm:$0xff]
    %v376 = vld [vmem:[%s8 + $0x50] sm:$0xff]
    %v377 = vld [vmem:[%s8 + $0x58] sm:$0xff]
    %v378 = vld [vmem:[%s8 + $0x60] sm:$0xff]
    %v379 = vld [vmem:[%s8 + $0x68] sm:$0xff]
    %v380 = vld [vmem:[%s8 + $0x70] sm:$0xff]
    %v381 = vld [vmem:[%s8 + $0x78] sm:$0xff]
    %v382 = vld [vmem:[%s9] sm:$0x1]
    %v384 = vlaneseq
    %v385 = vshrl.u32 %v384, 7
    %v386 = vsub.s32 0, %v385
    %v387 = vrot.slane %v382, %v386
    %389 = vmatprep.subr.mxu0 0.0
    %390 = vmatpush1.msra.mxu0 %v366
    %391 = vmatprep.subr.mxu0 0.0
    %392 = vmatpush1.msra.mxu0 %v367
    %393 = vmatprep.subr.mxu0 0.0
    %394 = vmatpush1.msra.mxu0 %v368
    %395 = vmatprep.subr.mxu0 0.0
    %396 = vmatpush1.msra.mxu0 %v369
    %397 = vmatprep.subr.mxu0 0.0
    %398 = vmatpush1.msra.mxu0 %v370
    %399 = vmatprep.subr.mxu0 0.0
    %400 = vmatpush1.msra.mxu0 %v371
    %401 = vmatprep.subr.mxu0 0.0
    %402 = vmatpush1.msra.mxu0 %v372
    %403 = vmatprep.subr.mxu0 0.0
    %404 = vmatpush1.msra.mxu0 %v373
    %405 = vmatprep.subr.mxu0 0.0
    %406 = vmatpush1.msra.mxu0 %v374
    %407 = vmatprep.subr.mxu0 0.0
    %408 = vmatpush1.msra.mxu0 %v375
    %409 = vmatprep.subr.mxu0 0.0
    %410 = vmatpush1.msra.mxu0 %v376
    %411 = vmatprep.subr.mxu0 0.0
    %412 = vmatpush1.msra.mxu0 %v377
    %413 = vmatprep.subr.mxu0 0.0
    %414 = vmatpush1.msra.mxu0 %v378
    %415 = vmatprep.subr.mxu0 0.0
    %416 = vmatpush1.msra.mxu0 %v379
    %417 = vmatprep.subr.mxu0 0.0
    %418 = vmatpush1.msra.mxu0 %v380
    %419 = vmatprep.subr.mxu0 0.0
    %420 = vmatpush1.msra.mxu0 %v381
    %421 = vmatprep.subr.mxu0 0.0
    %422 = vmatpush1.msra.mxu0 0.0
    %423 = vmatprep.subr.mxu0 0.0
    %424 = vmatpush1.msra.mxu0 0.0
    %425 = vmatprep.subr.mxu0 0.0
    %426 = vmatpush1.msra.mxu0 0.0
    %427 = vmatprep.subr.mxu0 0.0
    %428 = vmatpush1.msra.mxu0 0.0
    %429 = vmatprep.subr.mxu0 0.0
    %430 = vmatpush1.msra.mxu0 0.0
    %431 = vmatprep.subr.mxu0 0.0
    %432 = vmatpush1.msra.mxu0 0.0
    %433 = vmatprep.subr.mxu0 0.0
    %434 = vmatpush1.msra.mxu0 0.0
    %435 = vmatprep.subr.mxu0 0.0
    %436 = vmatpush1.msra.mxu0 0.0
    %437 = vmatprep.subr.mxu0 0.0
    %438 = vmatpush1.msra.mxu0 0.0
    %439 = vmatprep.subr.mxu0 0.0
    %440 = vmatpush1.msra.mxu0 0.0
    %441 = vmatprep.subr.mxu0 0.0
    %442 = vmatpush1.msra.mxu0 0.0
    %443 = vmatprep.subr.mxu0 0.0
    %444 = vmatpush1.msra.mxu0 0.0
    %445 = vmatprep.subr.mxu0 0.0
    %446 = vmatpush1.msra.mxu0 0.0
    %447 = vmatprep.subr.mxu0 0.0
    %448 = vmatpush1.msra.mxu0 0.0
    %449 = vmatprep.subr.mxu0 0.0
    %450 = vmatpush1.msra.mxu0 0.0
    %451 = vmatprep.subr.mxu0 0.0
    %452 = vmatpush1.msra.mxu0 0.0
    %453 = vmatprep.mubr.f32.mxu0 0.0
    %454 = vmatmul.mubr.f32.gmra.mrb[0].mxu0 %v252
    %v455 = vpop.f32.mrb[0].mxu0
    %v456 = vadd.f32 %v387, %v455
    %v457 = vpop.f32.mrb[0].mxu0
    %458 = vmatprep.mubr.f32.mxu0 0.0
    %459 = vmatmul.mubr.f32.gmra.mrb[0].mxu0 %v253
    %v460 = vpop.f32.mrb[0].mxu0
    %v461 = vadd.f32 %v387, %v460
    %v462 = vpop.f32.mrb[0].mxu0
    %463 = vmatprep.mubr.f32.mxu0 0.0
    %464 = vmatmul.mubr.f32.gmra.mrb[0].mxu0 %v254
    %v465 = vpop.f32.mrb[0].mxu0
    %v466 = vadd.f32 %v387, %v465
    %v467 = vpop.f32.mrb[0].mxu0
    %468 = vmatprep.mubr.f32.mxu0 0.0
    %469 = vmatmul.mubr.f32.gmra.mrb[0].mxu0 %v255
    %v470 = vpop.f32.mrb[0].mxu0
    %v471 = vadd.f32 %v387, %v470
    %v472 = vpop.f32.mrb[0].mxu0
    %473 = vdwg.mxu0
    %v474 = vld [vmem:[%s10] sm:$0xff]
    %v475 = vld [vmem:[%s10 + $0x8] sm:$0xff]
    %v476 = vld [vmem:[%s10 + $0x10] sm:$0xff]
    %v477 = vld [vmem:[%s10 + $0x18] sm:$0xff]
    %v478 = vld [vmem:[%s10 + $0x20] sm:$0xff]
    %v479 = vld [vmem:[%s10 + $0x28] sm:$0xff]
    %v480 = vld [vmem:[%s10 + $0x30] sm:$0xff]
    %v481 = vld [vmem:[%s10 + $0x38] sm:$0xff]
    %v482 = vld [vmem:[%s10 + $0x40] sm:$0xff]
    %v483 = vld [vmem:[%s10 + $0x48] sm:$0xff]
    %v484 = vld [vmem:[%s10 + $0x50] sm:$0xff]
    %v485 = vld [vmem:[%s10 + $0x58] sm:$0xff]
    %v486 = vld [vmem:[%s10 + $0x60] sm:$0xff]
    %v487 = vld [vmem:[%s10 + $0x68] sm:$0xff]
    %v488 = vld [vmem:[%s10 + $0x70] sm:$0xff]
    %v489 = vld [vmem:[%s10 + $0x78] sm:$0xff]
    %v490 = vld [vmem:[%s11] sm:$0x1]
    %v492 = vlaneseq
    %v493 = vshrl.u32 %v492, 7
    %v494 = vsub.s32 0, %v493
    %v495 = vrot.slane %v490, %v494
    %497 = vmatprep.subr.mxu0 0.0
    %498 = vmatpush1.msra.mxu0 %v474
    %499 = vmatprep.subr.mxu0 0.0
    %500 = vmatpush1.msra.mxu0 %v475
    %501 = vmatprep.subr.mxu0 0.0
    %502 = vmatpush1.msra.mxu0 %v476
    %503 = vmatprep.subr.mxu0 0.0
    %504 = vmatpush1.msra.mxu0 %v477
    %505 = vmatprep.subr.mxu0 0.0
    %506 = vmatpush1.msra.mxu0 %v478
    %507 = vmatprep.subr.mxu0 0.0
    %508 = vmatpush1.msra.mxu0 %v479
    %509 = vmatprep.subr.mxu0 0.0
    %510 = vmatpush1.msra.mxu0 %v480
    %511 = vmatprep.subr.mxu0 0.0
    %512 = vmatpush1.msra.mxu0 %v481
    %513 = vmatprep.subr.mxu0 0.0
    %514 = vmatpush1.msra.mxu0 %v482
    %515 = vmatprep.subr.mxu0 0.0
    %516 = vmatpush1.msra.mxu0 %v483
    %517 = vmatprep.subr.mxu0 0.0
    %518 = vmatpush1.msra.mxu0 %v484
    %519 = vmatprep.subr.mxu0 0.0
    %520 = vmatpush1.msra.mxu0 %v485
    %521 = vmatprep.subr.mxu0 0.0
    %522 = vmatpush1.msra.mxu0 %v486
    %523 = vmatprep.subr.mxu0 0.0
    %524 = vmatpush1.msra.mxu0 %v487
    %525 = vmatprep.subr.mxu0 0.0
    %526 = vmatpush1.msra.mxu0 %v488
    %527 = vmatprep.subr.mxu0 0.0
    %528 = vmatpush1.msra.mxu0 %v489
    %529 = vmatprep.subr.mxu0 0.0
    %530 = vmatpush1.msra.mxu0 0.0
    %531 = vmatprep.subr.mxu0 0.0
    %532 = vmatpush1.msra.mxu0 0.0
    %533 = vmatprep.subr.mxu0 0.0
    %534 = vmatpush1.msra.mxu0 0.0
    %535 = vmatprep.subr.mxu0 0.0
    %536 = vmatpush1.msra.mxu0 0.0
    %537 = vmatprep.subr.mxu0 0.0
    %538 = vmatpush1.msra.mxu0 0.0
    %539 = vmatprep.subr.mxu0 0.0
    %540 = vmatpush1.msra.mxu0 0.0
    %541 = vmatprep.subr.mxu0 0.0
    %542 = vmatpush1.msra.mxu0 0.0
    %543 = vmatprep.subr.mxu0 0.0
    %544 = vmatpush1.msra.mxu0 0.0
    %545 = vmatprep.subr.mxu0 0.0
    %546 = vmatpush1.msra.mxu0 0.0
    %547 = vmatprep.subr.mxu0 0.0
    %548 = vmatpush1.msra.mxu0 0.0
    %549 = vmatprep.subr.mxu0 0.0
    %550 = vmatpush1.msra.mxu0 0.0
    %551 = vmatprep.subr.mxu0 0.0
    %552 = vmatpush1.msra.mxu0 0.0
    %553 = vmatprep.subr.mxu0 0.0
    %554 = vmatpush1.msra.mxu0 0.0
    %555 = vmatprep.subr.mxu0 0.0
    %556 = vmatpush1.msra.mxu0 0.0
    %557 = vmatprep.subr.mxu0 0.0
    %558 = vmatpush1.msra.mxu0 0.0
    %559 = vmatprep.subr.mxu0 0.0
    %560 = vmatpush1.msra.mxu0 0.0
    %561 = vmatprep.mubr.f32.mxu0 0.0
    %562 = vmatmul.mubr.f32.gmra.mrb[0].mxu0 %v252
    %v563 = vpop.f32.mrb[0].mxu0
    %v564 = vadd.f32 %v495, %v563
    %v565 = vpop.f32.mrb[0].mxu0
    %566 = vmatprep.mubr.f32.mxu0 0.0
    %567 = vmatmul.mubr.f32.gmra.mrb[0].mxu0 %v253
    %v568 = vpop.f32.mrb[0].mxu0
    %v569 = vadd.f32 %v495, %v568
    %v570 = vpop.f32.mrb[0].mxu0
    %571 = vmatprep.mubr.f32.mxu0 0.0
    %572 = vmatmul.mubr.f32.gmra.mrb[0].mxu0 %v254
    %v573 = vpop.f32.mrb[0].mxu0
    %v574 = vadd.f32 %v495, %v573
    %v575 = vpop.f32.mrb[0].mxu0
    %576 = vmatprep.mubr.f32.mxu0 0.0
    %577 = vmatmul.mubr.f32.gmra.mrb[0].mxu0 %v255
    %v578 = vpop.f32.mrb[0].mxu0
    %v579 = vadd.f32 %v495, %v578
    %v580 = vpop.f32.mrb[0].mxu0
    %581 = vdwg.mxu0
    %vm582 = vcmask 261120
    %v584 = vsel %vm582, %v348, 0
    %v587 = vsel %vm582, %v353, 0
    %v590 = vsel %vm582, %v456, 0
    %v593 = vsel %vm582, %v461, 0
    %595 = vmatprep.subr.mxu0 0.0
    %596 = vmatpush1.xpose.msra.mxu0 %v590
    %597 = vmatprep.subr.mxu0 0.0
    %598 = vmatpush1.xpose.msra.mxu0 %v593
    %599 = vmatprep.subr.mxu0 0.0
    %600 = vmatpush1.xpose.msra.mxu0 0.0
    %601 = vmatprep.subr.mxu0 0.0
    %602 = vmatpush1.xpose.msra.mxu0 0.0
    %603 = vmatprep.subr.mxu0 0.0
    %604 = vmatpush1.xpose.msra.mxu0 0.0
    %605 = vmatprep.subr.mxu0 0.0
    %606 = vmatpush1.xpose.msra.mxu0 0.0
    %607 = vmatprep.subr.mxu0 0.0
    %608 = vmatpush1.xpose.msra.mxu0 0.0
    %609 = vmatprep.subr.mxu0 0.0
    %610 = vmatpush1.xpose.msra.mxu0 0.0
    %611 = vmatprep.subr.mxu0 0.0
    %612 = vmatpush1.xpose.msra.mxu0 0.0
    %613 = vmatprep.subr.mxu0 0.0
    %614 = vmatpush1.xpose.msra.mxu0 0.0
    %615 = vmatprep.subr.mxu0 0.0
    %616 = vmatpush1.xpose.msra.mxu0 0.0
    %617 = vmatprep.subr.mxu0 0.0
    %618 = vmatpush1.xpose.msra.mxu0 0.0
    %619 = vmatprep.subr.mxu0 0.0
    %620 = vmatpush1.xpose.msra.mxu0 0.0
    %621 = vmatprep.subr.mxu0 0.0
    %622 = vmatpush1.xpose.msra.mxu0 0.0
    %623 = vmatprep.subr.mxu0 0.0
    %624 = vmatpush1.xpose.msra.mxu0 0.0
    %625 = vmatprep.subr.mxu0 0.0
    %626 = vmatpush1.xpose.msra.mxu0 0.0
    %627 = vmatprep.subr.mxu0 0.0
    %628 = vmatpush1.xpose.msra.mxu0 0.0
    %629 = vmatprep.subr.mxu0 0.0
    %630 = vmatpush1.xpose.msra.mxu0 0.0
    %631 = vmatprep.subr.mxu0 0.0
    %632 = vmatpush1.xpose.msra.mxu0 0.0
    %633 = vmatprep.subr.mxu0 0.0
    %634 = vmatpush1.xpose.msra.mxu0 0.0
    %635 = vmatprep.subr.mxu0 0.0
    %636 = vmatpush1.xpose.msra.mxu0 0.0
    %637 = vmatprep.subr.mxu0 0.0
    %638 = vmatpush1.xpose.msra.mxu0 0.0
    %639 = vmatprep.subr.mxu0 0.0
    %640 = vmatpush1.xpose.msra.mxu0 0.0
    %641 = vmatprep.subr.mxu0 0.0
    %642 = vmatpush1.xpose.msra.mxu0 0.0
    %643 = vmatprep.subr.mxu0 0.0
    %644 = vmatpush1.xpose.msra.mxu0 0.0
    %645 = vmatprep.subr.mxu0 0.0
    %646 = vmatpush1.xpose.msra.mxu0 0.0
    %647 = vmatprep.subr.mxu0 0.0
    %648 = vmatpush1.xpose.msra.mxu0 0.0
    %649 = vmatprep.subr.mxu0 0.0
    %650 = vmatpush1.xpose.msra.mxu0 0.0
    %651 = vmatprep.subr.mxu0 0.0
    %652 = vmatpush1.xpose.msra.mxu0 0.0
    %653 = vmatprep.subr.mxu0 0.0
    %654 = vmatpush1.xpose.msra.mxu0 0.0
    %655 = vmatprep.subr.mxu0 0.0
    %656 = vmatpush1.xpose.msra.mxu0 0.0
    %657 = vmatprep.subr.mxu0 0.0
    %658 = vmatpush1.xpose.msra.mxu0 0.0
    %659 = vmatprep.mubr.f32.mxu0 0.0
    %660 = vmatmul.mubr.f32.gmra.mrb[0].mxu0 %v584
    %v661 = vpop.f32.mrb[0].mxu0
    %v662 = vadd.f32 0.0, %v661
    %v663 = vpop.f32.mrb[0].mxu0
    %664 = vmatprep.mubr.f32.mxu0 0.0
    %665 = vmatmul.mubr.f32.gmra.mrb[0].mxu0 %v587
    %v666 = vpop.f32.mrb[0].mxu0
    %v667 = vadd.f32 0.0, %v666
    %v668 = vpop.f32.mrb[0].mxu0
    %669 = vdwg.mxu0
    %v671 = vsel %vm582, %v358, 0
    %v674 = vsel %vm582, %v363, 0
    %v677 = vsel %vm582, %v466, 0
    %v680 = vsel %vm582, %v471, 0
    %682 = vmatprep.subr.mxu0 0.0
    %683 = vmatpush1.xpose.msra.mxu0 %v677
    %684 = vmatprep.subr.mxu0 0.0
    %685 = vmatpush1.xpose.msra.mxu0 %v680
    %686 = vmatprep.subr.mxu0 0.0
    %687 = vmatpush1.xpose.msra.mxu0 0.0
    %688 = vmatprep.subr.mxu0 0.0
    %689 = vmatpush1.xpose.msra.mxu0 0.0
    %690 = vmatprep.subr.mxu0 0.0
    %691 = vmatpush1.xpose.msra.mxu0 0.0
    %692 = vmatprep.subr.mxu0 0.0
    %693 = vmatpush1.xpose.msra.mxu0 0.0
    %694 = vmatprep.subr.mxu0 0.0
    %695 = vmatpush1.xpose.msra.mxu0 0.0
    %696 = vmatprep.subr.mxu0 0.0
    %697 = vmatpush1.xpose.msra.mxu0 0.0
    %698 = vmatprep.subr.mxu0 0.0
    %699 = vmatpush1.xpose.msra.mxu0 0.0
    %700 = vmatprep.subr.mxu0 0.0
    %701 = vmatpush1.xpose.msra.mxu0 0.0
    %702 = vmatprep.subr.mxu0 0.0
    %703 = vmatpush1.xpose.msra.mxu0 0.0
    %704 = vmatprep.subr.mxu0 0.0
    %705 = vmatpush1.xpose.msra.mxu0 0.0
    %706 = vmatprep.subr.mxu0 0.0
    %707 = vmatpush1.xpose.msra.mxu0 0.0
    %708 = vmatprep.subr.mxu0 0.0
    %709 = vmatpush1.xpose.msra.mxu0 0.0
    %710 = vmatprep.subr.mxu0 0.0
    %711 = vmatpush1.xpose.msra.mxu0 0.0
    %712 = vmatprep.subr.mxu0 0.0
    %713 = vmatpush1.xpose.msra.mxu0 0.0
    %714 = vmatprep.subr.mxu0 0.0
    %715 = vmatpush1.xpose.msra.mxu0 0.0
    %716 = vmatprep.subr.mxu0 0.0
    %717 = vmatpush1.xpose.msra.mxu0 0.0
    %718 = vmatprep.subr.mxu0 0.0
    %719 = vmatpush1.xpose.msra.mxu0 0.0
    %720 = vmatprep.subr.mxu0 0.0
    %721 = vmatpush1.xpose.msra.mxu0 0.0
    %722 = vmatprep.subr.mxu0 0.0
    %723 = vmatpush1.xpose.msra.mxu0 0.0
    %724 = vmatprep.subr.mxu0 0.0
    %725 = vmatpush1.xpose.msra.mxu0 0.0
    %726 = vmatprep.subr.mxu0 0.0
    %727 = vmatpush1.xpose.msra.mxu0 0.0
    %728 = vmatprep.subr.mxu0 0.0
    %729 = vmatpush1.xpose.msra.mxu0 0.0
    %730 = vmatprep.subr.mxu0 0.0
    %731 = vmatpush1.xpose.msra.mxu0 0.0
    %732 = vmatprep.subr.mxu0 0.0
    %733 = vmatpush1.xpose.msra.mxu0 0.0
    %734 = vmatprep.subr.mxu0 0.0
    %735 = vmatpush1.xpose.msra.mxu0 0.0
    %736 = vmatprep.subr.mxu0 0.0
    %737 = vmatpush1.xpose.msra.mxu0 0.0
    %738 = vmatprep.subr.mxu0 0.0
    %739 = vmatpush1.xpose.msra.mxu0 0.0
    %740 = vmatprep.subr.mxu0 0.0
    %741 = vmatpush1.xpose.msra.mxu0 0.0
    %742 = vmatprep.subr.mxu0 0.0
    %743 = vmatpush1.xpose.msra.mxu0 0.0
    %744 = vmatprep.subr.mxu0 0.0
    %745 = vmatpush1.xpose.msra.mxu0 0.0
    %746 = vmatprep.mubr.f32.mxu0 0.0
    %747 = vmatmul.mubr.f32.gmra.mrb[0].mxu0 %v671
    %v748 = vpop.f32.mrb[0].mxu0
    %v749 = vadd.f32 0.0, %v748
    %v750 = vpop.f32.mrb[0].mxu0
    %751 = vmatprep.mubr.f32.mxu0 0.0
    %752 = vmatmul.mubr.f32.gmra.mrb[0].mxu0 %v674
    %v753 = vpop.f32.mrb[0].mxu0
    %v754 = vadd.f32 0.0, %v753
    %v755 = vpop.f32.mrb[0].mxu0
    %756 = vdwg.mxu0
    %v757 = vmul.f32 %v662, 0.17677669
    %v758 = vmul.f32 %v667, 0.17677669
    %v759 = vmul.f32 %v749, 0.17677669
    %v760 = vmul.f32 %v754, 0.17677669
    %v763 = vlaneseq
    %v764 = vshrl.u32 %v763, 7
    %v765 = vsub.s32 0, %v764
    %v766 = vrot.slane %v256, %v765
    %v767 = vlaneseq
    %v768 = vshrl.u32 %v767, 7
    %v769 = vsub.s32 0, %v768
    %v770 = vrot.slane %v257, %v769
    %v773 = vadd.f32 %v757, %v766
    %v774 = vadd.f32 %v758, %v766
    %v775 = vadd.f32 %v759, %v770
    %v776 = vadd.f32 %v760, %v770
    %vm777 = vcmask 130048
    %v778 = vsel %vm777, %v773, -inf
    %779 = vmax.xlane.f32.xlu0 %v778
    %v780 = vpop.xlane.xlu0 %779
    %v781 = vsel %vm777, %v774, -inf
    %782 = vmax.xlane.f32.xlu0 %v781
    %v783 = vpop.xlane.xlu0 %782
    %v784 = vsel %vm777, %v775, -inf
    %785 = vmax.xlane.f32.xlu0 %v784
    %v786 = vpop.xlane.xlu0 %785
    %v787 = vsel %vm777, %v776, -inf
    %788 = vmax.xlane.f32.xlu0 %v787
    %v789 = vpop.xlane.xlu0 %788
    %v790 = vsub.f32 %v773, %v780
    %v791 = vsub.f32 %v774, %v783
    %v792 = vsub.f32 %v775, %v786
    %v793 = vsub.f32 %v776, %v789
    %v794 = vmul.f32 %v790, 1.442695
    %v795 = vpow.pop %v794
    %v796 = vmul.f32 %v791, 1.442695
    %v797 = vpow.pop %v796
    %v798 = vmul.f32 %v792, 1.442695
    %v799 = vpow.pop %v798
    %v800 = vmul.f32 %v793, 1.442695
    %v801 = vpow.pop %v800
    %v802 = vsel %vm777, %v795, 0.0
    %803 = vadd.xlane.f32.xlu0 %v802
    %v804 = vpop.xlane.xlu0 %803
    %v805 = vsel %vm777, %v797, 0.0
    %806 = vadd.xlane.f32.xlu0 %v805
    %v807 = vpop.xlane.xlu0 %806
    %v808 = vsel %vm777, %v799, 0.0
    %809 = vadd.xlane.f32.xlu0 %v808
    %v810 = vpop.xlane.xlu0 %809
    %v811 = vsel %vm777, %v801, 0.0
    %812 = vadd.xlane.f32.xlu0 %v811
    %v813 = vpop.xlane.xlu0 %812
    %v814 = vrcp.pop %v804
    %v815 = vmul.f32 %v795, %v814
    %v816 = vrcp.pop %v807
    %v817 = vmul.f32 %v797, %v816
    %v818 = vrcp.pop %v810
    %v819 = vmul.f32 %v799, %v818
    %v820 = vrcp.pop %v813
    %v821 = vmul.f32 %v801, %v820
    %v823 = vsel %vm777, %v815, 0
    %v826 = vsel %vm777, %v817, 0
    %828 = vmatprep.subr.mxu0 0.0
    %829 = vmatpush1.msra.mxu0 %v564
    %830 = vmatprep.subr.mxu0 0.0
    %831 = vmatpush1.msra.mxu0 %v569
    %832 = vmatprep.subr.mxu0 0.0
    %833 = vmatpush1.msra.mxu0 0.0
    %834 = vmatprep.subr.mxu0 0.0
    %835 = vmatpush1.msra.mxu0 0.0
    %836 = vmatprep.subr.mxu0 0.0
    %837 = vmatpush1.msra.mxu0 0.0
    %838 = vmatprep.subr.mxu0 0.0
    %839 = vmatpush1.msra.mxu0 0.0
    %840 = vmatprep.subr.mxu0 0.0
    %841 = vmatpush1.msra.mxu0 0.0
    %842 = vmatprep.subr.mxu0 0.0
    %843 = vmatpush1.msra.mxu0 0.0
    %844 = vmatprep.subr.mxu0 0.0
    %845 = vmatpush1.msra.mxu0 0.0
    %846 = vmatprep.subr.mxu0 0.0
    %847 = vmatpush1.msra.mxu0 0.0
    %848 = vmatprep.subr.mxu0 0.0
    %849 = vmatpush1.msra.mxu0 0.0
    %850 = vmatprep.subr.mxu0 0.0
    %851 = vmatpush1.msra.mxu0 0.0
    %852 = vmatprep.subr.mxu0 0.0
    %853 = vmatpush1.msra.mxu0 0.0
    %854 = vmatprep.subr.mxu0 0.0
    %855 = vmatpush1.msra.mxu0 0.0
    %856 = vmatprep.subr.mxu0 0.0
    %857 = vmatpush1.msra.mxu0 0.0
    %858 = vmatprep.subr.mxu0 0.0
    %859 = vmatpush1.msra.mxu0 0.0
    %860 = vmatprep.subr.mxu0 0.0
    %861 = vmatpush1.msra.mxu0 0.0
    %862 = vmatprep.subr.mxu0 0.0
    %863 = vmatpush1.msra.mxu0 0.0
    %864 = vmatprep.subr.mxu0 0.0
    %865 = vmatpush1.msra.mxu0 0.0
    %866 = vmatprep.subr.mxu0 0.0
    %867 = vmatpush1.msra.mxu0 0.0
    %868 = vmatprep.subr.mxu0 0.0
    %869 = vmatpush1.msra.mxu0 0.0
    %870 = vmatprep.subr.mxu0 0.0
    %871 = vmatpush1.msra.mxu0 0.0
    %872 = vmatprep.subr.mxu0 0.0
    %873 = vmatpush1.msra.mxu0 0.0
    %874 = vmatprep.subr.mxu0 0.0
    %875 = vmatpush1.msra.mxu0 0.0
    %876 = vmatprep.subr.mxu0 0.0
    %877 = vmatpush1.msra.mxu0 0.0
    %878 = vmatprep.subr.mxu0 0.0
    %879 = vmatpush1.msra.mxu0 0.0
    %880 = vmatprep.subr.mxu0 0.0
    %881 = vmatpush1.msra.mxu0 0.0
    %882 = vmatprep.subr.mxu0 0.0
    %883 = vmatpush1.msra.mxu0 0.0
    %884 = vmatprep.subr.mxu0 0.0
    %885 = vmatpush1.msra.mxu0 0.0
    %886 = vmatprep.subr.mxu0 0.0
    %887 = vmatpush1.msra.mxu0 0.0
    %888 = vmatprep.subr.mxu0 0.0
    %889 = vmatpush1.msra.mxu0 0.0
    %890 = vmatprep.subr.mxu0 0.0
    %891 = vmatpush1.msra.mxu0 0.0
    %892 = vmatprep.mubr.f32.mxu0 0.0
    %893 = vmatmul.mubr.f32.gmra.mrb[0].mxu0 %v823
    %v894 = vpop.f32.mrb[0].mxu0
    %v895 = vadd.f32 0.0, %v894
    %v896 = vpop.f32.mrb[0].mxu0
    %897 = vmatprep.mubr.f32.mxu0 0.0
    %898 = vmatmul.mubr.f32.gmra.mrb[0].mxu0 %v826
    %v899 = vpop.f32.mrb[0].mxu0
    %v900 = vadd.f32 0.0, %v899
    %v901 = vpop.f32.mrb[0].mxu0
    %902 = vdwg.mxu0
    %v904 = vsel %vm777, %v819, 0
    %v907 = vsel %vm777, %v821, 0
    %909 = vmatprep.subr.mxu0 0.0
    %910 = vmatpush1.msra.mxu0 %v574
    %911 = vmatprep.subr.mxu0 0.0
    %912 = vmatpush1.msra.mxu0 %v579
    %913 = vmatprep.subr.mxu0 0.0
    %914 = vmatpush1.msra.mxu0 0.0
    %915 = vmatprep.subr.mxu0 0.0
    %916 = vmatpush1.msra.mxu0 0.0
    %917 = vmatprep.subr.mxu0 0.0
    %918 = vmatpush1.msra.mxu0 0.0
    %919 = vmatprep.subr.mxu0 0.0
    %920 = vmatpush1.msra.mxu0 0.0
    %921 = vmatprep.subr.mxu0 0.0
    %922 = vmatpush1.msra.mxu0 0.0
    %923 = vmatprep.subr.mxu0 0.0
    %924 = vmatpush1.msra.mxu0 0.0
    %925 = vmatprep.subr.mxu0 0.0
    %926 = vmatpush1.msra.mxu0 0.0
    %927 = vmatprep.subr.mxu0 0.0
    %928 = vmatpush1.msra.mxu0 0.0
    %929 = vmatprep.subr.mxu0 0.0
    %930 = vmatpush1.msra.mxu0 0.0
    %931 = vmatprep.subr.mxu0 0.0
    %932 = vmatpush1.msra.mxu0 0.0
    %933 = vmatprep.subr.mxu0 0.0
    %934 = vmatpush1.msra.mxu0 0.0
    %935 = vmatprep.subr.mxu0 0.0
    %936 = vmatpush1.msra.mxu0 0.0
    %937 = vmatprep.subr.mxu0 0.0
    %938 = vmatpush1.msra.mxu0 0.0
    %939 = vmatprep.subr.mxu0 0.0
    %940 = vmatpush1.msra.mxu0 0.0
    %941 = vmatprep.subr.mxu0 0.0
    %942 = vmatpush1.msra.mxu0 0.0
    %943 = vmatprep.subr.mxu0 0.0
    %944 = vmatpush1.msra.mxu0 0.0
    %945 = vmatprep.subr.mxu0 0.0
    %946 = vmatpush1.msra.mxu0 0.0
    %947 = vmatprep.subr.mxu0 0.0
    %948 = vmatpush1.msra.mxu0 0.0
    %949 = vmatprep.subr.mxu0 0.0
    %950 = vmatpush1.msra.mxu0 0.0
    %951 = vmatprep.subr.mxu0 0.0
    %952 = vmatpush1.msra.mxu0 0.0
    %953 = vmatprep.subr.mxu0 0.0
    %954 = vmatpush1.msra.mxu0 0.0
    %955 = vmatprep.subr.mxu0 0.0
    %956 = vmatpush1.msra.mxu0 0.0
    %957 = vmatprep.subr.mxu0 0.0
    %958 = vmatpush1.msra.mxu0 0.0
    %959 = vmatprep.subr.mxu0 0.0
    %960 = vmatpush1.msra.mxu0 0.0
    %961 = vmatprep.subr.mxu0 0.0
    %962 = vmatpush1.msra.mxu0 0.0
    %963 = vmatprep.subr.mxu0 0.0
    %964 = vmatpush1.msra.mxu0 0.0
    %965 = vmatprep.subr.mxu0 0.0
    %966 = vmatpush1.msra.mxu0 0.0
    %967 = vmatprep.subr.mxu0 0.0
    %968 = vmatpush1.msra.mxu0 0.0
    %969 = vmatprep.subr.mxu0 0.0
    %970 = vmatpush1.msra.mxu0 0.0
    %971 = vmatprep.subr.mxu0 0.0
    %972 = vmatpush1.msra.mxu0 0.0
    %973 = vmatprep.mubr.f32.mxu0 0.0
    %974 = vmatmul.mubr.f32.gmra.mrb[0].mxu0 %v904
    %v975 = vpop.f32.mrb[0].mxu0
    %v976 = vadd.f32 0.0, %v975
    %v977 = vpop.f32.mrb[0].mxu0
    %978 = vmatprep.mubr.f32.mxu0 0.0
    %979 = vmatmul.mubr.f32.gmra.mrb[0].mxu0 %v907
    %v980 = vpop.f32.mrb[0].mxu0
    %v981 = vadd.f32 0.0, %v980
    %v982 = vpop.f32.mrb[0].mxu0
    %983 = vdwg.mxu0
    %v984 = vld [vmem:[%s12] sm:$0xff]
    %v985 = vld [vmem:[%s12 + $0x8] sm:$0xff]
    %v986 = vld [vmem:[%s12 + $0x10] sm:$0xff]
    %v987 = vld [vmem:[%s12 + $0x18] sm:$0xff]
    %s988 = scalar_lea.vmem %s6, 128
    %v989 = vld [vmem:[%s988] sm:$0xff]
    %v990 = vld [vmem:[%s988 + $0x8] sm:$0xff]
    %v991 = vld [vmem:[%s988 + $0x10] sm:$0xff]
    %v992 = vld [vmem:[%s988 + $0x18] sm:$0xff]
    %v993 = vld [vmem:[%s988 + $0x20] sm:$0xff]
    %v994 = vld [vmem:[%s988 + $0x28] sm:$0xff]
    %v995 = vld [vmem:[%s988 + $0x30] sm:$0xff]
    %v996 = vld [vmem:[%s988 + $0x38] sm:$0xff]
    %v997 = vld [vmem:[%s988 + $0x40] sm:$0xff]
    %v998 = vld [vmem:[%s988 + $0x48] sm:$0xff]
    %v999 = vld [vmem:[%s988 + $0x50] sm:$0xff]
    %v1000 = vld [vmem:[%s988 + $0x58] sm:$0xff]
    %v1001 = vld [vmem:[%s988 + $0x60] sm:$0xff]
    %v1002 = vld [vmem:[%s988 + $0x68] sm:$0xff]
    %v1003 = vld [vmem:[%s988 + $0x70] sm:$0xff]
    %v1004 = vld [vmem:[%s988 + $0x78] sm:$0xff]
    %s1005 = scalar_lea.vmem %s7, 1
    %v1006 = vld [vmem:[%s1005] sm:$0x1]
    %v1008 = vlaneseq
    %v1009 = vshrl.u32 %v1008, 7
    %v1010 = vsub.s32 0, %v1009
    %v1011 = vrot.slane %v1006, %v1010
    %1013 = vmatprep.subr.mxu0 0.0
    %1014 = vmatpush1.msra.mxu0 %v989
    %1015 = vmatprep.subr.mxu0 0.0
    %1016 = vmatpush1.msra.mxu0 %v990
    %1017 = vmatprep.subr.mxu0 0.0
    %1018 = vmatpush1.msra.mxu0 %v991
    %1019 = vmatprep.subr.mxu0 0.0
    %1020 = vmatpush1.msra.mxu0 %v992
    %1021 = vmatprep.subr.mxu0 0.0
    %1022 = vmatpush1.msra.mxu0 %v993
    %1023 = vmatprep.subr.mxu0 0.0
    %1024 = vmatpush1.msra.mxu0 %v994
    %1025 = vmatprep.subr.mxu0 0.0
    %1026 = vmatpush1.msra.mxu0 %v995
    %1027 = vmatprep.subr.mxu0 0.0
    %1028 = vmatpush1.msra.mxu0 %v996
    %1029 = vmatprep.subr.mxu0 0.0
    %1030 = vmatpush1.msra.mxu0 %v997
    %1031 = vmatprep.subr.mxu0 0.0
    %1032 = vmatpush1.msra.mxu0 %v998
    %1033 = vmatprep.subr.mxu0 0.0
    %1034 = vmatpush1.msra.mxu0 %v999
    %1035 = vmatprep.subr.mxu0 0.0
    %1036 = vmatpush1.msra.mxu0 %v1000
    %1037 = vmatprep.subr.mxu0 0.0
    %1038 = vmatpush1.msra.mxu0 %v1001
    %1039 = vmatprep.subr.mxu0 0.0
    %1040 = vmatpush1.msra.mxu0 %v1002
    %1041 = vmatprep.subr.mxu0 0.0
    %1042 = vmatpush1.msra.mxu0 %v1003
    %1043 = vmatprep.subr.mxu0 0.0
    %1044 = vmatpush1.msra.mxu0 %v1004
    %1045 = vmatprep.subr.mxu0 0.0
    %1046 = vmatpush1.msra.mxu0 0.0
    %1047 = vmatprep.subr.mxu0 0.0
    %1048 = vmatpush1.msra.mxu0 0.0
    %1049 = vmatprep.subr.mxu0 0.0
    %1050 = vmatpush1.msra.mxu0 0.0
    %1051 = vmatprep.subr.mxu0 0.0
    %1052 = vmatpush1.msra.mxu0 0.0
    %1053 = vmatprep.subr.mxu0 0.0
    %1054 = vmatpush1.msra.mxu0 0.0
    %1055 = vmatprep.subr.mxu0 0.0
    %1056 = vmatpush1.msra.mxu0 0.0
    %1057 = vmatprep.subr.mxu0 0.0
    %1058 = vmatpush1.msra.mxu0 0.0
    %1059 = vmatprep.subr.mxu0 0.0
    %1060 = vmatpush1.msra.mxu0 0.0
    %1061 = vmatprep.subr.mxu0 0.0
    %1062 = vmatpush1.msra.mxu0 0.0
    %1063 = vmatprep.subr.mxu0 0.0
    %1064 = vmatpush1.msra.mxu0 0.0
    %1065 = vmatprep.subr.mxu0 0.0
    %1066 = vmatpush1.msra.mxu0 0.0
    %1067 = vmatprep.subr.mxu0 0.0
    %1068 = vmatpush1.msra.mxu0 0.0
    %1069 = vmatprep.subr.mxu0 0.0
    %1070 = vmatpush1.msra.mxu0 0.0
    %1071 = vmatprep.subr.mxu0 0.0
    %1072 = vmatpush1.msra.mxu0 0.0
    %1073 = vmatprep.subr.mxu0 0.0
    %1074 = vmatpush1.msra.mxu0 0.0
    %1075 = vmatprep.subr.mxu0 0.0
    %1076 = vmatpush1.msra.mxu0 0.0
    %1077 = vmatprep.mubr.f32.mxu0 0.0
    %1078 = vmatmul.mubr.f32.gmra.mrb[0].mxu0 %v252
    %v1079 = vpop.f32.mrb[0].mxu0
    %v1080 = vadd.f32 %v1011, %v1079
    %v1081 = vpop.f32.mrb[0].mxu0
    %1082 = vmatprep.mubr.f32.mxu0 0.0
    %1083 = vmatmul.mubr.f32.gmra.mrb[0].mxu0 %v253
    %v1084 = vpop.f32.mrb[0].mxu0
    %v1085 = vadd.f32 %v1011, %v1084
    %v1086 = vpop.f32.mrb[0].mxu0
    %1087 = vmatprep.mubr.f32.mxu0 0.0
    %1088 = vmatmul.mubr.f32.gmra.mrb[0].mxu0 %v254
    %v1089 = vpop.f32.mrb[0].mxu0
    %v1090 = vadd.f32 %v1011, %v1089
    %v1091 = vpop.f32.mrb[0].mxu0
    %1092 = vmatprep.mubr.f32.mxu0 0.0
    %1093 = vmatmul.mubr.f32.gmra.mrb[0].mxu0 %v255
    %v1094 = vpop.f32.mrb[0].mxu0
    %v1095 = vadd.f32 %v1011, %v1094
    %v1096 = vpop.f32.mrb[0].mxu0
    %1097 = vdwg.mxu0
    %s1098 = scalar_lea.vmem %s8, 128
    %v1099 = vld [vmem:[%s1098] sm:$0xff]
    %v1100 = vld [vmem:[%s1098 + $0x8] sm:$0xff]
    %v1101 = vld [vmem:[%s1098 + $0x10] sm:$0xff]
    %v1102 = vld [vmem:[%s1098 + $0x18] sm:$0xff]
    %v1103 = vld [vmem:[%s1098 + $0x20] sm:$0xff]
    %v1104 = vld [vmem:[%s1098 + $0x28] sm:$0xff]
    %v1105 = vld [vmem:[%s1098 + $0x30] sm:$0xff]
    %v1106 = vld [vmem:[%s1098 + $0x38] sm:$0xff]
    %v1107 = vld [vmem:[%s1098 + $0x40] sm:$0xff]
    %v1108 = vld [vmem:[%s1098 + $0x48] sm:$0xff]
    %v1109 = vld [vmem:[%s1098 + $0x50] sm:$0xff]
    %v1110 = vld [vmem:[%s1098 + $0x58] sm:$0xff]
    %v1111 = vld [vmem:[%s1098 + $0x60] sm:$0xff]
    %v1112 = vld [vmem:[%s1098 + $0x68] sm:$0xff]
    %v1113 = vld [vmem:[%s1098 + $0x70] sm:$0xff]
    %v1114 = vld [vmem:[%s1098 + $0x78] sm:$0xff]
    %s1115 = scalar_lea.vmem %s9, 1
    %v1116 = vld [vmem:[%s1115] sm:$0x1]
    %v1118 = vlaneseq
    %v1119 = vshrl.u32 %v1118, 7
    %v1120 = vsub.s32 0, %v1119
    %v1121 = vrot.slane %v1116, %v1120
    %1123 = vmatprep.subr.mxu0 0.0
    %1124 = vmatpush1.msra.mxu0 %v1099
    %1125 = vmatprep.subr.mxu0 0.0
    %1126 = vmatpush1.msra.mxu0 %v1100
    %1127 = vmatprep.subr.mxu0 0.0
    %1128 = vmatpush1.msra.mxu0 %v1101
    %1129 = vmatprep.subr.mxu0 0.0
    %1130 = vmatpush1.msra.mxu0 %v1102
    %1131 = vmatprep.subr.mxu0 0.0
    %1132 = vmatpush1.msra.mxu0 %v1103
    %1133 = vmatprep.subr.mxu0 0.0
    %1134 = vmatpush1.msra.mxu0 %v1104
    %1135 = vmatprep.subr.mxu0 0.0
    %1136 = vmatpush1.msra.mxu0 %v1105
    %1137 = vmatprep.subr.mxu0 0.0
    %1138 = vmatpush1.msra.mxu0 %v1106
    %1139 = vmatprep.subr.mxu0 0.0
    %1140 = vmatpush1.msra.mxu0 %v1107
    %1141 = vmatprep.subr.mxu0 0.0
    %1142 = vmatpush1.msra.mxu0 %v1108
    %1143 = vmatprep.subr.mxu0 0.0
    %1144 = vmatpush1.msra.mxu0 %v1109
    %1145 = vmatprep.subr.mxu0 0.0
    %1146 = vmatpush1.msra.mxu0 %v1110
    %1147 = vmatprep.subr.mxu0 0.0
    %1148 = vmatpush1.msra.mxu0 %v1111
    %1149 = vmatprep.subr.mxu0 0.0
    %1150 = vmatpush1.msra.mxu0 %v1112
    %1151 = vmatprep.subr.mxu0 0.0
    %1152 = vmatpush1.msra.mxu0 %v1113
    %1153 = vmatprep.subr.mxu0 0.0
    %1154 = vmatpush1.msra.mxu0 %v1114
    %1155 = vmatprep.subr.mxu0 0.0
    %1156 = vmatpush1.msra.mxu0 0.0
    %1157 = vmatprep.subr.mxu0 0.0
    %1158 = vmatpush1.msra.mxu0 0.0
    %1159 = vmatprep.subr.mxu0 0.0
    %1160 = vmatpush1.msra.mxu0 0.0
    %1161 = vmatprep.subr.mxu0 0.0
    %1162 = vmatpush1.msra.mxu0 0.0
    %1163 = vmatprep.subr.mxu0 0.0
    %1164 = vmatpush1.msra.mxu0 0.0
    %1165 = vmatprep.subr.mxu0 0.0
    %1166 = vmatpush1.msra.mxu0 0.0
    %1167 = vmatprep.subr.mxu0 0.0
    %1168 = vmatpush1.msra.mxu0 0.0
    %1169 = vmatprep.subr.mxu0 0.0
    %1170 = vmatpush1.msra.mxu0 0.0
    %1171 = vmatprep.subr.mxu0 0.0
    %1172 = vmatpush1.msra.mxu0 0.0
    %1173 = vmatprep.subr.mxu0 0.0
    %1174 = vmatpush1.msra.mxu0 0.0
    %1175 = vmatprep.subr.mxu0 0.0
    %1176 = vmatpush1.msra.mxu0 0.0
    %1177 = vmatprep.subr.mxu0 0.0
    %1178 = vmatpush1.msra.mxu0 0.0
    %1179 = vmatprep.subr.mxu0 0.0
    %1180 = vmatpush1.msra.mxu0 0.0
    %1181 = vmatprep.subr.mxu0 0.0
    %1182 = vmatpush1.msra.mxu0 0.0
    %1183 = vmatprep.subr.mxu0 0.0
    %1184 = vmatpush1.msra.mxu0 0.0
    %1185 = vmatprep.subr.mxu0 0.0
    %1186 = vmatpush1.msra.mxu0 0.0
    %1187 = vmatprep.mubr.f32.mxu0 0.0
    %1188 = vmatmul.mubr.f32.gmra.mrb[0].mxu0 %v252
    %v1189 = vpop.f32.mrb[0].mxu0
    %v1190 = vadd.f32 %v1121, %v1189
    %v1191 = vpop.f32.mrb[0].mxu0
    %1192 = vmatprep.mubr.f32.mxu0 0.0
    %1193 = vmatmul.mubr.f32.gmra.mrb[0].mxu0 %v253
    %v1194 = vpop.f32.mrb[0].mxu0
    %v1195 = vadd.f32 %v1121, %v1194
    %v1196 = vpop.f32.mrb[0].mxu0
    %1197 = vmatprep.mubr.f32.mxu0 0.0
    %1198 = vmatmul.mubr.f32.gmra.mrb[0].mxu0 %v254
    %v1199 = vpop.f32.mrb[0].mxu0
    %v1200 = vadd.f32 %v1121, %v1199
    %v1201 = vpop.f32.mrb[0].mxu0
    %1202 = vmatprep.mubr.f32.mxu0 0.0
    %1203 = vmatmul.mubr.f32.gmra.mrb[0].mxu0 %v255
    %v1204 = vpop.f32.mrb[0].mxu0
    %v1205 = vadd.f32 %v1121, %v1204
    %v1206 = vpop.f32.mrb[0].mxu0
    %1207 = vdwg.mxu0
    %s1208 = scalar_lea.vmem %s10, 128
    %v1209 = vld [vmem:[%s1208] sm:$0xff]
    %v1210 = vld [vmem:[%s1208 + $0x8] sm:$0xff]
    %v1211 = vld [vmem:[%s1208 + $0x10] sm:$0xff]
    %v1212 = vld [vmem:[%s1208 + $0x18] sm:$0xff]
    %v1213 = vld [vmem:[%s1208 + $0x20] sm:$0xff]
    %v1214 = vld [vmem:[%s1208 + $0x28] sm:$0xff]
    %v1215 = vld [vmem:[%s1208 + $0x30] sm:$0xff]
    %v1216 = vld [vmem:[%s1208 + $0x38] sm:$0xff]
    %v1217 = vld [vmem:[%s1208 + $0x40] sm:$0xff]
    %v1218 = vld [vmem:[%s1208 + $0x48] sm:$0xff]
    %v1219 = vld [vmem:[%s1208 + $0x50] sm:$0xff]
    %v1220 = vld [vmem:[%s1208 + $0x58] sm:$0xff]
    %v1221 = vld [vmem:[%s1208 + $0x60] sm:$0xff]
    %v1222 = vld [vmem:[%s1208 + $0x68] sm:$0xff]
    %v1223 = vld [vmem:[%s1208 + $0x70] sm:$0xff]
    %v1224 = vld [vmem:[%s1208 + $0x78] sm:$0xff]
    %s1225 = scalar_lea.vmem %s11, 1
    %v1226 = vld [vmem:[%s1225] sm:$0x1]
    %v1228 = vlaneseq
    %v1229 = vshrl.u32 %v1228, 7
    %v1230 = vsub.s32 0, %v1229
    %v1231 = vrot.slane %v1226, %v1230
    %1233 = vmatprep.subr.mxu0 0.0
    %1234 = vmatpush1.msra.mxu0 %v1209
    %1235 = vmatprep.subr.mxu0 0.0
    %1236 = vmatpush1.msra.mxu0 %v1210
    %1237 = vmatprep.subr.mxu0 0.0
    %1238 = vmatpush1.msra.mxu0 %v1211
    %1239 = vmatprep.subr.mxu0 0.0
    %1240 = vmatpush1.msra.mxu0 %v1212
    %1241 = vmatprep.subr.mxu0 0.0
    %1242 = vmatpush1.msra.mxu0 %v1213
    %1243 = vmatprep.subr.mxu0 0.0
    %1244 = vmatpush1.msra.mxu0 %v1214
    %1245 = vmatprep.subr.mxu0 0.0
    %1246 = vmatpush1.msra.mxu0 %v1215
    %1247 = vmatprep.subr.mxu0 0.0
    %1248 = vmatpush1.msra.mxu0 %v1216
    %1249 = vmatprep.subr.mxu0 0.0
    %1250 = vmatpush1.msra.mxu0 %v1217
    %1251 = vmatprep.subr.mxu0 0.0
    %1252 = vmatpush1.msra.mxu0 %v1218
    %1253 = vmatprep.subr.mxu0 0.0
    %1254 = vmatpush1.msra.mxu0 %v1219
    %1255 = vmatprep.subr.mxu0 0.0
    %1256 = vmatpush1.msra.mxu0 %v1220
    %1257 = vmatprep.subr.mxu0 0.0
    %1258 = vmatpush1.msra.mxu0 %v1221
    %1259 = vmatprep.subr.mxu0 0.0
    %1260 = vmatpush1.msra.mxu0 %v1222
    %1261 = vmatprep.subr.mxu0 0.0
    %1262 = vmatpush1.msra.mxu0 %v1223
    %1263 = vmatprep.subr.mxu0 0.0
    %1264 = vmatpush1.msra.mxu0 %v1224
    %1265 = vmatprep.subr.mxu0 0.0
    %1266 = vmatpush1.msra.mxu0 0.0
    %1267 = vmatprep.subr.mxu0 0.0
    %1268 = vmatpush1.msra.mxu0 0.0
    %1269 = vmatprep.subr.mxu0 0.0
    %1270 = vmatpush1.msra.mxu0 0.0
    %1271 = vmatprep.subr.mxu0 0.0
    %1272 = vmatpush1.msra.mxu0 0.0
    %1273 = vmatprep.subr.mxu0 0.0
    %1274 = vmatpush1.msra.mxu0 0.0
    %1275 = vmatprep.subr.mxu0 0.0
    %1276 = vmatpush1.msra.mxu0 0.0
    %1277 = vmatprep.subr.mxu0 0.0
    %1278 = vmatpush1.msra.mxu0 0.0
    %1279 = vmatprep.subr.mxu0 0.0
    %1280 = vmatpush1.msra.mxu0 0.0
    %1281 = vmatprep.subr.mxu0 0.0
    %1282 = vmatpush1.msra.mxu0 0.0
    %1283 = vmatprep.subr.mxu0 0.0
    %1284 = vmatpush1.msra.mxu0 0.0
    %1285 = vmatprep.subr.mxu0 0.0
    %1286 = vmatpush1.msra.mxu0 0.0
    %1287 = vmatprep.subr.mxu0 0.0
    %1288 = vmatpush1.msra.mxu0 0.0
    %1289 = vmatprep.subr.mxu0 0.0
    %1290 = vmatpush1.msra.mxu0 0.0
    %1291 = vmatprep.subr.mxu0 0.0
    %1292 = vmatpush1.msra.mxu0 0.0
    %1293 = vmatprep.subr.mxu0 0.0
    %1294 = vmatpush1.msra.mxu0 0.0
    %1295 = vmatprep.subr.mxu0 0.0
    %1296 = vmatpush1.msra.mxu0 0.0
    %1297 = vmatprep.mubr.f32.mxu0 0.0
    %1298 = vmatmul.mubr.f32.gmra.mrb[0].mxu0 %v252
    %v1299 = vpop.f32.mrb[0].mxu0
    %v1300 = vadd.f32 %v1231, %v1299
    %v1301 = vpop.f32.mrb[0].mxu0
    %1302 = vmatprep.mubr.f32.mxu0 0.0
    %1303 = vmatmul.mubr.f32.gmra.mrb[0].mxu0 %v253
    %v1304 = vpop.f32.mrb[0].mxu0
    %v1305 = vadd.f32 %v1231, %v1304
    %v1306 = vpop.f32.mrb[0].mxu0
    %1307 = vmatprep.mubr.f32.mxu0 0.0
    %1308 = vmatmul.mubr.f32.gmra.mrb[0].mxu0 %v254
    %v1309 = vpop.f32.mrb[0].mxu0
    %v1310 = vadd.f32 %v1231, %v1309
    %v1311 = vpop.f32.mrb[0].mxu0
    %1312 = vmatprep.mubr.f32.mxu0 0.0
    %1313 = vmatmul.mubr.f32.gmra.mrb[0].mxu0 %v255
    %v1314 = vpop.f32.mrb[0].mxu0
    %v1315 = vadd.f32 %v1231, %v1314
    %v1316 = vpop.f32.mrb[0].mxu0
    %1317 = vdwg.mxu0
    %v1319 = vsel %vm582, %v1080, 0
    %v1322 = vsel %vm582, %v1085, 0
    %v1325 = vsel %vm582, %v1190, 0
    %v1328 = vsel %vm582, %v1195, 0
    %1330 = vmatprep.subr.mxu0 0.0
    %1331 = vmatpush1.xpose.msra.mxu0 %v1325
    %1332 = vmatprep.subr.mxu0 0.0
    %1333 = vmatpush1.xpose.msra.mxu0 %v1328
    %1334 = vmatprep.subr.mxu0 0.0
    %1335 = vmatpush1.xpose.msra.mxu0 0.0
    %1336 = vmatprep.subr.mxu0 0.0
    %1337 = vmatpush1.xpose.msra.mxu0 0.0
    %1338 = vmatprep.subr.mxu0 0.0
    %1339 = vmatpush1.xpose.msra.mxu0 0.0
    %1340 = vmatprep.subr.mxu0 0.0
    %1341 = vmatpush1.xpose.msra.mxu0 0.0
    %1342 = vmatprep.subr.mxu0 0.0
    %1343 = vmatpush1.xpose.msra.mxu0 0.0
    %1344 = vmatprep.subr.mxu0 0.0
    %1345 = vmatpush1.xpose.msra.mxu0 0.0
    %1346 = vmatprep.subr.mxu0 0.0
    %1347 = vmatpush1.xpose.msra.mxu0 0.0
    %1348 = vmatprep.subr.mxu0 0.0
    %1349 = vmatpush1.xpose.msra.mxu0 0.0
    %1350 = vmatprep.subr.mxu0 0.0
    %1351 = vmatpush1.xpose.msra.mxu0 0.0
    %1352 = vmatprep.subr.mxu0 0.0
    %1353 = vmatpush1.xpose.msra.mxu0 0.0
    %1354 = vmatprep.subr.mxu0 0.0
    %1355 = vmatpush1.xpose.msra.mxu0 0.0
    %1356 = vmatprep.subr.mxu0 0.0
    %1357 = vmatpush1.xpose.msra.mxu0 0.0
    %1358 = vmatprep.subr.mxu0 0.0
    %1359 = vmatpush1.xpose.msra.mxu0 0.0
    %1360 = vmatprep.subr.mxu0 0.0
    %1361 = vmatpush1.xpose.msra.mxu0 0.0
    %1362 = vmatprep.subr.mxu0 0.0
    %1363 = vmatpush1.xpose.msra.mxu0 0.0
    %1364 = vmatprep.subr.mxu0 0.0
    %1365 = vmatpush1.xpose.msra.mxu0 0.0
    %1366 = vmatprep.subr.mxu0 0.0
    %1367 = vmatpush1.xpose.msra.mxu0 0.0
    %1368 = vmatprep.subr.mxu0 0.0
    %1369 = vmatpush1.xpose.msra.mxu0 0.0
    %1370 = vmatprep.subr.mxu0 0.0
    %1371 = vmatpush1.xpose.msra.mxu0 0.0
    %1372 = vmatprep.subr.mxu0 0.0
    %1373 = vmatpush1.xpose.msra.mxu0 0.0
    %1374 = vmatprep.subr.mxu0 0.0
    %1375 = vmatpush1.xpose.msra.mxu0 0.0
    %1376 = vmatprep.subr.mxu0 0.0
    %1377 = vmatpush1.xpose.msra.mxu0 0.0
    %1378 = vmatprep.subr.mxu0 0.0
    %1379 = vmatpush1.xpose.msra.mxu0 0.0
    %1380 = vmatprep.subr.mxu0 0.0
    %1381 = vmatpush1.xpose.msra.mxu0 0.0
    %1382 = vmatprep.subr.mxu0 0.0
    %1383 = vmatpush1.xpose.msra.mxu0 0.0
    %1384 = vmatprep.subr.mxu0 0.0
    %1385 = vmatpush1.xpose.msra.mxu0 0.0
    %1386 = vmatprep.subr.mxu0 0.0
    %1387 = vmatpush1.xpose.msra.mxu0 0.0
    %1388 = vmatprep.subr.mxu0 0.0
    %1389 = vmatpush1.xpose.msra.mxu0 0.0
    %1390 = vmatprep.subr.mxu0 0.0
    %1391 = vmatpush1.xpose.msra.mxu0 0.0
    %1392 = vmatprep.subr.mxu0 0.0
    %1393 = vmatpush1.xpose.msra.mxu0 0.0
    %1394 = vmatprep.mubr.f32.mxu0 0.0
    %1395 = vmatmul.mubr.f32.gmra.mrb[0].mxu0 %v1319
    %v1396 = vpop.f32.mrb[0].mxu0
    %v1397 = vadd.f32 0.0, %v1396
    %v1398 = vpop.f32.mrb[0].mxu0
    %1399 = vmatprep.mubr.f32.mxu0 0.0
    %1400 = vmatmul.mubr.f32.gmra.mrb[0].mxu0 %v1322
    %v1401 = vpop.f32.mrb[0].mxu0
    %v1402 = vadd.f32 0.0, %v1401
    %v1403 = vpop.f32.mrb[0].mxu0
    %1404 = vdwg.mxu0
    %v1406 = vsel %vm582, %v1090, 0
    %v1409 = vsel %vm582, %v1095, 0
    %v1412 = vsel %vm582, %v1200, 0
    %v1415 = vsel %vm582, %v1205, 0
    %1417 = vmatprep.subr.mxu0 0.0
    %1418 = vmatpush1.xpose.msra.mxu0 %v1412
    %1419 = vmatprep.subr.mxu0 0.0
    %1420 = vmatpush1.xpose.msra.mxu0 %v1415
    %1421 = vmatprep.subr.mxu0 0.0
    %1422 = vmatpush1.xpose.msra.mxu0 0.0
    %1423 = vmatprep.subr.mxu0 0.0
    %1424 = vmatpush1.xpose.msra.mxu0 0.0
    %1425 = vmatprep.subr.mxu0 0.0
    %1426 = vmatpush1.xpose.msra.mxu0 0.0
    %1427 = vmatprep.subr.mxu0 0.0
    %1428 = vmatpush1.xpose.msra.mxu0 0.0
    %1429 = vmatprep.subr.mxu0 0.0
    %1430 = vmatpush1.xpose.msra.mxu0 0.0
    %1431 = vmatprep.subr.mxu0 0.0
    %1432 = vmatpush1.xpose.msra.mxu0 0.0
    %1433 = vmatprep.subr.mxu0 0.0
    %1434 = vmatpush1.xpose.msra.mxu0 0.0
    %1435 = vmatprep.subr.mxu0 0.0
    %1436 = vmatpush1.xpose.msra.mxu0 0.0
    %1437 = vmatprep.subr.mxu0 0.0
    %1438 = vmatpush1.xpose.msra.mxu0 0.0
    %1439 = vmatprep.subr.mxu0 0.0
    %1440 = vmatpush1.xpose.msra.mxu0 0.0
    %1441 = vmatprep.subr.mxu0 0.0
    %1442 = vmatpush1.xpose.msra.mxu0 0.0
    %1443 = vmatprep.subr.mxu0 0.0
    %1444 = vmatpush1.xpose.msra.mxu0 0.0
    %1445 = vmatprep.subr.mxu0 0.0
    %1446 = vmatpush1.xpose.msra.mxu0 0.0
    %1447 = vmatprep.subr.mxu0 0.0
    %1448 = vmatpush1.xpose.msra.mxu0 0.0
    %1449 = vmatprep.subr.mxu0 0.0
    %1450 = vmatpush1.xpose.msra.mxu0 0.0
    %1451 = vmatprep.subr.mxu0 0.0
    %1452 = vmatpush1.xpose.msra.mxu0 0.0
    %1453 = vmatprep.subr.mxu0 0.0
    %1454 = vmatpush1.xpose.msra.mxu0 0.0
    %1455 = vmatprep.subr.mxu0 0.0
    %1456 = vmatpush1.xpose.msra.mxu0 0.0
    %1457 = vmatprep.subr.mxu0 0.0
    %1458 = vmatpush1.xpose.msra.mxu0 0.0
    %1459 = vmatprep.subr.mxu0 0.0
    %1460 = vmatpush1.xpose.msra.mxu0 0.0
    %1461 = vmatprep.subr.mxu0 0.0
    %1462 = vmatpush1.xpose.msra.mxu0 0.0
    %1463 = vmatprep.subr.mxu0 0.0
    %1464 = vmatpush1.xpose.msra.mxu0 0.0
    %1465 = vmatprep.subr.mxu0 0.0
    %1466 = vmatpush1.xpose.msra.mxu0 0.0
    %1467 = vmatprep.subr.mxu0 0.0
    %1468 = vmatpush1.xpose.msra.mxu0 0.0
    %1469 = vmatprep.subr.mxu0 0.0
    %1470 = vmatpush1.xpose.msra.mxu0 0.0
    %1471 = vmatprep.subr.mxu0 0.0
    %1472 = vmatpush1.xpose.msra.mxu0 0.0
    %1473 = vmatprep.subr.mxu0 0.0
    %1474 = vmatpush1.xpose.msra.mxu0 0.0
    %1475 = vmatprep.subr.mxu0 0.0
    %1476 = vmatpush1.xpose.msra.mxu0 0.0
    %1477 = vmatprep.subr.mxu0 0.0
    %1478 = vmatpush1.xpose.msra.mxu0 0.0
    %1479 = vmatprep.subr.mxu0 0.0
    %1480 = vmatpush1.xpose.msra.mxu0 0.0
    %1481 = vmatprep.mubr.f32.mxu0 0.0
    %1482 = vmatmul.mubr.f32.gmra.mrb[0].mxu0 %v1406
    %v1483 = vpop.f32.mrb[0].mxu0
    %v1484 = vadd.f32 0.0, %v1483
    %v1485 = vpop.f32.mrb[0].mxu0
    %1486 = vmatprep.mubr.f32.mxu0 0.0
    %1487 = vmatmul.mubr.f32.gmra.mrb[0].mxu0 %v1409
    %v1488 = vpop.f32.mrb[0].mxu0
    %v1489 = vadd.f32 0.0, %v1488
    %v1490 = vpop.f32.mrb[0].mxu0
    %1491 = vdwg.mxu0
    %v1492 = vmul.f32 %v1397, 0.17677669
    %v1493 = vmul.f32 %v1402, 0.17677669
    %v1494 = vmul.f32 %v1484, 0.17677669
    %v1495 = vmul.f32 %v1489, 0.17677669
    %v1496 = vadd.f32 %v1492, %v766
    %v1497 = vadd.f32 %v1493, %v766
    %v1498 = vadd.f32 %v1494, %v770
    %v1499 = vadd.f32 %v1495, %v770
    %v1500 = vsel %vm777, %v1496, -inf
    %1501 = vmax.xlane.f32.xlu0 %v1500
    %v1502 = vpop.xlane.xlu0 %1501
    %v1503 = vsel %vm777, %v1497, -inf
    %1504 = vmax.xlane.f32.xlu0 %v1503
    %v1505 = vpop.xlane.xlu0 %1504
    %v1506 = vsel %vm777, %v1498, -inf
    %1507 = vmax.xlane.f32.xlu0 %v1506
    %v1508 = vpop.xlane.xlu0 %1507
    %v1509 = vsel %vm777, %v1499, -inf
    %1510 = vmax.xlane.f32.xlu0 %v1509
    %v1511 = vpop.xlane.xlu0 %1510
    %v1512 = vsub.f32 %v1496, %v1502
    %v1513 = vsub.f32 %v1497, %v1505
    %v1514 = vsub.f32 %v1498, %v1508
    %v1515 = vsub.f32 %v1499, %v1511
    %v1516 = vmul.f32 %v1512, 1.442695
    %v1517 = vpow.pop %v1516
    %v1518 = vmul.f32 %v1513, 1.442695
    %v1519 = vpow.pop %v1518
    %v1520 = vmul.f32 %v1514, 1.442695
    %v1521 = vpow.pop %v1520
    %v1522 = vmul.f32 %v1515, 1.442695
    %v1523 = vpow.pop %v1522
    %v1524 = vsel %vm777, %v1517, 0.0
    %1525 = vadd.xlane.f32.xlu0 %v1524
    %v1526 = vpop.xlane.xlu0 %1525
    %v1527 = vsel %vm777, %v1519, 0.0
    %1528 = vadd.xlane.f32.xlu0 %v1527
    %v1529 = vpop.xlane.xlu0 %1528
    %v1530 = vsel %vm777, %v1521, 0.0
    %1531 = vadd.xlane.f32.xlu0 %v1530
    %v1532 = vpop.xlane.xlu0 %1531
    %v1533 = vsel %vm777, %v1523, 0.0
    %1534 = vadd.xlane.f32.xlu0 %v1533
    %v1535 = vpop.xlane.xlu0 %1534
    %v1536 = vrcp.pop %v1526
    %v1537 = vmul.f32 %v1517, %v1536
    %v1538 = vrcp.pop %v1529
    %v1539 = vmul.f32 %v1519, %v1538
    %v1540 = vrcp.pop %v1532
    %v1541 = vmul.f32 %v1521, %v1540
    %v1542 = vrcp.pop %v1535
    %v1543 = vmul.f32 %v1523, %v1542
    %v1545 = vsel %vm777, %v1537, 0
    %v1548 = vsel %vm777, %v1539, 0
    %1550 = vmatprep.subr.mxu0 0.0
    %1551 = vmatpush1.msra.mxu0 %v1300
    %1552 = vmatprep.subr.mxu0 0.0
    %1553 = vmatpush1.msra.mxu0 %v1305
    %1554 = vmatprep.subr.mxu0 0.0
    %1555 = vmatpush1.msra.mxu0 0.0
    %1556 = vmatprep.subr.mxu0 0.0
    %1557 = vmatpush1.msra.mxu0 0.0
    %1558 = vmatprep.subr.mxu0 0.0
    %1559 = vmatpush1.msra.mxu0 0.0
    %1560 = vmatprep.subr.mxu0 0.0
    %1561 = vmatpush1.msra.mxu0 0.0
    %1562 = vmatprep.subr.mxu0 0.0
    %1563 = vmatpush1.msra.mxu0 0.0
    %1564 = vmatprep.subr.mxu0 0.0
    %1565 = vmatpush1.msra.mxu0 0.0
    %1566 = vmatprep.subr.mxu0 0.0
    %1567 = vmatpush1.msra.mxu0 0.0
    %1568 = vmatprep.subr.mxu0 0.0
    %1569 = vmatpush1.msra.mxu0 0.0
    %1570 = vmatprep.subr.mxu0 0.0
    %1571 = vmatpush1.msra.mxu0 0.0
    %1572 = vmatprep.subr.mxu0 0.0
    %1573 = vmatpush1.msra.mxu0 0.0
    %1574 = vmatprep.subr.mxu0 0.0
    %1575 = vmatpush1.msra.mxu0 0.0
    %1576 = vmatprep.subr.mxu0 0.0
    %1577 = vmatpush1.msra.mxu0 0.0
    %1578 = vmatprep.subr.mxu0 0.0
    %1579 = vmatpush1.msra.mxu0 0.0
    %1580 = vmatprep.subr.mxu0 0.0
    %1581 = vmatpush1.msra.mxu0 0.0
    %1582 = vmatprep.subr.mxu0 0.0
    %1583 = vmatpush1.msra.mxu0 0.0
    %1584 = vmatprep.subr.mxu0 0.0
    %1585 = vmatpush1.msra.mxu0 0.0
    %1586 = vmatprep.subr.mxu0 0.0
    %1587 = vmatpush1.msra.mxu0 0.0
    %1588 = vmatprep.subr.mxu0 0.0
    %1589 = vmatpush1.msra.mxu0 0.0
    %1590 = vmatprep.subr.mxu0 0.0
    %1591 = vmatpush1.msra.mxu0 0.0
    %1592 = vmatprep.subr.mxu0 0.0
    %1593 = vmatpush1.msra.mxu0 0.0
    %1594 = vmatprep.subr.mxu0 0.0
    %1595 = vmatpush1.msra.mxu0 0.0
    %1596 = vmatprep.subr.mxu0 0.0
    %1597 = vmatpush1.msra.mxu0 0.0
    %1598 = vmatprep.subr.mxu0 0.0
    %1599 = vmatpush1.msra.mxu0 0.0
    %1600 = vmatprep.subr.mxu0 0.0
    %1601 = vmatpush1.msra.mxu0 0.0
    %1602 = vmatprep.subr.mxu0 0.0
    %1603 = vmatpush1.msra.mxu0 0.0
    %1604 = vmatprep.subr.mxu0 0.0
    %1605 = vmatpush1.msra.mxu0 0.0
    %1606 = vmatprep.subr.mxu0 0.0
    %1607 = vmatpush1.msra.mxu0 0.0
    %1608 = vmatprep.subr.mxu0 0.0
    %1609 = vmatpush1.msra.mxu0 0.0
    %1610 = vmatprep.subr.mxu0 0.0
    %1611 = vmatpush1.msra.mxu0 0.0
    %1612 = vmatprep.subr.mxu0 0.0
    %1613 = vmatpush1.msra.mxu0 0.0
    %1614 = vmatprep.mubr.f32.mxu0 0.0
    %1615 = vmatmul.mubr.f32.gmra.mrb[0].mxu0 %v1545
    %v1616 = vpop.f32.mrb[0].mxu0
    %v1617 = vadd.f32 0.0, %v1616
    %v1618 = vpop.f32.mrb[0].mxu0
    %1619 = vmatprep.mubr.f32.mxu0 0.0
    %1620 = vmatmul.mubr.f32.gmra.mrb[0].mxu0 %v1548
    %v1621 = vpop.f32.mrb[0].mxu0
    %v1622 = vadd.f32 0.0, %v1621
    %v1623 = vpop.f32.mrb[0].mxu0
    %1624 = vdwg.mxu0
    %v1626 = vsel %vm777, %v1541, 0
    %v1629 = vsel %vm777, %v1543, 0
    %1631 = vmatprep.subr.mxu0 0.0
    %1632 = vmatpush1.msra.mxu0 %v1310
    %1633 = vmatprep.subr.mxu0 0.0
    %1634 = vmatpush1.msra.mxu0 %v1315
    %1635 = vmatprep.subr.mxu0 0.0
    %1636 = vmatpush1.msra.mxu0 0.0
    %1637 = vmatprep.subr.mxu0 0.0
    %1638 = vmatpush1.msra.mxu0 0.0
    %1639 = vmatprep.subr.mxu0 0.0
    %1640 = vmatpush1.msra.mxu0 0.0
    %1641 = vmatprep.subr.mxu0 0.0
    %1642 = vmatpush1.msra.mxu0 0.0
    %1643 = vmatprep.subr.mxu0 0.0
    %1644 = vmatpush1.msra.mxu0 0.0
    %1645 = vmatprep.subr.mxu0 0.0
    %1646 = vmatpush1.msra.mxu0 0.0
    %1647 = vmatprep.subr.mxu0 0.0
    %1648 = vmatpush1.msra.mxu0 0.0
    %1649 = vmatprep.subr.mxu0 0.0
    %1650 = vmatpush1.msra.mxu0 0.0
    %1651 = vmatprep.subr.mxu0 0.0
    %1652 = vmatpush1.msra.mxu0 0.0
    %1653 = vmatprep.subr.mxu0 0.0
    %1654 = vmatpush1.msra.mxu0 0.0
    %1655 = vmatprep.subr.mxu0 0.0
    %1656 = vmatpush1.msra.mxu0 0.0
    %1657 = vmatprep.subr.mxu0 0.0
    %1658 = vmatpush1.msra.mxu0 0.0
    %1659 = vmatprep.subr.mxu0 0.0
    %1660 = vmatpush1.msra.mxu0 0.0
    %1661 = vmatprep.subr.mxu0 0.0
    %1662 = vmatpush1.msra.mxu0 0.0
    %1663 = vmatprep.subr.mxu0 0.0
    %1664 = vmatpush1.msra.mxu0 0.0
    %1665 = vmatprep.subr.mxu0 0.0
    %1666 = vmatpush1.msra.mxu0 0.0
    %1667 = vmatprep.subr.mxu0 0.0
    %1668 = vmatpush1.msra.mxu0 0.0
    %1669 = vmatprep.subr.mxu0 0.0
    %1670 = vmatpush1.msra.mxu0 0.0
    %1671 = vmatprep.subr.mxu0 0.0
    %1672 = vmatpush1.msra.mxu0 0.0
    %1673 = vmatprep.subr.mxu0 0.0
    %1674 = vmatpush1.msra.mxu0 0.0
    %1675 = vmatprep.subr.mxu0 0.0
    %1676 = vmatpush1.msra.mxu0 0.0
    %1677 = vmatprep.subr.mxu0 0.0
    %1678 = vmatpush1.msra.mxu0 0.0
    %1679 = vmatprep.subr.mxu0 0.0
    %1680 = vmatpush1.msra.mxu0 0.0
    %1681 = vmatprep.subr.mxu0 0.0
    %1682 = vmatpush1.msra.mxu0 0.0
    %1683 = vmatprep.subr.mxu0 0.0
    %1684 = vmatpush1.msra.mxu0 0.0
    %1685 = vmatprep.subr.mxu0 0.0
    %1686 = vmatpush1.msra.mxu0 0.0
    %1687 = vmatprep.subr.mxu0 0.0
    %1688 = vmatpush1.msra.mxu0 0.0
    %1689 = vmatprep.subr.mxu0 0.0
    %1690 = vmatpush1.msra.mxu0 0.0
    %1691 = vmatprep.subr.mxu0 0.0
    %1692 = vmatpush1.msra.mxu0 0.0
    %1693 = vmatprep.subr.mxu0 0.0
    %1694 = vmatpush1.msra.mxu0 0.0
    %1695 = vmatprep.mubr.f32.mxu0 0.0
    %1696 = vmatmul.mubr.f32.gmra.mrb[0].mxu0 %v1626
    %v1697 = vpop.f32.mrb[0].mxu0
    %v1698 = vadd.f32 0.0, %v1697
    %v1699 = vpop.f32.mrb[0].mxu0
    %1700 = vmatprep.mubr.f32.mxu0 0.0
    %1701 = vmatmul.mubr.f32.gmra.mrb[0].mxu0 %v1629
    %v1702 = vpop.f32.mrb[0].mxu0
    %v1703 = vadd.f32 0.0, %v1702
    %v1704 = vpop.f32.mrb[0].mxu0
    %1705 = vdwg.mxu0
    %s1706 = scalar_lea.vmem %s12, 32
    %v1707 = vld [vmem:[%s1706] sm:$0xff]
    %v1708 = vld [vmem:[%s1706 + $0x8] sm:$0xff]
    %v1709 = vld [vmem:[%s1706 + $0x10] sm:$0xff]
    %v1710 = vld [vmem:[%s1706 + $0x18] sm:$0xff]
    %v1712 = vsel %vm582, %v1617, 0
    %v1715 = vsel %vm582, %v1622, 0
    %v1718 = vsel %vm582, %v1698, 0
    %v1721 = vsel %vm582, %v1703, 0
    %1723 = vmatprep.subr.mxu0 0.0
    %1724 = vmatpush1.msra.mxu0 %v1707
    %1725 = vmatprep.subr.mxu0 0.0
    %1726 = vmatpush1.msra.mxu0 %v1708
    %1727 = vmatprep.subr.mxu0 0.0
    %1728 = vmatpush1.msra.mxu0 %v1709
    %1729 = vmatprep.subr.mxu0 0.0
    %1730 = vmatpush1.msra.mxu0 %v1710
    %1731 = vmatprep.subr.mxu0 0.0
    %1732 = vmatpush1.msra.mxu0 0.0
    %1733 = vmatprep.subr.mxu0 0.0
    %1734 = vmatpush1.msra.mxu0 0.0
    %1735 = vmatprep.subr.mxu0 0.0
    %1736 = vmatpush1.msra.mxu0 0.0
    %1737 = vmatprep.subr.mxu0 0.0
    %1738 = vmatpush1.msra.mxu0 0.0
    %1739 = vmatprep.subr.mxu0 0.0
    %1740 = vmatpush1.msra.mxu0 0.0
    %1741 = vmatprep.subr.mxu0 0.0
    %1742 = vmatpush1.msra.mxu0 0.0
    %1743 = vmatprep.subr.mxu0 0.0
    %1744 = vmatpush1.msra.mxu0 0.0
    %1745 = vmatprep.subr.mxu0 0.0
    %1746 = vmatpush1.msra.mxu0 0.0
    %1747 = vmatprep.subr.mxu0 0.0
    %1748 = vmatpush1.msra.mxu0 0.0
    %1749 = vmatprep.subr.mxu0 0.0
    %1750 = vmatpush1.msra.mxu0 0.0
    %1751 = vmatprep.subr.mxu0 0.0
    %1752 = vmatpush1.msra.mxu0 0.0
    %1753 = vmatprep.subr.mxu0 0.0
    %1754 = vmatpush1.msra.mxu0 0.0
    %1755 = vmatprep.subr.mxu0 0.0
    %1756 = vmatpush1.msra.mxu0 0.0
    %1757 = vmatprep.subr.mxu0 0.0
    %1758 = vmatpush1.msra.mxu0 0.0
    %1759 = vmatprep.subr.mxu0 0.0
    %1760 = vmatpush1.msra.mxu0 0.0
    %1761 = vmatprep.subr.mxu0 0.0
    %1762 = vmatpush1.msra.mxu0 0.0
    %1763 = vmatprep.subr.mxu0 0.0
    %1764 = vmatpush1.msra.mxu0 0.0
    %1765 = vmatprep.subr.mxu0 0.0
    %1766 = vmatpush1.msra.mxu0 0.0
    %1767 = vmatprep.subr.mxu0 0.0
    %1768 = vmatpush1.msra.mxu0 0.0
    %1769 = vmatprep.subr.mxu0 0.0
    %1770 = vmatpush1.msra.mxu0 0.0
    %1771 = vmatprep.subr.mxu0 0.0
    %1772 = vmatpush1.msra.mxu0 0.0
    %1773 = vmatprep.subr.mxu0 0.0
    %1774 = vmatpush1.msra.mxu0 0.0
    %1775 = vmatprep.subr.mxu0 0.0
    %1776 = vmatpush1.msra.mxu0 0.0
    %1777 = vmatprep.subr.mxu0 0.0
    %1778 = vmatpush1.msra.mxu0 0.0
    %1779 = vmatprep.subr.mxu0 0.0
    %1780 = vmatpush1.msra.mxu0 0.0
    %1781 = vmatprep.subr.mxu0 0.0
    %1782 = vmatpush1.msra.mxu0 0.0
    %1783 = vmatprep.subr.mxu0 0.0
    %1784 = vmatpush1.msra.mxu0 0.0
    %1785 = vmatprep.subr.mxu0 0.0
    %1786 = vmatpush1.msra.mxu0 0.0
    %1787 = vmatprep.mubr.f32.mxu0 0.0
    %1788 = vmatmul.mubr.f32.gmra.mrb[0].mxu0 %v1712
    %v1789 = vpop.f32.mrb[0].mxu0
    %v1790 = vadd.f32 0.0, %v1789
    %v1791 = vpop.f32.mrb[0].mxu0
    %1792 = vmatprep.mubr.f32.mxu0 0.0
    %1793 = vmatmul.mubr.f32.gmra.mrb[0].mxu0 %v1715
    %v1794 = vpop.f32.mrb[0].mxu0
    %v1795 = vadd.f32 0.0, %v1794
    %v1796 = vpop.f32.mrb[0].mxu0
    %1797 = vmatprep.mubr.f32.mxu0 0.0
    %1798 = vmatmul.mubr.f32.gmra.mrb[0].mxu0 %v1718
    %v1799 = vpop.f32.mrb[0].mxu0
    %v1800 = vadd.f32 0.0, %v1799
    %v1801 = vpop.f32.mrb[0].mxu0
    %1802 = vmatprep.mubr.f32.mxu0 0.0
    %1803 = vmatmul.mubr.f32.gmra.mrb[0].mxu0 %v1721
    %v1804 = vpop.f32.mrb[0].mxu0
    %v1805 = vadd.f32 0.0, %v1804
    %v1806 = vpop.f32.mrb[0].mxu0
    %1807 = vdwg.mxu0
    %v1809 = vsel %vm582, %v895, 0
    %v1812 = vsel %vm582, %v900, 0
    %v1815 = vsel %vm582, %v976, 0
    %v1818 = vsel %vm582, %v981, 0
    %1820 = vmatprep.subr.mxu0 0.0
    %1821 = vmatpush1.msra.mxu0 %v984
    %1822 = vmatprep.subr.mxu0 0.0
    %1823 = vmatpush1.msra.mxu0 %v985
    %1824 = vmatprep.subr.mxu0 0.0
    %1825 = vmatpush1.msra.mxu0 %v986
    %1826 = vmatprep.subr.mxu0 0.0
    %1827 = vmatpush1.msra.mxu0 %v987
    %1828 = vmatprep.subr.mxu0 0.0
    %1829 = vmatpush1.msra.mxu0 0.0
    %1830 = vmatprep.subr.mxu0 0.0
    %1831 = vmatpush1.msra.mxu0 0.0
    %1832 = vmatprep.subr.mxu0 0.0
    %1833 = vmatpush1.msra.mxu0 0.0
    %1834 = vmatprep.subr.mxu0 0.0
    %1835 = vmatpush1.msra.mxu0 0.0
    %1836 = vmatprep.subr.mxu0 0.0
    %1837 = vmatpush1.msra.mxu0 0.0
    %1838 = vmatprep.subr.mxu0 0.0
    %1839 = vmatpush1.msra.mxu0 0.0
    %1840 = vmatprep.subr.mxu0 0.0
    %1841 = vmatpush1.msra.mxu0 0.0
    %1842 = vmatprep.subr.mxu0 0.0
    %1843 = vmatpush1.msra.mxu0 0.0
    %1844 = vmatprep.subr.mxu0 0.0
    %1845 = vmatpush1.msra.mxu0 0.0
    %1846 = vmatprep.subr.mxu0 0.0
    %1847 = vmatpush1.msra.mxu0 0.0
    %1848 = vmatprep.subr.mxu0 0.0
    %1849 = vmatpush1.msra.mxu0 0.0
    %1850 = vmatprep.subr.mxu0 0.0
    %1851 = vmatpush1.msra.mxu0 0.0
    %1852 = vmatprep.subr.mxu0 0.0
    %1853 = vmatpush1.msra.mxu0 0.0
    %1854 = vmatprep.subr.mxu0 0.0
    %1855 = vmatpush1.msra.mxu0 0.0
    %1856 = vmatprep.subr.mxu0 0.0
    %1857 = vmatpush1.msra.mxu0 0.0
    %1858 = vmatprep.subr.mxu0 0.0
    %1859 = vmatpush1.msra.mxu0 0.0
    %1860 = vmatprep.subr.mxu0 0.0
    %1861 = vmatpush1.msra.mxu0 0.0
    %1862 = vmatprep.subr.mxu0 0.0
    %1863 = vmatpush1.msra.mxu0 0.0
    %1864 = vmatprep.subr.mxu0 0.0
    %1865 = vmatpush1.msra.mxu0 0.0
    %1866 = vmatprep.subr.mxu0 0.0
    %1867 = vmatpush1.msra.mxu0 0.0
    %1868 = vmatprep.subr.mxu0 0.0
    %1869 = vmatpush1.msra.mxu0 0.0
    %1870 = vmatprep.subr.mxu0 0.0
    %1871 = vmatpush1.msra.mxu0 0.0
    %1872 = vmatprep.subr.mxu0 0.0
    %1873 = vmatpush1.msra.mxu0 0.0
    %1874 = vmatprep.subr.mxu0 0.0
    %1875 = vmatpush1.msra.mxu0 0.0
    %1876 = vmatprep.subr.mxu0 0.0
    %1877 = vmatpush1.msra.mxu0 0.0
    %1878 = vmatprep.subr.mxu0 0.0
    %1879 = vmatpush1.msra.mxu0 0.0
    %1880 = vmatprep.subr.mxu0 0.0
    %1881 = vmatpush1.msra.mxu0 0.0
    %1882 = vmatprep.subr.mxu0 0.0
    %1883 = vmatpush1.msra.mxu0 0.0
    %1884 = vmatprep.mubr.f32.mxu0 0.0
    %1885 = vmatmul.mubr.f32.gmra.mrb[0].mxu0 %v1809
    %v1886 = vpop.f32.mrb[0].mxu0
    %v1887 = vadd.f32 %v1790, %v1886
    %v1888 = vpop.f32.mrb[0].mxu0
    %1889 = vmatprep.mubr.f32.mxu0 0.0
    %1890 = vmatmul.mubr.f32.gmra.mrb[0].mxu0 %v1812
    %v1891 = vpop.f32.mrb[0].mxu0
    %v1892 = vadd.f32 %v1795, %v1891
    %v1893 = vpop.f32.mrb[0].mxu0
    %1894 = vmatprep.mubr.f32.mxu0 0.0
    %1895 = vmatmul.mubr.f32.gmra.mrb[0].mxu0 %v1815
    %v1896 = vpop.f32.mrb[0].mxu0
    %v1897 = vadd.f32 %v1800, %v1896
    %v1898 = vpop.f32.mrb[0].mxu0
    %1899 = vmatprep.mubr.f32.mxu0 0.0
    %1900 = vmatmul.mubr.f32.gmra.mrb[0].mxu0 %v1818
    %v1901 = vpop.f32.mrb[0].mxu0
    %v1902 = vadd.f32 %v1805, %v1901
    %v1903 = vpop.f32.mrb[0].mxu0
    %1904 = vdwg.mxu0
    %s1905 = scalar_lea.vmem %s6, 256
    %v1906 = vld [vmem:[%s1905] sm:$0xff]
    %v1907 = vld [vmem:[%s1905 + $0x8] sm:$0xff]
    %v1908 = vld [vmem:[%s1905 + $0x10] sm:$0xff]
    %v1909 = vld [vmem:[%s1905 + $0x18] sm:$0xff]
    %v1910 = vld [vmem:[%s1905 + $0x20] sm:$0xff]
    %v1911 = vld [vmem:[%s1905 + $0x28] sm:$0xff]
    %v1912 = vld [vmem:[%s1905 + $0x30] sm:$0xff]
    %v1913 = vld [vmem:[%s1905 + $0x38] sm:$0xff]
    %v1914 = vld [vmem:[%s1905 + $0x40] sm:$0xff]
    %v1915 = vld [vmem:[%s1905 + $0x48] sm:$0xff]
    %v1916 = vld [vmem:[%s1905 + $0x50] sm:$0xff]
    %v1917 = vld [vmem:[%s1905 + $0x58] sm:$0xff]
    %v1918 = vld [vmem:[%s1905 + $0x60] sm:$0xff]
    %v1919 = vld [vmem:[%s1905 + $0x68] sm:$0xff]
    %v1920 = vld [vmem:[%s1905 + $0x70] sm:$0xff]
    %v1921 = vld [vmem:[%s1905 + $0x78] sm:$0xff]
    %s1922 = scalar_lea.vmem %s7, 2
    %v1923 = vld [vmem:[%s1922] sm:$0x1]
    %v1925 = vlaneseq
    %v1926 = vshrl.u32 %v1925, 7
    %v1927 = vsub.s32 0, %v1926
    %v1928 = vrot.slane %v1923, %v1927
    %1930 = vmatprep.subr.mxu0 0.0
    %1931 = vmatpush1.msra.mxu0 %v1906
    %1932 = vmatprep.subr.mxu0 0.0
    %1933 = vmatpush1.msra.mxu0 %v1907
    %1934 = vmatprep.subr.mxu0 0.0
    %1935 = vmatpush1.msra.mxu0 %v1908
    %1936 = vmatprep.subr.mxu0 0.0
    %1937 = vmatpush1.msra.mxu0 %v1909
    %1938 = vmatprep.subr.mxu0 0.0
    %1939 = vmatpush1.msra.mxu0 %v1910
    %1940 = vmatprep.subr.mxu0 0.0
    %1941 = vmatpush1.msra.mxu0 %v1911
    %1942 = vmatprep.subr.mxu0 0.0
    %1943 = vmatpush1.msra.mxu0 %v1912
    %1944 = vmatprep.subr.mxu0 0.0
    %1945 = vmatpush1.msra.mxu0 %v1913
    %1946 = vmatprep.subr.mxu0 0.0
    %1947 = vmatpush1.msra.mxu0 %v1914
    %1948 = vmatprep.subr.mxu0 0.0
    %1949 = vmatpush1.msra.mxu0 %v1915
    %1950 = vmatprep.subr.mxu0 0.0
    %1951 = vmatpush1.msra.mxu0 %v1916
    %1952 = vmatprep.subr.mxu0 0.0
    %1953 = vmatpush1.msra.mxu0 %v1917
    %1954 = vmatprep.subr.mxu0 0.0
    %1955 = vmatpush1.msra.mxu0 %v1918
    %1956 = vmatprep.subr.mxu0 0.0
    %1957 = vmatpush1.msra.mxu0 %v1919
    %1958 = vmatprep.subr.mxu0 0.0
    %1959 = vmatpush1.msra.mxu0 %v1920
    %1960 = vmatprep.subr.mxu0 0.0
    %1961 = vmatpush1.msra.mxu0 %v1921
    %1962 = vmatprep.subr.mxu0 0.0
    %1963 = vmatpush1.msra.mxu0 0.0
    %1964 = vmatprep.subr.mxu0 0.0
    %1965 = vmatpush1.msra.mxu0 0.0
    %1966 = vmatprep.subr.mxu0 0.0
    %1967 = vmatpush1.msra.mxu0 0.0
    %1968 = vmatprep.subr.mxu0 0.0
    %1969 = vmatpush1.msra.mxu0 0.0
    %1970 = vmatprep.subr.mxu0 0.0
    %1971 = vmatpush1.msra.mxu0 0.0
    %1972 = vmatprep.subr.mxu0 0.0
    %1973 = vmatpush1.msra.mxu0 0.0
    %1974 = vmatprep.subr.mxu0 0.0
    %1975 = vmatpush1.msra.mxu0 0.0
    %1976 = vmatprep.subr.mxu0 0.0
    %1977 = vmatpush1.msra.mxu0 0.0
    %1978 = vmatprep.subr.mxu0 0.0
    %1979 = vmatpush1.msra.mxu0 0.0
    %1980 = vmatprep.subr.mxu0 0.0
    %1981 = vmatpush1.msra.mxu0 0.0
    %1982 = vmatprep.subr.mxu0 0.0
    %1983 = vmatpush1.msra.mxu0 0.0
    %1984 = vmatprep.subr.mxu0 0.0
    %1985 = vmatpush1.msra.mxu0 0.0
    %1986 = vmatprep.subr.mxu0 0.0
    %1987 = vmatpush1.msra.mxu0 0.0
    %1988 = vmatprep.subr.mxu0 0.0
    %1989 = vmatpush1.msra.mxu0 0.0
    %1990 = vmatprep.subr.mxu0 0.0
    %1991 = vmatpush1.msra.mxu0 0.0
    %1992 = vmatprep.subr.mxu0 0.0
    %1993 = vmatpush1.msra.mxu0 0.0
    %1994 = vmatprep.mubr.f32.mxu0 0.0
    %1995 = vmatmul.mubr.f32.gmra.mrb[0].mxu0 %v252
    %v1996 = vpop.f32.mrb[0].mxu0
    %v1997 = vadd.f32 %v1928, %v1996
    %v1998 = vpop.f32.mrb[0].mxu0
    %1999 = vmatprep.mubr.f32.mxu0 0.0
    %2000 = vmatmul.mubr.f32.gmra.mrb[0].mxu0 %v253
    %v2001 = vpop.f32.mrb[0].mxu0
    %v2002 = vadd.f32 %v1928, %v2001
    %v2003 = vpop.f32.mrb[0].mxu0
    %2004 = vmatprep.mubr.f32.mxu0 0.0
    %2005 = vmatmul.mubr.f32.gmra.mrb[0].mxu0 %v254
    %v2006 = vpop.f32.mrb[0].mxu0
    %v2007 = vadd.f32 %v1928, %v2006
    %v2008 = vpop.f32.mrb[0].mxu0
    %2009 = vmatprep.mubr.f32.mxu0 0.0
    %2010 = vmatmul.mubr.f32.gmra.mrb[0].mxu0 %v255
    %v2011 = vpop.f32.mrb[0].mxu0
    %v2012 = vadd.f32 %v1928, %v2011
    %v2013 = vpop.f32.mrb[0].mxu0
    %2014 = vdwg.mxu0
    %s2015 = scalar_lea.vmem %s8, 256
    %v2016 = vld [vmem:[%s2015] sm:$0xff]
    %v2017 = vld [vmem:[%s2015 + $0x8] sm:$0xff]
    %v2018 = vld [vmem:[%s2015 + $0x10] sm:$0xff]
    %v2019 = vld [vmem:[%s2015 + $0x18] sm:$0xff]
    %v2020 = vld [vmem:[%s2015 + $0x20] sm:$0xff]
    %v2021 = vld [vmem:[%s2015 + $0x28] sm:$0xff]
    %v2022 = vld [vmem:[%s2015 + $0x30] sm:$0xff]
    %v2023 = vld [vmem:[%s2015 + $0x38] sm:$0xff]
    %v2024 = vld [vmem:[%s2015 + $0x40] sm:$0xff]
    %v2025 = vld [vmem:[%s2015 + $0x48] sm:$0xff]
    %v2026 = vld [vmem:[%s2015 + $0x50] sm:$0xff]
    %v2027 = vld [vmem:[%s2015 + $0x58] sm:$0xff]
    %v2028 = vld [vmem:[%s2015 + $0x60] sm:$0xff]
    %v2029 = vld [vmem:[%s2015 + $0x68] sm:$0xff]
    %v2030 = vld [vmem:[%s2015 + $0x70] sm:$0xff]
    %v2031 = vld [vmem:[%s2015 + $0x78] sm:$0xff]
    %s2032 = scalar_lea.vmem %s9, 2
    %v2033 = vld [vmem:[%s2032] sm:$0x1]
    %v2035 = vlaneseq
    %v2036 = vshrl.u32 %v2035, 7
    %v2037 = vsub.s32 0, %v2036
    %v2038 = vrot.slane %v2033, %v2037
    %2040 = vmatprep.subr.mxu0 0.0
    %2041 = vmatpush1.msra.mxu0 %v2016
    %2042 = vmatprep.subr.mxu0 0.0
    %2043 = vmatpush1.msra.mxu0 %v2017
    %2044 = vmatprep.subr.mxu0 0.0
    %2045 = vmatpush1.msra.mxu0 %v2018
    %2046 = vmatprep.subr.mxu0 0.0
    %2047 = vmatpush1.msra.mxu0 %v2019
    %2048 = vmatprep.subr.mxu0 0.0
    %2049 = vmatpush1.msra.mxu0 %v2020
    %2050 = vmatprep.subr.mxu0 0.0
    %2051 = vmatpush1.msra.mxu0 %v2021
    %2052 = vmatprep.subr.mxu0 0.0
    %2053 = vmatpush1.msra.mxu0 %v2022
    %2054 = vmatprep.subr.mxu0 0.0
    %2055 = vmatpush1.msra.mxu0 %v2023
    %2056 = vmatprep.subr.mxu0 0.0
    %2057 = vmatpush1.msra.mxu0 %v2024
    %2058 = vmatprep.subr.mxu0 0.0
    %2059 = vmatpush1.msra.mxu0 %v2025
    %2060 = vmatprep.subr.mxu0 0.0
    %2061 = vmatpush1.msra.mxu0 %v2026
    %2062 = vmatprep.subr.mxu0 0.0
    %2063 = vmatpush1.msra.mxu0 %v2027
    %2064 = vmatprep.subr.mxu0 0.0
    %2065 = vmatpush1.msra.mxu0 %v2028
    %2066 = vmatprep.subr.mxu0 0.0
    %2067 = vmatpush1.msra.mxu0 %v2029
    %2068 = vmatprep.subr.mxu0 0.0
    %2069 = vmatpush1.msra.mxu0 %v2030
    %2070 = vmatprep.subr.mxu0 0.0
    %2071 = vmatpush1.msra.mxu0 %v2031
    %2072 = vmatprep.subr.mxu0 0.0
    %2073 = vmatpush1.msra.mxu0 0.0
    %2074 = vmatprep.subr.mxu0 0.0
    %2075 = vmatpush1.msra.mxu0 0.0
    %2076 = vmatprep.subr.mxu0 0.0
    %2077 = vmatpush1.msra.mxu0 0.0
    %2078 = vmatprep.subr.mxu0 0.0
    %2079 = vmatpush1.msra.mxu0 0.0
    %2080 = vmatprep.subr.mxu0 0.0
    %2081 = vmatpush1.msra.mxu0 0.0
    %2082 = vmatprep.subr.mxu0 0.0
    %2083 = vmatpush1.msra.mxu0 0.0
    %2084 = vmatprep.subr.mxu0 0.0
    %2085 = vmatpush1.msra.mxu0 0.0
    %2086 = vmatprep.subr.mxu0 0.0
    %2087 = vmatpush1.msra.mxu0 0.0
    %2088 = vmatprep.subr.mxu0 0.0
    %2089 = vmatpush1.msra.mxu0 0.0
    %2090 = vmatprep.subr.mxu0 0.0
    %2091 = vmatpush1.msra.mxu0 0.0
    %2092 = vmatprep.subr.mxu0 0.0
    %2093 = vmatpush1.msra.mxu0 0.0
    %2094 = vmatprep.subr.mxu0 0.0
    %2095 = vmatpush1.msra.mxu0 0.0
    %2096 = vmatprep.subr.mxu0 0.0
    %2097 = vmatpush1.msra.mxu0 0.0
    %2098 = vmatprep.subr.mxu0 0.0
    %2099 = vmatpush1.msra.mxu0 0.0
    %2100 = vmatprep.subr.mxu0 0.0
    %2101 = vmatpush1.msra.mxu0 0.0
    %2102 = vmatprep.subr.mxu0 0.0
    %2103 = vmatpush1.msra.mxu0 0.0
    %2104 = vmatprep.mubr.f32.mxu0 0.0
    %2105 = vmatmul.mubr.f32.gmra.mrb[0].mxu0 %v252
    %v2106 = vpop.f32.mrb[0].mxu0
    %v2107 = vadd.f32 %v2038, %v2106
    %v2108 = vpop.f32.mrb[0].mxu0
    %2109 = vmatprep.mubr.f32.mxu0 0.0
    %2110 = vmatmul.mubr.f32.gmra.mrb[0].mxu0 %v253
    %v2111 = vpop.f32.mrb[0].mxu0
    %v2112 = vadd.f32 %v2038, %v2111
    %v2113 = vpop.f32.mrb[0].mxu0
    %2114 = vmatprep.mubr.f32.mxu0 0.0
    %2115 = vmatmul.mubr.f32.gmra.mrb[0].mxu0 %v254
    %v2116 = vpop.f32.mrb[0].mxu0
    %v2117 = vadd.f32 %v2038, %v2116
    %v2118 = vpop.f32.mrb[0].mxu0
    %2119 = vmatprep.mubr.f32.mxu0 0.0
    %2120 = vmatmul.mubr.f32.gmra.mrb[0].mxu0 %v255
    %v2121 = vpop.f32.mrb[0].mxu0
    %v2122 = vadd.f32 %v2038, %v2121
    %v2123 = vpop.f32.mrb[0].mxu0
    %2124 = vdwg.mxu0
    %s2125 = scalar_lea.vmem %s10, 256
    %v2126 = vld [vmem:[%s2125] sm:$0xff]
    %v2127 = vld [vmem:[%s2125 + $0x8] sm:$0xff]
    %v2128 = vld [vmem:[%s2125 + $0x10] sm:$0xff]
    %v2129 = vld [vmem:[%s2125 + $0x18] sm:$0xff]
    %v2130 = vld [vmem:[%s2125 + $0x20] sm:$0xff]
    %v2131 = vld [vmem:[%s2125 + $0x28] sm:$0xff]
    %v2132 = vld [vmem:[%s2125 + $0x30] sm:$0xff]
    %v2133 = vld [vmem:[%s2125 + $0x38] sm:$0xff]
    %v2134 = vld [vmem:[%s2125 + $0x40] sm:$0xff]
    %v2135 = vld [vmem:[%s2125 + $0x48] sm:$0xff]
    %v2136 = vld [vmem:[%s2125 + $0x50] sm:$0xff]
    %v2137 = vld [vmem:[%s2125 + $0x58] sm:$0xff]
    %v2138 = vld [vmem:[%s2125 + $0x60] sm:$0xff]
    %v2139 = vld [vmem:[%s2125 + $0x68] sm:$0xff]
    %v2140 = vld [vmem:[%s2125 + $0x70] sm:$0xff]
    %v2141 = vld [vmem:[%s2125 + $0x78] sm:$0xff]
    %s2142 = scalar_lea.vmem %s11, 2
    %v2143 = vld [vmem:[%s2142] sm:$0x1]
    %v2145 = vlaneseq
    %v2146 = vshrl.u32 %v2145, 7
    %v2147 = vsub.s32 0, %v2146
    %v2148 = vrot.slane %v2143, %v2147
    %2150 = vmatprep.subr.mxu0 0.0
    %2151 = vmatpush1.msra.mxu0 %v2126
    %2152 = vmatprep.subr.mxu0 0.0
    %2153 = vmatpush1.msra.mxu0 %v2127
    %2154 = vmatprep.subr.mxu0 0.0
    %2155 = vmatpush1.msra.mxu0 %v2128
    %2156 = vmatprep.subr.mxu0 0.0
    %2157 = vmatpush1.msra.mxu0 %v2129
    %2158 = vmatprep.subr.mxu0 0.0
    %2159 = vmatpush1.msra.mxu0 %v2130
    %2160 = vmatprep.subr.mxu0 0.0
    %2161 = vmatpush1.msra.mxu0 %v2131
    %2162 = vmatprep.subr.mxu0 0.0
    %2163 = vmatpush1.msra.mxu0 %v2132
    %2164 = vmatprep.subr.mxu0 0.0
    %2165 = vmatpush1.msra.mxu0 %v2133
    %2166 = vmatprep.subr.mxu0 0.0
    %2167 = vmatpush1.msra.mxu0 %v2134
    %2168 = vmatprep.subr.mxu0 0.0
    %2169 = vmatpush1.msra.mxu0 %v2135
    %2170 = vmatprep.subr.mxu0 0.0
    %2171 = vmatpush1.msra.mxu0 %v2136
    %2172 = vmatprep.subr.mxu0 0.0
    %2173 = vmatpush1.msra.mxu0 %v2137
    %2174 = vmatprep.subr.mxu0 0.0
    %2175 = vmatpush1.msra.mxu0 %v2138
    %2176 = vmatprep.subr.mxu0 0.0
    %2177 = vmatpush1.msra.mxu0 %v2139
    %2178 = vmatprep.subr.mxu0 0.0
    %2179 = vmatpush1.msra.mxu0 %v2140
    %2180 = vmatprep.subr.mxu0 0.0
    %2181 = vmatpush1.msra.mxu0 %v2141
    %2182 = vmatprep.subr.mxu0 0.0
    %2183 = vmatpush1.msra.mxu0 0.0
    %2184 = vmatprep.subr.mxu0 0.0
    %2185 = vmatpush1.msra.mxu0 0.0
    %2186 = vmatprep.subr.mxu0 0.0
    %2187 = vmatpush1.msra.mxu0 0.0
    %2188 = vmatprep.subr.mxu0 0.0
    %2189 = vmatpush1.msra.mxu0 0.0
    %2190 = vmatprep.subr.mxu0 0.0
    %2191 = vmatpush1.msra.mxu0 0.0
    %2192 = vmatprep.subr.mxu0 0.0
    %2193 = vmatpush1.msra.mxu0 0.0
    %2194 = vmatprep.subr.mxu0 0.0
    %2195 = vmatpush1.msra.mxu0 0.0
    %2196 = vmatprep.subr.mxu0 0.0
    %2197 = vmatpush1.msra.mxu0 0.0
    %2198 = vmatprep.subr.mxu0 0.0
    %2199 = vmatpush1.msra.mxu0 0.0
    %2200 = vmatprep.subr.mxu0 0.0
    %2201 = vmatpush1.msra.mxu0 0.0
    %2202 = vmatprep.subr.mxu0 0.0
    %2203 = vmatpush1.msra.mxu0 0.0
    %2204 = vmatprep.subr.mxu0 0.0
    %2205 = vmatpush1.msra.mxu0 0.0
    %2206 = vmatprep.subr.mxu0 0.0
    %2207 = vmatpush1.msra.mxu0 0.0
    %2208 = vmatprep.subr.mxu0 0.0
    %2209 = vmatpush1.msra.mxu0 0.0
    %2210 = vmatprep.subr.mxu0 0.0
    %2211 = vmatpush1.msra.mxu0 0.0
    %2212 = vmatprep.subr.mxu0 0.0
    %2213 = vmatpush1.msra.mxu0 0.0
    %2214 = vmatprep.mubr.f32.mxu0 0.0
    %2215 = vmatmul.mubr.f32.gmra.mrb[0].mxu0 %v252
    %v2216 = vpop.f32.mrb[0].mxu0
    %v2217 = vadd.f32 %v2148, %v2216
    %v2218 = vpop.f32.mrb[0].mxu0
    %2219 = vmatprep.mubr.f32.mxu0 0.0
    %2220 = vmatmul.mubr.f32.gmra.mrb[0].mxu0 %v253
    %v2221 = vpop.f32.mrb[0].mxu0
    %v2222 = vadd.f32 %v2148, %v2221
    %v2223 = vpop.f32.mrb[0].mxu0
    %2224 = vmatprep.mubr.f32.mxu0 0.0
    %2225 = vmatmul.mubr.f32.gmra.mrb[0].mxu0 %v254
    %v2226 = vpop.f32.mrb[0].mxu0
    %v2227 = vadd.f32 %v2148, %v2226
    %v2228 = vpop.f32.mrb[0].mxu0
    %2229 = vmatprep.mubr.f32.mxu0 0.0
    %2230 = vmatmul.mubr.f32.gmra.mrb[0].mxu0 %v255
    %v2231 = vpop.f32.mrb[0].mxu0
    %v2232 = vadd.f32 %v2148, %v2231
    %v2233 = vpop.f32.mrb[0].mxu0
    %2234 = vdwg.mxu0
    %v2236 = vsel %vm582, %v1997, 0
    %v2239 = vsel %vm582, %v2002, 0
    %v2242 = vsel %vm582, %v2107, 0
    %v2245 = vsel %vm582, %v2112, 0
    %2247 = vmatprep.subr.mxu0 0.0
    %2248 = vmatpush1.xpose.msra.mxu0 %v2242
    %2249 = vmatprep.subr.mxu0 0.0
    %2250 = vmatpush1.xpose.msra.mxu0 %v2245
    %2251 = vmatprep.subr.mxu0 0.0
    %2252 = vmatpush1.xpose.msra.mxu0 0.0
    %2253 = vmatprep.subr.mxu0 0.0
    %2254 = vmatpush1.xpose.msra.mxu0 0.0
    %2255 = vmatprep.subr.mxu0 0.0
    %2256 = vmatpush1.xpose.msra.mxu0 0.0
    %2257 = vmatprep.subr.mxu0 0.0
    %2258 = vmatpush1.xpose.msra.mxu0 0.0
    %2259 = vmatprep.subr.mxu0 0.0
    %2260 = vmatpush1.xpose.msra.mxu0 0.0
    %2261 = vmatprep.subr.mxu0 0.0
    %2262 = vmatpush1.xpose.msra.mxu0 0.0
    %2263 = vmatprep.subr.mxu0 0.0
    %2264 = vmatpush1.xpose.msra.mxu0 0.0
    %2265 = vmatprep.subr.mxu0 0.0
    %2266 = vmatpush1.xpose.msra.mxu0 0.0
    %2267 = vmatprep.subr.mxu0 0.0
    %2268 = vmatpush1.xpose.msra.mxu0 0.0
    %2269 = vmatprep.subr.mxu0 0.0
    %2270 = vmatpush1.xpose.msra.mxu0 0.0
    %2271 = vmatprep.subr.mxu0 0.0
    %2272 = vmatpush1.xpose.msra.mxu0 0.0
    %2273 = vmatprep.subr.mxu0 0.0
    %2274 = vmatpush1.xpose.msra.mxu0 0.0
    %2275 = vmatprep.subr.mxu0 0.0
    %2276 = vmatpush1.xpose.msra.mxu0 0.0
    %2277 = vmatprep.subr.mxu0 0.0
    %2278 = vmatpush1.xpose.msra.mxu0 0.0
    %2279 = vmatprep.subr.mxu0 0.0
    %2280 = vmatpush1.xpose.msra.mxu0 0.0
    %2281 = vmatprep.subr.mxu0 0.0
    %2282 = vmatpush1.xpose.msra.mxu0 0.0
    %2283 = vmatprep.subr.mxu0 0.0
    %2284 = vmatpush1.xpose.msra.mxu0 0.0
    %2285 = vmatprep.subr.mxu0 0.0
    %2286 = vmatpush1.xpose.msra.mxu0 0.0
    %2287 = vmatprep.subr.mxu0 0.0
    %2288 = vmatpush1.xpose.msra.mxu0 0.0
    %2289 = vmatprep.subr.mxu0 0.0
    %2290 = vmatpush1.xpose.msra.mxu0 0.0
    %2291 = vmatprep.subr.mxu0 0.0
    %2292 = vmatpush1.xpose.msra.mxu0 0.0
    %2293 = vmatprep.subr.mxu0 0.0
    %2294 = vmatpush1.xpose.msra.mxu0 0.0
    %2295 = vmatprep.subr.mxu0 0.0
    %2296 = vmatpush1.xpose.msra.mxu0 0.0
    %2297 = vmatprep.subr.mxu0 0.0
    %2298 = vmatpush1.xpose.msra.mxu0 0.0
    %2299 = vmatprep.subr.mxu0 0.0
    %2300 = vmatpush1.xpose.msra.mxu0 0.0
    %2301 = vmatprep.subr.mxu0 0.0
    %2302 = vmatpush1.xpose.msra.mxu0 0.0
    %2303 = vmatprep.subr.mxu0 0.0
    %2304 = vmatpush1.xpose.msra.mxu0 0.0
    %2305 = vmatprep.subr.mxu0 0.0
    %2306 = vmatpush1.xpose.msra.mxu0 0.0
    %2307 = vmatprep.subr.mxu0 0.0
    %2308 = vmatpush1.xpose.msra.mxu0 0.0
    %2309 = vmatprep.subr.mxu0 0.0
    %2310 = vmatpush1.xpose.msra.mxu0 0.0
    %2311 = vmatprep.mubr.f32.mxu0 0.0
    %2312 = vmatmul.mubr.f32.gmra.mrb[0].mxu0 %v2236
    %v2313 = vpop.f32.mrb[0].mxu0
    %v2314 = vadd.f32 0.0, %v2313
    %v2315 = vpop.f32.mrb[0].mxu0
    %2316 = vmatprep.mubr.f32.mxu0 0.0
    %2317 = vmatmul.mubr.f32.gmra.mrb[0].mxu0 %v2239
    %v2318 = vpop.f32.mrb[0].mxu0
    %v2319 = vadd.f32 0.0, %v2318
    %v2320 = vpop.f32.mrb[0].mxu0
    %2321 = vdwg.mxu0
    %v2323 = vsel %vm582, %v2007, 0
    %v2326 = vsel %vm582, %v2012, 0
    %v2329 = vsel %vm582, %v2117, 0
    %v2332 = vsel %vm582, %v2122, 0
    %2334 = vmatprep.subr.mxu0 0.0
    %2335 = vmatpush1.xpose.msra.mxu0 %v2329
    %2336 = vmatprep.subr.mxu0 0.0
    %2337 = vmatpush1.xpose.msra.mxu0 %v2332
    %2338 = vmatprep.subr.mxu0 0.0
    %2339 = vmatpush1.xpose.msra.mxu0 0.0
    %2340 = vmatprep.subr.mxu0 0.0
    %2341 = vmatpush1.xpose.msra.mxu0 0.0
    %2342 = vmatprep.subr.mxu0 0.0
    %2343 = vmatpush1.xpose.msra.mxu0 0.0
    %2344 = vmatprep.subr.mxu0 0.0
    %2345 = vmatpush1.xpose.msra.mxu0 0.0
    %2346 = vmatprep.subr.mxu0 0.0
    %2347 = vmatpush1.xpose.msra.mxu0 0.0
    %2348 = vmatprep.subr.mxu0 0.0
    %2349 = vmatpush1.xpose.msra.mxu0 0.0
    %2350 = vmatprep.subr.mxu0 0.0
    %2351 = vmatpush1.xpose.msra.mxu0 0.0
    %2352 = vmatprep.subr.mxu0 0.0
    %2353 = vmatpush1.xpose.msra.mxu0 0.0
    %2354 = vmatprep.subr.mxu0 0.0
    %2355 = vmatpush1.xpose.msra.mxu0 0.0
    %2356 = vmatprep.subr.mxu0 0.0
    %2357 = vmatpush1.xpose.msra.mxu0 0.0
    %2358 = vmatprep.subr.mxu0 0.0
    %2359 = vmatpush1.xpose.msra.mxu0 0.0
    %2360 = vmatprep.subr.mxu0 0.0
    %2361 = vmatpush1.xpose.msra.mxu0 0.0
    %2362 = vmatprep.subr.mxu0 0.0
    %2363 = vmatpush1.xpose.msra.mxu0 0.0
    %2364 = vmatprep.subr.mxu0 0.0
    %2365 = vmatpush1.xpose.msra.mxu0 0.0
    %2366 = vmatprep.subr.mxu0 0.0
    %2367 = vmatpush1.xpose.msra.mxu0 0.0
    %2368 = vmatprep.subr.mxu0 0.0
    %2369 = vmatpush1.xpose.msra.mxu0 0.0
    %2370 = vmatprep.subr.mxu0 0.0
    %2371 = vmatpush1.xpose.msra.mxu0 0.0
    %2372 = vmatprep.subr.mxu0 0.0
    %2373 = vmatpush1.xpose.msra.mxu0 0.0
    %2374 = vmatprep.subr.mxu0 0.0
    %2375 = vmatpush1.xpose.msra.mxu0 0.0
    %2376 = vmatprep.subr.mxu0 0.0
    %2377 = vmatpush1.xpose.msra.mxu0 0.0
    %2378 = vmatprep.subr.mxu0 0.0
    %2379 = vmatpush1.xpose.msra.mxu0 0.0
    %2380 = vmatprep.subr.mxu0 0.0
    %2381 = vmatpush1.xpose.msra.mxu0 0.0
    %2382 = vmatprep.subr.mxu0 0.0
    %2383 = vmatpush1.xpose.msra.mxu0 0.0
    %2384 = vmatprep.subr.mxu0 0.0
    %2385 = vmatpush1.xpose.msra.mxu0 0.0
    %2386 = vmatprep.subr.mxu0 0.0
    %2387 = vmatpush1.xpose.msra.mxu0 0.0
    %2388 = vmatprep.subr.mxu0 0.0
    %2389 = vmatpush1.xpose.msra.mxu0 0.0
    %2390 = vmatprep.subr.mxu0 0.0
    %2391 = vmatpush1.xpose.msra.mxu0 0.0
    %2392 = vmatprep.subr.mxu0 0.0
    %2393 = vmatpush1.xpose.msra.mxu0 0.0
    %2394 = vmatprep.subr.mxu0 0.0
    %2395 = vmatpush1.xpose.msra.mxu0 0.0
    %2396 = vmatprep.subr.mxu0 0.0
    %2397 = vmatpush1.xpose.msra.mxu0 0.0
    %2398 = vmatprep.mubr.f32.mxu0 0.0
    %2399 = vmatmul.mubr.f32.gmra.mrb[0].mxu0 %v2323
    %v2400 = vpop.f32.mrb[0].mxu0
    %v2401 = vadd.f32 0.0, %v2400
    %v2402 = vpop.f32.mrb[0].mxu0
    %2403 = vmatprep.mubr.f32.mxu0 0.0
    %2404 = vmatmul.mubr.f32.gmra.mrb[0].mxu0 %v2326
    %v2405 = vpop.f32.mrb[0].mxu0
    %v2406 = vadd.f32 0.0, %v2405
    %v2407 = vpop.f32.mrb[0].mxu0
    %2408 = vdwg.mxu0
    %v2409 = vmul.f32 %v2314, 0.17677669
    %v2410 = vmul.f32 %v2319, 0.17677669
    %v2411 = vmul.f32 %v2401, 0.17677669
    %v2412 = vmul.f32 %v2406, 0.17677669
    %v2413 = vadd.f32 %v2409, %v766
    %v2414 = vadd.f32 %v2410, %v766
    %v2415 = vadd.f32 %v2411, %v770
    %v2416 = vadd.f32 %v2412, %v770
    %v2417 = vsel %vm777, %v2413, -inf
    %2418 = vmax.xlane.f32.xlu0 %v2417
    %v2419 = vpop.xlane.xlu0 %2418
    %v2420 = vsel %vm777, %v2414, -inf
    %2421 = vmax.xlane.f32.xlu0 %v2420
    %v2422 = vpop.xlane.xlu0 %2421
    %v2423 = vsel %vm777, %v2415, -inf
    %2424 = vmax.xlane.f32.xlu0 %v2423
    %v2425 = vpop.xlane.xlu0 %2424
    %v2426 = vsel %vm777, %v2416, -inf
    %2427 = vmax.xlane.f32.xlu0 %v2426
    %v2428 = vpop.xlane.xlu0 %2427
    %v2429 = vsub.f32 %v2413, %v2419
    %v2430 = vsub.f32 %v2414, %v2422
    %v2431 = vsub.f32 %v2415, %v2425
    %v2432 = vsub.f32 %v2416, %v2428
    %v2433 = vmul.f32 %v2429, 1.442695
    %v2434 = vpow.pop %v2433
    %v2435 = vmul.f32 %v2430, 1.442695
    %v2436 = vpow.pop %v2435
    %v2437 = vmul.f32 %v2431, 1.442695
    %v2438 = vpow.pop %v2437
    %v2439 = vmul.f32 %v2432, 1.442695
    %v2440 = vpow.pop %v2439
    %v2441 = vsel %vm777, %v2434, 0.0
    %2442 = vadd.xlane.f32.xlu0 %v2441
    %v2443 = vpop.xlane.xlu0 %2442
    %v2444 = vsel %vm777, %v2436, 0.0
    %2445 = vadd.xlane.f32.xlu0 %v2444
    %v2446 = vpop.xlane.xlu0 %2445
    %v2447 = vsel %vm777, %v2438, 0.0
    %2448 = vadd.xlane.f32.xlu0 %v2447
    %v2449 = vpop.xlane.xlu0 %2448
    %v2450 = vsel %vm777, %v2440, 0.0
    %2451 = vadd.xlane.f32.xlu0 %v2450
    %v2452 = vpop.xlane.xlu0 %2451
    %v2453 = vrcp.pop %v2443
    %v2454 = vmul.f32 %v2434, %v2453
    %v2455 = vrcp.pop %v2446
    %v2456 = vmul.f32 %v2436, %v2455
    %v2457 = vrcp.pop %v2449
    %v2458 = vmul.f32 %v2438, %v2457
    %v2459 = vrcp.pop %v2452
    %v2460 = vmul.f32 %v2440, %v2459
    %v2462 = vsel %vm777, %v2454, 0
    %v2465 = vsel %vm777, %v2456, 0
    %2467 = vmatprep.subr.mxu0 0.0
    %2468 = vmatpush1.msra.mxu0 %v2217
    %2469 = vmatprep.subr.mxu0 0.0
    %2470 = vmatpush1.msra.mxu0 %v2222
    %2471 = vmatprep.subr.mxu0 0.0
    %2472 = vmatpush1.msra.mxu0 0.0
    %2473 = vmatprep.subr.mxu0 0.0
    %2474 = vmatpush1.msra.mxu0 0.0
    %2475 = vmatprep.subr.mxu0 0.0
    %2476 = vmatpush1.msra.mxu0 0.0
    %2477 = vmatprep.subr.mxu0 0.0
    %2478 = vmatpush1.msra.mxu0 0.0
    %2479 = vmatprep.subr.mxu0 0.0
    %2480 = vmatpush1.msra.mxu0 0.0
    %2481 = vmatprep.subr.mxu0 0.0
    %2482 = vmatpush1.msra.mxu0 0.0
    %2483 = vmatprep.subr.mxu0 0.0
    %2484 = vmatpush1.msra.mxu0 0.0
    %2485 = vmatprep.subr.mxu0 0.0
    %2486 = vmatpush1.msra.mxu0 0.0
    %2487 = vmatprep.subr.mxu0 0.0
    %2488 = vmatpush1.msra.mxu0 0.0
    %2489 = vmatprep.subr.mxu0 0.0
    %2490 = vmatpush1.msra.mxu0 0.0
    %2491 = vmatprep.subr.mxu0 0.0
    %2492 = vmatpush1.msra.mxu0 0.0
    %2493 = vmatprep.subr.mxu0 0.0
    %2494 = vmatpush1.msra.mxu0 0.0
    %2495 = vmatprep.subr.mxu0 0.0
    %2496 = vmatpush1.msra.mxu0 0.0
    %2497 = vmatprep.subr.mxu0 0.0
    %2498 = vmatpush1.msra.mxu0 0.0
    %2499 = vmatprep.subr.mxu0 0.0
    %2500 = vmatpush1.msra.mxu0 0.0
    %2501 = vmatprep.subr.mxu0 0.0
    %2502 = vmatpush1.msra.mxu0 0.0
    %2503 = vmatprep.subr.mxu0 0.0
    %2504 = vmatpush1.msra.mxu0 0.0
    %2505 = vmatprep.subr.mxu0 0.0
    %2506 = vmatpush1.msra.mxu0 0.0
    %2507 = vmatprep.subr.mxu0 0.0
    %2508 = vmatpush1.msra.mxu0 0.0
    %2509 = vmatprep.subr.mxu0 0.0
    %2510 = vmatpush1.msra.mxu0 0.0
    %2511 = vmatprep.subr.mxu0 0.0
    %2512 = vmatpush1.msra.mxu0 0.0
    %2513 = vmatprep.subr.mxu0 0.0
    %2514 = vmatpush1.msra.mxu0 0.0
    %2515 = vmatprep.subr.mxu0 0.0
    %2516 = vmatpush1.msra.mxu0 0.0
    %2517 = vmatprep.subr.mxu0 0.0
    %2518 = vmatpush1.msra.mxu0 0.0
    %2519 = vmatprep.subr.mxu0 0.0
    %2520 = vmatpush1.msra.mxu0 0.0
    %2521 = vmatprep.subr.mxu0 0.0
    %2522 = vmatpush1.msra.mxu0 0.0
    %2523 = vmatprep.subr.mxu0 0.0
    %2524 = vmatpush1.msra.mxu0 0.0
    %2525 = vmatprep.subr.mxu0 0.0
    %2526 = vmatpush1.msra.mxu0 0.0
    %2527 = vmatprep.subr.mxu0 0.0
    %2528 = vmatpush1.msra.mxu0 0.0
    %2529 = vmatprep.subr.mxu0 0.0
    %2530 = vmatpush1.msra.mxu0 0.0
    %2531 = vmatprep.mubr.f32.mxu0 0.0
    %2532 = vmatmul.mubr.f32.gmra.mrb[0].mxu0 %v2462
    %v2533 = vpop.f32.mrb[0].mxu0
    %v2534 = vadd.f32 0.0, %v2533
    %v2535 = vpop.f32.mrb[0].mxu0
    %2536 = vmatprep.mubr.f32.mxu0 0.0
    %2537 = vmatmul.mubr.f32.gmra.mrb[0].mxu0 %v2465
    %v2538 = vpop.f32.mrb[0].mxu0
    %v2539 = vadd.f32 0.0, %v2538
    %v2540 = vpop.f32.mrb[0].mxu0
    %2541 = vdwg.mxu0
    %v2543 = vsel %vm777, %v2458, 0
    %v2546 = vsel %vm777, %v2460, 0
    %2548 = vmatprep.subr.mxu0 0.0
    %2549 = vmatpush1.msra.mxu0 %v2227
    %2550 = vmatprep.subr.mxu0 0.0
    %2551 = vmatpush1.msra.mxu0 %v2232
    %2552 = vmatprep.subr.mxu0 0.0
    %2553 = vmatpush1.msra.mxu0 0.0
    %2554 = vmatprep.subr.mxu0 0.0
    %2555 = vmatpush1.msra.mxu0 0.0
    %2556 = vmatprep.subr.mxu0 0.0
    %2557 = vmatpush1.msra.mxu0 0.0
    %2558 = vmatprep.subr.mxu0 0.0
    %2559 = vmatpush1.msra.mxu0 0.0
    %2560 = vmatprep.subr.mxu0 0.0
    %2561 = vmatpush1.msra.mxu0 0.0
    %2562 = vmatprep.subr.mxu0 0.0
    %2563 = vmatpush1.msra.mxu0 0.0
    %2564 = vmatprep.subr.mxu0 0.0
    %2565 = vmatpush1.msra.mxu0 0.0
    %2566 = vmatprep.subr.mxu0 0.0
    %2567 = vmatpush1.msra.mxu0 0.0
    %2568 = vmatprep.subr.mxu0 0.0
    %2569 = vmatpush1.msra.mxu0 0.0
    %2570 = vmatprep.subr.mxu0 0.0
    %2571 = vmatpush1.msra.mxu0 0.0
    %2572 = vmatprep.subr.mxu0 0.0
    %2573 = vmatpush1.msra.mxu0 0.0
    %2574 = vmatprep.subr.mxu0 0.0
    %2575 = vmatpush1.msra.mxu0 0.0
    %2576 = vmatprep.subr.mxu0 0.0
    %2577 = vmatpush1.msra.mxu0 0.0
    %2578 = vmatprep.subr.mxu0 0.0
    %2579 = vmatpush1.msra.mxu0 0.0
    %2580 = vmatprep.subr.mxu0 0.0
    %2581 = vmatpush1.msra.mxu0 0.0
    %2582 = vmatprep.subr.mxu0 0.0
    %2583 = vmatpush1.msra.mxu0 0.0
    %2584 = vmatprep.subr.mxu0 0.0
    %2585 = vmatpush1.msra.mxu0 0.0
    %2586 = vmatprep.subr.mxu0 0.0
    %2587 = vmatpush1.msra.mxu0 0.0
    %2588 = vmatprep.subr.mxu0 0.0
    %2589 = vmatpush1.msra.mxu0 0.0
    %2590 = vmatprep.subr.mxu0 0.0
    %2591 = vmatpush1.msra.mxu0 0.0
    %2592 = vmatprep.subr.mxu0 0.0
    %2593 = vmatpush1.msra.mxu0 0.0
    %2594 = vmatprep.subr.mxu0 0.0
    %2595 = vmatpush1.msra.mxu0 0.0
    %2596 = vmatprep.subr.mxu0 0.0
    %2597 = vmatpush1.msra.mxu0 0.0
    %2598 = vmatprep.subr.mxu0 0.0
    %2599 = vmatpush1.msra.mxu0 0.0
    %2600 = vmatprep.subr.mxu0 0.0
    %2601 = vmatpush1.msra.mxu0 0.0
    %2602 = vmatprep.subr.mxu0 0.0
    %2603 = vmatpush1.msra.mxu0 0.0
    %2604 = vmatprep.subr.mxu0 0.0
    %2605 = vmatpush1.msra.mxu0 0.0
    %2606 = vmatprep.subr.mxu0 0.0
    %2607 = vmatpush1.msra.mxu0 0.0
    %2608 = vmatprep.subr.mxu0 0.0
    %2609 = vmatpush1.msra.mxu0 0.0
    %2610 = vmatprep.subr.mxu0 0.0
    %2611 = vmatpush1.msra.mxu0 0.0
    %2612 = vmatprep.mubr.f32.mxu0 0.0
    %2613 = vmatmul.mubr.f32.gmra.mrb[0].mxu0 %v2543
    %v2614 = vpop.f32.mrb[0].mxu0
    %v2615 = vadd.f32 0.0, %v2614
    %v2616 = vpop.f32.mrb[0].mxu0
    %2617 = vmatprep.mubr.f32.mxu0 0.0
    %2618 = vmatmul.mubr.f32.gmra.mrb[0].mxu0 %v2546
    %v2619 = vpop.f32.mrb[0].mxu0
    %v2620 = vadd.f32 0.0, %v2619
    %v2621 = vpop.f32.mrb[0].mxu0
    %2622 = vdwg.mxu0
    %s2623 = scalar_lea.vmem %s12, 64
    %v2624 = vld [vmem:[%s2623] sm:$0xff]
    %v2625 = vld [vmem:[%s2623 + $0x8] sm:$0xff]
    %v2626 = vld [vmem:[%s2623 + $0x10] sm:$0xff]
    %v2627 = vld [vmem:[%s2623 + $0x18] sm:$0xff]
    %v2629 = vsel %vm582, %v2534, 0
    %v2632 = vsel %vm582, %v2539, 0
    %v2635 = vsel %vm582, %v2615, 0
    %v2638 = vsel %vm582, %v2620, 0
    %2640 = vmatprep.subr.mxu0 0.0
    %2641 = vmatpush1.msra.mxu0 %v2624
    %2642 = vmatprep.subr.mxu0 0.0
    %2643 = vmatpush1.msra.mxu0 %v2625
    %2644 = vmatprep.subr.mxu0 0.0
    %2645 = vmatpush1.msra.mxu0 %v2626
    %2646 = vmatprep.subr.mxu0 0.0
    %2647 = vmatpush1.msra.mxu0 %v2627
    %2648 = vmatprep.subr.mxu0 0.0
    %2649 = vmatpush1.msra.mxu0 0.0
    %2650 = vmatprep.subr.mxu0 0.0
    %2651 = vmatpush1.msra.mxu0 0.0
    %2652 = vmatprep.subr.mxu0 0.0
    %2653 = vmatpush1.msra.mxu0 0.0
    %2654 = vmatprep.subr.mxu0 0.0
    %2655 = vmatpush1.msra.mxu0 0.0
    %2656 = vmatprep.subr.mxu0 0.0
    %2657 = vmatpush1.msra.mxu0 0.0
    %2658 = vmatprep.subr.mxu0 0.0
    %2659 = vmatpush1.msra.mxu0 0.0
    %2660 = vmatprep.subr.mxu0 0.0
    %2661 = vmatpush1.msra.mxu0 0.0
    %2662 = vmatprep.subr.mxu0 0.0
    %2663 = vmatpush1.msra.mxu0 0.0
    %2664 = vmatprep.subr.mxu0 0.0
    %2665 = vmatpush1.msra.mxu0 0.0
    %2666 = vmatprep.subr.mxu0 0.0
    %2667 = vmatpush1.msra.mxu0 0.0
    %2668 = vmatprep.subr.mxu0 0.0
    %2669 = vmatpush1.msra.mxu0 0.0
    %2670 = vmatprep.subr.mxu0 0.0
    %2671 = vmatpush1.msra.mxu0 0.0
    %2672 = vmatprep.subr.mxu0 0.0
    %2673 = vmatpush1.msra.mxu0 0.0
    %2674 = vmatprep.subr.mxu0 0.0
    %2675 = vmatpush1.msra.mxu0 0.0
    %2676 = vmatprep.subr.mxu0 0.0
    %2677 = vmatpush1.msra.mxu0 0.0
    %2678 = vmatprep.subr.mxu0 0.0
    %2679 = vmatpush1.msra.mxu0 0.0
    %2680 = vmatprep.subr.mxu0 0.0
    %2681 = vmatpush1.msra.mxu0 0.0
    %2682 = vmatprep.subr.mxu0 0.0
    %2683 = vmatpush1.msra.mxu0 0.0
    %2684 = vmatprep.subr.mxu0 0.0
    %2685 = vmatpush1.msra.mxu0 0.0
    %2686 = vmatprep.subr.mxu0 0.0
    %2687 = vmatpush1.msra.mxu0 0.0
    %2688 = vmatprep.subr.mxu0 0.0
    %2689 = vmatpush1.msra.mxu0 0.0
    %2690 = vmatprep.subr.mxu0 0.0
    %2691 = vmatpush1.msra.mxu0 0.0
    %2692 = vmatprep.subr.mxu0 0.0
    %2693 = vmatpush1.msra.mxu0 0.0
    %2694 = vmatprep.subr.mxu0 0.0
    %2695 = vmatpush1.msra.mxu0 0.0
    %2696 = vmatprep.subr.mxu0 0.0
    %2697 = vmatpush1.msra.mxu0 0.0
    %2698 = vmatprep.subr.mxu0 0.0
    %2699 = vmatpush1.msra.mxu0 0.0
    %2700 = vmatprep.subr.mxu0 0.0
    %2701 = vmatpush1.msra.mxu0 0.0
    %2702 = vmatprep.subr.mxu0 0.0
    %2703 = vmatpush1.msra.mxu0 0.0
    %2704 = vmatprep.mubr.f32.mxu0 0.0
    %2705 = vmatmul.mubr.f32.gmra.mrb[0].mxu0 %v2629
    %v2706 = vpop.f32.mrb[0].mxu0
    %v2707 = vadd.f32 0.0, %v2706
    %v2708 = vpop.f32.mrb[0].mxu0
    %2709 = vmatprep.mubr.f32.mxu0 0.0
    %2710 = vmatmul.mubr.f32.gmra.mrb[0].mxu0 %v2632
    %v2711 = vpop.f32.mrb[0].mxu0
    %v2712 = vadd.f32 0.0, %v2711
    %v2713 = vpop.f32.mrb[0].mxu0
    %2714 = vmatprep.mubr.f32.mxu0 0.0
    %2715 = vmatmul.mubr.f32.gmra.mrb[0].mxu0 %v2635
    %v2716 = vpop.f32.mrb[0].mxu0
    %v2717 = vadd.f32 0.0, %v2716
    %v2718 = vpop.f32.mrb[0].mxu0
    %2719 = vmatprep.mubr.f32.mxu0 0.0
    %2720 = vmatmul.mubr.f32.gmra.mrb[0].mxu0 %v2638
    %v2721 = vpop.f32.mrb[0].mxu0
    %v2722 = vadd.f32 0.0, %v2721
    %v2723 = vpop.f32.mrb[0].mxu0
    %2724 = vdwg.mxu0
    %v2725 = vadd.f32 %v1887, %v2707
    %v2726 = vadd.f32 %v1892, %v2712
    %v2727 = vadd.f32 %v1897, %v2717
    %v2728 = vadd.f32 %v1902, %v2722
    %s2729 = scalar_lea.vmem %s6, 384
    %v2730 = vld [vmem:[%s2729] sm:$0xff]
    %v2731 = vld [vmem:[%s2729 + $0x8] sm:$0xff]
    %v2732 = vld [vmem:[%s2729 + $0x10] sm:$0xff]
    %v2733 = vld [vmem:[%s2729 + $0x18] sm:$0xff]
    %v2734 = vld [vmem:[%s2729 + $0x20] sm:$0xff]
    %v2735 = vld [vmem:[%s2729 + $0x28] sm:$0xff]
    %v2736 = vld [vmem:[%s2729 + $0x30] sm:$0xff]
    %v2737 = vld [vmem:[%s2729 + $0x38] sm:$0xff]
    %v2738 = vld [vmem:[%s2729 + $0x40] sm:$0xff]
    %v2739 = vld [vmem:[%s2729 + $0x48] sm:$0xff]
    %v2740 = vld [vmem:[%s2729 + $0x50] sm:$0xff]
    %v2741 = vld [vmem:[%s2729 + $0x58] sm:$0xff]
    %v2742 = vld [vmem:[%s2729 + $0x60] sm:$0xff]
    %v2743 = vld [vmem:[%s2729 + $0x68] sm:$0xff]
    %v2744 = vld [vmem:[%s2729 + $0x70] sm:$0xff]
    %v2745 = vld [vmem:[%s2729 + $0x78] sm:$0xff]
    %s2746 = scalar_lea.vmem %s7, 3
    %v2747 = vld [vmem:[%s2746] sm:$0x1]
    %v2749 = vlaneseq
    %v2750 = vshrl.u32 %v2749, 7
    %v2751 = vsub.s32 0, %v2750
    %v2752 = vrot.slane %v2747, %v2751
    %2754 = vmatprep.subr.mxu0 0.0
    %2755 = vmatpush1.msra.mxu0 %v2730
    %2756 = vmatprep.subr.mxu0 0.0
    %2757 = vmatpush1.msra.mxu0 %v2731
    %2758 = vmatprep.subr.mxu0 0.0
    %2759 = vmatpush1.msra.mxu0 %v2732
    %2760 = vmatprep.subr.mxu0 0.0
    %2761 = vmatpush1.msra.mxu0 %v2733
    %2762 = vmatprep.subr.mxu0 0.0
    %2763 = vmatpush1.msra.mxu0 %v2734
    %2764 = vmatprep.subr.mxu0 0.0
    %2765 = vmatpush1.msra.mxu0 %v2735
    %2766 = vmatprep.subr.mxu0 0.0
    %2767 = vmatpush1.msra.mxu0 %v2736
    %2768 = vmatprep.subr.mxu0 0.0
    %2769 = vmatpush1.msra.mxu0 %v2737
    %2770 = vmatprep.subr.mxu0 0.0
    %2771 = vmatpush1.msra.mxu0 %v2738
    %2772 = vmatprep.subr.mxu0 0.0
    %2773 = vmatpush1.msra.mxu0 %v2739
    %2774 = vmatprep.subr.mxu0 0.0
    %2775 = vmatpush1.msra.mxu0 %v2740
    %2776 = vmatprep.subr.mxu0 0.0
    %2777 = vmatpush1.msra.mxu0 %v2741
    %2778 = vmatprep.subr.mxu0 0.0
    %2779 = vmatpush1.msra.mxu0 %v2742
    %2780 = vmatprep.subr.mxu0 0.0
    %2781 = vmatpush1.msra.mxu0 %v2743
    %2782 = vmatprep.subr.mxu0 0.0
    %2783 = vmatpush1.msra.mxu0 %v2744
    %2784 = vmatprep.subr.mxu0 0.0
    %2785 = vmatpush1.msra.mxu0 %v2745
    %2786 = vmatprep.subr.mxu0 0.0
    %2787 = vmatpush1.msra.mxu0 0.0
    %2788 = vmatprep.subr.mxu0 0.0
    %2789 = vmatpush1.msra.mxu0 0.0
    %2790 = vmatprep.subr.mxu0 0.0
    %2791 = vmatpush1.msra.mxu0 0.0
    %2792 = vmatprep.subr.mxu0 0.0
    %2793 = vmatpush1.msra.mxu0 0.0
    %2794 = vmatprep.subr.mxu0 0.0
    %2795 = vmatpush1.msra.mxu0 0.0
    %2796 = vmatprep.subr.mxu0 0.0
    %2797 = vmatpush1.msra.mxu0 0.0
    %2798 = vmatprep.subr.mxu0 0.0
    %2799 = vmatpush1.msra.mxu0 0.0
    %2800 = vmatprep.subr.mxu0 0.0
    %2801 = vmatpush1.msra.mxu0 0.0
    %2802 = vmatprep.subr.mxu0 0.0
    %2803 = vmatpush1.msra.mxu0 0.0
    %2804 = vmatprep.subr.mxu0 0.0
    %2805 = vmatpush1.msra.mxu0 0.0
    %2806 = vmatprep.subr.mxu0 0.0
    %2807 = vmatpush1.msra.mxu0 0.0
    %2808 = vmatprep.subr.mxu0 0.0
    %2809 = vmatpush1.msra.mxu0 0.0
    %2810 = vmatprep.subr.mxu0 0.0
    %2811 = vmatpush1.msra.mxu0 0.0
    %2812 = vmatprep.subr.mxu0 0.0
    %2813 = vmatpush1.msra.mxu0 0.0
    %2814 = vmatprep.subr.mxu0 0.0
    %2815 = vmatpush1.msra.mxu0 0.0
    %2816 = vmatprep.subr.mxu0 0.0
    %2817 = vmatpush1.msra.mxu0 0.0
    %2818 = vmatprep.mubr.f32.mxu0 0.0
    %2819 = vmatmul.mubr.f32.gmra.mrb[0].mxu0 %v252
    %v2820 = vpop.f32.mrb[0].mxu0
    %v2821 = vadd.f32 %v2752, %v2820
    %v2822 = vpop.f32.mrb[0].mxu0
    %2823 = vmatprep.mubr.f32.mxu0 0.0
    %2824 = vmatmul.mubr.f32.gmra.mrb[0].mxu0 %v253
    %v2825 = vpop.f32.mrb[0].mxu0
    %v2826 = vadd.f32 %v2752, %v2825
    %v2827 = vpop.f32.mrb[0].mxu0
    %2828 = vmatprep.mubr.f32.mxu0 0.0
    %2829 = vmatmul.mubr.f32.gmra.mrb[0].mxu0 %v254
    %v2830 = vpop.f32.mrb[0].mxu0
    %v2831 = vadd.f32 %v2752, %v2830
    %v2832 = vpop.f32.mrb[0].mxu0
    %2833 = vmatprep.mubr.f32.mxu0 0.0
    %2834 = vmatmul.mubr.f32.gmra.mrb[0].mxu0 %v255
    %v2835 = vpop.f32.mrb[0].mxu0
    %v2836 = vadd.f32 %v2752, %v2835
    %v2837 = vpop.f32.mrb[0].mxu0
    %2838 = vdwg.mxu0
    %s2839 = scalar_lea.vmem %s8, 384
    %v2840 = vld [vmem:[%s2839] sm:$0xff]
    %v2841 = vld [vmem:[%s2839 + $0x8] sm:$0xff]
    %v2842 = vld [vmem:[%s2839 + $0x10] sm:$0xff]
    %v2843 = vld [vmem:[%s2839 + $0x18] sm:$0xff]
    %v2844 = vld [vmem:[%s2839 + $0x20] sm:$0xff]
    %v2845 = vld [vmem:[%s2839 + $0x28] sm:$0xff]
    %v2846 = vld [vmem:[%s2839 + $0x30] sm:$0xff]
    %v2847 = vld [vmem:[%s2839 + $0x38] sm:$0xff]
    %v2848 = vld [vmem:[%s2839 + $0x40] sm:$0xff]
    %v2849 = vld [vmem:[%s2839 + $0x48] sm:$0xff]
    %v2850 = vld [vmem:[%s2839 + $0x50] sm:$0xff]
    %v2851 = vld [vmem:[%s2839 + $0x58] sm:$0xff]
    %v2852 = vld [vmem:[%s2839 + $0x60] sm:$0xff]
    %v2853 = vld [vmem:[%s2839 + $0x68] sm:$0xff]
    %v2854 = vld [vmem:[%s2839 + $0x70] sm:$0xff]
    %v2855 = vld [vmem:[%s2839 + $0x78] sm:$0xff]
    %s2856 = scalar_lea.vmem %s9, 3
    %v2857 = vld [vmem:[%s2856] sm:$0x1]
    %v2859 = vlaneseq
    %v2860 = vshrl.u32 %v2859, 7
    %v2861 = vsub.s32 0, %v2860
    %v2862 = vrot.slane %v2857, %v2861
    %2864 = vmatprep.subr.mxu0 0.0
    %2865 = vmatpush1.msra.mxu0 %v2840
    %2866 = vmatprep.subr.mxu0 0.0
    %2867 = vmatpush1.msra.mxu0 %v2841
    %2868 = vmatprep.subr.mxu0 0.0
    %2869 = vmatpush1.msra.mxu0 %v2842
    %2870 = vmatprep.subr.mxu0 0.0
    %2871 = vmatpush1.msra.mxu0 %v2843
    %2872 = vmatprep.subr.mxu0 0.0
    %2873 = vmatpush1.msra.mxu0 %v2844
    %2874 = vmatprep.subr.mxu0 0.0
    %2875 = vmatpush1.msra.mxu0 %v2845
    %2876 = vmatprep.subr.mxu0 0.0
    %2877 = vmatpush1.msra.mxu0 %v2846
    %2878 = vmatprep.subr.mxu0 0.0
    %2879 = vmatpush1.msra.mxu0 %v2847
    %2880 = vmatprep.subr.mxu0 0.0
    %2881 = vmatpush1.msra.mxu0 %v2848
    %2882 = vmatprep.subr.mxu0 0.0
    %2883 = vmatpush1.msra.mxu0 %v2849
    %2884 = vmatprep.subr.mxu0 0.0
    %2885 = vmatpush1.msra.mxu0 %v2850
    %2886 = vmatprep.subr.mxu0 0.0
    %2887 = vmatpush1.msra.mxu0 %v2851
    %2888 = vmatprep.subr.mxu0 0.0
    %2889 = vmatpush1.msra.mxu0 %v2852
    %2890 = vmatprep.subr.mxu0 0.0
    %2891 = vmatpush1.msra.mxu0 %v2853
    %2892 = vmatprep.subr.mxu0 0.0
    %2893 = vmatpush1.msra.mxu0 %v2854
    %2894 = vmatprep.subr.mxu0 0.0
    %2895 = vmatpush1.msra.mxu0 %v2855
    %2896 = vmatprep.subr.mxu0 0.0
    %2897 = vmatpush1.msra.mxu0 0.0
    %2898 = vmatprep.subr.mxu0 0.0
    %2899 = vmatpush1.msra.mxu0 0.0
    %2900 = vmatprep.subr.mxu0 0.0
    %2901 = vmatpush1.msra.mxu0 0.0
    %2902 = vmatprep.subr.mxu0 0.0
    %2903 = vmatpush1.msra.mxu0 0.0
    %2904 = vmatprep.subr.mxu0 0.0
    %2905 = vmatpush1.msra.mxu0 0.0
    %2906 = vmatprep.subr.mxu0 0.0
    %2907 = vmatpush1.msra.mxu0 0.0
    %2908 = vmatprep.subr.mxu0 0.0
    %2909 = vmatpush1.msra.mxu0 0.0
    %2910 = vmatprep.subr.mxu0 0.0
    %2911 = vmatpush1.msra.mxu0 0.0
    %2912 = vmatprep.subr.mxu0 0.0
    %2913 = vmatpush1.msra.mxu0 0.0
    %2914 = vmatprep.subr.mxu0 0.0
    %2915 = vmatpush1.msra.mxu0 0.0
    %2916 = vmatprep.subr.mxu0 0.0
    %2917 = vmatpush1.msra.mxu0 0.0
    %2918 = vmatprep.subr.mxu0 0.0
    %2919 = vmatpush1.msra.mxu0 0.0
    %2920 = vmatprep.subr.mxu0 0.0
    %2921 = vmatpush1.msra.mxu0 0.0
    %2922 = vmatprep.subr.mxu0 0.0
    %2923 = vmatpush1.msra.mxu0 0.0
    %2924 = vmatprep.subr.mxu0 0.0
    %2925 = vmatpush1.msra.mxu0 0.0
    %2926 = vmatprep.subr.mxu0 0.0
    %2927 = vmatpush1.msra.mxu0 0.0
    %2928 = vmatprep.mubr.f32.mxu0 0.0
    %2929 = vmatmul.mubr.f32.gmra.mrb[0].mxu0 %v252
    %v2930 = vpop.f32.mrb[0].mxu0
    %v2931 = vadd.f32 %v2862, %v2930
    %v2932 = vpop.f32.mrb[0].mxu0
    %2933 = vmatprep.mubr.f32.mxu0 0.0
    %2934 = vmatmul.mubr.f32.gmra.mrb[0].mxu0 %v253
    %v2935 = vpop.f32.mrb[0].mxu0
    %v2936 = vadd.f32 %v2862, %v2935
    %v2937 = vpop.f32.mrb[0].mxu0
    %2938 = vmatprep.mubr.f32.mxu0 0.0
    %2939 = vmatmul.mubr.f32.gmra.mrb[0].mxu0 %v254
    %v2940 = vpop.f32.mrb[0].mxu0
    %v2941 = vadd.f32 %v2862, %v2940
    %v2942 = vpop.f32.mrb[0].mxu0
    %2943 = vmatprep.mubr.f32.mxu0 0.0
    %2944 = vmatmul.mubr.f32.gmra.mrb[0].mxu0 %v255
    %v2945 = vpop.f32.mrb[0].mxu0
    %v2946 = vadd.f32 %v2862, %v2945
    %v2947 = vpop.f32.mrb[0].mxu0
    %2948 = vdwg.mxu0
    %s2949 = scalar_lea.vmem %s10, 384
    %v2950 = vld [vmem:[%s2949] sm:$0xff]
    %v2951 = vld [vmem:[%s2949 + $0x8] sm:$0xff]
    %v2952 = vld [vmem:[%s2949 + $0x10] sm:$0xff]
    %v2953 = vld [vmem:[%s2949 + $0x18] sm:$0xff]
    %v2954 = vld [vmem:[%s2949 + $0x20] sm:$0xff]
    %v2955 = vld [vmem:[%s2949 + $0x28] sm:$0xff]
    %v2956 = vld [vmem:[%s2949 + $0x30] sm:$0xff]
    %v2957 = vld [vmem:[%s2949 + $0x38] sm:$0xff]
    %v2958 = vld [vmem:[%s2949 + $0x40] sm:$0xff]
    %v2959 = vld [vmem:[%s2949 + $0x48] sm:$0xff]
    %v2960 = vld [vmem:[%s2949 + $0x50] sm:$0xff]
    %v2961 = vld [vmem:[%s2949 + $0x58] sm:$0xff]
    %v2962 = vld [vmem:[%s2949 + $0x60] sm:$0xff]
    %v2963 = vld [vmem:[%s2949 + $0x68] sm:$0xff]
    %v2964 = vld [vmem:[%s2949 + $0x70] sm:$0xff]
    %v2965 = vld [vmem:[%s2949 + $0x78] sm:$0xff]
    %s2966 = scalar_lea.vmem %s11, 3
    %v2967 = vld [vmem:[%s2966] sm:$0x1]
    %v2969 = vlaneseq
    %v2970 = vshrl.u32 %v2969, 7
    %v2971 = vsub.s32 0, %v2970
    %v2972 = vrot.slane %v2967, %v2971
    %2974 = vmatprep.subr.mxu0 0.0
    %2975 = vmatpush1.msra.mxu0 %v2950
    %2976 = vmatprep.subr.mxu0 0.0
    %2977 = vmatpush1.msra.mxu0 %v2951
    %2978 = vmatprep.subr.mxu0 0.0
    %2979 = vmatpush1.msra.mxu0 %v2952
    %2980 = vmatprep.subr.mxu0 0.0
    %2981 = vmatpush1.msra.mxu0 %v2953
    %2982 = vmatprep.subr.mxu0 0.0
    %2983 = vmatpush1.msra.mxu0 %v2954
    %2984 = vmatprep.subr.mxu0 0.0
    %2985 = vmatpush1.msra.mxu0 %v2955
    %2986 = vmatprep.subr.mxu0 0.0
    %2987 = vmatpush1.msra.mxu0 %v2956
    %2988 = vmatprep.subr.mxu0 0.0
    %2989 = vmatpush1.msra.mxu0 %v2957
    %2990 = vmatprep.subr.mxu0 0.0
    %2991 = vmatpush1.msra.mxu0 %v2958
    %2992 = vmatprep.subr.mxu0 0.0
    %2993 = vmatpush1.msra.mxu0 %v2959
    %2994 = vmatprep.subr.mxu0 0.0
    %2995 = vmatpush1.msra.mxu0 %v2960
    %2996 = vmatprep.subr.mxu0 0.0
    %2997 = vmatpush1.msra.mxu0 %v2961
    %2998 = vmatprep.subr.mxu0 0.0
    %2999 = vmatpush1.msra.mxu0 %v2962
    %3000 = vmatprep.subr.mxu0 0.0
    %3001 = vmatpush1.msra.mxu0 %v2963
    %3002 = vmatprep.subr.mxu0 0.0
    %3003 = vmatpush1.msra.mxu0 %v2964
    %3004 = vmatprep.subr.mxu0 0.0
    %3005 = vmatpush1.msra.mxu0 %v2965
    %3006 = vmatprep.subr.mxu0 0.0
    %3007 = vmatpush1.msra.mxu0 0.0
    %3008 = vmatprep.subr.mxu0 0.0
    %3009 = vmatpush1.msra.mxu0 0.0
    %3010 = vmatprep.subr.mxu0 0.0
    %3011 = vmatpush1.msra.mxu0 0.0
    %3012 = vmatprep.subr.mxu0 0.0
    %3013 = vmatpush1.msra.mxu0 0.0
    %3014 = vmatprep.subr.mxu0 0.0
    %3015 = vmatpush1.msra.mxu0 0.0
    %3016 = vmatprep.subr.mxu0 0.0
    %3017 = vmatpush1.msra.mxu0 0.0
    %3018 = vmatprep.subr.mxu0 0.0
    %3019 = vmatpush1.msra.mxu0 0.0
    %3020 = vmatprep.subr.mxu0 0.0
    %3021 = vmatpush1.msra.mxu0 0.0
    %3022 = vmatprep.subr.mxu0 0.0
    %3023 = vmatpush1.msra.mxu0 0.0
    %3024 = vmatprep.subr.mxu0 0.0
    %3025 = vmatpush1.msra.mxu0 0.0
    %3026 = vmatprep.subr.mxu0 0.0
    %3027 = vmatpush1.msra.mxu0 0.0
    %3028 = vmatprep.subr.mxu0 0.0
    %3029 = vmatpush1.msra.mxu0 0.0
    %3030 = vmatprep.subr.mxu0 0.0
    %3031 = vmatpush1.msra.mxu0 0.0
    %3032 = vmatprep.subr.mxu0 0.0
    %3033 = vmatpush1.msra.mxu0 0.0
    %3034 = vmatprep.subr.mxu0 0.0
    %3035 = vmatpush1.msra.mxu0 0.0
    %3036 = vmatprep.subr.mxu0 0.0
    %3037 = vmatpush1.msra.mxu0 0.0
    %3038 = vmatprep.mubr.f32.mxu0 0.0
    %3039 = vmatmul.mubr.f32.gmra.mrb[0].mxu0 %v252
    %v3040 = vpop.f32.mrb[0].mxu0
    %v3041 = vadd.f32 %v2972, %v3040
    %v3042 = vpop.f32.mrb[0].mxu0
    %3043 = vmatprep.mubr.f32.mxu0 0.0
    %3044 = vmatmul.mubr.f32.gmra.mrb[0].mxu0 %v253
    %v3045 = vpop.f32.mrb[0].mxu0
    %v3046 = vadd.f32 %v2972, %v3045
    %v3047 = vpop.f32.mrb[0].mxu0
    %3048 = vmatprep.mubr.f32.mxu0 0.0
    %3049 = vmatmul.mubr.f32.gmra.mrb[0].mxu0 %v254
    %v3050 = vpop.f32.mrb[0].mxu0
    %v3051 = vadd.f32 %v2972, %v3050
    %v3052 = vpop.f32.mrb[0].mxu0
    %3053 = vmatprep.mubr.f32.mxu0 0.0
    %3054 = vmatmul.mubr.f32.gmra.mrb[0].mxu0 %v255
    %v3055 = vpop.f32.mrb[0].mxu0
    %v3056 = vadd.f32 %v2972, %v3055
    %v3057 = vpop.f32.mrb[0].mxu0
    %3058 = vdwg.mxu0
    %v3060 = vsel %vm582, %v2821, 0
    %v3063 = vsel %vm582, %v2826, 0
    %v3066 = vsel %vm582, %v2931, 0
    %v3069 = vsel %vm582, %v2936, 0
    %3071 = vmatprep.subr.mxu0 0.0
    %3072 = vmatpush1.xpose.msra.mxu0 %v3066
    %3073 = vmatprep.subr.mxu0 0.0
    %3074 = vmatpush1.xpose.msra.mxu0 %v3069
    %3075 = vmatprep.subr.mxu0 0.0
    %3076 = vmatpush1.xpose.msra.mxu0 0.0
    %3077 = vmatprep.subr.mxu0 0.0
    %3078 = vmatpush1.xpose.msra.mxu0 0.0
    %3079 = vmatprep.subr.mxu0 0.0
    %3080 = vmatpush1.xpose.msra.mxu0 0.0
    %3081 = vmatprep.subr.mxu0 0.0
    %3082 = vmatpush1.xpose.msra.mxu0 0.0
    %3083 = vmatprep.subr.mxu0 0.0
    %3084 = vmatpush1.xpose.msra.mxu0 0.0
    %3085 = vmatprep.subr.mxu0 0.0
    %3086 = vmatpush1.xpose.msra.mxu0 0.0
    %3087 = vmatprep.subr.mxu0 0.0
    %3088 = vmatpush1.xpose.msra.mxu0 0.0
    %3089 = vmatprep.subr.mxu0 0.0
    %3090 = vmatpush1.xpose.msra.mxu0 0.0
    %3091 = vmatprep.subr.mxu0 0.0
    %3092 = vmatpush1.xpose.msra.mxu0 0.0
    %3093 = vmatprep.subr.mxu0 0.0
    %3094 = vmatpush1.xpose.msra.mxu0 0.0
    %3095 = vmatprep.subr.mxu0 0.0
    %3096 = vmatpush1.xpose.msra.mxu0 0.0
    %3097 = vmatprep.subr.mxu0 0.0
    %3098 = vmatpush1.xpose.msra.mxu0 0.0
    %3099 = vmatprep.subr.mxu0 0.0
    %3100 = vmatpush1.xpose.msra.mxu0 0.0
    %3101 = vmatprep.subr.mxu0 0.0
    %3102 = vmatpush1.xpose.msra.mxu0 0.0
    %3103 = vmatprep.subr.mxu0 0.0
    %3104 = vmatpush1.xpose.msra.mxu0 0.0
    %3105 = vmatprep.subr.mxu0 0.0
    %3106 = vmatpush1.xpose.msra.mxu0 0.0
    %3107 = vmatprep.subr.mxu0 0.0
    %3108 = vmatpush1.xpose.msra.mxu0 0.0
    %3109 = vmatprep.subr.mxu0 0.0
    %3110 = vmatpush1.xpose.msra.mxu0 0.0
    %3111 = vmatprep.subr.mxu0 0.0
    %3112 = vmatpush1.xpose.msra.mxu0 0.0
    %3113 = vmatprep.subr.mxu0 0.0
    %3114 = vmatpush1.xpose.msra.mxu0 0.0
    %3115 = vmatprep.subr.mxu0 0.0
    %3116 = vmatpush1.xpose.msra.mxu0 0.0
    %3117 = vmatprep.subr.mxu0 0.0
    %3118 = vmatpush1.xpose.msra.mxu0 0.0
    %3119 = vmatprep.subr.mxu0 0.0
    %3120 = vmatpush1.xpose.msra.mxu0 0.0
    %3121 = vmatprep.subr.mxu0 0.0
    %3122 = vmatpush1.xpose.msra.mxu0 0.0
    %3123 = vmatprep.subr.mxu0 0.0
    %3124 = vmatpush1.xpose.msra.mxu0 0.0
    %3125 = vmatprep.subr.mxu0 0.0
    %3126 = vmatpush1.xpose.msra.mxu0 0.0
    %3127 = vmatprep.subr.mxu0 0.0
    %3128 = vmatpush1.xpose.msra.mxu0 0.0
    %3129 = vmatprep.subr.mxu0 0.0
    %3130 = vmatpush1.xpose.msra.mxu0 0.0
    %3131 = vmatprep.subr.mxu0 0.0
    %3132 = vmatpush1.xpose.msra.mxu0 0.0
    %3133 = vmatprep.subr.mxu0 0.0
    %3134 = vmatpush1.xpose.msra.mxu0 0.0
    %3135 = vmatprep.mubr.f32.mxu0 0.0
    %3136 = vmatmul.mubr.f32.gmra.mrb[0].mxu0 %v3060
    %v3137 = vpop.f32.mrb[0].mxu0
    %v3138 = vadd.f32 0.0, %v3137
    %v3139 = vpop.f32.mrb[0].mxu0
    %3140 = vmatprep.mubr.f32.mxu0 0.0
    %3141 = vmatmul.mubr.f32.gmra.mrb[0].mxu0 %v3063
    %v3142 = vpop.f32.mrb[0].mxu0
    %v3143 = vadd.f32 0.0, %v3142
    %v3144 = vpop.f32.mrb[0].mxu0
    %3145 = vdwg.mxu0
    %v3147 = vsel %vm582, %v2831, 0
    %v3150 = vsel %vm582, %v2836, 0
    %v3153 = vsel %vm582, %v2941, 0
    %v3156 = vsel %vm582, %v2946, 0
    %3158 = vmatprep.subr.mxu0 0.0
    %3159 = vmatpush1.xpose.msra.mxu0 %v3153
    %3160 = vmatprep.subr.mxu0 0.0
    %3161 = vmatpush1.xpose.msra.mxu0 %v3156
    %3162 = vmatprep.subr.mxu0 0.0
    %3163 = vmatpush1.xpose.msra.mxu0 0.0
    %3164 = vmatprep.subr.mxu0 0.0
    %3165 = vmatpush1.xpose.msra.mxu0 0.0
    %3166 = vmatprep.subr.mxu0 0.0
    %3167 = vmatpush1.xpose.msra.mxu0 0.0
    %3168 = vmatprep.subr.mxu0 0.0
    %3169 = vmatpush1.xpose.msra.mxu0 0.0
    %3170 = vmatprep.subr.mxu0 0.0
    %3171 = vmatpush1.xpose.msra.mxu0 0.0
    %3172 = vmatprep.subr.mxu0 0.0
    %3173 = vmatpush1.xpose.msra.mxu0 0.0
    %3174 = vmatprep.subr.mxu0 0.0
    %3175 = vmatpush1.xpose.msra.mxu0 0.0
    %3176 = vmatprep.subr.mxu0 0.0
    %3177 = vmatpush1.xpose.msra.mxu0 0.0
    %3178 = vmatprep.subr.mxu0 0.0
    %3179 = vmatpush1.xpose.msra.mxu0 0.0
    %3180 = vmatprep.subr.mxu0 0.0
    %3181 = vmatpush1.xpose.msra.mxu0 0.0
    %3182 = vmatprep.subr.mxu0 0.0
    %3183 = vmatpush1.xpose.msra.mxu0 0.0
    %3184 = vmatprep.subr.mxu0 0.0
    %3185 = vmatpush1.xpose.msra.mxu0 0.0
    %3186 = vmatprep.subr.mxu0 0.0
    %3187 = vmatpush1.xpose.msra.mxu0 0.0
    %3188 = vmatprep.subr.mxu0 0.0
    %3189 = vmatpush1.xpose.msra.mxu0 0.0
    %3190 = vmatprep.subr.mxu0 0.0
    %3191 = vmatpush1.xpose.msra.mxu0 0.0
    %3192 = vmatprep.subr.mxu0 0.0
    %3193 = vmatpush1.xpose.msra.mxu0 0.0
    %3194 = vmatprep.subr.mxu0 0.0
    %3195 = vmatpush1.xpose.msra.mxu0 0.0
    %3196 = vmatprep.subr.mxu0 0.0
    %3197 = vmatpush1.xpose.msra.mxu0 0.0
    %3198 = vmatprep.subr.mxu0 0.0
    %3199 = vmatpush1.xpose.msra.mxu0 0.0
    %3200 = vmatprep.subr.mxu0 0.0
    %3201 = vmatpush1.xpose.msra.mxu0 0.0
    %3202 = vmatprep.subr.mxu0 0.0
    %3203 = vmatpush1.xpose.msra.mxu0 0.0
    %3204 = vmatprep.subr.mxu0 0.0
    %3205 = vmatpush1.xpose.msra.mxu0 0.0
    %3206 = vmatprep.subr.mxu0 0.0
    %3207 = vmatpush1.xpose.msra.mxu0 0.0
    %3208 = vmatprep.subr.mxu0 0.0
    %3209 = vmatpush1.xpose.msra.mxu0 0.0
    %3210 = vmatprep.subr.mxu0 0.0
    %3211 = vmatpush1.xpose.msra.mxu0 0.0
    %3212 = vmatprep.subr.mxu0 0.0
    %3213 = vmatpush1.xpose.msra.mxu0 0.0
    %3214 = vmatprep.subr.mxu0 0.0
    %3215 = vmatpush1.xpose.msra.mxu0 0.0
    %3216 = vmatprep.subr.mxu0 0.0
    %3217 = vmatpush1.xpose.msra.mxu0 0.0
    %3218 = vmatprep.subr.mxu0 0.0
    %3219 = vmatpush1.xpose.msra.mxu0 0.0
    %3220 = vmatprep.subr.mxu0 0.0
    %3221 = vmatpush1.xpose.msra.mxu0 0.0
    %3222 = vmatprep.mubr.f32.mxu0 0.0
    %3223 = vmatmul.mubr.f32.gmra.mrb[0].mxu0 %v3147
    %v3224 = vpop.f32.mrb[0].mxu0
    %v3225 = vadd.f32 0.0, %v3224
    %v3226 = vpop.f32.mrb[0].mxu0
    %3227 = vmatprep.mubr.f32.mxu0 0.0
    %3228 = vmatmul.mubr.f32.gmra.mrb[0].mxu0 %v3150
    %v3229 = vpop.f32.mrb[0].mxu0
    %v3230 = vadd.f32 0.0, %v3229
    %v3231 = vpop.f32.mrb[0].mxu0
    %3232 = vdwg.mxu0
    %v3233 = vmul.f32 %v3138, 0.17677669
    %v3234 = vmul.f32 %v3143, 0.17677669
    %v3235 = vmul.f32 %v3225, 0.17677669
    %v3236 = vmul.f32 %v3230, 0.17677669
    %v3237 = vadd.f32 %v3233, %v766
    %v3238 = vadd.f32 %v3234, %v766
    %v3239 = vadd.f32 %v3235, %v770
    %v3240 = vadd.f32 %v3236, %v770
    %v3241 = vsel %vm777, %v3237, -inf
    %3242 = vmax.xlane.f32.xlu0 %v3241
    %v3243 = vpop.xlane.xlu0 %3242
    %v3244 = vsel %vm777, %v3238, -inf
    %3245 = vmax.xlane.f32.xlu0 %v3244
    %v3246 = vpop.xlane.xlu0 %3245
    %v3247 = vsel %vm777, %v3239, -inf
    %3248 = vmax.xlane.f32.xlu0 %v3247
    %v3249 = vpop.xlane.xlu0 %3248
    %v3250 = vsel %vm777, %v3240, -inf
    %3251 = vmax.xlane.f32.xlu0 %v3250
    %v3252 = vpop.xlane.xlu0 %3251
    %v3253 = vsub.f32 %v3237, %v3243
    %v3254 = vsub.f32 %v3238, %v3246
    %v3255 = vsub.f32 %v3239, %v3249
    %v3256 = vsub.f32 %v3240, %v3252
    %v3257 = vmul.f32 %v3253, 1.442695
    %v3258 = vpow.pop %v3257
    %v3259 = vmul.f32 %v3254, 1.442695
    %v3260 = vpow.pop %v3259
    %v3261 = vmul.f32 %v3255, 1.442695
    %v3262 = vpow.pop %v3261
    %v3263 = vmul.f32 %v3256, 1.442695
    %v3264 = vpow.pop %v3263
    %v3265 = vsel %vm777, %v3258, 0.0
    %3266 = vadd.xlane.f32.xlu0 %v3265
    %v3267 = vpop.xlane.xlu0 %3266
    %v3268 = vsel %vm777, %v3260, 0.0
    %3269 = vadd.xlane.f32.xlu0 %v3268
    %v3270 = vpop.xlane.xlu0 %3269
    %v3271 = vsel %vm777, %v3262, 0.0
    %3272 = vadd.xlane.f32.xlu0 %v3271
    %v3273 = vpop.xlane.xlu0 %3272
    %v3274 = vsel %vm777, %v3264, 0.0
    %3275 = vadd.xlane.f32.xlu0 %v3274
    %v3276 = vpop.xlane.xlu0 %3275
    %v3277 = vrcp.pop %v3267
    %v3278 = vmul.f32 %v3258, %v3277
    %v3279 = vrcp.pop %v3270
    %v3280 = vmul.f32 %v3260, %v3279
    %v3281 = vrcp.pop %v3273
    %v3282 = vmul.f32 %v3262, %v3281
    %v3283 = vrcp.pop %v3276
    %v3284 = vmul.f32 %v3264, %v3283
    %v3286 = vsel %vm777, %v3278, 0
    %v3289 = vsel %vm777, %v3280, 0
    %3291 = vmatprep.subr.mxu0 0.0
    %3292 = vmatpush1.msra.mxu0 %v3041
    %3293 = vmatprep.subr.mxu0 0.0
    %3294 = vmatpush1.msra.mxu0 %v3046
    %3295 = vmatprep.subr.mxu0 0.0
    %3296 = vmatpush1.msra.mxu0 0.0
    %3297 = vmatprep.subr.mxu0 0.0
    %3298 = vmatpush1.msra.mxu0 0.0
    %3299 = vmatprep.subr.mxu0 0.0
    %3300 = vmatpush1.msra.mxu0 0.0
    %3301 = vmatprep.subr.mxu0 0.0
    %3302 = vmatpush1.msra.mxu0 0.0
    %3303 = vmatprep.subr.mxu0 0.0
    %3304 = vmatpush1.msra.mxu0 0.0
    %3305 = vmatprep.subr.mxu0 0.0
    %3306 = vmatpush1.msra.mxu0 0.0
    %3307 = vmatprep.subr.mxu0 0.0
    %3308 = vmatpush1.msra.mxu0 0.0
    %3309 = vmatprep.subr.mxu0 0.0
    %3310 = vmatpush1.msra.mxu0 0.0
    %3311 = vmatprep.subr.mxu0 0.0
    %3312 = vmatpush1.msra.mxu0 0.0
    %3313 = vmatprep.subr.mxu0 0.0
    %3314 = vmatpush1.msra.mxu0 0.0
    %3315 = vmatprep.subr.mxu0 0.0
    %3316 = vmatpush1.msra.mxu0 0.0
    %3317 = vmatprep.subr.mxu0 0.0
    %3318 = vmatpush1.msra.mxu0 0.0
    %3319 = vmatprep.subr.mxu0 0.0
    %3320 = vmatpush1.msra.mxu0 0.0
    %3321 = vmatprep.subr.mxu0 0.0
    %3322 = vmatpush1.msra.mxu0 0.0
    %3323 = vmatprep.subr.mxu0 0.0
    %3324 = vmatpush1.msra.mxu0 0.0
    %3325 = vmatprep.subr.mxu0 0.0
    %3326 = vmatpush1.msra.mxu0 0.0
    %3327 = vmatprep.subr.mxu0 0.0
    %3328 = vmatpush1.msra.mxu0 0.0
    %3329 = vmatprep.subr.mxu0 0.0
    %3330 = vmatpush1.msra.mxu0 0.0
    %3331 = vmatprep.subr.mxu0 0.0
    %3332 = vmatpush1.msra.mxu0 0.0
    %3333 = vmatprep.subr.mxu0 0.0
    %3334 = vmatpush1.msra.mxu0 0.0
    %3335 = vmatprep.subr.mxu0 0.0
    %3336 = vmatpush1.msra.mxu0 0.0
    %3337 = vmatprep.subr.mxu0 0.0
    %3338 = vmatpush1.msra.mxu0 0.0
    %3339 = vmatprep.subr.mxu0 0.0
    %3340 = vmatpush1.msra.mxu0 0.0
    %3341 = vmatprep.subr.mxu0 0.0
    %3342 = vmatpush1.msra.mxu0 0.0
    %3343 = vmatprep.subr.mxu0 0.0
    %3344 = vmatpush1.msra.mxu0 0.0
    %3345 = vmatprep.subr.mxu0 0.0
    %3346 = vmatpush1.msra.mxu0 0.0
    %3347 = vmatprep.subr.mxu0 0.0
    %3348 = vmatpush1.msra.mxu0 0.0
    %3349 = vmatprep.subr.mxu0 0.0
    %3350 = vmatpush1.msra.mxu0 0.0
    %3351 = vmatprep.subr.mxu0 0.0
    %3352 = vmatpush1.msra.mxu0 0.0
    %3353 = vmatprep.subr.mxu0 0.0
    %3354 = vmatpush1.msra.mxu0 0.0
    %3355 = vmatprep.mubr.f32.mxu0 0.0
    %3356 = vmatmul.mubr.f32.gmra.mrb[0].mxu0 %v3286
    %v3357 = vpop.f32.mrb[0].mxu0
    %v3358 = vadd.f32 0.0, %v3357
    %v3359 = vpop.f32.mrb[0].mxu0
    %3360 = vmatprep.mubr.f32.mxu0 0.0
    %3361 = vmatmul.mubr.f32.gmra.mrb[0].mxu0 %v3289
    %v3362 = vpop.f32.mrb[0].mxu0
    %v3363 = vadd.f32 0.0, %v3362
    %v3364 = vpop.f32.mrb[0].mxu0
    %3365 = vdwg.mxu0
    %v3367 = vsel %vm777, %v3282, 0
    %v3370 = vsel %vm777, %v3284, 0
    %3372 = vmatprep.subr.mxu0 0.0
    %3373 = vmatpush1.msra.mxu0 %v3051
    %3374 = vmatprep.subr.mxu0 0.0
    %3375 = vmatpush1.msra.mxu0 %v3056
    %3376 = vmatprep.subr.mxu0 0.0
    %3377 = vmatpush1.msra.mxu0 0.0
    %3378 = vmatprep.subr.mxu0 0.0
    %3379 = vmatpush1.msra.mxu0 0.0
    %3380 = vmatprep.subr.mxu0 0.0
    %3381 = vmatpush1.msra.mxu0 0.0
    %3382 = vmatprep.subr.mxu0 0.0
    %3383 = vmatpush1.msra.mxu0 0.0
    %3384 = vmatprep.subr.mxu0 0.0
    %3385 = vmatpush1.msra.mxu0 0.0
    %3386 = vmatprep.subr.mxu0 0.0
    %3387 = vmatpush1.msra.mxu0 0.0
    %3388 = vmatprep.subr.mxu0 0.0
    %3389 = vmatpush1.msra.mxu0 0.0
    %3390 = vmatprep.subr.mxu0 0.0
    %3391 = vmatpush1.msra.mxu0 0.0
    %3392 = vmatprep.subr.mxu0 0.0
    %3393 = vmatpush1.msra.mxu0 0.0
    %3394 = vmatprep.subr.mxu0 0.0
    %3395 = vmatpush1.msra.mxu0 0.0
    %3396 = vmatprep.subr.mxu0 0.0
    %3397 = vmatpush1.msra.mxu0 0.0
    %3398 = vmatprep.subr.mxu0 0.0
    %3399 = vmatpush1.msra.mxu0 0.0
    %3400 = vmatprep.subr.mxu0 0.0
    %3401 = vmatpush1.msra.mxu0 0.0
    %3402 = vmatprep.subr.mxu0 0.0
    %3403 = vmatpush1.msra.mxu0 0.0
    %3404 = vmatprep.subr.mxu0 0.0
    %3405 = vmatpush1.msra.mxu0 0.0
    %3406 = vmatprep.subr.mxu0 0.0
    %3407 = vmatpush1.msra.mxu0 0.0
    %3408 = vmatprep.subr.mxu0 0.0
    %3409 = vmatpush1.msra.mxu0 0.0
    %3410 = vmatprep.subr.mxu0 0.0
    %3411 = vmatpush1.msra.mxu0 0.0
    %3412 = vmatprep.subr.mxu0 0.0
    %3413 = vmatpush1.msra.mxu0 0.0
    %3414 = vmatprep.subr.mxu0 0.0
    %3415 = vmatpush1.msra.mxu0 0.0
    %3416 = vmatprep.subr.mxu0 0.0
    %3417 = vmatpush1.msra.mxu0 0.0
    %3418 = vmatprep.subr.mxu0 0.0
    %3419 = vmatpush1.msra.mxu0 0.0
    %3420 = vmatprep.subr.mxu0 0.0
    %3421 = vmatpush1.msra.mxu0 0.0
    %3422 = vmatprep.subr.mxu0 0.0
    %3423 = vmatpush1.msra.mxu0 0.0
    %3424 = vmatprep.subr.mxu0 0.0
    %3425 = vmatpush1.msra.mxu0 0.0
    %3426 = vmatprep.subr.mxu0 0.0
    %3427 = vmatpush1.msra.mxu0 0.0
    %3428 = vmatprep.subr.mxu0 0.0
    %3429 = vmatpush1.msra.mxu0 0.0
    %3430 = vmatprep.subr.mxu0 0.0
    %3431 = vmatpush1.msra.mxu0 0.0
    %3432 = vmatprep.subr.mxu0 0.0
    %3433 = vmatpush1.msra.mxu0 0.0
    %3434 = vmatprep.subr.mxu0 0.0
    %3435 = vmatpush1.msra.mxu0 0.0
    %3436 = vmatprep.mubr.f32.mxu0 0.0
    %3437 = vmatmul.mubr.f32.gmra.mrb[0].mxu0 %v3367
    %v3438 = vpop.f32.mrb[0].mxu0
    %v3439 = vadd.f32 0.0, %v3438
    %v3440 = vpop.f32.mrb[0].mxu0
    %3441 = vmatprep.mubr.f32.mxu0 0.0
    %3442 = vmatmul.mubr.f32.gmra.mrb[0].mxu0 %v3370
    %v3443 = vpop.f32.mrb[0].mxu0
    %v3444 = vadd.f32 0.0, %v3443
    %v3445 = vpop.f32.mrb[0].mxu0
    %3446 = vdwg.mxu0
    %s3447 = scalar_lea.vmem %s12, 96
    %v3448 = vld [vmem:[%s3447] sm:$0xff]
    %v3449 = vld [vmem:[%s3447 + $0x8] sm:$0xff]
    %v3450 = vld [vmem:[%s3447 + $0x10] sm:$0xff]
    %v3451 = vld [vmem:[%s3447 + $0x18] sm:$0xff]
    %v3453 = vsel %vm582, %v3358, 0
    %v3456 = vsel %vm582, %v3363, 0
    %v3459 = vsel %vm582, %v3439, 0
    %v3462 = vsel %vm582, %v3444, 0
    %3464 = vmatprep.subr.mxu0 0.0
    %3465 = vmatpush1.msra.mxu0 %v3448
    %3466 = vmatprep.subr.mxu0 0.0
    %3467 = vmatpush1.msra.mxu0 %v3449
    %3468 = vmatprep.subr.mxu0 0.0
    %3469 = vmatpush1.msra.mxu0 %v3450
    %3470 = vmatprep.subr.mxu0 0.0
    %3471 = vmatpush1.msra.mxu0 %v3451
    %3472 = vmatprep.subr.mxu0 0.0
    %3473 = vmatpush1.msra.mxu0 0.0
    %3474 = vmatprep.subr.mxu0 0.0
    %3475 = vmatpush1.msra.mxu0 0.0
    %3476 = vmatprep.subr.mxu0 0.0
    %3477 = vmatpush1.msra.mxu0 0.0
    %3478 = vmatprep.subr.mxu0 0.0
    %3479 = vmatpush1.msra.mxu0 0.0
    %3480 = vmatprep.subr.mxu0 0.0
    %3481 = vmatpush1.msra.mxu0 0.0
    %3482 = vmatprep.subr.mxu0 0.0
    %3483 = vmatpush1.msra.mxu0 0.0
    %3484 = vmatprep.subr.mxu0 0.0
    %3485 = vmatpush1.msra.mxu0 0.0
    %3486 = vmatprep.subr.mxu0 0.0
    %3487 = vmatpush1.msra.mxu0 0.0
    %3488 = vmatprep.subr.mxu0 0.0
    %3489 = vmatpush1.msra.mxu0 0.0
    %3490 = vmatprep.subr.mxu0 0.0
    %3491 = vmatpush1.msra.mxu0 0.0
    %3492 = vmatprep.subr.mxu0 0.0
    %3493 = vmatpush1.msra.mxu0 0.0
    %3494 = vmatprep.subr.mxu0 0.0
    %3495 = vmatpush1.msra.mxu0 0.0
    %3496 = vmatprep.subr.mxu0 0.0
    %3497 = vmatpush1.msra.mxu0 0.0
    %3498 = vmatprep.subr.mxu0 0.0
    %3499 = vmatpush1.msra.mxu0 0.0
    %3500 = vmatprep.subr.mxu0 0.0
    %3501 = vmatpush1.msra.mxu0 0.0
    %3502 = vmatprep.subr.mxu0 0.0
    %3503 = vmatpush1.msra.mxu0 0.0
    %3504 = vmatprep.subr.mxu0 0.0
    %3505 = vmatpush1.msra.mxu0 0.0
    %3506 = vmatprep.subr.mxu0 0.0
    %3507 = vmatpush1.msra.mxu0 0.0
    %3508 = vmatprep.subr.mxu0 0.0
    %3509 = vmatpush1.msra.mxu0 0.0
    %3510 = vmatprep.subr.mxu0 0.0
    %3511 = vmatpush1.msra.mxu0 0.0
    %3512 = vmatprep.subr.mxu0 0.0
    %3513 = vmatpush1.msra.mxu0 0.0
    %3514 = vmatprep.subr.mxu0 0.0
    %3515 = vmatpush1.msra.mxu0 0.0
    %3516 = vmatprep.subr.mxu0 0.0
    %3517 = vmatpush1.msra.mxu0 0.0
    %3518 = vmatprep.subr.mxu0 0.0
    %3519 = vmatpush1.msra.mxu0 0.0
    %3520 = vmatprep.subr.mxu0 0.0
    %3521 = vmatpush1.msra.mxu0 0.0
    %3522 = vmatprep.subr.mxu0 0.0
    %3523 = vmatpush1.msra.mxu0 0.0
    %3524 = vmatprep.subr.mxu0 0.0
    %3525 = vmatpush1.msra.mxu0 0.0
    %3526 = vmatprep.subr.mxu0 0.0
    %3527 = vmatpush1.msra.mxu0 0.0
    %3528 = vmatprep.mubr.f32.mxu0 0.0
    %3529 = vmatmul.mubr.f32.gmra.mrb[0].mxu0 %v3453
    %v3530 = vpop.f32.mrb[0].mxu0
    %v3531 = vadd.f32 0.0, %v3530
    %v3532 = vpop.f32.mrb[0].mxu0
    %3533 = vmatprep.mubr.f32.mxu0 0.0
    %3534 = vmatmul.mubr.f32.gmra.mrb[0].mxu0 %v3456
    %v3535 = vpop.f32.mrb[0].mxu0
    %v3536 = vadd.f32 0.0, %v3535
    %v3537 = vpop.f32.mrb[0].mxu0
    %3538 = vmatprep.mubr.f32.mxu0 0.0
    %3539 = vmatmul.mubr.f32.gmra.mrb[0].mxu0 %v3459
    %v3540 = vpop.f32.mrb[0].mxu0
    %v3541 = vadd.f32 0.0, %v3540
    %v3542 = vpop.f32.mrb[0].mxu0
    %3543 = vmatprep.mubr.f32.mxu0 0.0
    %3544 = vmatmul.mubr.f32.gmra.mrb[0].mxu0 %v3462
    %v3545 = vpop.f32.mrb[0].mxu0
    %v3546 = vadd.f32 0.0, %v3545
    %v3547 = vpop.f32.mrb[0].mxu0
    %3548 = vdwg.mxu0
    %v3549 = vadd.f32 %v2725, %v3531
    %v3550 = vadd.f32 %v2726, %v3536
    %v3551 = vadd.f32 %v2727, %v3541
    %v3552 = vadd.f32 %v2728, %v3546
    %v3553 = vld [vmem:[%s13] sm:$0x1]
    %v3555 = vlaneseq
    %v3556 = vshrl.u32 %v3555, 7
    %v3557 = vsub.s32 0, %v3556
    %v3558 = vrot.slane %v3553, %v3557
    %v3560 = vadd.f32 %v3549, %v3558
    %v3561 = vadd.f32 %v3550, %v3558
    %v3562 = vadd.f32 %v3551, %v3558
    %v3563 = vadd.f32 %v3552, %v3558
    %v3564 = vadd.f32 %v252, %v3560
    %v3565 = vadd.f32 %v253, %v3561
    %v3566 = vadd.f32 %v254, %v3562
    %v3567 = vadd.f32 %v255, %v3563
    %v3568 = vld [vmem:[%s18] sm:$0x1]
    %v3569 = vld [vmem:[%s19] sm:$0x1]
    %3570 = vadd.xlane.f32.xlu0 %v3564
    %v3571 = vpop.xlane.xlu0 %3570
    %3572 = vadd.xlane.f32.xlu0 %v3565
    %v3573 = vpop.xlane.xlu0 %3572
    %3574 = vadd.xlane.f32.xlu0 %v3566
    %v3575 = vpop.xlane.xlu0 %3574
    %3576 = vadd.xlane.f32.xlu0 %v3567
    %v3577 = vpop.xlane.xlu0 %3576
    %v3578 = vmul.f32 %v3571, %v199
    %v3579 = vmul.f32 %v3573, %v199
    %v3580 = vmul.f32 %v3575, %v199
    %v3581 = vmul.f32 %v3577, %v199
    %v3582 = vsub.f32 %v3564, %v3578
    %v3583 = vsub.f32 %v3565, %v3579
    %v3584 = vsub.f32 %v3566, %v3580
    %v3585 = vsub.f32 %v3567, %v3581
    %v3586 = vmul.f32 %v3582, %v3582
    %v3587 = vmul.f32 %v3583, %v3583
    %v3588 = vmul.f32 %v3584, %v3584
    %v3589 = vmul.f32 %v3585, %v3585
    %3590 = vadd.xlane.f32.xlu0 %v3586
    %v3591 = vpop.xlane.xlu0 %3590
    %3592 = vadd.xlane.f32.xlu0 %v3587
    %v3593 = vpop.xlane.xlu0 %3592
    %3594 = vadd.xlane.f32.xlu0 %v3588
    %v3595 = vpop.xlane.xlu0 %3594
    %3596 = vadd.xlane.f32.xlu0 %v3589
    %v3597 = vpop.xlane.xlu0 %3596
    %v3598 = vmul.f32 %v3591, %v199
    %v3599 = vmul.f32 %v3593, %v199
    %v3600 = vmul.f32 %v3595, %v199
    %v3601 = vmul.f32 %v3597, %v199
    %v3602 = vadd.f32 %v3598, 1e-05
    %v3603 = vadd.f32 %v3599, 1e-05
    %v3604 = vadd.f32 %v3600, 1e-05
    %v3605 = vadd.f32 %v3601, 1e-05
    %v3606 = vrsqrt.pop %v3602
    %v3607 = vrsqrt.pop %v3603
    %v3608 = vrsqrt.pop %v3604
    %v3609 = vrsqrt.pop %v3605
    %v3610 = vmul.f32 %v3582, %v3606
    %v3611 = vmul.f32 %v3583, %v3607
    %v3612 = vmul.f32 %v3584, %v3608
    %v3613 = vmul.f32 %v3585, %v3609
    %v3615 = vlaneseq
    %v3616 = vshrl.u32 %v3615, 7
    %v3617 = vsub.s32 0, %v3616
    %v3618 = vrot.slane %v3568, %v3617
    %v3620 = vmul.f32 %v3610, %v3618
    %v3621 = vmul.f32 %v3611, %v3618
    %v3622 = vmul.f32 %v3612, %v3618
    %v3623 = vmul.f32 %v3613, %v3618
    %v3625 = vlaneseq
    %v3626 = vshrl.u32 %v3625, 7
    %v3627 = vsub.s32 0, %v3626
    %v3628 = vrot.slane %v3569, %v3627
    %v3630 = vadd.f32 %v3620, %v3628
    %v3631 = vadd.f32 %v3621, %v3628
    %v3632 = vadd.f32 %v3622, %v3628
    %v3633 = vadd.f32 %v3623, %v3628
    %v3634 = vld [vmem:[%s14] sm:$0xff]
    %v3635 = vld [vmem:[%s14 + $0x8] sm:$0xff]
    %v3636 = vld [vmem:[%s14 + $0x10] sm:$0xff]
    %v3637 = vld [vmem:[%s14 + $0x18] sm:$0xff]
    %v3638 = vld [vmem:[%s14 + $0x20] sm:$0xff]
    %v3639 = vld [vmem:[%s14 + $0x28] sm:$0xff]
    %v3640 = vld [vmem:[%s14 + $0x30] sm:$0xff]
    %v3641 = vld [vmem:[%s14 + $0x38] sm:$0xff]
    %v3642 = vld [vmem:[%s14 + $0x40] sm:$0xff]
    %v3643 = vld [vmem:[%s14 + $0x48] sm:$0xff]
    %v3644 = vld [vmem:[%s14 + $0x50] sm:$0xff]
    %v3645 = vld [vmem:[%s14 + $0x58] sm:$0xff]
    %v3646 = vld [vmem:[%s14 + $0x60] sm:$0xff]
    %v3647 = vld [vmem:[%s14 + $0x68] sm:$0xff]
    %v3648 = vld [vmem:[%s14 + $0x70] sm:$0xff]
    %v3649 = vld [vmem:[%s14 + $0x78] sm:$0xff]
    %v3650 = vld [vmem:[%s14 + $0x80] sm:$0xff]
    %v3651 = vld [vmem:[%s14 + $0x88] sm:$0xff]
    %v3652 = vld [vmem:[%s14 + $0x90] sm:$0xff]
    %v3653 = vld [vmem:[%s14 + $0x98] sm:$0xff]
    %v3654 = vld [vmem:[%s14 + $0xa0] sm:$0xff]
    %v3655 = vld [vmem:[%s14 + $0xa8] sm:$0xff]
    %v3656 = vld [vmem:[%s14 + $0xb0] sm:$0xff]
    %v3657 = vld [vmem:[%s14 + $0xb8] sm:$0xff]
    %v3658 = vld [vmem:[%s14 + $0xc0] sm:$0xff]
    %v3659 = vld [vmem:[%s14 + $0xc8] sm:$0xff]
    %v3660 = vld [vmem:[%s14 + $0xd0] sm:$0xff]
    %v3661 = vld [vmem:[%s14 + $0xd8] sm:$0xff]
    %v3662 = vld [vmem:[%s14 + $0xe0] sm:$0xff]
    %v3663 = vld [vmem:[%s14 + $0xe8] sm:$0xff]
    %v3664 = vld [vmem:[%s14 + $0xf0] sm:$0xff]
    %v3665 = vld [vmem:[%s14 + $0xf8] sm:$0xff]
    %v3666 = vld [vmem:[%s15] sm:$0x3]
    %v3668 = vlaneseq
    %v3669 = vshrl.u32 %v3668, 7
    %v3670 = vsub.s32 0, %v3669
    %v3671 = vrot.slane %v3666, %v3670
    %v3672 = vlaneseq
    %v3673 = vshrl.u32 %v3672, 7
    %v3674 = vsub.s32 1, %v3673
    %v3675 = vrot.slane %v3666, %v3674
    %3678 = vmatprep.subr.mxu0 %v3635
    %3679 = vmatpush1.msra.mxu0 %v3634
    %3680 = vmatprep.subr.mxu0 %v3637
    %3681 = vmatpush1.msra.mxu0 %v3636
    %3682 = vmatprep.subr.mxu0 %v3639
    %3683 = vmatpush1.msra.mxu0 %v3638
    %3684 = vmatprep.subr.mxu0 %v3641
    %3685 = vmatpush1.msra.mxu0 %v3640
    %3686 = vmatprep.subr.mxu0 %v3643
    %3687 = vmatpush1.msra.mxu0 %v3642
    %3688 = vmatprep.subr.mxu0 %v3645
    %3689 = vmatpush1.msra.mxu0 %v3644
    %3690 = vmatprep.subr.mxu0 %v3647
    %3691 = vmatpush1.msra.mxu0 %v3646
    %3692 = vmatprep.subr.mxu0 %v3649
    %3693 = vmatpush1.msra.mxu0 %v3648
    %3694 = vmatprep.subr.mxu0 %v3651
    %3695 = vmatpush1.msra.mxu0 %v3650
    %3696 = vmatprep.subr.mxu0 %v3653
    %3697 = vmatpush1.msra.mxu0 %v3652
    %3698 = vmatprep.subr.mxu0 %v3655
    %3699 = vmatpush1.msra.mxu0 %v3654
    %3700 = vmatprep.subr.mxu0 %v3657
    %3701 = vmatpush1.msra.mxu0 %v3656
    %3702 = vmatprep.subr.mxu0 %v3659
    %3703 = vmatpush1.msra.mxu0 %v3658
    %3704 = vmatprep.subr.mxu0 %v3661
    %3705 = vmatpush1.msra.mxu0 %v3660
    %3706 = vmatprep.subr.mxu0 %v3663
    %3707 = vmatpush1.msra.mxu0 %v3662
    %3708 = vmatprep.subr.mxu0 %v3665
    %3709 = vmatpush1.msra.mxu0 %v3664
    %3710 = vmatprep.subr.mxu0 0.0
    %3711 = vmatpush1.msra.mxu0 0.0
    %3712 = vmatprep.subr.mxu0 0.0
    %3713 = vmatpush1.msra.mxu0 0.0
    %3714 = vmatprep.subr.mxu0 0.0
    %3715 = vmatpush1.msra.mxu0 0.0
    %3716 = vmatprep.subr.mxu0 0.0
    %3717 = vmatpush1.msra.mxu0 0.0
    %3718 = vmatprep.subr.mxu0 0.0
    %3719 = vmatpush1.msra.mxu0 0.0
    %3720 = vmatprep.subr.mxu0 0.0
    %3721 = vmatpush1.msra.mxu0 0.0
    %3722 = vmatprep.subr.mxu0 0.0
    %3723 = vmatpush1.msra.mxu0 0.0
    %3724 = vmatprep.subr.mxu0 0.0
    %3725 = vmatpush1.msra.mxu0 0.0
    %3726 = vmatprep.subr.mxu0 0.0
    %3727 = vmatpush1.msra.mxu0 0.0
    %3728 = vmatprep.subr.mxu0 0.0
    %3729 = vmatpush1.msra.mxu0 0.0
    %3730 = vmatprep.subr.mxu0 0.0
    %3731 = vmatpush1.msra.mxu0 0.0
    %3732 = vmatprep.subr.mxu0 0.0
    %3733 = vmatpush1.msra.mxu0 0.0
    %3734 = vmatprep.subr.mxu0 0.0
    %3735 = vmatpush1.msra.mxu0 0.0
    %3736 = vmatprep.subr.mxu0 0.0
    %3737 = vmatpush1.msra.mxu0 0.0
    %3738 = vmatprep.subr.mxu0 0.0
    %3739 = vmatpush1.msra.mxu0 0.0
    %3740 = vmatprep.subr.mxu0 0.0
    %3741 = vmatpush1.msra.mxu0 0.0
    %3742 = vmatprep.mubr.f32.mxu0 0.0
    %3743 = vmatmul.mubr.f32.gmra.mrb[0].mxu0 %v3630
    %v3744 = vpop.f32.mrb[0].mxu0
    %v3745 = vadd.f32 %v3671, %v3744
    %v3746 = vpop.f32.mrb[0].mxu0
    %v3747 = vadd.f32 %v3675, %v3746
    %3748 = vmatprep.mubr.f32.mxu0 0.0
    %3749 = vmatmul.mubr.f32.gmra.mrb[0].mxu0 %v3631
    %v3750 = vpop.f32.mrb[0].mxu0
    %v3751 = vadd.f32 %v3671, %v3750
    %v3752 = vpop.f32.mrb[0].mxu0
    %v3753 = vadd.f32 %v3675, %v3752
    %3754 = vmatprep.mubr.f32.mxu0 0.0
    %3755 = vmatmul.mubr.f32.gmra.mrb[0].mxu0 %v3632
    %v3756 = vpop.f32.mrb[0].mxu0
    %v3757 = vadd.f32 %v3671, %v3756
    %v3758 = vpop.f32.mrb[0].mxu0
    %v3759 = vadd.f32 %v3675, %v3758
    %3760 = vmatprep.mubr.f32.mxu0 0.0
    %3761 = vmatmul.mubr.f32.gmra.mrb[0].mxu0 %v3633
    %v3762 = vpop.f32.mrb[0].mxu0
    %v3763 = vadd.f32 %v3671, %v3762
    %v3764 = vpop.f32.mrb[0].mxu0
    %v3765 = vadd.f32 %v3675, %v3764
    %3766 = vdwg.mxu0
    %v3767 = vmax.f32 %v3745, 0.0
    %v3768 = vmax.f32 %v3747, 0.0
    %v3769 = vmax.f32 %v3751, 0.0
    %v3770 = vmax.f32 %v3753, 0.0
    %v3771 = vmax.f32 %v3757, 0.0
    %v3772 = vmax.f32 %v3759, 0.0
    %v3773 = vmax.f32 %v3763, 0.0
    %v3774 = vmax.f32 %v3765, 0.0
    %v3775 = vld [vmem:[%s16] sm:$0xff]
    %v3776 = vld [vmem:[%s16 + $0x8] sm:$0xff]
    %v3777 = vld [vmem:[%s16 + $0x10] sm:$0xff]
    %v3778 = vld [vmem:[%s16 + $0x18] sm:$0xff]
    %v3779 = vld [vmem:[%s16 + $0x20] sm:$0xff]
    %v3780 = vld [vmem:[%s16 + $0x28] sm:$0xff]
    %v3781 = vld [vmem:[%s16 + $0x30] sm:$0xff]
    %v3782 = vld [vmem:[%s16 + $0x38] sm:$0xff]
    %v3783 = vld [vmem:[%s16 + $0x40] sm:$0xff]
    %v3784 = vld [vmem:[%s16 + $0x48] sm:$0xff]
    %v3785 = vld [vmem:[%s16 + $0x50] sm:$0xff]
    %v3786 = vld [vmem:[%s16 + $0x58] sm:$0xff]
    %v3787 = vld [vmem:[%s16 + $0x60] sm:$0xff]
    %v3788 = vld [vmem:[%s16 + $0x68] sm:$0xff]
    %v3789 = vld [vmem:[%s16 + $0x70] sm:$0xff]
    %v3790 = vld [vmem:[%s16 + $0x78] sm:$0xff]
    %v3791 = vld [vmem:[%s16 + $0x80] sm:$0xff]
    %v3792 = vld [vmem:[%s16 + $0x88] sm:$0xff]
    %v3793 = vld [vmem:[%s16 + $0x90] sm:$0xff]
    %v3794 = vld [vmem:[%s16 + $0x98] sm:$0xff]
    %v3795 = vld [vmem:[%s16 + $0xa0] sm:$0xff]
    %v3796 = vld [vmem:[%s16 + $0xa8] sm:$0xff]
    %v3797 = vld [vmem:[%s16 + $0xb0] sm:$0xff]
    %v3798 = vld [vmem:[%s16 + $0xb8] sm:$0xff]
    %v3799 = vld [vmem:[%s16 + $0xc0] sm:$0xff]
    %v3800 = vld [vmem:[%s16 + $0xc8] sm:$0xff]
    %v3801 = vld [vmem:[%s16 + $0xd0] sm:$0xff]
    %v3802 = vld [vmem:[%s16 + $0xd8] sm:$0xff]
    %v3803 = vld [vmem:[%s16 + $0xe0] sm:$0xff]
    %v3804 = vld [vmem:[%s16 + $0xe8] sm:$0xff]
    %v3805 = vld [vmem:[%s16 + $0xf0] sm:$0xff]
    %v3806 = vld [vmem:[%s16 + $0xf8] sm:$0xff]
    %v3807 = vld [vmem:[%s17] sm:$0x1]
    %v3809 = vlaneseq
    %v3810 = vshrl.u32 %v3809, 7
    %v3811 = vsub.s32 0, %v3810
    %v3812 = vrot.slane %v3807, %v3811
    %3814 = vmatprep.subr.mxu0 0.0
    %3815 = vmatpush1.msra.mxu0 %v3775
    %3816 = vmatprep.subr.mxu0 0.0
    %3817 = vmatpush1.msra.mxu0 %v3776
    %3818 = vmatprep.subr.mxu0 0.0
    %3819 = vmatpush1.msra.mxu0 %v3777
    %3820 = vmatprep.subr.mxu0 0.0
    %3821 = vmatpush1.msra.mxu0 %v3778
    %3822 = vmatprep.subr.mxu0 0.0
    %3823 = vmatpush1.msra.mxu0 %v3779
    %3824 = vmatprep.subr.mxu0 0.0
    %3825 = vmatpush1.msra.mxu0 %v3780
    %3826 = vmatprep.subr.mxu0 0.0
    %3827 = vmatpush1.msra.mxu0 %v3781
    %3828 = vmatprep.subr.mxu0 0.0
    %3829 = vmatpush1.msra.mxu0 %v3782
    %3830 = vmatprep.subr.mxu0 0.0
    %3831 = vmatpush1.msra.mxu0 %v3783
    %3832 = vmatprep.subr.mxu0 0.0
    %3833 = vmatpush1.msra.mxu0 %v3784
    %3834 = vmatprep.subr.mxu0 0.0
    %3835 = vmatpush1.msra.mxu0 %v3785
    %3836 = vmatprep.subr.mxu0 0.0
    %3837 = vmatpush1.msra.mxu0 %v3786
    %3838 = vmatprep.subr.mxu0 0.0
    %3839 = vmatpush1.msra.mxu0 %v3787
    %3840 = vmatprep.subr.mxu0 0.0
    %3841 = vmatpush1.msra.mxu0 %v3788
    %3842 = vmatprep.subr.mxu0 0.0
    %3843 = vmatpush1.msra.mxu0 %v3789
    %3844 = vmatprep.subr.mxu0 0.0
    %3845 = vmatpush1.msra.mxu0 %v3790
    %3846 = vmatprep.subr.mxu0 0.0
    %3847 = vmatpush1.msra.mxu0 %v3791
    %3848 = vmatprep.subr.mxu0 0.0
    %3849 = vmatpush1.msra.mxu0 %v3792
    %3850 = vmatprep.subr.mxu0 0.0
    %3851 = vmatpush1.msra.mxu0 %v3793
    %3852 = vmatprep.subr.mxu0 0.0
    %3853 = vmatpush1.msra.mxu0 %v3794
    %3854 = vmatprep.subr.mxu0 0.0
    %3855 = vmatpush1.msra.mxu0 %v3795
    %3856 = vmatprep.subr.mxu0 0.0
    %3857 = vmatpush1.msra.mxu0 %v3796
    %3858 = vmatprep.subr.mxu0 0.0
    %3859 = vmatpush1.msra.mxu0 %v3797
    %3860 = vmatprep.subr.mxu0 0.0
    %3861 = vmatpush1.msra.mxu0 %v3798
    %3862 = vmatprep.subr.mxu0 0.0
    %3863 = vmatpush1.msra.mxu0 %v3799
    %3864 = vmatprep.subr.mxu0 0.0
    %3865 = vmatpush1.msra.mxu0 %v3800
    %3866 = vmatprep.subr.mxu0 0.0
    %3867 = vmatpush1.msra.mxu0 %v3801
    %3868 = vmatprep.subr.mxu0 0.0
    %3869 = vmatpush1.msra.mxu0 %v3802
    %3870 = vmatprep.subr.mxu0 0.0
    %3871 = vmatpush1.msra.mxu0 %v3803
    %3872 = vmatprep.subr.mxu0 0.0
    %3873 = vmatpush1.msra.mxu0 %v3804
    %3874 = vmatprep.subr.mxu0 0.0
    %3875 = vmatpush1.msra.mxu0 %v3805
    %3876 = vmatprep.subr.mxu0 0.0
    %3877 = vmatpush1.msra.mxu0 %v3806
    %3878 = vmatprep.mubr.f32.mxu0 %v3768
    %3879 = vmatmul.mubr.f32.gmra.mrb[0].mxu0 %v3767
    %v3880 = vpop.f32.mrb[0].mxu0
    %v3881 = vadd.f32 %v3812, %v3880
    %v3882 = vpop.f32.mrb[0].mxu0
    %3883 = vmatprep.mubr.f32.mxu0 %v3770
    %3884 = vmatmul.mubr.f32.gmra.mrb[0].mxu0 %v3769
    %v3885 = vpop.f32.mrb[0].mxu0
    %v3886 = vadd.f32 %v3812, %v3885
    %v3887 = vpop.f32.mrb[0].mxu0
    %3888 = vmatprep.mubr.f32.mxu0 %v3772
    %3889 = vmatmul.mubr.f32.gmra.mrb[0].mxu0 %v3771
    %v3890 = vpop.f32.mrb[0].mxu0
    %v3891 = vadd.f32 %v3812, %v3890
    %v3892 = vpop.f32.mrb[0].mxu0
    %3893 = vmatprep.mubr.f32.mxu0 %v3774
    %3894 = vmatmul.mubr.f32.gmra.mrb[0].mxu0 %v3773
    %v3895 = vpop.f32.mrb[0].mxu0
    %v3896 = vadd.f32 %v3812, %v3895
    %v3897 = vpop.f32.mrb[0].mxu0
    %3898 = vdwg.mxu0
    %v3899 = vadd.f32 %v3630, %v3881
    %v3900 = vadd.f32 %v3631, %v3886
    %v3901 = vadd.f32 %v3632, %v3891
    %v3902 = vadd.f32 %v3633, %v3896
    %v3903 = vld [vmem:[%s20] sm:$0x1]
    %v3904 = vld [vmem:[%s21] sm:$0x1]
    %3905 = vadd.xlane.f32.xlu0 %v3899
    %v3906 = vpop.xlane.xlu0 %3905
    %3907 = vadd.xlane.f32.xlu0 %v3900
    %v3908 = vpop.xlane.xlu0 %3907
    %3909 = vadd.xlane.f32.xlu0 %v3901
    %v3910 = vpop.xlane.xlu0 %3909
    %3911 = vadd.xlane.f32.xlu0 %v3902
    %v3912 = vpop.xlane.xlu0 %3911
    %v3913 = vmul.f32 %v3906, %v199
    %v3914 = vmul.f32 %v3908, %v199
    %v3915 = vmul.f32 %v3910, %v199
    %v3916 = vmul.f32 %v3912, %v199
    %v3917 = vsub.f32 %v3899, %v3913
    %v3918 = vsub.f32 %v3900, %v3914
    %v3919 = vsub.f32 %v3901, %v3915
    %v3920 = vsub.f32 %v3902, %v3916
    %v3921 = vmul.f32 %v3917, %v3917
    %v3922 = vmul.f32 %v3918, %v3918
    %v3923 = vmul.f32 %v3919, %v3919
    %v3924 = vmul.f32 %v3920, %v3920
    %3925 = vadd.xlane.f32.xlu0 %v3921
    %v3926 = vpop.xlane.xlu0 %3925
    %3927 = vadd.xlane.f32.xlu0 %v3922
    %v3928 = vpop.xlane.xlu0 %3927
    %3929 = vadd.xlane.f32.xlu0 %v3923
    %v3930 = vpop.xlane.xlu0 %3929
    %3931 = vadd.xlane.f32.xlu0 %v3924
    %v3932 = vpop.xlane.xlu0 %3931
    %v3933 = vmul.f32 %v3926, %v199
    %v3934 = vmul.f32 %v3928, %v199
    %v3935 = vmul.f32 %v3930, %v199
    %v3936 = vmul.f32 %v3932, %v199
    %v3937 = vadd.f32 %v3933, 1e-05
    %v3938 = vadd.f32 %v3934, 1e-05
    %v3939 = vadd.f32 %v3935, 1e-05
    %v3940 = vadd.f32 %v3936, 1e-05
    %v3941 = vrsqrt.pop %v3937
    %v3942 = vrsqrt.pop %v3938
    %v3943 = vrsqrt.pop %v3939
    %v3944 = vrsqrt.pop %v3940
    %v3945 = vmul.f32 %v3917, %v3941
    %v3946 = vmul.f32 %v3918, %v3942
    %v3947 = vmul.f32 %v3919, %v3943
    %v3948 = vmul.f32 %v3920, %v3944
    %v3950 = vlaneseq
    %v3951 = vshrl.u32 %v3950, 7
    %v3952 = vsub.s32 0, %v3951
    %v3953 = vrot.slane %v3903, %v3952
    %v3955 = vmul.f32 %v3945, %v3953
    %v3956 = vmul.f32 %v3946, %v3953
    %v3957 = vmul.f32 %v3947, %v3953
    %v3958 = vmul.f32 %v3948, %v3953
    %v3960 = vlaneseq
    %v3961 = vshrl.u32 %v3960, 7
    %v3962 = vsub.s32 0, %v3961
    %v3963 = vrot.slane %v3904, %v3962
    %v3965 = vadd.f32 %v3955, %v3963
    %v3966 = vadd.f32 %v3956, %v3963
    %v3967 = vadd.f32 %v3957, %v3963
    %v3968 = vadd.f32 %v3958, %v3963
    %s3969 = scalar_lea.vmem %s6, 512
    %v3970 = vld [vmem:[%s3969] sm:$0xff]
    %v3971 = vld [vmem:[%s3969 + $0x8] sm:$0xff]
    %v3972 = vld [vmem:[%s3969 + $0x10] sm:$0xff]
    %v3973 = vld [vmem:[%s3969 + $0x18] sm:$0xff]
    %v3974 = vld [vmem:[%s3969 + $0x20] sm:$0xff]
    %v3975 = vld [vmem:[%s3969 + $0x28] sm:$0xff]
    %v3976 = vld [vmem:[%s3969 + $0x30] sm:$0xff]
    %v3977 = vld [vmem:[%s3969 + $0x38] sm:$0xff]
    %v3978 = vld [vmem:[%s3969 + $0x40] sm:$0xff]
    %v3979 = vld [vmem:[%s3969 + $0x48] sm:$0xff]
    %v3980 = vld [vmem:[%s3969 + $0x50] sm:$0xff]
    %v3981 = vld [vmem:[%s3969 + $0x58] sm:$0xff]
    %v3982 = vld [vmem:[%s3969 + $0x60] sm:$0xff]
    %v3983 = vld [vmem:[%s3969 + $0x68] sm:$0xff]
    %v3984 = vld [vmem:[%s3969 + $0x70] sm:$0xff]
    %v3985 = vld [vmem:[%s3969 + $0x78] sm:$0xff]
    %s3986 = scalar_lea.vmem %s7, 4
    %v3987 = vld [vmem:[%s3986] sm:$0x1]
    %v3989 = vlaneseq
    %v3990 = vshrl.u32 %v3989, 7
    %v3991 = vsub.s32 0, %v3990
    %v3992 = vrot.slane %v3987, %v3991
    %3994 = vmatprep.subr.mxu0 0.0
    %3995 = vmatpush1.msra.mxu0 %v3970
    %3996 = vmatprep.subr.mxu0 0.0
    %3997 = vmatpush1.msra.mxu0 %v3971
    %3998 = vmatprep.subr.mxu0 0.0
    %3999 = vmatpush1.msra.mxu0 %v3972
    %4000 = vmatprep.subr.mxu0 0.0
    %4001 = vmatpush1.msra.mxu0 %v3973
    %4002 = vmatprep.subr.mxu0 0.0
    %4003 = vmatpush1.msra.mxu0 %v3974
    %4004 = vmatprep.subr.mxu0 0.0
    %4005 = vmatpush1.msra.mxu0 %v3975
    %4006 = vmatprep.subr.mxu0 0.0
    %4007 = vmatpush1.msra.mxu0 %v3976
    %4008 = vmatprep.subr.mxu0 0.0
    %4009 = vmatpush1.msra.mxu0 %v3977
    %4010 = vmatprep.subr.mxu0 0.0
    %4011 = vmatpush1.msra.mxu0 %v3978
    %4012 = vmatprep.subr.mxu0 0.0
    %4013 = vmatpush1.msra.mxu0 %v3979
    %4014 = vmatprep.subr.mxu0 0.0
    %4015 = vmatpush1.msra.mxu0 %v3980
    %4016 = vmatprep.subr.mxu0 0.0
    %4017 = vmatpush1.msra.mxu0 %v3981
    %4018 = vmatprep.subr.mxu0 0.0
    %4019 = vmatpush1.msra.mxu0 %v3982
    %4020 = vmatprep.subr.mxu0 0.0
    %4021 = vmatpush1.msra.mxu0 %v3983
    %4022 = vmatprep.subr.mxu0 0.0
    %4023 = vmatpush1.msra.mxu0 %v3984
    %4024 = vmatprep.subr.mxu0 0.0
    %4025 = vmatpush1.msra.mxu0 %v3985
    %4026 = vmatprep.subr.mxu0 0.0
    %4027 = vmatpush1.msra.mxu0 0.0
    %4028 = vmatprep.subr.mxu0 0.0
    %4029 = vmatpush1.msra.mxu0 0.0
    %4030 = vmatprep.subr.mxu0 0.0
    %4031 = vmatpush1.msra.mxu0 0.0
    %4032 = vmatprep.subr.mxu0 0.0
    %4033 = vmatpush1.msra.mxu0 0.0
    %4034 = vmatprep.subr.mxu0 0.0
    %4035 = vmatpush1.msra.mxu0 0.0
    %4036 = vmatprep.subr.mxu0 0.0
    %4037 = vmatpush1.msra.mxu0 0.0
    %4038 = vmatprep.subr.mxu0 0.0
    %4039 = vmatpush1.msra.mxu0 0.0
    %4040 = vmatprep.subr.mxu0 0.0
    %4041 = vmatpush1.msra.mxu0 0.0
    %4042 = vmatprep.subr.mxu0 0.0
    %4043 = vmatpush1.msra.mxu0 0.0
    %4044 = vmatprep.subr.mxu0 0.0
    %4045 = vmatpush1.msra.mxu0 0.0
    %4046 = vmatprep.subr.mxu0 0.0
    %4047 = vmatpush1.msra.mxu0 0.0
    %4048 = vmatprep.subr.mxu0 0.0
    %4049 = vmatpush1.msra.mxu0 0.0
    %4050 = vmatprep.subr.mxu0 0.0
    %4051 = vmatpush1.msra.mxu0 0.0
    %4052 = vmatprep.subr.mxu0 0.0
    %4053 = vmatpush1.msra.mxu0 0.0
    %4054 = vmatprep.subr.mxu0 0.0
    %4055 = vmatpush1.msra.mxu0 0.0
    %4056 = vmatprep.subr.mxu0 0.0
    %4057 = vmatpush1.msra.mxu0 0.0
    %4058 = vmatprep.mubr.f32.mxu0 0.0
    %4059 = vmatmul.mubr.f32.gmra.mrb[0].mxu0 %v3965
    %v4060 = vpop.f32.mrb[0].mxu0
    %v4061 = vadd.f32 %v3992, %v4060
    %v4062 = vpop.f32.mrb[0].mxu0
    %4063 = vmatprep.mubr.f32.mxu0 0.0
    %4064 = vmatmul.mubr.f32.gmra.mrb[0].mxu0 %v3966
    %v4065 = vpop.f32.mrb[0].mxu0
    %v4066 = vadd.f32 %v3992, %v4065
    %v4067 = vpop.f32.mrb[0].mxu0
    %4068 = vmatprep.mubr.f32.mxu0 0.0
    %4069 = vmatmul.mubr.f32.gmra.mrb[0].mxu0 %v3967
    %v4070 = vpop.f32.mrb[0].mxu0
    %v4071 = vadd.f32 %v3992, %v4070
    %v4072 = vpop.f32.mrb[0].mxu0
    %4073 = vmatprep.mubr.f32.mxu0 0.0
    %4074 = vmatmul.mubr.f32.gmra.mrb[0].mxu0 %v3968
    %v4075 = vpop.f32.mrb[0].mxu0
    %v4076 = vadd.f32 %v3992, %v4075
    %v4077 = vpop.f32.mrb[0].mxu0
    %4078 = vdwg.mxu0
    %s4079 = scalar_lea.vmem %s8, 512
    %v4080 = vld [vmem:[%s4079] sm:$0xff]
    %v4081 = vld [vmem:[%s4079 + $0x8] sm:$0xff]
    %v4082 = vld [vmem:[%s4079 + $0x10] sm:$0xff]
    %v4083 = vld [vmem:[%s4079 + $0x18] sm:$0xff]
    %v4084 = vld [vmem:[%s4079 + $0x20] sm:$0xff]
    %v4085 = vld [vmem:[%s4079 + $0x28] sm:$0xff]
    %v4086 = vld [vmem:[%s4079 + $0x30] sm:$0xff]
    %v4087 = vld [vmem:[%s4079 + $0x38] sm:$0xff]
    %v4088 = vld [vmem:[%s4079 + $0x40] sm:$0xff]
    %v4089 = vld [vmem:[%s4079 + $0x48] sm:$0xff]
    %v4090 = vld [vmem:[%s4079 + $0x50] sm:$0xff]
    %v4091 = vld [vmem:[%s4079 + $0x58] sm:$0xff]
    %v4092 = vld [vmem:[%s4079 + $0x60] sm:$0xff]
    %v4093 = vld [vmem:[%s4079 + $0x68] sm:$0xff]
    %v4094 = vld [vmem:[%s4079 + $0x70] sm:$0xff]
    %v4095 = vld [vmem:[%s4079 + $0x78] sm:$0xff]
    %s4096 = scalar_lea.vmem %s9, 4
    %v4097 = vld [vmem:[%s4096] sm:$0x1]
    %v4099 = vlaneseq
    %v4100 = vshrl.u32 %v4099, 7
    %v4101 = vsub.s32 0, %v4100
    %v4102 = vrot.slane %v4097, %v4101
    %4104 = vmatprep.subr.mxu0 0.0
    %4105 = vmatpush1.msra.mxu0 %v4080
    %4106 = vmatprep.subr.mxu0 0.0
    %4107 = vmatpush1.msra.mxu0 %v4081
    %4108 = vmatprep.subr.mxu0 0.0
    %4109 = vmatpush1.msra.mxu0 %v4082
    %4110 = vmatprep.subr.mxu0 0.0
    %4111 = vmatpush1.msra.mxu0 %v4083
    %4112 = vmatprep.subr.mxu0 0.0
    %4113 = vmatpush1.msra.mxu0 %v4084
    %4114 = vmatprep.subr.mxu0 0.0
    %4115 = vmatpush1.msra.mxu0 %v4085
    %4116 = vmatprep.subr.mxu0 0.0
    %4117 = vmatpush1.msra.mxu0 %v4086
    %4118 = vmatprep.subr.mxu0 0.0
    %4119 = vmatpush1.msra.mxu0 %v4087
    %4120 = vmatprep.subr.mxu0 0.0
    %4121 = vmatpush1.msra.mxu0 %v4088
    %4122 = vmatprep.subr.mxu0 0.0
    %4123 = vmatpush1.msra.mxu0 %v4089
    %4124 = vmatprep.subr.mxu0 0.0
    %4125 = vmatpush1.msra.mxu0 %v4090
    %4126 = vmatprep.subr.mxu0 0.0
    %4127 = vmatpush1.msra.mxu0 %v4091
    %4128 = vmatprep.subr.mxu0 0.0
    %4129 = vmatpush1.msra.mxu0 %v4092
    %4130 = vmatprep.subr.mxu0 0.0
    %4131 = vmatpush1.msra.mxu0 %v4093
    %4132 = vmatprep.subr.mxu0 0.0
    %4133 = vmatpush1.msra.mxu0 %v4094
    %4134 = vmatprep.subr.mxu0 0.0
    %4135 = vmatpush1.msra.mxu0 %v4095
    %4136 = vmatprep.subr.mxu0 0.0
    %4137 = vmatpush1.msra.mxu0 0.0
    %4138 = vmatprep.subr.mxu0 0.0
    %4139 = vmatpush1.msra.mxu0 0.0
    %4140 = vmatprep.subr.mxu0 0.0
    %4141 = vmatpush1.msra.mxu0 0.0
    %4142 = vmatprep.subr.mxu0 0.0
    %4143 = vmatpush1.msra.mxu0 0.0
    %4144 = vmatprep.subr.mxu0 0.0
    %4145 = vmatpush1.msra.mxu0 0.0
    %4146 = vmatprep.subr.mxu0 0.0
    %4147 = vmatpush1.msra.mxu0 0.0
    %4148 = vmatprep.subr.mxu0 0.0
    %4149 = vmatpush1.msra.mxu0 0.0
    %4150 = vmatprep.subr.mxu0 0.0
    %4151 = vmatpush1.msra.mxu0 0.0
    %4152 = vmatprep.subr.mxu0 0.0
    %4153 = vmatpush1.msra.mxu0 0.0
    %4154 = vmatprep.subr.mxu0 0.0
    %4155 = vmatpush1.msra.mxu0 0.0
    %4156 = vmatprep.subr.mxu0 0.0
    %4157 = vmatpush1.msra.mxu0 0.0
    %4158 = vmatprep.subr.mxu0 0.0
    %4159 = vmatpush1.msra.mxu0 0.0
    %4160 = vmatprep.subr.mxu0 0.0
    %4161 = vmatpush1.msra.mxu0 0.0
    %4162 = vmatprep.subr.mxu0 0.0
    %4163 = vmatpush1.msra.mxu0 0.0
    %4164 = vmatprep.subr.mxu0 0.0
    %4165 = vmatpush1.msra.mxu0 0.0
    %4166 = vmatprep.subr.mxu0 0.0
    %4167 = vmatpush1.msra.mxu0 0.0
    %4168 = vmatprep.mubr.f32.mxu0 0.0
    %4169 = vmatmul.mubr.f32.gmra.mrb[0].mxu0 %v3965
    %v4170 = vpop.f32.mrb[0].mxu0
    %v4171 = vadd.f32 %v4102, %v4170
    %v4172 = vpop.f32.mrb[0].mxu0
    %4173 = vmatprep.mubr.f32.mxu0 0.0
    %4174 = vmatmul.mubr.f32.gmra.mrb[0].mxu0 %v3966
    %v4175 = vpop.f32.mrb[0].mxu0
    %v4176 = vadd.f32 %v4102, %v4175
    %v4177 = vpop.f32.mrb[0].mxu0
    %4178 = vmatprep.mubr.f32.mxu0 0.0
    %4179 = vmatmul.mubr.f32.gmra.mrb[0].mxu0 %v3967
    %v4180 = vpop.f32.mrb[0].mxu0
    %v4181 = vadd.f32 %v4102, %v4180
    %v4182 = vpop.f32.mrb[0].mxu0
    %4183 = vmatprep.mubr.f32.mxu0 0.0
    %4184 = vmatmul.mubr.f32.gmra.mrb[0].mxu0 %v3968
    %v4185 = vpop.f32.mrb[0].mxu0
    %v4186 = vadd.f32 %v4102, %v4185
    %v4187 = vpop.f32.mrb[0].mxu0
    %4188 = vdwg.mxu0
    %s4189 = scalar_lea.vmem %s10, 512
    %v4190 = vld [vmem:[%s4189] sm:$0xff]
    %v4191 = vld [vmem:[%s4189 + $0x8] sm:$0xff]
    %v4192 = vld [vmem:[%s4189 + $0x10] sm:$0xff]
    %v4193 = vld [vmem:[%s4189 + $0x18] sm:$0xff]
    %v4194 = vld [vmem:[%s4189 + $0x20] sm:$0xff]
    %v4195 = vld [vmem:[%s4189 + $0x28] sm:$0xff]
    %v4196 = vld [vmem:[%s4189 + $0x30] sm:$0xff]
    %v4197 = vld [vmem:[%s4189 + $0x38] sm:$0xff]
    %v4198 = vld [vmem:[%s4189 + $0x40] sm:$0xff]
    %v4199 = vld [vmem:[%s4189 + $0x48] sm:$0xff]
    %v4200 = vld [vmem:[%s4189 + $0x50] sm:$0xff]
    %v4201 = vld [vmem:[%s4189 + $0x58] sm:$0xff]
    %v4202 = vld [vmem:[%s4189 + $0x60] sm:$0xff]
    %v4203 = vld [vmem:[%s4189 + $0x68] sm:$0xff]
    %v4204 = vld [vmem:[%s4189 + $0x70] sm:$0xff]
    %v4205 = vld [vmem:[%s4189 + $0x78] sm:$0xff]
    %s4206 = scalar_lea.vmem %s11, 4
    %v4207 = vld [vmem:[%s4206] sm:$0x1]
    %v4209 = vlaneseq
    %v4210 = vshrl.u32 %v4209, 7
    %v4211 = vsub.s32 0, %v4210
    %v4212 = vrot.slane %v4207, %v4211
    %4214 = vmatprep.subr.mxu0 0.0
    %4215 = vmatpush1.msra.mxu0 %v4190
    %4216 = vmatprep.subr.mxu0 0.0
    %4217 = vmatpush1.msra.mxu0 %v4191
    %4218 = vmatprep.subr.mxu0 0.0
    %4219 = vmatpush1.msra.mxu0 %v4192
    %4220 = vmatprep.subr.mxu0 0.0
    %4221 = vmatpush1.msra.mxu0 %v4193
    %4222 = vmatprep.subr.mxu0 0.0
    %4223 = vmatpush1.msra.mxu0 %v4194
    %4224 = vmatprep.subr.mxu0 0.0
    %4225 = vmatpush1.msra.mxu0 %v4195
    %4226 = vmatprep.subr.mxu0 0.0
    %4227 = vmatpush1.msra.mxu0 %v4196
    %4228 = vmatprep.subr.mxu0 0.0
    %4229 = vmatpush1.msra.mxu0 %v4197
    %4230 = vmatprep.subr.mxu0 0.0
    %4231 = vmatpush1.msra.mxu0 %v4198
    %4232 = vmatprep.subr.mxu0 0.0
    %4233 = vmatpush1.msra.mxu0 %v4199
    %4234 = vmatprep.subr.mxu0 0.0
    %4235 = vmatpush1.msra.mxu0 %v4200
    %4236 = vmatprep.subr.mxu0 0.0
    %4237 = vmatpush1.msra.mxu0 %v4201
    %4238 = vmatprep.subr.mxu0 0.0
    %4239 = vmatpush1.msra.mxu0 %v4202
    %4240 = vmatprep.subr.mxu0 0.0
    %4241 = vmatpush1.msra.mxu0 %v4203
    %4242 = vmatprep.subr.mxu0 0.0
    %4243 = vmatpush1.msra.mxu0 %v4204
    %4244 = vmatprep.subr.mxu0 0.0
    %4245 = vmatpush1.msra.mxu0 %v4205
    %4246 = vmatprep.subr.mxu0 0.0
    %4247 = vmatpush1.msra.mxu0 0.0
    %4248 = vmatprep.subr.mxu0 0.0
    %4249 = vmatpush1.msra.mxu0 0.0
    %4250 = vmatprep.subr.mxu0 0.0
    %4251 = vmatpush1.msra.mxu0 0.0
    %4252 = vmatprep.subr.mxu0 0.0
    %4253 = vmatpush1.msra.mxu0 0.0
    %4254 = vmatprep.subr.mxu0 0.0
    %4255 = vmatpush1.msra.mxu0 0.0
    %4256 = vmatprep.subr.mxu0 0.0
    %4257 = vmatpush1.msra.mxu0 0.0
    %4258 = vmatprep.subr.mxu0 0.0
    %4259 = vmatpush1.msra.mxu0 0.0
    %4260 = vmatprep.subr.mxu0 0.0
    %4261 = vmatpush1.msra.mxu0 0.0
    %4262 = vmatprep.subr.mxu0 0.0
    %4263 = vmatpush1.msra.mxu0 0.0
    %4264 = vmatprep.subr.mxu0 0.0
    %4265 = vmatpush1.msra.mxu0 0.0
    %4266 = vmatprep.subr.mxu0 0.0
    %4267 = vmatpush1.msra.mxu0 0.0
    %4268 = vmatprep.subr.mxu0 0.0
    %4269 = vmatpush1.msra.mxu0 0.0
    %4270 = vmatprep.subr.mxu0 0.0
    %4271 = vmatpush1.msra.mxu0 0.0
    %4272 = vmatprep.subr.mxu0 0.0
    %4273 = vmatpush1.msra.mxu0 0.0
    %4274 = vmatprep.subr.mxu0 0.0
    %4275 = vmatpush1.msra.mxu0 0.0
    %4276 = vmatprep.subr.mxu0 0.0
    %4277 = vmatpush1.msra.mxu0 0.0
    %4278 = vmatprep.mubr.f32.mxu0 0.0
    %4279 = vmatmul.mubr.f32.gmra.mrb[0].mxu0 %v3965
    %v4280 = vpop.f32.mrb[0].mxu0
    %v4281 = vadd.f32 %v4212, %v4280
    %v4282 = vpop.f32.mrb[0].mxu0
    %4283 = vmatprep.mubr.f32.mxu0 0.0
    %4284 = vmatmul.mubr.f32.gmra.mrb[0].mxu0 %v3966
    %v4285 = vpop.f32.mrb[0].mxu0
    %v4286 = vadd.f32 %v4212, %v4285
    %v4287 = vpop.f32.mrb[0].mxu0
    %4288 = vmatprep.mubr.f32.mxu0 0.0
    %4289 = vmatmul.mubr.f32.gmra.mrb[0].mxu0 %v3967
    %v4290 = vpop.f32.mrb[0].mxu0
    %v4291 = vadd.f32 %v4212, %v4290
    %v4292 = vpop.f32.mrb[0].mxu0
    %4293 = vmatprep.mubr.f32.mxu0 0.0
    %4294 = vmatmul.mubr.f32.gmra.mrb[0].mxu0 %v3968
    %v4295 = vpop.f32.mrb[0].mxu0
    %v4296 = vadd.f32 %v4212, %v4295
    %v4297 = vpop.f32.mrb[0].mxu0
    %4298 = vdwg.mxu0
    %v4300 = vsel %vm582, %v4061, 0
    %v4303 = vsel %vm582, %v4066, 0
    %v4306 = vsel %vm582, %v4171, 0
    %v4309 = vsel %vm582, %v4176, 0
    %4311 = vmatprep.subr.mxu0 0.0
    %4312 = vmatpush1.xpose.msra.mxu0 %v4306
    %4313 = vmatprep.subr.mxu0 0.0
    %4314 = vmatpush1.xpose.msra.mxu0 %v4309
    %4315 = vmatprep.subr.mxu0 0.0
    %4316 = vmatpush1.xpose.msra.mxu0 0.0
    %4317 = vmatprep.subr.mxu0 0.0
    %4318 = vmatpush1.xpose.msra.mxu0 0.0
    %4319 = vmatprep.subr.mxu0 0.0
    %4320 = vmatpush1.xpose.msra.mxu0 0.0
    %4321 = vmatprep.subr.mxu0 0.0
    %4322 = vmatpush1.xpose.msra.mxu0 0.0
    %4323 = vmatprep.subr.mxu0 0.0
    %4324 = vmatpush1.xpose.msra.mxu0 0.0
    %4325 = vmatprep.subr.mxu0 0.0
    %4326 = vmatpush1.xpose.msra.mxu0 0.0
    %4327 = vmatprep.subr.mxu0 0.0
    %4328 = vmatpush1.xpose.msra.mxu0 0.0
    %4329 = vmatprep.subr.mxu0 0.0
    %4330 = vmatpush1.xpose.msra.mxu0 0.0
    %4331 = vmatprep.subr.mxu0 0.0
    %4332 = vmatpush1.xpose.msra.mxu0 0.0
    %4333 = vmatprep.subr.mxu0 0.0
    %4334 = vmatpush1.xpose.msra.mxu0 0.0
    %4335 = vmatprep.subr.mxu0 0.0
    %4336 = vmatpush1.xpose.msra.mxu0 0.0
    %4337 = vmatprep.subr.mxu0 0.0
    %4338 = vmatpush1.xpose.msra.mxu0 0.0
    %4339 = vmatprep.subr.mxu0 0.0
    %4340 = vmatpush1.xpose.msra.mxu0 0.0
    %4341 = vmatprep.subr.mxu0 0.0
    %4342 = vmatpush1.xpose.msra.mxu0 0.0
    %4343 = vmatprep.subr.mxu0 0.0
    %4344 = vmatpush1.xpose.msra.mxu0 0.0
    %4345 = vmatprep.subr.mxu0 0.0
    %4346 = vmatpush1.xpose.msra.mxu0 0.0
    %4347 = vmatprep.subr.mxu0 0.0
    %4348 = vmatpush1.xpose.msra.mxu0 0.0
    %4349 = vmatprep.subr.mxu0 0.0
    %4350 = vmatpush1.xpose.msra.mxu0 0.0
    %4351 = vmatprep.subr.mxu0 0.0
    %4352 = vmatpush1.xpose.msra.mxu0 0.0
    %4353 = vmatprep.subr.mxu0 0.0
    %4354 = vmatpush1.xpose.msra.mxu0 0.0
    %4355 = vmatprep.subr.mxu0 0.0
    %4356 = vmatpush1.xpose.msra.mxu0 0.0
    %4357 = vmatprep.subr.mxu0 0.0
    %4358 = vmatpush1.xpose.msra.mxu0 0.0
    %4359 = vmatprep.subr.mxu0 0.0
    %4360 = vmatpush1.xpose.msra.mxu0 0.0
    %4361 = vmatprep.subr.mxu0 0.0
    %4362 = vmatpush1.xpose.msra.mxu0 0.0
    %4363 = vmatprep.subr.mxu0 0.0
    %4364 = vmatpush1.xpose.msra.mxu0 0.0
    %4365 = vmatprep.subr.mxu0 0.0
    %4366 = vmatpush1.xpose.msra.mxu0 0.0
    %4367 = vmatprep.subr.mxu0 0.0
    %4368 = vmatpush1.xpose.msra.mxu0 0.0
    %4369 = vmatprep.subr.mxu0 0.0
    %4370 = vmatpush1.xpose.msra.mxu0 0.0
    %4371 = vmatprep.subr.mxu0 0.0
    %4372 = vmatpush1.xpose.msra.mxu0 0.0
    %4373 = vmatprep.subr.mxu0 0.0
    %4374 = vmatpush1.xpose.msra.mxu0 0.0
    %4375 = vmatprep.mubr.f32.mxu0 0.0
    %4376 = vmatmul.mubr.f32.gmra.mrb[0].mxu0 %v4300
    %v4377 = vpop.f32.mrb[0].mxu0
    %v4378 = vadd.f32 0.0, %v4377
    %v4379 = vpop.f32.mrb[0].mxu0
    %4380 = vmatprep.mubr.f32.mxu0 0.0
    %4381 = vmatmul.mubr.f32.gmra.mrb[0].mxu0 %v4303
    %v4382 = vpop.f32.mrb[0].mxu0
    %v4383 = vadd.f32 0.0, %v4382
    %v4384 = vpop.f32.mrb[0].mxu0
    %4385 = vdwg.mxu0
    %v4387 = vsel %vm582, %v4071, 0
    %v4390 = vsel %vm582, %v4076, 0
    %v4393 = vsel %vm582, %v4181, 0
    %v4396 = vsel %vm582, %v4186, 0
    %4398 = vmatprep.subr.mxu0 0.0
    %4399 = vmatpush1.xpose.msra.mxu0 %v4393
    %4400 = vmatprep.subr.mxu0 0.0
    %4401 = vmatpush1.xpose.msra.mxu0 %v4396
    %4402 = vmatprep.subr.mxu0 0.0
    %4403 = vmatpush1.xpose.msra.mxu0 0.0
    %4404 = vmatprep.subr.mxu0 0.0
    %4405 = vmatpush1.xpose.msra.mxu0 0.0
    %4406 = vmatprep.subr.mxu0 0.0
    %4407 = vmatpush1.xpose.msra.mxu0 0.0
    %4408 = vmatprep.subr.mxu0 0.0
    %4409 = vmatpush1.xpose.msra.mxu0 0.0
    %4410 = vmatprep.subr.mxu0 0.0
    %4411 = vmatpush1.xpose.msra.mxu0 0.0
    %4412 = vmatprep.subr.mxu0 0.0
    %4413 = vmatpush1.xpose.msra.mxu0 0.0
    %4414 = vmatprep.subr.mxu0 0.0
    %4415 = vmatpush1.xpose.msra.mxu0 0.0
    %4416 = vmatprep.subr.mxu0 0.0
    %4417 = vmatpush1.xpose.msra.mxu0 0.0
    %4418 = vmatprep.subr.mxu0 0.0
    %4419 = vmatpush1.xpose.msra.mxu0 0.0
    %4420 = vmatprep.subr.mxu0 0.0
    %4421 = vmatpush1.xpose.msra.mxu0 0.0
    %4422 = vmatprep.subr.mxu0 0.0
    %4423 = vmatpush1.xpose.msra.mxu0 0.0
    %4424 = vmatprep.subr.mxu0 0.0
    %4425 = vmatpush1.xpose.msra.mxu0 0.0
    %4426 = vmatprep.subr.mxu0 0.0
    %4427 = vmatpush1.xpose.msra.mxu0 0.0
    %4428 = vmatprep.subr.mxu0 0.0
    %4429 = vmatpush1.xpose.msra.mxu0 0.0
    %4430 = vmatprep.subr.mxu0 0.0
    %4431 = vmatpush1.xpose.msra.mxu0 0.0
    %4432 = vmatprep.subr.mxu0 0.0
    %4433 = vmatpush1.xpose.msra.mxu0 0.0
    %4434 = vmatprep.subr.mxu0 0.0
    %4435 = vmatpush1.xpose.msra.mxu0 0.0
    %4436 = vmatprep.subr.mxu0 0.0
    %4437 = vmatpush1.xpose.msra.mxu0 0.0
    %4438 = vmatprep.subr.mxu0 0.0
    %4439 = vmatpush1.xpose.msra.mxu0 0.0
    %4440 = vmatprep.subr.mxu0 0.0
    %4441 = vmatpush1.xpose.msra.mxu0 0.0
    %4442 = vmatprep.subr.mxu0 0.0
    %4443 = vmatpush1.xpose.msra.mxu0 0.0
    %4444 = vmatprep.subr.mxu0 0.0
    %4445 = vmatpush1.xpose.msra.mxu0 0.0
    %4446 = vmatprep.subr.mxu0 0.0
    %4447 = vmatpush1.xpose.msra.mxu0 0.0
    %4448 = vmatprep.subr.mxu0 0.0
    %4449 = vmatpush1.xpose.msra.mxu0 0.0
    %4450 = vmatprep.subr.mxu0 0.0
    %4451 = vmatpush1.xpose.msra.mxu0 0.0
    %4452 = vmatprep.subr.mxu0 0.0
    %4453 = vmatpush1.xpose.msra.mxu0 0.0
    %4454 = vmatprep.subr.mxu0 0.0
    %4455 = vmatpush1.xpose.msra.mxu0 0.0
    %4456 = vmatprep.subr.mxu0 0.0
    %4457 = vmatpush1.xpose.msra.mxu0 0.0
    %4458 = vmatprep.subr.mxu0 0.0
    %4459 = vmatpush1.xpose.msra.mxu0 0.0
    %4460 = vmatprep.subr.mxu0 0.0
    %4461 = vmatpush1.xpose.msra.mxu0 0.0
    %4462 = vmatprep.mubr.f32.mxu0 0.0
    %4463 = vmatmul.mubr.f32.gmra.mrb[0].mxu0 %v4387
    %v4464 = vpop.f32.mrb[0].mxu0
    %v4465 = vadd.f32 0.0, %v4464
    %v4466 = vpop.f32.mrb[0].mxu0
    %4467 = vmatprep.mubr.f32.mxu0 0.0
    %4468 = vmatmul.mubr.f32.gmra.mrb[0].mxu0 %v4390
    %v4469 = vpop.f32.mrb[0].mxu0
    %v4470 = vadd.f32 0.0, %v4469
    %v4471 = vpop.f32.mrb[0].mxu0
    %4472 = vdwg.mxu0
    %v4473 = vmul.f32 %v4378, 0.17677669
    %v4474 = vmul.f32 %v4383, 0.17677669
    %v4475 = vmul.f32 %v4465, 0.17677669
    %v4476 = vmul.f32 %v4470, 0.17677669
    %v4477 = vadd.f32 %v4473, %v766
    %v4478 = vadd.f32 %v4474, %v766
    %v4479 = vadd.f32 %v4475, %v770
    %v4480 = vadd.f32 %v4476, %v770
    %v4481 = vsel %vm777, %v4477, -inf
    %4482 = vmax.xlane.f32.xlu0 %v4481
    %v4483 = vpop.xlane.xlu0 %4482
    %v4484 = vsel %vm777, %v4478, -inf
    %4485 = vmax.xlane.f32.xlu0 %v4484
    %v4486 = vpop.xlane.xlu0 %4485
    %v4487 = vsel %vm777, %v4479, -inf
    %4488 = vmax.xlane.f32.xlu0 %v4487
    %v4489 = vpop.xlane.xlu0 %4488
    %v4490 = vsel %vm777, %v4480, -inf
    %4491 = vmax.xlane.f32.xlu0 %v4490
    %v4492 = vpop.xlane.xlu0 %4491
    %v4493 = vsub.f32 %v4477, %v4483
    %v4494 = vsub.f32 %v4478, %v4486
    %v4495 = vsub.f32 %v4479, %v4489
    %v4496 = vsub.f32 %v4480, %v4492
    %v4497 = vmul.f32 %v4493, 1.442695
    %v4498 = vpow.pop %v4497
    %v4499 = vmul.f32 %v4494, 1.442695
    %v4500 = vpow.pop %v4499
    %v4501 = vmul.f32 %v4495, 1.442695
    %v4502 = vpow.pop %v4501
    %v4503 = vmul.f32 %v4496, 1.442695
    %v4504 = vpow.pop %v4503
    %v4505 = vsel %vm777, %v4498, 0.0
    %4506 = vadd.xlane.f32.xlu0 %v4505
    %v4507 = vpop.xlane.xlu0 %4506
    %v4508 = vsel %vm777, %v4500, 0.0
    %4509 = vadd.xlane.f32.xlu0 %v4508
    %v4510 = vpop.xlane.xlu0 %4509
    %v4511 = vsel %vm777, %v4502, 0.0
    %4512 = vadd.xlane.f32.xlu0 %v4511
    %v4513 = vpop.xlane.xlu0 %4512
    %v4514 = vsel %vm777, %v4504, 0.0
    %4515 = vadd.xlane.f32.xlu0 %v4514
    %v4516 = vpop.xlane.xlu0 %4515
    %v4517 = vrcp.pop %v4507
    %v4518 = vmul.f32 %v4498, %v4517
    %v4519 = vrcp.pop %v4510
    %v4520 = vmul.f32 %v4500, %v4519
    %v4521 = vrcp.pop %v4513
    %v4522 = vmul.f32 %v4502, %v4521
    %v4523 = vrcp.pop %v4516
    %v4524 = vmul.f32 %v4504, %v4523
    %v4526 = vsel %vm777, %v4518, 0
    %v4529 = vsel %vm777, %v4520, 0
    %4531 = vmatprep.subr.mxu0 0.0
    %4532 = vmatpush1.msra.mxu0 %v4281
    %4533 = vmatprep.subr.mxu0 0.0
    %4534 = vmatpush1.msra.mxu0 %v4286
    %4535 = vmatprep.subr.mxu0 0.0
    %4536 = vmatpush1.msra.mxu0 0.0
    %4537 = vmatprep.subr.mxu0 0.0
    %4538 = vmatpush1.msra.mxu0 0.0
    %4539 = vmatprep.subr.mxu0 0.0
    %4540 = vmatpush1.msra.mxu0 0.0
    %4541 = vmatprep.subr.mxu0 0.0
    %4542 = vmatpush1.msra.mxu0 0.0
    %4543 = vmatprep.subr.mxu0 0.0
    %4544 = vmatpush1.msra.mxu0 0.0
    %4545 = vmatprep.subr.mxu0 0.0
    %4546 = vmatpush1.msra.mxu0 0.0
    %4547 = vmatprep.subr.mxu0 0.0
    %4548 = vmatpush1.msra.mxu0 0.0
    %4549 = vmatprep.subr.mxu0 0.0
    %4550 = vmatpush1.msra.mxu0 0.0
    %4551 = vmatprep.subr.mxu0 0.0
    %4552 = vmatpush1.msra.mxu0 0.0
    %4553 = vmatprep.subr.mxu0 0.0
    %4554 = vmatpush1.msra.mxu0 0.0
    %4555 = vmatprep.subr.mxu0 0.0
    %4556 = vmatpush1.msra.mxu0 0.0
    %4557 = vmatprep.subr.mxu0 0.0
    %4558 = vmatpush1.msra.mxu0 0.0
    %4559 = vmatprep.subr.mxu0 0.0
    %4560 = vmatpush1.msra.mxu0 0.0
    %4561 = vmatprep.subr.mxu0 0.0
    %4562 = vmatpush1.msra.mxu0 0.0
    %4563 = vmatprep.subr.mxu0 0.0
    %4564 = vmatpush1.msra.mxu0 0.0
    %4565 = vmatprep.subr.mxu0 0.0
    %4566 = vmatpush1.msra.mxu0 0.0
    %4567 = vmatprep.subr.mxu0 0.0
    %4568 = vmatpush1.msra.mxu0 0.0
    %4569 = vmatprep.subr.mxu0 0.0
    %4570 = vmatpush1.msra.mxu0 0.0
    %4571 = vmatprep.subr.mxu0 0.0
    %4572 = vmatpush1.msra.mxu0 0.0
    %4573 = vmatprep.subr.mxu0 0.0
    %4574 = vmatpush1.msra.mxu0 0.0
    %4575 = vmatprep.subr.mxu0 0.0
    %4576 = vmatpush1.msra.mxu0 0.0
    %4577 = vmatprep.subr.mxu0 0.0
    %4578 = vmatpush1.msra.mxu0 0.0
    %4579 = vmatprep.subr.mxu0 0.0
    %4580 = vmatpush1.msra.mxu0 0.0
    %4581 = vmatprep.subr.mxu0 0.0
    %4582 = vmatpush1.msra.mxu0 0.0
    %4583 = vmatprep.subr.mxu0 0.0
    %4584 = vmatpush1.msra.mxu0 0.0
    %4585 = vmatprep.subr.mxu0 0.0
    %4586 = vmatpush1.msra.mxu0 0.0
    %4587 = vmatprep.subr.mxu0 0.0
    %4588 = vmatpush1.msra.mxu0 0.0
    %4589 = vmatprep.subr.mxu0 0.0
    %4590 = vmatpush1.msra.mxu0 0.0
    %4591 = vmatprep.subr.mxu0 0.0
    %4592 = vmatpush1.msra.mxu0 0.0
    %4593 = vmatprep.subr.mxu0 0.0
    %4594 = vmatpush1.msra.mxu0 0.0
    %4595 = vmatprep.mubr.f32.mxu0 0.0
    %4596 = vmatmul.mubr.f32.gmra.mrb[0].mxu0 %v4526
    %v4597 = vpop.f32.mrb[0].mxu0
    %v4598 = vadd.f32 0.0, %v4597
    %v4599 = vpop.f32.mrb[0].mxu0
    %4600 = vmatprep.mubr.f32.mxu0 0.0
    %4601 = vmatmul.mubr.f32.gmra.mrb[0].mxu0 %v4529
    %v4602 = vpop.f32.mrb[0].mxu0
    %v4603 = vadd.f32 0.0, %v4602
    %v4604 = vpop.f32.mrb[0].mxu0
    %4605 = vdwg.mxu0
    %v4607 = vsel %vm777, %v4522, 0
    %v4610 = vsel %vm777, %v4524, 0
    %4612 = vmatprep.subr.mxu0 0.0
    %4613 = vmatpush1.msra.mxu0 %v4291
    %4614 = vmatprep.subr.mxu0 0.0
    %4615 = vmatpush1.msra.mxu0 %v4296
    %4616 = vmatprep.subr.mxu0 0.0
    %4617 = vmatpush1.msra.mxu0 0.0
    %4618 = vmatprep.subr.mxu0 0.0
    %4619 = vmatpush1.msra.mxu0 0.0
    %4620 = vmatprep.subr.mxu0 0.0
    %4621 = vmatpush1.msra.mxu0 0.0
    %4622 = vmatprep.subr.mxu0 0.0
    %4623 = vmatpush1.msra.mxu0 0.0
    %4624 = vmatprep.subr.mxu0 0.0
    %4625 = vmatpush1.msra.mxu0 0.0
    %4626 = vmatprep.subr.mxu0 0.0
    %4627 = vmatpush1.msra.mxu0 0.0
    %4628 = vmatprep.subr.mxu0 0.0
    %4629 = vmatpush1.msra.mxu0 0.0
    %4630 = vmatprep.subr.mxu0 0.0
    %4631 = vmatpush1.msra.mxu0 0.0
    %4632 = vmatprep.subr.mxu0 0.0
    %4633 = vmatpush1.msra.mxu0 0.0
    %4634 = vmatprep.subr.mxu0 0.0
    %4635 = vmatpush1.msra.mxu0 0.0
    %4636 = vmatprep.subr.mxu0 0.0
    %4637 = vmatpush1.msra.mxu0 0.0
    %4638 = vmatprep.subr.mxu0 0.0
    %4639 = vmatpush1.msra.mxu0 0.0
    %4640 = vmatprep.subr.mxu0 0.0
    %4641 = vmatpush1.msra.mxu0 0.0
    %4642 = vmatprep.subr.mxu0 0.0
    %4643 = vmatpush1.msra.mxu0 0.0
    %4644 = vmatprep.subr.mxu0 0.0
    %4645 = vmatpush1.msra.mxu0 0.0
    %4646 = vmatprep.subr.mxu0 0.0
    %4647 = vmatpush1.msra.mxu0 0.0
    %4648 = vmatprep.subr.mxu0 0.0
    %4649 = vmatpush1.msra.mxu0 0.0
    %4650 = vmatprep.subr.mxu0 0.0
    %4651 = vmatpush1.msra.mxu0 0.0
    %4652 = vmatprep.subr.mxu0 0.0
    %4653 = vmatpush1.msra.mxu0 0.0
    %4654 = vmatprep.subr.mxu0 0.0
    %4655 = vmatpush1.msra.mxu0 0.0
    %4656 = vmatprep.subr.mxu0 0.0
    %4657 = vmatpush1.msra.mxu0 0.0
    %4658 = vmatprep.subr.mxu0 0.0
    %4659 = vmatpush1.msra.mxu0 0.0
    %4660 = vmatprep.subr.mxu0 0.0
    %4661 = vmatpush1.msra.mxu0 0.0
    %4662 = vmatprep.subr.mxu0 0.0
    %4663 = vmatpush1.msra.mxu0 0.0
    %4664 = vmatprep.subr.mxu0 0.0
    %4665 = vmatpush1.msra.mxu0 0.0
    %4666 = vmatprep.subr.mxu0 0.0
    %4667 = vmatpush1.msra.mxu0 0.0
    %4668 = vmatprep.subr.mxu0 0.0
    %4669 = vmatpush1.msra.mxu0 0.0
    %4670 = vmatprep.subr.mxu0 0.0
    %4671 = vmatpush1.msra.mxu0 0.0
    %4672 = vmatprep.subr.mxu0 0.0
    %4673 = vmatpush1.msra.mxu0 0.0
    %4674 = vmatprep.subr.mxu0 0.0
    %4675 = vmatpush1.msra.mxu0 0.0
    %4676 = vmatprep.mubr.f32.mxu0 0.0
    %4677 = vmatmul.mubr.f32.gmra.mrb[0].mxu0 %v4607
    %v4678 = vpop.f32.mrb[0].mxu0
    %v4679 = vadd.f32 0.0, %v4678
    %v4680 = vpop.f32.mrb[0].mxu0
    %4681 = vmatprep.mubr.f32.mxu0 0.0
    %4682 = vmatmul.mubr.f32.gmra.mrb[0].mxu0 %v4610
    %v4683 = vpop.f32.mrb[0].mxu0
    %v4684 = vadd.f32 0.0, %v4683
    %v4685 = vpop.f32.mrb[0].mxu0
    %4686 = vdwg.mxu0
    %s4687 = scalar_lea.vmem %s12, 128
    %v4688 = vld [vmem:[%s4687] sm:$0xff]
    %v4689 = vld [vmem:[%s4687 + $0x8] sm:$0xff]
    %v4690 = vld [vmem:[%s4687 + $0x10] sm:$0xff]
    %v4691 = vld [vmem:[%s4687 + $0x18] sm:$0xff]
    %s4692 = scalar_lea.vmem %s6, 640
    %v4693 = vld [vmem:[%s4692] sm:$0xff]
    %v4694 = vld [vmem:[%s4692 + $0x8] sm:$0xff]
    %v4695 = vld [vmem:[%s4692 + $0x10] sm:$0xff]
    %v4696 = vld [vmem:[%s4692 + $0x18] sm:$0xff]
    %v4697 = vld [vmem:[%s4692 + $0x20] sm:$0xff]
    %v4698 = vld [vmem:[%s4692 + $0x28] sm:$0xff]
    %v4699 = vld [vmem:[%s4692 + $0x30] sm:$0xff]
    %v4700 = vld [vmem:[%s4692 + $0x38] sm:$0xff]
    %v4701 = vld [vmem:[%s4692 + $0x40] sm:$0xff]
    %v4702 = vld [vmem:[%s4692 + $0x48] sm:$0xff]
    %v4703 = vld [vmem:[%s4692 + $0x50] sm:$0xff]
    %v4704 = vld [vmem:[%s4692 + $0x58] sm:$0xff]
    %v4705 = vld [vmem:[%s4692 + $0x60] sm:$0xff]
    %v4706 = vld [vmem:[%s4692 + $0x68] sm:$0xff]
    %v4707 = vld [vmem:[%s4692 + $0x70] sm:$0xff]
    %v4708 = vld [vmem:[%s4692 + $0x78] sm:$0xff]
    %s4709 = scalar_lea.vmem %s7, 5
    %v4710 = vld [vmem:[%s4709] sm:$0x1]
    %v4712 = vlaneseq
    %v4713 = vshrl.u32 %v4712, 7
    %v4714 = vsub.s32 0, %v4713
    %v4715 = vrot.slane %v4710, %v4714
    %4717 = vmatprep.subr.mxu0 0.0
    %4718 = vmatpush1.msra.mxu0 %v4693
    %4719 = vmatprep.subr.mxu0 0.0
    %4720 = vmatpush1.msra.mxu0 %v4694
    %4721 = vmatprep.subr.mxu0 0.0
    %4722 = vmatpush1.msra.mxu0 %v4695
    %4723 = vmatprep.subr.mxu0 0.0
    %4724 = vmatpush1.msra.mxu0 %v4696
    %4725 = vmatprep.subr.mxu0 0.0
    %4726 = vmatpush1.msra.mxu0 %v4697
    %4727 = vmatprep.subr.mxu0 0.0
    %4728 = vmatpush1.msra.mxu0 %v4698
    %4729 = vmatprep.subr.mxu0 0.0
    %4730 = vmatpush1.msra.mxu0 %v4699
    %4731 = vmatprep.subr.mxu0 0.0
    %4732 = vmatpush1.msra.mxu0 %v4700
    %4733 = vmatprep.subr.mxu0 0.0
    %4734 = vmatpush1.msra.mxu0 %v4701
    %4735 = vmatprep.subr.mxu0 0.0
    %4736 = vmatpush1.msra.mxu0 %v4702
    %4737 = vmatprep.subr.mxu0 0.0
    %4738 = vmatpush1.msra.mxu0 %v4703
    %4739 = vmatprep.subr.mxu0 0.0
    %4740 = vmatpush1.msra.mxu0 %v4704
    %4741 = vmatprep.subr.mxu0 0.0
    %4742 = vmatpush1.msra.mxu0 %v4705
    %4743 = vmatprep.subr.mxu0 0.0
    %4744 = vmatpush1.msra.mxu0 %v4706
    %4745 = vmatprep.subr.mxu0 0.0
    %4746 = vmatpush1.msra.mxu0 %v4707
    %4747 = vmatprep.subr.mxu0 0.0
    %4748 = vmatpush1.msra.mxu0 %v4708
    %4749 = vmatprep.subr.mxu0 0.0
    %4750 = vmatpush1.msra.mxu0 0.0
    %4751 = vmatprep.subr.mxu0 0.0
    %4752 = vmatpush1.msra.mxu0 0.0
    %4753 = vmatprep.subr.mxu0 0.0
    %4754 = vmatpush1.msra.mxu0 0.0
    %4755 = vmatprep.subr.mxu0 0.0
    %4756 = vmatpush1.msra.mxu0 0.0
    %4757 = vmatprep.subr.mxu0 0.0
    %4758 = vmatpush1.msra.mxu0 0.0
    %4759 = vmatprep.subr.mxu0 0.0
    %4760 = vmatpush1.msra.mxu0 0.0
    %4761 = vmatprep.subr.mxu0 0.0
    %4762 = vmatpush1.msra.mxu0 0.0
    %4763 = vmatprep.subr.mxu0 0.0
    %4764 = vmatpush1.msra.mxu0 0.0
    %4765 = vmatprep.subr.mxu0 0.0
    %4766 = vmatpush1.msra.mxu0 0.0
    %4767 = vmatprep.subr.mxu0 0.0
    %4768 = vmatpush1.msra.mxu0 0.0
    %4769 = vmatprep.subr.mxu0 0.0
    %4770 = vmatpush1.msra.mxu0 0.0
    %4771 = vmatprep.subr.mxu0 0.0
    %4772 = vmatpush1.msra.mxu0 0.0
    %4773 = vmatprep.subr.mxu0 0.0
    %4774 = vmatpush1.msra.mxu0 0.0
    %4775 = vmatprep.subr.mxu0 0.0
    %4776 = vmatpush1.msra.mxu0 0.0
    %4777 = vmatprep.subr.mxu0 0.0
    %4778 = vmatpush1.msra.mxu0 0.0
    %4779 = vmatprep.subr.mxu0 0.0
    %4780 = vmatpush1.msra.mxu0 0.0
    %4781 = vmatprep.mubr.f32.mxu0 0.0
    %4782 = vmatmul.mubr.f32.gmra.mrb[0].mxu0 %v3965
    %v4783 = vpop.f32.mrb[0].mxu0
    %v4784 = vadd.f32 %v4715, %v4783
    %v4785 = vpop.f32.mrb[0].mxu0
    %4786 = vmatprep.mubr.f32.mxu0 0.0
    %4787 = vmatmul.mubr.f32.gmra.mrb[0].mxu0 %v3966
    %v4788 = vpop.f32.mrb[0].mxu0
    %v4789 = vadd.f32 %v4715, %v4788
    %v4790 = vpop.f32.mrb[0].mxu0
    %4791 = vmatprep.mubr.f32.mxu0 0.0
    %4792 = vmatmul.mubr.f32.gmra.mrb[0].mxu0 %v3967
    %v4793 = vpop.f32.mrb[0].mxu0
    %v4794 = vadd.f32 %v4715, %v4793
    %v4795 = vpop.f32.mrb[0].mxu0
    %4796 = vmatprep.mubr.f32.mxu0 0.0
    %4797 = vmatmul.mubr.f32.gmra.mrb[0].mxu0 %v3968
    %v4798 = vpop.f32.mrb[0].mxu0
    %v4799 = vadd.f32 %v4715, %v4798
    %v4800 = vpop.f32.mrb[0].mxu0
    %4801 = vdwg.mxu0
    %s4802 = scalar_lea.vmem %s8, 640
    %v4803 = vld [vmem:[%s4802] sm:$0xff]
    %v4804 = vld [vmem:[%s4802 + $0x8] sm:$0xff]
    %v4805 = vld [vmem:[%s4802 + $0x10] sm:$0xff]
    %v4806 = vld [vmem:[%s4802 + $0x18] sm:$0xff]
    %v4807 = vld [vmem:[%s4802 + $0x20] sm:$0xff]
    %v4808 = vld [vmem:[%s4802 + $0x28] sm:$0xff]
    %v4809 = vld [vmem:[%s4802 + $0x30] sm:$0xff]
    %v4810 = vld [vmem:[%s4802 + $0x38] sm:$0xff]
    %v4811 = vld [vmem:[%s4802 + $0x40] sm:$0xff]
    %v4812 = vld [vmem:[%s4802 + $0x48] sm:$0xff]
    %v4813 = vld [vmem:[%s4802 + $0x50] sm:$0xff]
    %v4814 = vld [vmem:[%s4802 + $0x58] sm:$0xff]
    %v4815 = vld [vmem:[%s4802 + $0x60] sm:$0xff]
    %v4816 = vld [vmem:[%s4802 + $0x68] sm:$0xff]
    %v4817 = vld [vmem:[%s4802 + $0x70] sm:$0xff]
    %v4818 = vld [vmem:[%s4802 + $0x78] sm:$0xff]
    %s4819 = scalar_lea.vmem %s9, 5
    %v4820 = vld [vmem:[%s4819] sm:$0x1]
    %v4822 = vlaneseq
    %v4823 = vshrl.u32 %v4822, 7
    %v4824 = vsub.s32 0, %v4823
    %v4825 = vrot.slane %v4820, %v4824
    %4827 = vmatprep.subr.mxu0 0.0
    %4828 = vmatpush1.msra.mxu0 %v4803
    %4829 = vmatprep.subr.mxu0 0.0
    %4830 = vmatpush1.msra.mxu0 %v4804
    %4831 = vmatprep.subr.mxu0 0.0
    %4832 = vmatpush1.msra.mxu0 %v4805
    %4833 = vmatprep.subr.mxu0 0.0
    %4834 = vmatpush1.msra.mxu0 %v4806
    %4835 = vmatprep.subr.mxu0 0.0
    %4836 = vmatpush1.msra.mxu0 %v4807
    %4837 = vmatprep.subr.mxu0 0.0
    %4838 = vmatpush1.msra.mxu0 %v4808
    %4839 = vmatprep.subr.mxu0 0.0
    %4840 = vmatpush1.msra.mxu0 %v4809
    %4841 = vmatprep.subr.mxu0 0.0
    %4842 = vmatpush1.msra.mxu0 %v4810
    %4843 = vmatprep.subr.mxu0 0.0
    %4844 = vmatpush1.msra.mxu0 %v4811
    %4845 = vmatprep.subr.mxu0 0.0
    %4846 = vmatpush1.msra.mxu0 %v4812
    %4847 = vmatprep.subr.mxu0 0.0
    %4848 = vmatpush1.msra.mxu0 %v4813
    %4849 = vmatprep.subr.mxu0 0.0
    %4850 = vmatpush1.msra.mxu0 %v4814
    %4851 = vmatprep.subr.mxu0 0.0
    %4852 = vmatpush1.msra.mxu0 %v4815
    %4853 = vmatprep.subr.mxu0 0.0
    %4854 = vmatpush1.msra.mxu0 %v4816
    %4855 = vmatprep.subr.mxu0 0.0
    %4856 = vmatpush1.msra.mxu0 %v4817
    %4857 = vmatprep.subr.mxu0 0.0
    %4858 = vmatpush1.msra.mxu0 %v4818
    %4859 = vmatprep.subr.mxu0 0.0
    %4860 = vmatpush1.msra.mxu0 0.0
    %4861 = vmatprep.subr.mxu0 0.0
    %4862 = vmatpush1.msra.mxu0 0.0
    %4863 = vmatprep.subr.mxu0 0.0
    %4864 = vmatpush1.msra.mxu0 0.0
    %4865 = vmatprep.subr.mxu0 0.0
    %4866 = vmatpush1.msra.mxu0 0.0
    %4867 = vmatprep.subr.mxu0 0.0
    %4868 = vmatpush1.msra.mxu0 0.0
    %4869 = vmatprep.subr.mxu0 0.0
    %4870 = vmatpush1.msra.mxu0 0.0
    %4871 = vmatprep.subr.mxu0 0.0
    %4872 = vmatpush1.msra.mxu0 0.0
    %4873 = vmatprep.subr.mxu0 0.0
    %4874 = vmatpush1.msra.mxu0 0.0
    %4875 = vmatprep.subr.mxu0 0.0
    %4876 = vmatpush1.msra.mxu0 0.0
    %4877 = vmatprep.subr.mxu0 0.0
    %4878 = vmatpush1.msra.mxu0 0.0
    %4879 = vmatprep.subr.mxu0 0.0
    %4880 = vmatpush1.msra.mxu0 0.0
    %4881 = vmatprep.subr.mxu0 0.0
    %4882 = vmatpush1.msra.mxu0 0.0
    %4883 = vmatprep.subr.mxu0 0.0
    %4884 = vmatpush1.msra.mxu0 0.0
    %4885 = vmatprep.subr.mxu0 0.0
    %4886 = vmatpush1.msra.mxu0 0.0
    %4887 = vmatprep.subr.mxu0 0.0
    %4888 = vmatpush1.msra.mxu0 0.0
    %4889 = vmatprep.subr.mxu0 0.0
    %4890 = vmatpush1.msra.mxu0 0.0
    %4891 = vmatprep.mubr.f32.mxu0 0.0
    %4892 = vmatmul.mubr.f32.gmra.mrb[0].mxu0 %v3965
    %v4893 = vpop.f32.mrb[0].mxu0
    %v4894 = vadd.f32 %v4825, %v4893
    %v4895 = vpop.f32.mrb[0].mxu0
    %4896 = vmatprep.mubr.f32.mxu0 0.0
    %4897 = vmatmul.mubr.f32.gmra.mrb[0].mxu0 %v3966
    %v4898 = vpop.f32.mrb[0].mxu0
    %v4899 = vadd.f32 %v4825, %v4898
    %v4900 = vpop.f32.mrb[0].mxu0
    %4901 = vmatprep.mubr.f32.mxu0 0.0
    %4902 = vmatmul.mubr.f32.gmra.mrb[0].mxu0 %v3967
    %v4903 = vpop.f32.mrb[0].mxu0
    %v4904 = vadd.f32 %v4825, %v4903
    %v4905 = vpop.f32.mrb[0].mxu0
    %4906 = vmatprep.mubr.f32.mxu0 0.0
    %4907 = vmatmul.mubr.f32.gmra.mrb[0].mxu0 %v3968
    %v4908 = vpop.f32.mrb[0].mxu0
    %v4909 = vadd.f32 %v4825, %v4908
    %v4910 = vpop.f32.mrb[0].mxu0
    %4911 = vdwg.mxu0
    %s4912 = scalar_lea.vmem %s10, 640
    %v4913 = vld [vmem:[%s4912] sm:$0xff]
    %v4914 = vld [vmem:[%s4912 + $0x8] sm:$0xff]
    %v4915 = vld [vmem:[%s4912 + $0x10] sm:$0xff]
    %v4916 = vld [vmem:[%s4912 + $0x18] sm:$0xff]
    %v4917 = vld [vmem:[%s4912 + $0x20] sm:$0xff]
    %v4918 = vld [vmem:[%s4912 + $0x28] sm:$0xff]
    %v4919 = vld [vmem:[%s4912 + $0x30] sm:$0xff]
    %v4920 = vld [vmem:[%s4912 + $0x38] sm:$0xff]
    %v4921 = vld [vmem:[%s4912 + $0x40] sm:$0xff]
    %v4922 = vld [vmem:[%s4912 + $0x48] sm:$0xff]
    %v4923 = vld [vmem:[%s4912 + $0x50] sm:$0xff]
    %v4924 = vld [vmem:[%s4912 + $0x58] sm:$0xff]
    %v4925 = vld [vmem:[%s4912 + $0x60] sm:$0xff]
    %v4926 = vld [vmem:[%s4912 + $0x68] sm:$0xff]
    %v4927 = vld [vmem:[%s4912 + $0x70] sm:$0xff]
    %v4928 = vld [vmem:[%s4912 + $0x78] sm:$0xff]
    %s4929 = scalar_lea.vmem %s11, 5
    %v4930 = vld [vmem:[%s4929] sm:$0x1]
    %v4932 = vlaneseq
    %v4933 = vshrl.u32 %v4932, 7
    %v4934 = vsub.s32 0, %v4933
    %v4935 = vrot.slane %v4930, %v4934
    %4937 = vmatprep.subr.mxu0 0.0
    %4938 = vmatpush1.msra.mxu0 %v4913
    %4939 = vmatprep.subr.mxu0 0.0
    %4940 = vmatpush1.msra.mxu0 %v4914
    %4941 = vmatprep.subr.mxu0 0.0
    %4942 = vmatpush1.msra.mxu0 %v4915
    %4943 = vmatprep.subr.mxu0 0.0
    %4944 = vmatpush1.msra.mxu0 %v4916
    %4945 = vmatprep.subr.mxu0 0.0
    %4946 = vmatpush1.msra.mxu0 %v4917
    %4947 = vmatprep.subr.mxu0 0.0
    %4948 = vmatpush1.msra.mxu0 %v4918
    %4949 = vmatprep.subr.mxu0 0.0
    %4950 = vmatpush1.msra.mxu0 %v4919
    %4951 = vmatprep.subr.mxu0 0.0
    %4952 = vmatpush1.msra.mxu0 %v4920
    %4953 = vmatprep.subr.mxu0 0.0
    %4954 = vmatpush1.msra.mxu0 %v4921
    %4955 = vmatprep.subr.mxu0 0.0
    %4956 = vmatpush1.msra.mxu0 %v4922
    %4957 = vmatprep.subr.mxu0 0.0
    %4958 = vmatpush1.msra.mxu0 %v4923
    %4959 = vmatprep.subr.mxu0 0.0
    %4960 = vmatpush1.msra.mxu0 %v4924
    %4961 = vmatprep.subr.mxu0 0.0
    %4962 = vmatpush1.msra.mxu0 %v4925
    %4963 = vmatprep.subr.mxu0 0.0
    %4964 = vmatpush1.msra.mxu0 %v4926
    %4965 = vmatprep.subr.mxu0 0.0
    %4966 = vmatpush1.msra.mxu0 %v4927
    %4967 = vmatprep.subr.mxu0 0.0
    %4968 = vmatpush1.msra.mxu0 %v4928
    %4969 = vmatprep.subr.mxu0 0.0
    %4970 = vmatpush1.msra.mxu0 0.0
    %4971 = vmatprep.subr.mxu0 0.0
    %4972 = vmatpush1.msra.mxu0 0.0
    %4973 = vmatprep.subr.mxu0 0.0
    %4974 = vmatpush1.msra.mxu0 0.0
    %4975 = vmatprep.subr.mxu0 0.0
    %4976 = vmatpush1.msra.mxu0 0.0
    %4977 = vmatprep.subr.mxu0 0.0
    %4978 = vmatpush1.msra.mxu0 0.0
    %4979 = vmatprep.subr.mxu0 0.0
    %4980 = vmatpush1.msra.mxu0 0.0
    %4981 = vmatprep.subr.mxu0 0.0
    %4982 = vmatpush1.msra.mxu0 0.0
    %4983 = vmatprep.subr.mxu0 0.0
    %4984 = vmatpush1.msra.mxu0 0.0
    %4985 = vmatprep.subr.mxu0 0.0
    %4986 = vmatpush1.msra.mxu0 0.0
    %4987 = vmatprep.subr.mxu0 0.0
    %4988 = vmatpush1.msra.mxu0 0.0
    %4989 = vmatprep.subr.mxu0 0.0
    %4990 = vmatpush1.msra.mxu0 0.0
    %4991 = vmatprep.subr.mxu0 0.0
    %4992 = vmatpush1.msra.mxu0 0.0
    %4993 = vmatprep.subr.mxu0 0.0
    %4994 = vmatpush1.msra.mxu0 0.0
    %4995 = vmatprep.subr.mxu0 0.0
    %4996 = vmatpush1.msra.mxu0 0.0
    %4997 = vmatprep.subr.mxu0 0.0
    %4998 = vmatpush1.msra.mxu0 0.0
    %4999 = vmatprep.subr.mxu0 0.0
    %5000 = vmatpush1.msra.mxu0 0.0
    %5001 = vmatprep.mubr.f32.mxu0 0.0
    %5002 = vmatmul.mubr.f32.gmra.mrb[0].mxu0 %v3965
    %v5003 = vpop.f32.mrb[0].mxu0
    %v5004 = vadd.f32 %v4935, %v5003
    %v5005 = vpop.f32.mrb[0].mxu0
    %5006 = vmatprep.mubr.f32.mxu0 0.0
    %5007 = vmatmul.mubr.f32.gmra.mrb[0].mxu0 %v3966
    %v5008 = vpop.f32.mrb[0].mxu0
    %v5009 = vadd.f32 %v4935, %v5008
    %v5010 = vpop.f32.mrb[0].mxu0
    %5011 = vmatprep.mubr.f32.mxu0 0.0
    %5012 = vmatmul.mubr.f32.gmra.mrb[0].mxu0 %v3967
    %v5013 = vpop.f32.mrb[0].mxu0
    %v5014 = vadd.f32 %v4935, %v5013
    %v5015 = vpop.f32.mrb[0].mxu0
    %5016 = vmatprep.mubr.f32.mxu0 0.0
    %5017 = vmatmul.mubr.f32.gmra.mrb[0].mxu0 %v3968
    %v5018 = vpop.f32.mrb[0].mxu0
    %v5019 = vadd.f32 %v4935, %v5018
    %v5020 = vpop.f32.mrb[0].mxu0
    %5021 = vdwg.mxu0
    %v5023 = vsel %vm582, %v4784, 0
    %v5026 = vsel %vm582, %v4789, 0
    %v5029 = vsel %vm582, %v4894, 0
    %v5032 = vsel %vm582, %v4899, 0
    %5034 = vmatprep.subr.mxu0 0.0
    %5035 = vmatpush1.xpose.msra.mxu0 %v5029
    %5036 = vmatprep.subr.mxu0 0.0
    %5037 = vmatpush1.xpose.msra.mxu0 %v5032
    %5038 = vmatprep.subr.mxu0 0.0
    %5039 = vmatpush1.xpose.msra.mxu0 0.0
    %5040 = vmatprep.subr.mxu0 0.0
    %5041 = vmatpush1.xpose.msra.mxu0 0.0
    %5042 = vmatprep.subr.mxu0 0.0
    %5043 = vmatpush1.xpose.msra.mxu0 0.0
    %5044 = vmatprep.subr.mxu0 0.0
    %5045 = vmatpush1.xpose.msra.mxu0 0.0
    %5046 = vmatprep.subr.mxu0 0.0
    %5047 = vmatpush1.xpose.msra.mxu0 0.0
    %5048 = vmatprep.subr.mxu0 0.0
    %5049 = vmatpush1.xpose.msra.mxu0 0.0
    %5050 = vmatprep.subr.mxu0 0.0
    %5051 = vmatpush1.xpose.msra.mxu0 0.0
    %5052 = vmatprep.subr.mxu0 0.0
    %5053 = vmatpush1.xpose.msra.mxu0 0.0
    %5054 = vmatprep.subr.mxu0 0.0
    %5055 = vmatpush1.xpose.msra.mxu0 0.0
    %5056 = vmatprep.subr.mxu0 0.0
    %5057 = vmatpush1.xpose.msra.mxu0 0.0
    %5058 = vmatprep.subr.mxu0 0.0
    %5059 = vmatpush1.xpose.msra.mxu0 0.0
    %5060 = vmatprep.subr.mxu0 0.0
    %5061 = vmatpush1.xpose.msra.mxu0 0.0
    %5062 = vmatprep.subr.mxu0 0.0
    %5063 = vmatpush1.xpose.msra.mxu0 0.0
    %5064 = vmatprep.subr.mxu0 0.0
    %5065 = vmatpush1.xpose.msra.mxu0 0.0
    %5066 = vmatprep.subr.mxu0 0.0
    %5067 = vmatpush1.xpose.msra.mxu0 0.0
    %5068 = vmatprep.subr.mxu0 0.0
    %5069 = vmatpush1.xpose.msra.mxu0 0.0
    %5070 = vmatprep.subr.mxu0 0.0
    %5071 = vmatpush1.xpose.msra.mxu0 0.0
    %5072 = vmatprep.subr.mxu0 0.0
    %5073 = vmatpush1.xpose.msra.mxu0 0.0
    %5074 = vmatprep.subr.mxu0 0.0
    %5075 = vmatpush1.xpose.msra.mxu0 0.0
    %5076 = vmatprep.subr.mxu0 0.0
    %5077 = vmatpush1.xpose.msra.mxu0 0.0
    %5078 = vmatprep.subr.mxu0 0.0
    %5079 = vmatpush1.xpose.msra.mxu0 0.0
    %5080 = vmatprep.subr.mxu0 0.0
    %5081 = vmatpush1.xpose.msra.mxu0 0.0
    %5082 = vmatprep.subr.mxu0 0.0
    %5083 = vmatpush1.xpose.msra.mxu0 0.0
    %5084 = vmatprep.subr.mxu0 0.0
    %5085 = vmatpush1.xpose.msra.mxu0 0.0
    %5086 = vmatprep.subr.mxu0 0.0
    %5087 = vmatpush1.xpose.msra.mxu0 0.0
    %5088 = vmatprep.subr.mxu0 0.0
    %5089 = vmatpush1.xpose.msra.mxu0 0.0
    %5090 = vmatprep.subr.mxu0 0.0
    %5091 = vmatpush1.xpose.msra.mxu0 0.0
    %5092 = vmatprep.subr.mxu0 0.0
    %5093 = vmatpush1.xpose.msra.mxu0 0.0
    %5094 = vmatprep.subr.mxu0 0.0
    %5095 = vmatpush1.xpose.msra.mxu0 0.0
    %5096 = vmatprep.subr.mxu0 0.0
    %5097 = vmatpush1.xpose.msra.mxu0 0.0
    %5098 = vmatprep.mubr.f32.mxu0 0.0
    %5099 = vmatmul.mubr.f32.gmra.mrb[0].mxu0 %v5023
    %v5100 = vpop.f32.mrb[0].mxu0
    %v5101 = vadd.f32 0.0, %v5100
    %v5102 = vpop.f32.mrb[0].mxu0
    %5103 = vmatprep.mubr.f32.mxu0 0.0
    %5104 = vmatmul.mubr.f32.gmra.mrb[0].mxu0 %v5026
    %v5105 = vpop.f32.mrb[0].mxu0
    %v5106 = vadd.f32 0.0, %v5105
    %v5107 = vpop.f32.mrb[0].mxu0
    %5108 = vdwg.mxu0
    %v5110 = vsel %vm582, %v4794, 0
    %v5113 = vsel %vm582, %v4799, 0
    %v5116 = vsel %vm582, %v4904, 0
    %v5119 = vsel %vm582, %v4909, 0
    %5121 = vmatprep.subr.mxu0 0.0
    %5122 = vmatpush1.xpose.msra.mxu0 %v5116
    %5123 = vmatprep.subr.mxu0 0.0
    %5124 = vmatpush1.xpose.msra.mxu0 %v5119
    %5125 = vmatprep.subr.mxu0 0.0
    %5126 = vmatpush1.xpose.msra.mxu0 0.0
    %5127 = vmatprep.subr.mxu0 0.0
    %5128 = vmatpush1.xpose.msra.mxu0 0.0
    %5129 = vmatprep.subr.mxu0 0.0
    %5130 = vmatpush1.xpose.msra.mxu0 0.0
    %5131 = vmatprep.subr.mxu0 0.0
    %5132 = vmatpush1.xpose.msra.mxu0 0.0
    %5133 = vmatprep.subr.mxu0 0.0
    %5134 = vmatpush1.xpose.msra.mxu0 0.0
    %5135 = vmatprep.subr.mxu0 0.0
    %5136 = vmatpush1.xpose.msra.mxu0 0.0
    %5137 = vmatprep.subr.mxu0 0.0
    %5138 = vmatpush1.xpose.msra.mxu0 0.0
    %5139 = vmatprep.subr.mxu0 0.0
    %5140 = vmatpush1.xpose.msra.mxu0 0.0
    %5141 = vmatprep.subr.mxu0 0.0
    %5142 = vmatpush1.xpose.msra.mxu0 0.0
    %5143 = vmatprep.subr.mxu0 0.0
    %5144 = vmatpush1.xpose.msra.mxu0 0.0
    %5145 = vmatprep.subr.mxu0 0.0
    %5146 = vmatpush1.xpose.msra.mxu0 0.0
    %5147 = vmatprep.subr.mxu0 0.0
    %5148 = vmatpush1.xpose.msra.mxu0 0.0
    %5149 = vmatprep.subr.mxu0 0.0
    %5150 = vmatpush1.xpose.msra.mxu0 0.0
    %5151 = vmatprep.subr.mxu0 0.0
    %5152 = vmatpush1.xpose.msra.mxu0 0.0
    %5153 = vmatprep.subr.mxu0 0.0
    %5154 = vmatpush1.xpose.msra.mxu0 0.0
    %5155 = vmatprep.subr.mxu0 0.0
    %5156 = vmatpush1.xpose.msra.mxu0 0.0
    %5157 = vmatprep.subr.mxu0 0.0
    %5158 = vmatpush1.xpose.msra.mxu0 0.0
    %5159 = vmatprep.subr.mxu0 0.0
    %5160 = vmatpush1.xpose.msra.mxu0 0.0
    %5161 = vmatprep.subr.mxu0 0.0
    %5162 = vmatpush1.xpose.msra.mxu0 0.0
    %5163 = vmatprep.subr.mxu0 0.0
    %5164 = vmatpush1.xpose.msra.mxu0 0.0
    %5165 = vmatprep.subr.mxu0 0.0
    %5166 = vmatpush1.xpose.msra.mxu0 0.0
    %5167 = vmatprep.subr.mxu0 0.0
    %5168 = vmatpush1.xpose.msra.mxu0 0.0
    %5169 = vmatprep.subr.mxu0 0.0
    %5170 = vmatpush1.xpose.msra.mxu0 0.0
    %5171 = vmatprep.subr.mxu0 0.0
    %5172 = vmatpush1.xpose.msra.mxu0 0.0
    %5173 = vmatprep.subr.mxu0 0.0
    %5174 = vmatpush1.xpose.msra.mxu0 0.0
    %5175 = vmatprep.subr.mxu0 0.0
    %5176 = vmatpush1.xpose.msra.mxu0 0.0
    %5177 = vmatprep.subr.mxu0 0.0
    %5178 = vmatpush1.xpose.msra.mxu0 0.0
    %5179 = vmatprep.subr.mxu0 0.0
    %5180 = vmatpush1.xpose.msra.mxu0 0.0
    %5181 = vmatprep.subr.mxu0 0.0
    %5182 = vmatpush1.xpose.msra.mxu0 0.0
    %5183 = vmatprep.subr.mxu0 0.0
    %5184 = vmatpush1.xpose.msra.mxu0 0.0
    %5185 = vmatprep.mubr.f32.mxu0 0.0
    %5186 = vmatmul.mubr.f32.gmra.mrb[0].mxu0 %v5110
    %v5187 = vpop.f32.mrb[0].mxu0
    %v5188 = vadd.f32 0.0, %v5187
    %v5189 = vpop.f32.mrb[0].mxu0
    %5190 = vmatprep.mubr.f32.mxu0 0.0
    %5191 = vmatmul.mubr.f32.gmra.mrb[0].mxu0 %v5113
    %v5192 = vpop.f32.mrb[0].mxu0
    %v5193 = vadd.f32 0.0, %v5192
    %v5194 = vpop.f32.mrb[0].mxu0
    %5195 = vdwg.mxu0
    %v5196 = vmul.f32 %v5101, 0.17677669
    %v5197 = vmul.f32 %v5106, 0.17677669
    %v5198 = vmul.f32 %v5188, 0.17677669
    %v5199 = vmul.f32 %v5193, 0.17677669
    %v5200 = vadd.f32 %v5196, %v766
    %v5201 = vadd.f32 %v5197, %v766
    %v5202 = vadd.f32 %v5198, %v770
    %v5203 = vadd.f32 %v5199, %v770
    %v5204 = vsel %vm777, %v5200, -inf
    %5205 = vmax.xlane.f32.xlu0 %v5204
    %v5206 = vpop.xlane.xlu0 %5205
    %v5207 = vsel %vm777, %v5201, -inf
    %5208 = vmax.xlane.f32.xlu0 %v5207
    %v5209 = vpop.xlane.xlu0 %5208
    %v5210 = vsel %vm777, %v5202, -inf
    %5211 = vmax.xlane.f32.xlu0 %v5210
    %v5212 = vpop.xlane.xlu0 %5211
    %v5213 = vsel %vm777, %v5203, -inf
    %5214 = vmax.xlane.f32.xlu0 %v5213
    %v5215 = vpop.xlane.xlu0 %5214
    %v5216 = vsub.f32 %v5200, %v5206
    %v5217 = vsub.f32 %v5201, %v5209
    %v5218 = vsub.f32 %v5202, %v5212
    %v5219 = vsub.f32 %v5203, %v5215
    %v5220 = vmul.f32 %v5216, 1.442695
    %v5221 = vpow.pop %v5220
    %v5222 = vmul.f32 %v5217, 1.442695
    %v5223 = vpow.pop %v5222
    %v5224 = vmul.f32 %v5218, 1.442695
    %v5225 = vpow.pop %v5224
    %v5226 = vmul.f32 %v5219, 1.442695
    %v5227 = vpow.pop %v5226
    %v5228 = vsel %vm777, %v5221, 0.0
    %5229 = vadd.xlane.f32.xlu0 %v5228
    %v5230 = vpop.xlane.xlu0 %5229
    %v5231 = vsel %vm777, %v5223, 0.0
    %5232 = vadd.xlane.f32.xlu0 %v5231
    %v5233 = vpop.xlane.xlu0 %5232
    %v5234 = vsel %vm777, %v5225, 0.0
    %5235 = vadd.xlane.f32.xlu0 %v5234
    %v5236 = vpop.xlane.xlu0 %5235
    %v5237 = vsel %vm777, %v5227, 0.0
    %5238 = vadd.xlane.f32.xlu0 %v5237
    %v5239 = vpop.xlane.xlu0 %5238
    %v5240 = vrcp.pop %v5230
    %v5241 = vmul.f32 %v5221, %v5240
    %v5242 = vrcp.pop %v5233
    %v5243 = vmul.f32 %v5223, %v5242
    %v5244 = vrcp.pop %v5236
    %v5245 = vmul.f32 %v5225, %v5244
    %v5246 = vrcp.pop %v5239
    %v5247 = vmul.f32 %v5227, %v5246
    %v5249 = vsel %vm777, %v5241, 0
    %v5252 = vsel %vm777, %v5243, 0
    %5254 = vmatprep.subr.mxu0 0.0
    %5255 = vmatpush1.msra.mxu0 %v5004
    %5256 = vmatprep.subr.mxu0 0.0
    %5257 = vmatpush1.msra.mxu0 %v5009
    %5258 = vmatprep.subr.mxu0 0.0
    %5259 = vmatpush1.msra.mxu0 0.0
    %5260 = vmatprep.subr.mxu0 0.0
    %5261 = vmatpush1.msra.mxu0 0.0
    %5262 = vmatprep.subr.mxu0 0.0
    %5263 = vmatpush1.msra.mxu0 0.0
    %5264 = vmatprep.subr.mxu0 0.0
    %5265 = vmatpush1.msra.mxu0 0.0
    %5266 = vmatprep.subr.mxu0 0.0
    %5267 = vmatpush1.msra.mxu0 0.0
    %5268 = vmatprep.subr.mxu0 0.0
    %5269 = vmatpush1.msra.mxu0 0.0
    %5270 = vmatprep.subr.mxu0 0.0
    %5271 = vmatpush1.msra.mxu0 0.0
    %5272 = vmatprep.subr.mxu0 0.0
    %5273 = vmatpush1.msra.mxu0 0.0
    %5274 = vmatprep.subr.mxu0 0.0
    %5275 = vmatpush1.msra.mxu0 0.0
    %5276 = vmatprep.subr.mxu0 0.0
    %5277 = vmatpush1.msra.mxu0 0.0
    %5278 = vmatprep.subr.mxu0 0.0
    %5279 = vmatpush1.msra.mxu0 0.0
    %5280 = vmatprep.subr.mxu0 0.0
    %5281 = vmatpush1.msra.mxu0 0.0
    %5282 = vmatprep.subr.mxu0 0.0
    %5283 = vmatpush1.msra.mxu0 0.0
    %5284 = vmatprep.subr.mxu0 0.0
    %5285 = vmatpush1.msra.mxu0 0.0
    %5286 = vmatprep.subr.mxu0 0.0
    %5287 = vmatpush1.msra.mxu0 0.0
    %5288 = vmatprep.subr.mxu0 0.0
    %5289 = vmatpush1.msra.mxu0 0.0
    %5290 = vmatprep.subr.mxu0 0.0
    %5291 = vmatpush1.msra.mxu0 0.0
    %5292 = vmatprep.subr.mxu0 0.0
    %5293 = vmatpush1.msra.mxu0 0.0
    %5294 = vmatprep.subr.mxu0 0.0
    %5295 = vmatpush1.msra.mxu0 0.0
    %5296 = vmatprep.subr.mxu0 0.0
    %5297 = vmatpush1.msra.mxu0 0.0
    %5298 = vmatprep.subr.mxu0 0.0
    %5299 = vmatpush1.msra.mxu0 0.0
    %5300 = vmatprep.subr.mxu0 0.0
    %5301 = vmatpush1.msra.mxu0 0.0
    %5302 = vmatprep.subr.mxu0 0.0
    %5303 = vmatpush1.msra.mxu0 0.0
    %5304 = vmatprep.subr.mxu0 0.0
    %5305 = vmatpush1.msra.mxu0 0.0
    %5306 = vmatprep.subr.mxu0 0.0
    %5307 = vmatpush1.msra.mxu0 0.0
    %5308 = vmatprep.subr.mxu0 0.0
    %5309 = vmatpush1.msra.mxu0 0.0
    %5310 = vmatprep.subr.mxu0 0.0
    %5311 = vmatpush1.msra.mxu0 0.0
    %5312 = vmatprep.subr.mxu0 0.0
    %5313 = vmatpush1.msra.mxu0 0.0
    %5314 = vmatprep.subr.mxu0 0.0
    %5315 = vmatpush1.msra.mxu0 0.0
    %5316 = vmatprep.subr.mxu0 0.0
    %5317 = vmatpush1.msra.mxu0 0.0
    %5318 = vmatprep.mubr.f32.mxu0 0.0
    %5319 = vmatmul.mubr.f32.gmra.mrb[0].mxu0 %v5249
    %v5320 = vpop.f32.mrb[0].mxu0
    %v5321 = vadd.f32 0.0, %v5320
    %v5322 = vpop.f32.mrb[0].mxu0
    %5323 = vmatprep.mubr.f32.mxu0 0.0
    %5324 = vmatmul.mubr.f32.gmra.mrb[0].mxu0 %v5252
    %v5325 = vpop.f32.mrb[0].mxu0
    %v5326 = vadd.f32 0.0, %v5325
    %v5327 = vpop.f32.mrb[0].mxu0
    %5328 = vdwg.mxu0
    %v5330 = vsel %vm777, %v5245, 0
    %v5333 = vsel %vm777, %v5247, 0
    %5335 = vmatprep.subr.mxu0 0.0
    %5336 = vmatpush1.msra.mxu0 %v5014
    %5337 = vmatprep.subr.mxu0 0.0
    %5338 = vmatpush1.msra.mxu0 %v5019
    %5339 = vmatprep.subr.mxu0 0.0
    %5340 = vmatpush1.msra.mxu0 0.0
    %5341 = vmatprep.subr.mxu0 0.0
    %5342 = vmatpush1.msra.mxu0 0.0
    %5343 = vmatprep.subr.mxu0 0.0
    %5344 = vmatpush1.msra.mxu0 0.0
    %5345 = vmatprep.subr.mxu0 0.0
    %5346 = vmatpush1.msra.mxu0 0.0
    %5347 = vmatprep.subr.mxu0 0.0
    %5348 = vmatpush1.msra.mxu0 0.0
    %5349 = vmatprep.subr.mxu0 0.0
    %5350 = vmatpush1.msra.mxu0 0.0
    %5351 = vmatprep.subr.mxu0 0.0
    %5352 = vmatpush1.msra.mxu0 0.0
    %5353 = vmatprep.subr.mxu0 0.0
    %5354 = vmatpush1.msra.mxu0 0.0
    %5355 = vmatprep.subr.mxu0 0.0
    %5356 = vmatpush1.msra.mxu0 0.0
    %5357 = vmatprep.subr.mxu0 0.0
    %5358 = vmatpush1.msra.mxu0 0.0
    %5359 = vmatprep.subr.mxu0 0.0
    %5360 = vmatpush1.msra.mxu0 0.0
    %5361 = vmatprep.subr.mxu0 0.0
    %5362 = vmatpush1.msra.mxu0 0.0
    %5363 = vmatprep.subr.mxu0 0.0
    %5364 = vmatpush1.msra.mxu0 0.0
    %5365 = vmatprep.subr.mxu0 0.0
    %5366 = vmatpush1.msra.mxu0 0.0
    %5367 = vmatprep.subr.mxu0 0.0
    %5368 = vmatpush1.msra.mxu0 0.0
    %5369 = vmatprep.subr.mxu0 0.0
    %5370 = vmatpush1.msra.mxu0 0.0
    %5371 = vmatprep.subr.mxu0 0.0
    %5372 = vmatpush1.msra.mxu0 0.0
    %5373 = vmatprep.subr.mxu0 0.0
    %5374 = vmatpush1.msra.mxu0 0.0
    %5375 = vmatprep.subr.mxu0 0.0
    %5376 = vmatpush1.msra.mxu0 0.0
    %5377 = vmatprep.subr.mxu0 0.0
    %5378 = vmatpush1.msra.mxu0 0.0
    %5379 = vmatprep.subr.mxu0 0.0
    %5380 = vmatpush1.msra.mxu0 0.0
    %5381 = vmatprep.subr.mxu0 0.0
    %5382 = vmatpush1.msra.mxu0 0.0
    %5383 = vmatprep.subr.mxu0 0.0
    %5384 = vmatpush1.msra.mxu0 0.0
    %5385 = vmatprep.subr.mxu0 0.0
    %5386 = vmatpush1.msra.mxu0 0.0
    %5387 = vmatprep.subr.mxu0 0.0
    %5388 = vmatpush1.msra.mxu0 0.0
    %5389 = vmatprep.subr.mxu0 0.0
    %5390 = vmatpush1.msra.mxu0 0.0
    %5391 = vmatprep.subr.mxu0 0.0
    %5392 = vmatpush1.msra.mxu0 0.0
    %5393 = vmatprep.subr.mxu0 0.0
    %5394 = vmatpush1.msra.mxu0 0.0
    %5395 = vmatprep.subr.mxu0 0.0
    %5396 = vmatpush1.msra.mxu0 0.0
    %5397 = vmatprep.subr.mxu0 0.0
    %5398 = vmatpush1.msra.mxu0 0.0
    %5399 = vmatprep.mubr.f32.mxu0 0.0
    %5400 = vmatmul.mubr.f32.gmra.mrb[0].mxu0 %v5330
    %v5401 = vpop.f32.mrb[0].mxu0
    %v5402 = vadd.f32 0.0, %v5401
    %v5403 = vpop.f32.mrb[0].mxu0
    %5404 = vmatprep.mubr.f32.mxu0 0.0
    %5405 = vmatmul.mubr.f32.gmra.mrb[0].mxu0 %v5333
    %v5406 = vpop.f32.mrb[0].mxu0
    %v5407 = vadd.f32 0.0, %v5406
    %v5408 = vpop.f32.mrb[0].mxu0
    %5409 = vdwg.mxu0
    %s5410 = scalar_lea.vmem %s12, 160
    %v5411 = vld [vmem:[%s5410] sm:$0xff]
    %v5412 = vld [vmem:[%s5410 + $0x8] sm:$0xff]
    %v5413 = vld [vmem:[%s5410 + $0x10] sm:$0xff]
    %v5414 = vld [vmem:[%s5410 + $0x18] sm:$0xff]
    %v5416 = vsel %vm582, %v5321, 0
    %v5419 = vsel %vm582, %v5326, 0
    %v5422 = vsel %vm582, %v5402, 0
    %v5425 = vsel %vm582, %v5407, 0
    %5427 = vmatprep.subr.mxu0 0.0
    %5428 = vmatpush1.msra.mxu0 %v5411
    %5429 = vmatprep.subr.mxu0 0.0
    %5430 = vmatpush1.msra.mxu0 %v5412
    %5431 = vmatprep.subr.mxu0 0.0
    %5432 = vmatpush1.msra.mxu0 %v5413
    %5433 = vmatprep.subr.mxu0 0.0
    %5434 = vmatpush1.msra.mxu0 %v5414
    %5435 = vmatprep.subr.mxu0 0.0
    %5436 = vmatpush1.msra.mxu0 0.0
    %5437 = vmatprep.subr.mxu0 0.0
    %5438 = vmatpush1.msra.mxu0 0.0
    %5439 = vmatprep.subr.mxu0 0.0
    %5440 = vmatpush1.msra.mxu0 0.0
    %5441 = vmatprep.subr.mxu0 0.0
    %5442 = vmatpush1.msra.mxu0 0.0
    %5443 = vmatprep.subr.mxu0 0.0
    %5444 = vmatpush1.msra.mxu0 0.0
    %5445 = vmatprep.subr.mxu0 0.0
    %5446 = vmatpush1.msra.mxu0 0.0
    %5447 = vmatprep.subr.mxu0 0.0
    %5448 = vmatpush1.msra.mxu0 0.0
    %5449 = vmatprep.subr.mxu0 0.0
    %5450 = vmatpush1.msra.mxu0 0.0
    %5451 = vmatprep.subr.mxu0 0.0
    %5452 = vmatpush1.msra.mxu0 0.0
    %5453 = vmatprep.subr.mxu0 0.0
    %5454 = vmatpush1.msra.mxu0 0.0
    %5455 = vmatprep.subr.mxu0 0.0
    %5456 = vmatpush1.msra.mxu0 0.0
    %5457 = vmatprep.subr.mxu0 0.0
    %5458 = vmatpush1.msra.mxu0 0.0
    %5459 = vmatprep.subr.mxu0 0.0
    %5460 = vmatpush1.msra.mxu0 0.0
    %5461 = vmatprep.subr.mxu0 0.0
    %5462 = vmatpush1.msra.mxu0 0.0
    %5463 = vmatprep.subr.mxu0 0.0
    %5464 = vmatpush1.msra.mxu0 0.0
    %5465 = vmatprep.subr.mxu0 0.0
    %5466 = vmatpush1.msra.mxu0 0.0
    %5467 = vmatprep.subr.mxu0 0.0
    %5468 = vmatpush1.msra.mxu0 0.0
    %5469 = vmatprep.subr.mxu0 0.0
    %5470 = vmatpush1.msra.mxu0 0.0
    %5471 = vmatprep.subr.mxu0 0.0
    %5472 = vmatpush1.msra.mxu0 0.0
    %5473 = vmatprep.subr.mxu0 0.0
    %5474 = vmatpush1.msra.mxu0 0.0
    %5475 = vmatprep.subr.mxu0 0.0
    %5476 = vmatpush1.msra.mxu0 0.0
    %5477 = vmatprep.subr.mxu0 0.0
    %5478 = vmatpush1.msra.mxu0 0.0
    %5479 = vmatprep.subr.mxu0 0.0
    %5480 = vmatpush1.msra.mxu0 0.0
    %5481 = vmatprep.subr.mxu0 0.0
    %5482 = vmatpush1.msra.mxu0 0.0
    %5483 = vmatprep.subr.mxu0 0.0
    %5484 = vmatpush1.msra.mxu0 0.0
    %5485 = vmatprep.subr.mxu0 0.0
    %5486 = vmatpush1.msra.mxu0 0.0
    %5487 = vmatprep.subr.mxu0 0.0
    %5488 = vmatpush1.msra.mxu0 0.0
    %5489 = vmatprep.subr.mxu0 0.0
    %5490 = vmatpush1.msra.mxu0 0.0
    %5491 = vmatprep.mubr.f32.mxu0 0.0
    %5492 = vmatmul.mubr.f32.gmra.mrb[0].mxu0 %v5416
    %v5493 = vpop.f32.mrb[0].mxu0
    %v5494 = vadd.f32 0.0, %v5493
    %v5495 = vpop.f32.mrb[0].mxu0
    %5496 = vmatprep.mubr.f32.mxu0 0.0
    %5497 = vmatmul.mubr.f32.gmra.mrb[0].mxu0 %v5419
    %v5498 = vpop.f32.mrb[0].mxu0
    %v5499 = vadd.f32 0.0, %v5498
    %v5500 = vpop.f32.mrb[0].mxu0
    %5501 = vmatprep.mubr.f32.mxu0 0.0
    %5502 = vmatmul.mubr.f32.gmra.mrb[0].mxu0 %v5422
    %v5503 = vpop.f32.mrb[0].mxu0
    %v5504 = vadd.f32 0.0, %v5503
    %v5505 = vpop.f32.mrb[0].mxu0
    %5506 = vmatprep.mubr.f32.mxu0 0.0
    %5507 = vmatmul.mubr.f32.gmra.mrb[0].mxu0 %v5425
    %v5508 = vpop.f32.mrb[0].mxu0
    %v5509 = vadd.f32 0.0, %v5508
    %v5510 = vpop.f32.mrb[0].mxu0
    %5511 = vdwg.mxu0
    %v5513 = vsel %vm582, %v4598, 0
    %v5516 = vsel %vm582, %v4603, 0
    %v5519 = vsel %vm582, %v4679, 0
    %v5522 = vsel %vm582, %v4684, 0
    %5524 = vmatprep.subr.mxu0 0.0
    %5525 = vmatpush1.msra.mxu0 %v4688
    %5526 = vmatprep.subr.mxu0 0.0
    %5527 = vmatpush1.msra.mxu0 %v4689
    %5528 = vmatprep.subr.mxu0 0.0
    %5529 = vmatpush1.msra.mxu0 %v4690
    %5530 = vmatprep.subr.mxu0 0.0
    %5531 = vmatpush1.msra.mxu0 %v4691
    %5532 = vmatprep.subr.mxu0 0.0
    %5533 = vmatpush1.msra.mxu0 0.0
    %5534 = vmatprep.subr.mxu0 0.0
    %5535 = vmatpush1.msra.mxu0 0.0
    %5536 = vmatprep.subr.mxu0 0.0
    %5537 = vmatpush1.msra.mxu0 0.0
    %5538 = vmatprep.subr.mxu0 0.0
    %5539 = vmatpush1.msra.mxu0 0.0
    %5540 = vmatprep.subr.mxu0 0.0
    %5541 = vmatpush1.msra.mxu0 0.0
    %5542 = vmatprep.subr.mxu0 0.0
    %5543 = vmatpush1.msra.mxu0 0.0
    %5544 = vmatprep.subr.mxu0 0.0
    %5545 = vmatpush1.msra.mxu0 0.0
    %5546 = vmatprep.subr.mxu0 0.0
    %5547 = vmatpush1.msra.mxu0 0.0
    %5548 = vmatprep.subr.mxu0 0.0
    %5549 = vmatpush1.msra.mxu0 0.0
    %5550 = vmatprep.subr.mxu0 0.0
    %5551 = vmatpush1.msra.mxu0 0.0
    %5552 = vmatprep.subr.mxu0 0.0
    %5553 = vmatpush1.msra.mxu0 0.0
    %5554 = vmatprep.subr.mxu0 0.0
    %5555 = vmatpush1.msra.mxu0 0.0
    %5556 = vmatprep.subr.mxu0 0.0
    %5557 = vmatpush1.msra.mxu0 0.0
    %5558 = vmatprep.subr.mxu0 0.0
    %5559 = vmatpush1.msra.mxu0 0.0
    %5560 = vmatprep.subr.mxu0 0.0
    %5561 = vmatpush1.msra.mxu0 0.0
    %5562 = vmatprep.subr.mxu0 0.0
    %5563 = vmatpush1.msra.mxu0 0.0
    %5564 = vmatprep.subr.mxu0 0.0
    %5565 = vmatpush1.msra.mxu0 0.0
    %5566 = vmatprep.subr.mxu0 0.0
    %5567 = vmatpush1.msra.mxu0 0.0
    %5568 = vmatprep.subr.mxu0 0.0
    %5569 = vmatpush1.msra.mxu0 0.0
    %5570 = vmatprep.subr.mxu0 0.0
    %5571 = vmatpush1.msra.mxu0 0.0
    %5572 = vmatprep.subr.mxu0 0.0
    %5573 = vmatpush1.msra.mxu0 0.0
    %5574 = vmatprep.subr.mxu0 0.0
    %5575 = vmatpush1.msra.mxu0 0.0
    %5576 = vmatprep.subr.mxu0 0.0
    %5577 = vmatpush1.msra.mxu0 0.0
    %5578 = vmatprep.subr.mxu0 0.0
    %5579 = vmatpush1.msra.mxu0 0.0
    %5580 = vmatprep.subr.mxu0 0.0
    %5581 = vmatpush1.msra.mxu0 0.0
    %5582 = vmatprep.subr.mxu0 0.0
    %5583 = vmatpush1.msra.mxu0 0.0
    %5584 = vmatprep.subr.mxu0 0.0
    %5585 = vmatpush1.msra.mxu0 0.0
    %5586 = vmatprep.subr.mxu0 0.0
    %5587 = vmatpush1.msra.mxu0 0.0
    %5588 = vmatprep.mubr.f32.mxu0 0.0
    %5589 = vmatmul.mubr.f32.gmra.mrb[0].mxu0 %v5513
    %v5590 = vpop.f32.mrb[0].mxu0
    %v5591 = vadd.f32 %v5494, %v5590
    %v5592 = vpop.f32.mrb[0].mxu0
    %5593 = vmatprep.mubr.f32.mxu0 0.0
    %5594 = vmatmul.mubr.f32.gmra.mrb[0].mxu0 %v5516
    %v5595 = vpop.f32.mrb[0].mxu0
    %v5596 = vadd.f32 %v5499, %v5595
    %v5597 = vpop.f32.mrb[0].mxu0
    %5598 = vmatprep.mubr.f32.mxu0 0.0
    %5599 = vmatmul.mubr.f32.gmra.mrb[0].mxu0 %v5519
    %v5600 = vpop.f32.mrb[0].mxu0
    %v5601 = vadd.f32 %v5504, %v5600
    %v5602 = vpop.f32.mrb[0].mxu0
    %5603 = vmatprep.mubr.f32.mxu0 0.0
    %5604 = vmatmul.mubr.f32.gmra.mrb[0].mxu0 %v5522
    %v5605 = vpop.f32.mrb[0].mxu0
    %v5606 = vadd.f32 %v5509, %v5605
    %v5607 = vpop.f32.mrb[0].mxu0
    %5608 = vdwg.mxu0
    %s5609 = scalar_lea.vmem %s6, 768
    %v5610 = vld [vmem:[%s5609] sm:$0xff]
    %v5611 = vld [vmem:[%s5609 + $0x8] sm:$0xff]
    %v5612 = vld [vmem:[%s5609 + $0x10] sm:$0xff]
    %v5613 = vld [vmem:[%s5609 + $0x18] sm:$0xff]
    %v5614 = vld [vmem:[%s5609 + $0x20] sm:$0xff]
    %v5615 = vld [vmem:[%s5609 + $0x28] sm:$0xff]
    %v5616 = vld [vmem:[%s5609 + $0x30] sm:$0xff]
    %v5617 = vld [vmem:[%s5609 + $0x38] sm:$0xff]
    %v5618 = vld [vmem:[%s5609 + $0x40] sm:$0xff]
    %v5619 = vld [vmem:[%s5609 + $0x48] sm:$0xff]
    %v5620 = vld [vmem:[%s5609 + $0x50] sm:$0xff]
    %v5621 = vld [vmem:[%s5609 + $0x58] sm:$0xff]
    %v5622 = vld [vmem:[%s5609 + $0x60] sm:$0xff]
    %v5623 = vld [vmem:[%s5609 + $0x68] sm:$0xff]
    %v5624 = vld [vmem:[%s5609 + $0x70] sm:$0xff]
    %v5625 = vld [vmem:[%s5609 + $0x78] sm:$0xff]
    %s5626 = scalar_lea.vmem %s7, 6
    %v5627 = vld [vmem:[%s5626] sm:$0x1]
    %v5629 = vlaneseq
    %v5630 = vshrl.u32 %v5629, 7
    %v5631 = vsub.s32 0, %v5630
    %v5632 = vrot.slane %v5627, %v5631
    %5634 = vmatprep.subr.mxu0 0.0
    %5635 = vmatpush1.msra.mxu0 %v5610
    %5636 = vmatprep.subr.mxu0 0.0
    %5637 = vmatpush1.msra.mxu0 %v5611
    %5638 = vmatprep.subr.mxu0 0.0
    %5639 = vmatpush1.msra.mxu0 %v5612
    %5640 = vmatprep.subr.mxu0 0.0
    %5641 = vmatpush1.msra.mxu0 %v5613
    %5642 = vmatprep.subr.mxu0 0.0
    %5643 = vmatpush1.msra.mxu0 %v5614
    %5644 = vmatprep.subr.mxu0 0.0
    %5645 = vmatpush1.msra.mxu0 %v5615
    %5646 = vmatprep.subr.mxu0 0.0
    %5647 = vmatpush1.msra.mxu0 %v5616
    %5648 = vmatprep.subr.mxu0 0.0
    %5649 = vmatpush1.msra.mxu0 %v5617
    %5650 = vmatprep.subr.mxu0 0.0
    %5651 = vmatpush1.msra.mxu0 %v5618
    %5652 = vmatprep.subr.mxu0 0.0
    %5653 = vmatpush1.msra.mxu0 %v5619
    %5654 = vmatprep.subr.mxu0 0.0
    %5655 = vmatpush1.msra.mxu0 %v5620
    %5656 = vmatprep.subr.mxu0 0.0
    %5657 = vmatpush1.msra.mxu0 %v5621
    %5658 = vmatprep.subr.mxu0 0.0
    %5659 = vmatpush1.msra.mxu0 %v5622
    %5660 = vmatprep.subr.mxu0 0.0
    %5661 = vmatpush1.msra.mxu0 %v5623
    %5662 = vmatprep.subr.mxu0 0.0
    %5663 = vmatpush1.msra.mxu0 %v5624
    %5664 = vmatprep.subr.mxu0 0.0
    %5665 = vmatpush1.msra.mxu0 %v5625
    %5666 = vmatprep.subr.mxu0 0.0
    %5667 = vmatpush1.msra.mxu0 0.0
    %5668 = vmatprep.subr.mxu0 0.0
    %5669 = vmatpush1.msra.mxu0 0.0
    %5670 = vmatprep.subr.mxu0 0.0
    %5671 = vmatpush1.msra.mxu0 0.0
    %5672 = vmatprep.subr.mxu0 0.0
    %5673 = vmatpush1.msra.mxu0 0.0
    %5674 = vmatprep.subr.mxu0 0.0
    %5675 = vmatpush1.msra.mxu0 0.0
    %5676 = vmatprep.subr.mxu0 0.0
    %5677 = vmatpush1.msra.mxu0 0.0
    %5678 = vmatprep.subr.mxu0 0.0
    %5679 = vmatpush1.msra.mxu0 0.0
    %5680 = vmatprep.subr.mxu0 0.0
    %5681 = vmatpush1.msra.mxu0 0.0
    %5682 = vmatprep.subr.mxu0 0.0
    %5683 = vmatpush1.msra.mxu0 0.0
    %5684 = vmatprep.subr.mxu0 0.0
    %5685 = vmatpush1.msra.mxu0 0.0
    %5686 = vmatprep.subr.mxu0 0.0
    %5687 = vmatpush1.msra.mxu0 0.0
    %5688 = vmatprep.subr.mxu0 0.0
    %5689 = vmatpush1.msra.mxu0 0.0
    %5690 = vmatprep.subr.mxu0 0.0
    %5691 = vmatpush1.msra.mxu0 0.0
    %5692 = vmatprep.subr.mxu0 0.0
    %5693 = vmatpush1.msra.mxu0 0.0
    %5694 = vmatprep.subr.mxu0 0.0
    %5695 = vmatpush1.msra.mxu0 0.0
    %5696 = vmatprep.subr.mxu0 0.0
    %5697 = vmatpush1.msra.mxu0 0.0
    %5698 = vmatprep.mubr.f32.mxu0 0.0
    %5699 = vmatmul.mubr.f32.gmra.mrb[0].mxu0 %v3965
    %v5700 = vpop.f32.mrb[0].mxu0
    %v5701 = vadd.f32 %v5632, %v5700
    %v5702 = vpop.f32.mrb[0].mxu0
    %5703 = vmatprep.mubr.f32.mxu0 0.0
    %5704 = vmatmul.mubr.f32.gmra.mrb[0].mxu0 %v3966
    %v5705 = vpop.f32.mrb[0].mxu0
    %v5706 = vadd.f32 %v5632, %v5705
    %v5707 = vpop.f32.mrb[0].mxu0
    %5708 = vmatprep.mubr.f32.mxu0 0.0
    %5709 = vmatmul.mubr.f32.gmra.mrb[0].mxu0 %v3967
    %v5710 = vpop.f32.mrb[0].mxu0
    %v5711 = vadd.f32 %v5632, %v5710
    %v5712 = vpop.f32.mrb[0].mxu0
    %5713 = vmatprep.mubr.f32.mxu0 0.0
    %5714 = vmatmul.mubr.f32.gmra.mrb[0].mxu0 %v3968
    %v5715 = vpop.f32.mrb[0].mxu0
    %v5716 = vadd.f32 %v5632, %v5715
    %v5717 = vpop.f32.mrb[0].mxu0
    %5718 = vdwg.mxu0
    %s5719 = scalar_lea.vmem %s8, 768
    %v5720 = vld [vmem:[%s5719] sm:$0xff]
    %v5721 = vld [vmem:[%s5719 + $0x8] sm:$0xff]
    %v5722 = vld [vmem:[%s5719 + $0x10] sm:$0xff]
    %v5723 = vld [vmem:[%s5719 + $0x18] sm:$0xff]
    %v5724 = vld [vmem:[%s5719 + $0x20] sm:$0xff]
    %v5725 = vld [vmem:[%s5719 + $0x28] sm:$0xff]
    %v5726 = vld [vmem:[%s5719 + $0x30] sm:$0xff]
    %v5727 = vld [vmem:[%s5719 + $0x38] sm:$0xff]
    %v5728 = vld [vmem:[%s5719 + $0x40] sm:$0xff]
    %v5729 = vld [vmem:[%s5719 + $0x48] sm:$0xff]
    %v5730 = vld [vmem:[%s5719 + $0x50] sm:$0xff]
    %v5731 = vld [vmem:[%s5719 + $0x58] sm:$0xff]
    %v5732 = vld [vmem:[%s5719 + $0x60] sm:$0xff]
    %v5733 = vld [vmem:[%s5719 + $0x68] sm:$0xff]
    %v5734 = vld [vmem:[%s5719 + $0x70] sm:$0xff]
    %v5735 = vld [vmem:[%s5719 + $0x78] sm:$0xff]
    %s5736 = scalar_lea.vmem %s9, 6
    %v5737 = vld [vmem:[%s5736] sm:$0x1]
    %v5739 = vlaneseq
    %v5740 = vshrl.u32 %v5739, 7
    %v5741 = vsub.s32 0, %v5740
    %v5742 = vrot.slane %v5737, %v5741
    %5744 = vmatprep.subr.mxu0 0.0
    %5745 = vmatpush1.msra.mxu0 %v5720
    %5746 = vmatprep.subr.mxu0 0.0
    %5747 = vmatpush1.msra.mxu0 %v5721
    %5748 = vmatprep.subr.mxu0 0.0
    %5749 = vmatpush1.msra.mxu0 %v5722
    %5750 = vmatprep.subr.mxu0 0.0
    %5751 = vmatpush1.msra.mxu0 %v5723
    %5752 = vmatprep.subr.mxu0 0.0
    %5753 = vmatpush1.msra.mxu0 %v5724
    %5754 = vmatprep.subr.mxu0 0.0
    %5755 = vmatpush1.msra.mxu0 %v5725
    %5756 = vmatprep.subr.mxu0 0.0
    %5757 = vmatpush1.msra.mxu0 %v5726
    %5758 = vmatprep.subr.mxu0 0.0
    %5759 = vmatpush1.msra.mxu0 %v5727
    %5760 = vmatprep.subr.mxu0 0.0
    %5761 = vmatpush1.msra.mxu0 %v5728
    %5762 = vmatprep.subr.mxu0 0.0
    %5763 = vmatpush1.msra.mxu0 %v5729
    %5764 = vmatprep.subr.mxu0 0.0
    %5765 = vmatpush1.msra.mxu0 %v5730
    %5766 = vmatprep.subr.mxu0 0.0
    %5767 = vmatpush1.msra.mxu0 %v5731
    %5768 = vmatprep.subr.mxu0 0.0
    %5769 = vmatpush1.msra.mxu0 %v5732
    %5770 = vmatprep.subr.mxu0 0.0
    %5771 = vmatpush1.msra.mxu0 %v5733
    %5772 = vmatprep.subr.mxu0 0.0
    %5773 = vmatpush1.msra.mxu0 %v5734
    %5774 = vmatprep.subr.mxu0 0.0
    %5775 = vmatpush1.msra.mxu0 %v5735
    %5776 = vmatprep.subr.mxu0 0.0
    %5777 = vmatpush1.msra.mxu0 0.0
    %5778 = vmatprep.subr.mxu0 0.0
    %5779 = vmatpush1.msra.mxu0 0.0
    %5780 = vmatprep.subr.mxu0 0.0
    %5781 = vmatpush1.msra.mxu0 0.0
    %5782 = vmatprep.subr.mxu0 0.0
    %5783 = vmatpush1.msra.mxu0 0.0
    %5784 = vmatprep.subr.mxu0 0.0
    %5785 = vmatpush1.msra.mxu0 0.0
    %5786 = vmatprep.subr.mxu0 0.0
    %5787 = vmatpush1.msra.mxu0 0.0
    %5788 = vmatprep.subr.mxu0 0.0
    %5789 = vmatpush1.msra.mxu0 0.0
    %5790 = vmatprep.subr.mxu0 0.0
    %5791 = vmatpush1.msra.mxu0 0.0
    %5792 = vmatprep.subr.mxu0 0.0
    %5793 = vmatpush1.msra.mxu0 0.0
    %5794 = vmatprep.subr.mxu0 0.0
    %5795 = vmatpush1.msra.mxu0 0.0
    %5796 = vmatprep.subr.mxu0 0.0
    %5797 = vmatpush1.msra.mxu0 0.0
    %5798 = vmatprep.subr.mxu0 0.0
    %5799 = vmatpush1.msra.mxu0 0.0
    %5800 = vmatprep.subr.mxu0 0.0
    %5801 = vmatpush1.msra.mxu0 0.0
    %5802 = vmatprep.subr.mxu0 0.0
    %5803 = vmatpush1.msra.mxu0 0.0
    %5804 = vmatprep.subr.mxu0 0.0
    %5805 = vmatpush1.msra.mxu0 0.0
    %5806 = vmatprep.subr.mxu0 0.0
    %5807 = vmatpush1.msra.mxu0 0.0
    %5808 = vmatprep.mubr.f32.mxu0 0.0
    %5809 = vmatmul.mubr.f32.gmra.mrb[0].mxu0 %v3965
    %v5810 = vpop.f32.mrb[0].mxu0
    %v5811 = vadd.f32 %v5742, %v5810
    %v5812 = vpop.f32.mrb[0].mxu0
    %5813 = vmatprep.mubr.f32.mxu0 0.0
    %5814 = vmatmul.mubr.f32.gmra.mrb[0].mxu0 %v3966
    %v5815 = vpop.f32.mrb[0].mxu0
    %v5816 = vadd.f32 %v5742, %v5815
    %v5817 = vpop.f32.mrb[0].mxu0
    %5818 = vmatprep.mubr.f32.mxu0 0.0
    %5819 = vmatmul.mubr.f32.gmra.mrb[0].mxu0 %v3967
    %v5820 = vpop.f32.mrb[0].mxu0
    %v5821 = vadd.f32 %v5742, %v5820
    %v5822 = vpop.f32.mrb[0].mxu0
    %5823 = vmatprep.mubr.f32.mxu0 0.0
    %5824 = vmatmul.mubr.f32.gmra.mrb[0].mxu0 %v3968
    %v5825 = vpop.f32.mrb[0].mxu0
    %v5826 = vadd.f32 %v5742, %v5825
    %v5827 = vpop.f32.mrb[0].mxu0
    %5828 = vdwg.mxu0
    %s5829 = scalar_lea.vmem %s10, 768
    %v5830 = vld [vmem:[%s5829] sm:$0xff]
    %v5831 = vld [vmem:[%s5829 + $0x8] sm:$0xff]
    %v5832 = vld [vmem:[%s5829 + $0x10] sm:$0xff]
    %v5833 = vld [vmem:[%s5829 + $0x18] sm:$0xff]
    %v5834 = vld [vmem:[%s5829 + $0x20] sm:$0xff]
    %v5835 = vld [vmem:[%s5829 + $0x28] sm:$0xff]
    %v5836 = vld [vmem:[%s5829 + $0x30] sm:$0xff]
    %v5837 = vld [vmem:[%s5829 + $0x38] sm:$0xff]
    %v5838 = vld [vmem:[%s5829 + $0x40] sm:$0xff]
    %v5839 = vld [vmem:[%s5829 + $0x48] sm:$0xff]
    %v5840 = vld [vmem:[%s5829 + $0x50] sm:$0xff]
    %v5841 = vld [vmem:[%s5829 + $0x58] sm:$0xff]
    %v5842 = vld [vmem:[%s5829 + $0x60] sm:$0xff]
    %v5843 = vld [vmem:[%s5829 + $0x68] sm:$0xff]
    %v5844 = vld [vmem:[%s5829 + $0x70] sm:$0xff]
    %v5845 = vld [vmem:[%s5829 + $0x78] sm:$0xff]
    %s5846 = scalar_lea.vmem %s11, 6
    %v5847 = vld [vmem:[%s5846] sm:$0x1]
    %v5849 = vlaneseq
    %v5850 = vshrl.u32 %v5849, 7
    %v5851 = vsub.s32 0, %v5850
    %v5852 = vrot.slane %v5847, %v5851
    %5854 = vmatprep.subr.mxu0 0.0
    %5855 = vmatpush1.msra.mxu0 %v5830
    %5856 = vmatprep.subr.mxu0 0.0
    %5857 = vmatpush1.msra.mxu0 %v5831
    %5858 = vmatprep.subr.mxu0 0.0
    %5859 = vmatpush1.msra.mxu0 %v5832
    %5860 = vmatprep.subr.mxu0 0.0
    %5861 = vmatpush1.msra.mxu0 %v5833
    %5862 = vmatprep.subr.mxu0 0.0
    %5863 = vmatpush1.msra.mxu0 %v5834
    %5864 = vmatprep.subr.mxu0 0.0
    %5865 = vmatpush1.msra.mxu0 %v5835
    %5866 = vmatprep.subr.mxu0 0.0
    %5867 = vmatpush1.msra.mxu0 %v5836
    %5868 = vmatprep.subr.mxu0 0.0
    %5869 = vmatpush1.msra.mxu0 %v5837
    %5870 = vmatprep.subr.mxu0 0.0
    %5871 = vmatpush1.msra.mxu0 %v5838
    %5872 = vmatprep.subr.mxu0 0.0
    %5873 = vmatpush1.msra.mxu0 %v5839
    %5874 = vmatprep.subr.mxu0 0.0
    %5875 = vmatpush1.msra.mxu0 %v5840
    %5876 = vmatprep.subr.mxu0 0.0
    %5877 = vmatpush1.msra.mxu0 %v5841
    %5878 = vmatprep.subr.mxu0 0.0
    %5879 = vmatpush1.msra.mxu0 %v5842
    %5880 = vmatprep.subr.mxu0 0.0
    %5881 = vmatpush1.msra.mxu0 %v5843
    %5882 = vmatprep.subr.mxu0 0.0
    %5883 = vmatpush1.msra.mxu0 %v5844
    %5884 = vmatprep.subr.mxu0 0.0
    %5885 = vmatpush1.msra.mxu0 %v5845
    %5886 = vmatprep.subr.mxu0 0.0
    %5887 = vmatpush1.msra.mxu0 0.0
    %5888 = vmatprep.subr.mxu0 0.0
    %5889 = vmatpush1.msra.mxu0 0.0
    %5890 = vmatprep.subr.mxu0 0.0
    %5891 = vmatpush1.msra.mxu0 0.0
    %5892 = vmatprep.subr.mxu0 0.0
    %5893 = vmatpush1.msra.mxu0 0.0
    %5894 = vmatprep.subr.mxu0 0.0
    %5895 = vmatpush1.msra.mxu0 0.0
    %5896 = vmatprep.subr.mxu0 0.0
    %5897 = vmatpush1.msra.mxu0 0.0
    %5898 = vmatprep.subr.mxu0 0.0
    %5899 = vmatpush1.msra.mxu0 0.0
    %5900 = vmatprep.subr.mxu0 0.0
    %5901 = vmatpush1.msra.mxu0 0.0
    %5902 = vmatprep.subr.mxu0 0.0
    %5903 = vmatpush1.msra.mxu0 0.0
    %5904 = vmatprep.subr.mxu0 0.0
    %5905 = vmatpush1.msra.mxu0 0.0
    %5906 = vmatprep.subr.mxu0 0.0
    %5907 = vmatpush1.msra.mxu0 0.0
    %5908 = vmatprep.subr.mxu0 0.0
    %5909 = vmatpush1.msra.mxu0 0.0
    %5910 = vmatprep.subr.mxu0 0.0
    %5911 = vmatpush1.msra.mxu0 0.0
    %5912 = vmatprep.subr.mxu0 0.0
    %5913 = vmatpush1.msra.mxu0 0.0
    %5914 = vmatprep.subr.mxu0 0.0
    %5915 = vmatpush1.msra.mxu0 0.0
    %5916 = vmatprep.subr.mxu0 0.0
    %5917 = vmatpush1.msra.mxu0 0.0
    %5918 = vmatprep.mubr.f32.mxu0 0.0
    %5919 = vmatmul.mubr.f32.gmra.mrb[0].mxu0 %v3965
    %v5920 = vpop.f32.mrb[0].mxu0
    %v5921 = vadd.f32 %v5852, %v5920
    %v5922 = vpop.f32.mrb[0].mxu0
    %5923 = vmatprep.mubr.f32.mxu0 0.0
    %5924 = vmatmul.mubr.f32.gmra.mrb[0].mxu0 %v3966
    %v5925 = vpop.f32.mrb[0].mxu0
    %v5926 = vadd.f32 %v5852, %v5925
    %v5927 = vpop.f32.mrb[0].mxu0
    %5928 = vmatprep.mubr.f32.mxu0 0.0
    %5929 = vmatmul.mubr.f32.gmra.mrb[0].mxu0 %v3967
    %v5930 = vpop.f32.mrb[0].mxu0
    %v5931 = vadd.f32 %v5852, %v5930
    %v5932 = vpop.f32.mrb[0].mxu0
    %5933 = vmatprep.mubr.f32.mxu0 0.0
    %5934 = vmatmul.mubr.f32.gmra.mrb[0].mxu0 %v3968
    %v5935 = vpop.f32.mrb[0].mxu0
    %v5936 = vadd.f32 %v5852, %v5935
    %v5937 = vpop.f32.mrb[0].mxu0
    %5938 = vdwg.mxu0
    %v5940 = vsel %vm582, %v5701, 0
    %v5943 = vsel %vm582, %v5706, 0
    %v5946 = vsel %vm582, %v5811, 0
    %v5949 = vsel %vm582, %v5816, 0
    %5951 = vmatprep.subr.mxu0 0.0
    %5952 = vmatpush1.xpose.msra.mxu0 %v5946
    %5953 = vmatprep.subr.mxu0 0.0
    %5954 = vmatpush1.xpose.msra.mxu0 %v5949
    %5955 = vmatprep.subr.mxu0 0.0
    %5956 = vmatpush1.xpose.msra.mxu0 0.0
    %5957 = vmatprep.subr.mxu0 0.0
    %5958 = vmatpush1.xpose.msra.mxu0 0.0
    %5959 = vmatprep.subr.mxu0 0.0
    %5960 = vmatpush1.xpose.msra.mxu0 0.0
    %5961 = vmatprep.subr.mxu0 0.0
    %5962 = vmatpush1.xpose.msra.mxu0 0.0
    %5963 = vmatprep.subr.mxu0 0.0
    %5964 = vmatpush1.xpose.msra.mxu0 0.0
    %5965 = vmatprep.subr.mxu0 0.0
    %5966 = vmatpush1.xpose.msra.mxu0 0.0
    %5967 = vmatprep.subr.mxu0 0.0
    %5968 = vmatpush1.xpose.msra.mxu0 0.0
    %5969 = vmatprep.subr.mxu0 0.0
    %5970 = vmatpush1.xpose.msra.mxu0 0.0
    %5971 = vmatprep.subr.mxu0 0.0
    %5972 = vmatpush1.xpose.msra.mxu0 0.0
    %5973 = vmatprep.subr.mxu0 0.0
    %5974 = vmatpush1.xpose.msra.mxu0 0.0
    %5975 = vmatprep.subr.mxu0 0.0
    %5976 = vmatpush1.xpose.msra.mxu0 0.0
    %5977 = vmatprep.subr.mxu0 0.0
    %5978 = vmatpush1.xpose.msra.mxu0 0.0
    %5979 = vmatprep.subr.mxu0 0.0
    %5980 = vmatpush1.xpose.msra.mxu0 0.0
    %5981 = vmatprep.subr.mxu0 0.0
    %5982 = vmatpush1.xpose.msra.mxu0 0.0
    %5983 = vmatprep.subr.mxu0 0.0
    %5984 = vmatpush1.xpose.msra.mxu0 0.0
    %5985 = vmatprep.subr.mxu0 0.0
    %5986 = vmatpush1.xpose.msra.mxu0 0.0
    %5987 = vmatprep.subr.mxu0 0.0
    %5988 = vmatpush1.xpose.msra.mxu0 0.0
    %5989 = vmatprep.subr.mxu0 0.0
    %5990 = vmatpush1.xpose.msra.mxu0 0.0
    %5991 = vmatprep.subr.mxu0 0.0
    %5992 = vmatpush1.xpose.msra.mxu0 0.0
    %5993 = vmatprep.subr.mxu0 0.0
    %5994 = vmatpush1.xpose.msra.mxu0 0.0
    %5995 = vmatprep.subr.mxu0 0.0
    %5996 = vmatpush1.xpose.msra.mxu0 0.0
    %5997 = vmatprep.subr.mxu0 0.0
    %5998 = vmatpush1.xpose.msra.mxu0 0.0
    %5999 = vmatprep.subr.mxu0 0.0
    %6000 = vmatpush1.xpose.msra.mxu0 0.0
    %6001 = vmatprep.subr.mxu0 0.0
    %6002 = vmatpush1.xpose.msra.mxu0 0.0
    %6003 = vmatprep.subr.mxu0 0.0
    %6004 = vmatpush1.xpose.msra.mxu0 0.0
    %6005 = vmatprep.subr.mxu0 0.0
    %6006 = vmatpush1.xpose.msra.mxu0 0.0
    %6007 = vmatprep.subr.mxu0 0.0
    %6008 = vmatpush1.xpose.msra.mxu0 0.0
    %6009 = vmatprep.subr.mxu0 0.0
    %6010 = vmatpush1.xpose.msra.mxu0 0.0
    %6011 = vmatprep.subr.mxu0 0.0
    %6012 = vmatpush1.xpose.msra.mxu0 0.0
    %6013 = vmatprep.subr.mxu0 0.0
    %6014 = vmatpush1.xpose.msra.mxu0 0.0
    %6015 = vmatprep.mubr.f32.mxu0 0.0
    %6016 = vmatmul.mubr.f32.gmra.mrb[0].mxu0 %v5940
    %v6017 = vpop.f32.mrb[0].mxu0
    %v6018 = vadd.f32 0.0, %v6017
    %v6019 = vpop.f32.mrb[0].mxu0
    %6020 = vmatprep.mubr.f32.mxu0 0.0
    %6021 = vmatmul.mubr.f32.gmra.mrb[0].mxu0 %v5943
    %v6022 = vpop.f32.mrb[0].mxu0
    %v6023 = vadd.f32 0.0, %v6022
    %v6024 = vpop.f32.mrb[0].mxu0
    %6025 = vdwg.mxu0
    %v6027 = vsel %vm582, %v5711, 0
    %v6030 = vsel %vm582, %v5716, 0
    %v6033 = vsel %vm582, %v5821, 0
    %v6036 = vsel %vm582, %v5826, 0
    %6038 = vmatprep.subr.mxu0 0.0
    %6039 = vmatpush1.xpose.msra.mxu0 %v6033
    %6040 = vmatprep.subr.mxu0 0.0
    %6041 = vmatpush1.xpose.msra.mxu0 %v6036
    %6042 = vmatprep.subr.mxu0 0.0
    %6043 = vmatpush1.xpose.msra.mxu0 0.0
    %6044 = vmatprep.subr.mxu0 0.0
    %6045 = vmatpush1.xpose.msra.mxu0 0.0
    %6046 = vmatprep.subr.mxu0 0.0
    %6047 = vmatpush1.xpose.msra.mxu0 0.0
    %6048 = vmatprep.subr.mxu0 0.0
    %6049 = vmatpush1.xpose.msra.mxu0 0.0
    %6050 = vmatprep.subr.mxu0 0.0
    %6051 = vmatpush1.xpose.msra.mxu0 0.0
    %6052 = vmatprep.subr.mxu0 0.0
    %6053 = vmatpush1.xpose.msra.mxu0 0.0
    %6054 = vmatprep.subr.mxu0 0.0
    %6055 = vmatpush1.xpose.msra.mxu0 0.0
    %6056 = vmatprep.subr.mxu0 0.0
    %6057 = vmatpush1.xpose.msra.mxu0 0.0
    %6058 = vmatprep.subr.mxu0 0.0
    %6059 = vmatpush1.xpose.msra.mxu0 0.0
    %6060 = vmatprep.subr.mxu0 0.0
    %6061 = vmatpush1.xpose.msra.mxu0 0.0
    %6062 = vmatprep.subr.mxu0 0.0
    %6063 = vmatpush1.xpose.msra.mxu0 0.0
    %6064 = vmatprep.subr.mxu0 0.0
    %6065 = vmatpush1.xpose.msra.mxu0 0.0
    %6066 = vmatprep.subr.mxu0 0.0
    %6067 = vmatpush1.xpose.msra.mxu0 0.0
    %6068 = vmatprep.subr.mxu0 0.0
    %6069 = vmatpush1.xpose.msra.mxu0 0.0
    %6070 = vmatprep.subr.mxu0 0.0
    %6071 = vmatpush1.xpose.msra.mxu0 0.0
    %6072 = vmatprep.subr.mxu0 0.0
    %6073 = vmatpush1.xpose.msra.mxu0 0.0
    %6074 = vmatprep.subr.mxu0 0.0
    %6075 = vmatpush1.xpose.msra.mxu0 0.0
    %6076 = vmatprep.subr.mxu0 0.0
    %6077 = vmatpush1.xpose.msra.mxu0 0.0
    %6078 = vmatprep.subr.mxu0 0.0
    %6079 = vmatpush1.xpose.msra.mxu0 0.0
    %6080 = vmatprep.subr.mxu0 0.0
    %6081 = vmatpush1.xpose.msra.mxu0 0.0
    %6082 = vmatprep.subr.mxu0 0.0
    %6083 = vmatpush1.xpose.msra.mxu0 0.0
    %6084 = vmatprep.subr.mxu0 0.0
    %6085 = vmatpush1.xpose.msra.mxu0 0.0
    %6086 = vmatprep.subr.mxu0 0.0
    %6087 = vmatpush1.xpose.msra.mxu0 0.0
    %6088 = vmatprep.subr.mxu0 0.0
    %6089 = vmatpush1.xpose.msra.mxu0 0.0
    %6090 = vmatprep.subr.mxu0 0.0
    %6091 = vmatpush1.xpose.msra.mxu0 0.0
    %6092 = vmatprep.subr.mxu0 0.0
    %6093 = vmatpush1.xpose.msra.mxu0 0.0
    %6094 = vmatprep.subr.mxu0 0.0
    %6095 = vmatpush1.xpose.msra.mxu0 0.0
    %6096 = vmatprep.subr.mxu0 0.0
    %6097 = vmatpush1.xpose.msra.mxu0 0.0
    %6098 = vmatprep.subr.mxu0 0.0
    %6099 = vmatpush1.xpose.msra.mxu0 0.0
    %6100 = vmatprep.subr.mxu0 0.0
    %6101 = vmatpush1.xpose.msra.mxu0 0.0
    %6102 = vmatprep.mubr.f32.mxu0 0.0
    %6103 = vmatmul.mubr.f32.gmra.mrb[0].mxu0 %v6027
    %v6104 = vpop.f32.mrb[0].mxu0
    %v6105 = vadd.f32 0.0, %v6104
    %v6106 = vpop.f32.mrb[0].mxu0
    %6107 = vmatprep.mubr.f32.mxu0 0.0
    %6108 = vmatmul.mubr.f32.gmra.mrb[0].mxu0 %v6030
    %v6109 = vpop.f32.mrb[0].mxu0
    %v6110 = vadd.f32 0.0, %v6109
    %v6111 = vpop.f32.mrb[0].mxu0
    %6112 = vdwg.mxu0
    %v6113 = vmul.f32 %v6018, 0.17677669
    %v6114 = vmul.f32 %v6023, 0.17677669
    %v6115 = vmul.f32 %v6105, 0.17677669
    %v6116 = vmul.f32 %v6110, 0.17677669
    %v6117 = vadd.f32 %v6113, %v766
    %v6118 = vadd.f32 %v6114, %v766
    %v6119 = vadd.f32 %v6115, %v770
    %v6120 = vadd.f32 %v6116, %v770
    %v6121 = vsel %vm777, %v6117, -inf
    %6122 = vmax.xlane.f32.xlu0 %v6121
    %v6123 = vpop.xlane.xlu0 %6122
    %v6124 = vsel %vm777, %v6118, -inf
    %6125 = vmax.xlane.f32.xlu0 %v6124
    %v6126 = vpop.xlane.xlu0 %6125
    %v6127 = vsel %vm777, %v6119, -inf
    %6128 = vmax.xlane.f32.xlu0 %v6127
    %v6129 = vpop.xlane.xlu0 %6128
    %v6130 = vsel %vm777, %v6120, -inf
    %6131 = vmax.xlane.f32.xlu0 %v6130
    %v6132 = vpop.xlane.xlu0 %6131
    %v6133 = vsub.f32 %v6117, %v6123
    %v6134 = vsub.f32 %v6118, %v6126
    %v6135 = vsub.f32 %v6119, %v6129
    %v6136 = vsub.f32 %v6120, %v6132
    %v6137 = vmul.f32 %v6133, 1.442695
    %v6138 = vpow.pop %v6137
    %v6139 = vmul.f32 %v6134, 1.442695
    %v6140 = vpow.pop %v6139
    %v6141 = vmul.f32 %v6135, 1.442695
    %v6142 = vpow.pop %v6141
    %v6143 = vmul.f32 %v6136, 1.442695
    %v6144 = vpow.pop %v6143
    %v6145 = vsel %vm777, %v6138, 0.0
    %6146 = vadd.xlane.f32.xlu0 %v6145
    %v6147 = vpop.xlane.xlu0 %6146
    %v6148 = vsel %vm777, %v6140, 0.0
    %6149 = vadd.xlane.f32.xlu0 %v6148
    %v6150 = vpop.xlane.xlu0 %6149
    %v6151 = vsel %vm777, %v6142, 0.0
    %6152 = vadd.xlane.f32.xlu0 %v6151
    %v6153 = vpop.xlane.xlu0 %6152
    %v6154 = vsel %vm777, %v6144, 0.0
    %6155 = vadd.xlane.f32.xlu0 %v6154
    %v6156 = vpop.xlane.xlu0 %6155
    %v6157 = vrcp.pop %v6147
    %v6158 = vmul.f32 %v6138, %v6157
    %v6159 = vrcp.pop %v6150
    %v6160 = vmul.f32 %v6140, %v6159
    %v6161 = vrcp.pop %v6153
    %v6162 = vmul.f32 %v6142, %v6161
    %v6163 = vrcp.pop %v6156
    %v6164 = vmul.f32 %v6144, %v6163
    %v6166 = vsel %vm777, %v6158, 0
    %v6169 = vsel %vm777, %v6160, 0
    %6171 = vmatprep.subr.mxu0 0.0
    %6172 = vmatpush1.msra.mxu0 %v5921
    %6173 = vmatprep.subr.mxu0 0.0
    %6174 = vmatpush1.msra.mxu0 %v5926
    %6175 = vmatprep.subr.mxu0 0.0
    %6176 = vmatpush1.msra.mxu0 0.0
    %6177 = vmatprep.subr.mxu0 0.0
    %6178 = vmatpush1.msra.mxu0 0.0
    %6179 = vmatprep.subr.mxu0 0.0
    %6180 = vmatpush1.msra.mxu0 0.0
    %6181 = vmatprep.subr.mxu0 0.0
    %6182 = vmatpush1.msra.mxu0 0.0
    %6183 = vmatprep.subr.mxu0 0.0
    %6184 = vmatpush1.msra.mxu0 0.0
    %6185 = vmatprep.subr.mxu0 0.0
    %6186 = vmatpush1.msra.mxu0 0.0
    %6187 = vmatprep.subr.mxu0 0.0
    %6188 = vmatpush1.msra.mxu0 0.0
    %6189 = vmatprep.subr.mxu0 0.0
    %6190 = vmatpush1.msra.mxu0 0.0
    %6191 = vmatprep.subr.mxu0 0.0
    %6192 = vmatpush1.msra.mxu0 0.0
    %6193 = vmatprep.subr.mxu0 0.0
    %6194 = vmatpush1.msra.mxu0 0.0
    %6195 = vmatprep.subr.mxu0 0.0
    %6196 = vmatpush1.msra.mxu0 0.0
    %6197 = vmatprep.subr.mxu0 0.0
    %6198 = vmatpush1.msra.mxu0 0.0
    %6199 = vmatprep.subr.mxu0 0.0
    %6200 = vmatpush1.msra.mxu0 0.0
    %6201 = vmatprep.subr.mxu0 0.0
    %6202 = vmatpush1.msra.mxu0 0.0
    %6203 = vmatprep.subr.mxu0 0.0
    %6204 = vmatpush1.msra.mxu0 0.0
    %6205 = vmatprep.subr.mxu0 0.0
    %6206 = vmatpush1.msra.mxu0 0.0
    %6207 = vmatprep.subr.mxu0 0.0
    %6208 = vmatpush1.msra.mxu0 0.0
    %6209 = vmatprep.subr.mxu0 0.0
    %6210 = vmatpush1.msra.mxu0 0.0
    %6211 = vmatprep.subr.mxu0 0.0
    %6212 = vmatpush1.msra.mxu0 0.0
    %6213 = vmatprep.subr.mxu0 0.0
    %6214 = vmatpush1.msra.mxu0 0.0
    %6215 = vmatprep.subr.mxu0 0.0
    %6216 = vmatpush1.msra.mxu0 0.0
    %6217 = vmatprep.subr.mxu0 0.0
    %6218 = vmatpush1.msra.mxu0 0.0
    %6219 = vmatprep.subr.mxu0 0.0
    %6220 = vmatpush1.msra.mxu0 0.0
    %6221 = vmatprep.subr.mxu0 0.0
    %6222 = vmatpush1.msra.mxu0 0.0
    %6223 = vmatprep.subr.mxu0 0.0
    %6224 = vmatpush1.msra.mxu0 0.0
    %6225 = vmatprep.subr.mxu0 0.0
    %6226 = vmatpush1.msra.mxu0 0.0
    %6227 = vmatprep.subr.mxu0 0.0
    %6228 = vmatpush1.msra.mxu0 0.0
    %6229 = vmatprep.subr.mxu0 0.0
    %6230 = vmatpush1.msra.mxu0 0.0
    %6231 = vmatprep.subr.mxu0 0.0
    %6232 = vmatpush1.msra.mxu0 0.0
    %6233 = vmatprep.subr.mxu0 0.0
    %6234 = vmatpush1.msra.mxu0 0.0
    %6235 = vmatprep.mubr.f32.mxu0 0.0
    %6236 = vmatmul.mubr.f32.gmra.mrb[0].mxu0 %v6166
    %v6237 = vpop.f32.mrb[0].mxu0
    %v6238 = vadd.f32 0.0, %v6237
    %v6239 = vpop.f32.mrb[0].mxu0
    %6240 = vmatprep.mubr.f32.mxu0 0.0
    %6241 = vmatmul.mubr.f32.gmra.mrb[0].mxu0 %v6169
    %v6242 = vpop.f32.mrb[0].mxu0
    %v6243 = vadd.f32 0.0, %v6242
    %v6244 = vpop.f32.mrb[0].mxu0
    %6245 = vdwg.mxu0
    %v6247 = vsel %vm777, %v6162, 0
    %v6250 = vsel %vm777, %v6164, 0
    %6252 = vmatprep.subr.mxu0 0.0
    %6253 = vmatpush1.msra.mxu0 %v5931
    %6254 = vmatprep.subr.mxu0 0.0
    %6255 = vmatpush1.msra.mxu0 %v5936
    %6256 = vmatprep.subr.mxu0 0.0
    %6257 = vmatpush1.msra.mxu0 0.0
    %6258 = vmatprep.subr.mxu0 0.0
    %6259 = vmatpush1.msra.mxu0 0.0
    %6260 = vmatprep.subr.mxu0 0.0
    %6261 = vmatpush1.msra.mxu0 0.0
    %6262 = vmatprep.subr.mxu0 0.0
    %6263 = vmatpush1.msra.mxu0 0.0
    %6264 = vmatprep.subr.mxu0 0.0
    %6265 = vmatpush1.msra.mxu0 0.0
    %6266 = vmatprep.subr.mxu0 0.0
    %6267 = vmatpush1.msra.mxu0 0.0
    %6268 = vmatprep.subr.mxu0 0.0
    %6269 = vmatpush1.msra.mxu0 0.0
    %6270 = vmatprep.subr.mxu0 0.0
    %6271 = vmatpush1.msra.mxu0 0.0
    %6272 = vmatprep.subr.mxu0 0.0
    %6273 = vmatpush1.msra.mxu0 0.0
    %6274 = vmatprep.subr.mxu0 0.0
    %6275 = vmatpush1.msra.mxu0 0.0
    %6276 = vmatprep.subr.mxu0 0.0
    %6277 = vmatpush1.msra.mxu0 0.0
    %6278 = vmatprep.subr.mxu0 0.0
    %6279 = vmatpush1.msra.mxu0 0.0
    %6280 = vmatprep.subr.mxu0 0.0
    %6281 = vmatpush1.msra.mxu0 0.0
    %6282 = vmatprep.subr.mxu0 0.0
    %6283 = vmatpush1.msra.mxu0 0.0
    %6284 = vmatprep.subr.mxu0 0.0
    %6285 = vmatpush1.msra.mxu0 0.0
    %6286 = vmatprep.subr.mxu0 0.0
    %6287 = vmatpush1.msra.mxu0 0.0
    %6288 = vmatprep.subr.mxu0 0.0
    %6289 = vmatpush1.msra.mxu0 0.0
    %6290 = vmatprep.subr.mxu0 0.0
    %6291 = vmatpush1.msra.mxu0 0.0
    %6292 = vmatprep.subr.mxu0 0.0
    %6293 = vmatpush1.msra.mxu0 0.0
    %6294 = vmatprep.subr.mxu0 0.0
    %6295 = vmatpush1.msra.mxu0 0.0
    %6296 = vmatprep.subr.mxu0 0.0
    %6297 = vmatpush1.msra.mxu0 0.0
    %6298 = vmatprep.subr.mxu0 0.0
    %6299 = vmatpush1.msra.mxu0 0.0
    %6300 = vmatprep.subr.mxu0 0.0
    %6301 = vmatpush1.msra.mxu0 0.0
    %6302 = vmatprep.subr.mxu0 0.0
    %6303 = vmatpush1.msra.mxu0 0.0
    %6304 = vmatprep.subr.mxu0 0.0
    %6305 = vmatpush1.msra.mxu0 0.0
    %6306 = vmatprep.subr.mxu0 0.0
    %6307 = vmatpush1.msra.mxu0 0.0
    %6308 = vmatprep.subr.mxu0 0.0
    %6309 = vmatpush1.msra.mxu0 0.0
    %6310 = vmatprep.subr.mxu0 0.0
    %6311 = vmatpush1.msra.mxu0 0.0
    %6312 = vmatprep.subr.mxu0 0.0
    %6313 = vmatpush1.msra.mxu0 0.0
    %6314 = vmatprep.subr.mxu0 0.0
    %6315 = vmatpush1.msra.mxu0 0.0
    %6316 = vmatprep.mubr.f32.mxu0 0.0
    %6317 = vmatmul.mubr.f32.gmra.mrb[0].mxu0 %v6247
    %v6318 = vpop.f32.mrb[0].mxu0
    %v6319 = vadd.f32 0.0, %v6318
    %v6320 = vpop.f32.mrb[0].mxu0
    %6321 = vmatprep.mubr.f32.mxu0 0.0
    %6322 = vmatmul.mubr.f32.gmra.mrb[0].mxu0 %v6250
    %v6323 = vpop.f32.mrb[0].mxu0
    %v6324 = vadd.f32 0.0, %v6323
    %v6325 = vpop.f32.mrb[0].mxu0
    %6326 = vdwg.mxu0
    %s6327 = scalar_lea.vmem %s12, 192
    %v6328 = vld [vmem:[%s6327] sm:$0xff]
    %v6329 = vld [vmem:[%s6327 + $0x8] sm:$0xff]
    %v6330 = vld [vmem:[%s6327 + $0x10] sm:$0xff]
    %v6331 = vld [vmem:[%s6327 + $0x18] sm:$0xff]
    %v6333 = vsel %vm582, %v6238, 0
    %v6336 = vsel %vm582, %v6243, 0
    %v6339 = vsel %vm582, %v6319, 0
    %v6342 = vsel %vm582, %v6324, 0
    %6344 = vmatprep.subr.mxu0 0.0
    %6345 = vmatpush1.msra.mxu0 %v6328
    %6346 = vmatprep.subr.mxu0 0.0
    %6347 = vmatpush1.msra.mxu0 %v6329
    %6348 = vmatprep.subr.mxu0 0.0
    %6349 = vmatpush1.msra.mxu0 %v6330
    %6350 = vmatprep.subr.mxu0 0.0
    %6351 = vmatpush1.msra.mxu0 %v6331
    %6352 = vmatprep.subr.mxu0 0.0
    %6353 = vmatpush1.msra.mxu0 0.0
    %6354 = vmatprep.subr.mxu0 0.0
    %6355 = vmatpush1.msra.mxu0 0.0
    %6356 = vmatprep.subr.mxu0 0.0
    %6357 = vmatpush1.msra.mxu0 0.0
    %6358 = vmatprep.subr.mxu0 0.0
    %6359 = vmatpush1.msra.mxu0 0.0
    %6360 = vmatprep.subr.mxu0 0.0
    %6361 = vmatpush1.msra.mxu0 0.0
    %6362 = vmatprep.subr.mxu0 0.0
    %6363 = vmatpush1.msra.mxu0 0.0
    %6364 = vmatprep.subr.mxu0 0.0
    %6365 = vmatpush1.msra.mxu0 0.0
    %6366 = vmatprep.subr.mxu0 0.0
    %6367 = vmatpush1.msra.mxu0 0.0
    %6368 = vmatprep.subr.mxu0 0.0
    %6369 = vmatpush1.msra.mxu0 0.0
    %6370 = vmatprep.subr.mxu0 0.0
    %6371 = vmatpush1.msra.mxu0 0.0
    %6372 = vmatprep.subr.mxu0 0.0
    %6373 = vmatpush1.msra.mxu0 0.0
    %6374 = vmatprep.subr.mxu0 0.0
    %6375 = vmatpush1.msra.mxu0 0.0
    %6376 = vmatprep.subr.mxu0 0.0
    %6377 = vmatpush1.msra.mxu0 0.0
    %6378 = vmatprep.subr.mxu0 0.0
    %6379 = vmatpush1.msra.mxu0 0.0
    %6380 = vmatprep.subr.mxu0 0.0
    %6381 = vmatpush1.msra.mxu0 0.0
    %6382 = vmatprep.subr.mxu0 0.0
    %6383 = vmatpush1.msra.mxu0 0.0
    %6384 = vmatprep.subr.mxu0 0.0
    %6385 = vmatpush1.msra.mxu0 0.0
    %6386 = vmatprep.subr.mxu0 0.0
    %6387 = vmatpush1.msra.mxu0 0.0
    %6388 = vmatprep.subr.mxu0 0.0
    %6389 = vmatpush1.msra.mxu0 0.0
    %6390 = vmatprep.subr.mxu0 0.0
    %6391 = vmatpush1.msra.mxu0 0.0
    %6392 = vmatprep.subr.mxu0 0.0
    %6393 = vmatpush1.msra.mxu0 0.0
    %6394 = vmatprep.subr.mxu0 0.0
    %6395 = vmatpush1.msra.mxu0 0.0
    %6396 = vmatprep.subr.mxu0 0.0
    %6397 = vmatpush1.msra.mxu0 0.0
    %6398 = vmatprep.subr.mxu0 0.0
    %6399 = vmatpush1.msra.mxu0 0.0
    %6400 = vmatprep.subr.mxu0 0.0
    %6401 = vmatpush1.msra.mxu0 0.0
    %6402 = vmatprep.subr.mxu0 0.0
    %6403 = vmatpush1.msra.mxu0 0.0
    %6404 = vmatprep.subr.mxu0 0.0
    %6405 = vmatpush1.msra.mxu0 0.0
    %6406 = vmatprep.subr.mxu0 0.0
    %6407 = vmatpush1.msra.mxu0 0.0
    %6408 = vmatprep.mubr.f32.mxu0 0.0
    %6409 = vmatmul.mubr.f32.gmra.mrb[0].mxu0 %v6333
    %v6410 = vpop.f32.mrb[0].mxu0
    %v6411 = vadd.f32 0.0, %v6410
    %v6412 = vpop.f32.mrb[0].mxu0
    %6413 = vmatprep.mubr.f32.mxu0 0.0
    %6414 = vmatmul.mubr.f32.gmra.mrb[0].mxu0 %v6336
    %v6415 = vpop.f32.mrb[0].mxu0
    %v6416 = vadd.f32 0.0, %v6415
    %v6417 = vpop.f32.mrb[0].mxu0
    %6418 = vmatprep.mubr.f32.mxu0 0.0
    %6419 = vmatmul.mubr.f32.gmra.mrb[0].mxu0 %v6339
    %v6420 = vpop.f32.mrb[0].mxu0
    %v6421 = vadd.f32 0.0, %v6420
    %v6422 = vpop.f32.mrb[0].mxu0
    %6423 = vmatprep.mubr.f32.mxu0 0.0
    %6424 = vmatmul.mubr.f32.gmra.mrb[0].mxu0 %v6342
    %v6425 = vpop.f32.mrb[0].mxu0
    %v6426 = vadd.f32 0.0, %v6425
    %v6427 = vpop.f32.mrb[0].mxu0
    %6428 = vdwg.mxu0
    %v6429 = vadd.f32 %v5591, %v6411
    %v6430 = vadd.f32 %v5596, %v6416
    %v6431 = vadd.f32 %v5601, %v6421
    %v6432 = vadd.f32 %v5606, %v6426
    %s6433 = scalar_lea.vmem %s6, 896
    %v6434 = vld [vmem:[%s6433] sm:$0xff]
    %v6435 = vld [vmem:[%s6433 + $0x8] sm:$0xff]
    %v6436 = vld [vmem:[%s6433 + $0x10] sm:$0xff]
    %v6437 = vld [vmem:[%s6433 + $0x18] sm:$0xff]
    %v6438 = vld [vmem:[%s6433 + $0x20] sm:$0xff]
    %v6439 = vld [vmem:[%s6433 + $0x28] sm:$0xff]
    %v6440 = vld [vmem:[%s6433 + $0x30] sm:$0xff]
    %v6441 = vld [vmem:[%s6433 + $0x38] sm:$0xff]
    %v6442 = vld [vmem:[%s6433 + $0x40] sm:$0xff]
    %v6443 = vld [vmem:[%s6433 + $0x48] sm:$0xff]
    %v6444 = vld [vmem:[%s6433 + $0x50] sm:$0xff]
    %v6445 = vld [vmem:[%s6433 + $0x58] sm:$0xff]
    %v6446 = vld [vmem:[%s6433 + $0x60] sm:$0xff]
    %v6447 = vld [vmem:[%s6433 + $0x68] sm:$0xff]
    %v6448 = vld [vmem:[%s6433 + $0x70] sm:$0xff]
    %v6449 = vld [vmem:[%s6433 + $0x78] sm:$0xff]
    %s6450 = scalar_lea.vmem %s7, 7
    %v6451 = vld [vmem:[%s6450] sm:$0x1]
    %v6453 = vlaneseq
    %v6454 = vshrl.u32 %v6453, 7
    %v6455 = vsub.s32 0, %v6454
    %v6456 = vrot.slane %v6451, %v6455
    %6458 = vmatprep.subr.mxu0 0.0
    %6459 = vmatpush1.msra.mxu0 %v6434
    %6460 = vmatprep.subr.mxu0 0.0
    %6461 = vmatpush1.msra.mxu0 %v6435
    %6462 = vmatprep.subr.mxu0 0.0
    %6463 = vmatpush1.msra.mxu0 %v6436
    %6464 = vmatprep.subr.mxu0 0.0
    %6465 = vmatpush1.msra.mxu0 %v6437
    %6466 = vmatprep.subr.mxu0 0.0
    %6467 = vmatpush1.msra.mxu0 %v6438
    %6468 = vmatprep.subr.mxu0 0.0
    %6469 = vmatpush1.msra.mxu0 %v6439
    %6470 = vmatprep.subr.mxu0 0.0
    %6471 = vmatpush1.msra.mxu0 %v6440
    %6472 = vmatprep.subr.mxu0 0.0
    %6473 = vmatpush1.msra.mxu0 %v6441
    %6474 = vmatprep.subr.mxu0 0.0
    %6475 = vmatpush1.msra.mxu0 %v6442
    %6476 = vmatprep.subr.mxu0 0.0
    %6477 = vmatpush1.msra.mxu0 %v6443
    %6478 = vmatprep.subr.mxu0 0.0
    %6479 = vmatpush1.msra.mxu0 %v6444
    %6480 = vmatprep.subr.mxu0 0.0
    %6481 = vmatpush1.msra.mxu0 %v6445
    %6482 = vmatprep.subr.mxu0 0.0
    %6483 = vmatpush1.msra.mxu0 %v6446
    %6484 = vmatprep.subr.mxu0 0.0
    %6485 = vmatpush1.msra.mxu0 %v6447
    %6486 = vmatprep.subr.mxu0 0.0
    %6487 = vmatpush1.msra.mxu0 %v6448
    %6488 = vmatprep.subr.mxu0 0.0
    %6489 = vmatpush1.msra.mxu0 %v6449
    %6490 = vmatprep.subr.mxu0 0.0
    %6491 = vmatpush1.msra.mxu0 0.0
    %6492 = vmatprep.subr.mxu0 0.0
    %6493 = vmatpush1.msra.mxu0 0.0
    %6494 = vmatprep.subr.mxu0 0.0
    %6495 = vmatpush1.msra.mxu0 0.0
    %6496 = vmatprep.subr.mxu0 0.0
    %6497 = vmatpush1.msra.mxu0 0.0
    %6498 = vmatprep.subr.mxu0 0.0
    %6499 = vmatpush1.msra.mxu0 0.0
    %6500 = vmatprep.subr.mxu0 0.0
    %6501 = vmatpush1.msra.mxu0 0.0
    %6502 = vmatprep.subr.mxu0 0.0
    %6503 = vmatpush1.msra.mxu0 0.0
    %6504 = vmatprep.subr.mxu0 0.0
    %6505 = vmatpush1.msra.mxu0 0.0
    %6506 = vmatprep.subr.mxu0 0.0
    %6507 = vmatpush1.msra.mxu0 0.0
    %6508 = vmatprep.subr.mxu0 0.0
    %6509 = vmatpush1.msra.mxu0 0.0
    %6510 = vmatprep.subr.mxu0 0.0
    %6511 = vmatpush1.msra.mxu0 0.0
    %6512 = vmatprep.subr.mxu0 0.0
    %6513 = vmatpush1.msra.mxu0 0.0
    %6514 = vmatprep.subr.mxu0 0.0
    %6515 = vmatpush1.msra.mxu0 0.0
    %6516 = vmatprep.subr.mxu0 0.0
    %6517 = vmatpush1.msra.mxu0 0.0
    %6518 = vmatprep.subr.mxu0 0.0
    %6519 = vmatpush1.msra.mxu0 0.0
    %6520 = vmatprep.subr.mxu0 0.0
    %6521 = vmatpush1.msra.mxu0 0.0
    %6522 = vmatprep.mubr.f32.mxu0 0.0
    %6523 = vmatmul.mubr.f32.gmra.mrb[0].mxu0 %v3965
    %v6524 = vpop.f32.mrb[0].mxu0
    %v6525 = vadd.f32 %v6456, %v6524
    %v6526 = vpop.f32.mrb[0].mxu0
    %6527 = vmatprep.mubr.f32.mxu0 0.0
    %6528 = vmatmul.mubr.f32.gmra.mrb[0].mxu0 %v3966
    %v6529 = vpop.f32.mrb[0].mxu0
    %v6530 = vadd.f32 %v6456, %v6529
    %v6531 = vpop.f32.mrb[0].mxu0
    %6532 = vmatprep.mubr.f32.mxu0 0.0
    %6533 = vmatmul.mubr.f32.gmra.mrb[0].mxu0 %v3967
    %v6534 = vpop.f32.mrb[0].mxu0
    %v6535 = vadd.f32 %v6456, %v6534
    %v6536 = vpop.f32.mrb[0].mxu0
    %6537 = vmatprep.mubr.f32.mxu0 0.0
    %6538 = vmatmul.mubr.f32.gmra.mrb[0].mxu0 %v3968
    %v6539 = vpop.f32.mrb[0].mxu0
    %v6540 = vadd.f32 %v6456, %v6539
    %v6541 = vpop.f32.mrb[0].mxu0
    %6542 = vdwg.mxu0
    %s6543 = scalar_lea.vmem %s8, 896
    %v6544 = vld [vmem:[%s6543] sm:$0xff]
    %v6545 = vld [vmem:[%s6543 + $0x8] sm:$0xff]
    %v6546 = vld [vmem:[%s6543 + $0x10] sm:$0xff]
    %v6547 = vld [vmem:[%s6543 + $0x18] sm:$0xff]
    %v6548 = vld [vmem:[%s6543 + $0x20] sm:$0xff]
    %v6549 = vld [vmem:[%s6543 + $0x28] sm:$0xff]
    %v6550 = vld [vmem:[%s6543 + $0x30] sm:$0xff]
    %v6551 = vld [vmem:[%s6543 + $0x38] sm:$0xff]
    %v6552 = vld [vmem:[%s6543 + $0x40] sm:$0xff]
    %v6553 = vld [vmem:[%s6543 + $0x48] sm:$0xff]
    %v6554 = vld [vmem:[%s6543 + $0x50] sm:$0xff]
    %v6555 = vld [vmem:[%s6543 + $0x58] sm:$0xff]
    %v6556 = vld [vmem:[%s6543 + $0x60] sm:$0xff]
    %v6557 = vld [vmem:[%s6543 + $0x68] sm:$0xff]
    %v6558 = vld [vmem:[%s6543 + $0x70] sm:$0xff]
    %v6559 = vld [vmem:[%s6543 + $0x78] sm:$0xff]
    %s6560 = scalar_lea.vmem %s9, 7
    %v6561 = vld [vmem:[%s6560] sm:$0x1]
    %v6563 = vlaneseq
    %v6564 = vshrl.u32 %v6563, 7
    %v6565 = vsub.s32 0, %v6564
    %v6566 = vrot.slane %v6561, %v6565
    %6568 = vmatprep.subr.mxu0 0.0
    %6569 = vmatpush1.msra.mxu0 %v6544
    %6570 = vmatprep.subr.mxu0 0.0
    %6571 = vmatpush1.msra.mxu0 %v6545
    %6572 = vmatprep.subr.mxu0 0.0
    %6573 = vmatpush1.msra.mxu0 %v6546
    %6574 = vmatprep.subr.mxu0 0.0
    %6575 = vmatpush1.msra.mxu0 %v6547
    %6576 = vmatprep.subr.mxu0 0.0
    %6577 = vmatpush1.msra.mxu0 %v6548
    %6578 = vmatprep.subr.mxu0 0.0
    %6579 = vmatpush1.msra.mxu0 %v6549
    %6580 = vmatprep.subr.mxu0 0.0
    %6581 = vmatpush1.msra.mxu0 %v6550
    %6582 = vmatprep.subr.mxu0 0.0
    %6583 = vmatpush1.msra.mxu0 %v6551
    %6584 = vmatprep.subr.mxu0 0.0
    %6585 = vmatpush1.msra.mxu0 %v6552
    %6586 = vmatprep.subr.mxu0 0.0
    %6587 = vmatpush1.msra.mxu0 %v6553
    %6588 = vmatprep.subr.mxu0 0.0
    %6589 = vmatpush1.msra.mxu0 %v6554
    %6590 = vmatprep.subr.mxu0 0.0
    %6591 = vmatpush1.msra.mxu0 %v6555
    %6592 = vmatprep.subr.mxu0 0.0
    %6593 = vmatpush1.msra.mxu0 %v6556
    %6594 = vmatprep.subr.mxu0 0.0
    %6595 = vmatpush1.msra.mxu0 %v6557
    %6596 = vmatprep.subr.mxu0 0.0
    %6597 = vmatpush1.msra.mxu0 %v6558
    %6598 = vmatprep.subr.mxu0 0.0
    %6599 = vmatpush1.msra.mxu0 %v6559
    %6600 = vmatprep.subr.mxu0 0.0
    %6601 = vmatpush1.msra.mxu0 0.0
    %6602 = vmatprep.subr.mxu0 0.0
    %6603 = vmatpush1.msra.mxu0 0.0
    %6604 = vmatprep.subr.mxu0 0.0
    %6605 = vmatpush1.msra.mxu0 0.0
    %6606 = vmatprep.subr.mxu0 0.0
    %6607 = vmatpush1.msra.mxu0 0.0
    %6608 = vmatprep.subr.mxu0 0.0
    %6609 = vmatpush1.msra.mxu0 0.0
    %6610 = vmatprep.subr.mxu0 0.0
    %6611 = vmatpush1.msra.mxu0 0.0
    %6612 = vmatprep.subr.mxu0 0.0
    %6613 = vmatpush1.msra.mxu0 0.0
    %6614 = vmatprep.subr.mxu0 0.0
    %6615 = vmatpush1.msra.mxu0 0.0
    %6616 = vmatprep.subr.mxu0 0.0
    %6617 = vmatpush1.msra.mxu0 0.0
    %6618 = vmatprep.subr.mxu0 0.0
    %6619 = vmatpush1.msra.mxu0 0.0
    %6620 = vmatprep.subr.mxu0 0.0
    %6621 = vmatpush1.msra.mxu0 0.0
    %6622 = vmatprep.subr.mxu0 0.0
    %6623 = vmatpush1.msra.mxu0 0.0
    %6624 = vmatprep.subr.mxu0 0.0
    %6625 = vmatpush1.msra.mxu0 0.0
    %6626 = vmatprep.subr.mxu0 0.0
    %6627 = vmatpush1.msra.mxu0 0.0
    %6628 = vmatprep.subr.mxu0 0.0
    %6629 = vmatpush1.msra.mxu0 0.0
    %6630 = vmatprep.subr.mxu0 0.0
    %6631 = vmatpush1.msra.mxu0 0.0
    %6632 = vmatprep.mubr.f32.mxu0 0.0
    %6633 = vmatmul.mubr.f32.gmra.mrb[0].mxu0 %v3965
    %v6634 = vpop.f32.mrb[0].mxu0
    %v6635 = vadd.f32 %v6566, %v6634
    %v6636 = vpop.f32.mrb[0].mxu0
    %6637 = vmatprep.mubr.f32.mxu0 0.0
    %6638 = vmatmul.mubr.f32.gmra.mrb[0].mxu0 %v3966
    %v6639 = vpop.f32.mrb[0].mxu0
    %v6640 = vadd.f32 %v6566, %v6639
    %v6641 = vpop.f32.mrb[0].mxu0
    %6642 = vmatprep.mubr.f32.mxu0 0.0
    %6643 = vmatmul.mubr.f32.gmra.mrb[0].mxu0 %v3967
    %v6644 = vpop.f32.mrb[0].mxu0
    %v6645 = vadd.f32 %v6566, %v6644
    %v6646 = vpop.f32.mrb[0].mxu0
    %6647 = vmatprep.mubr.f32.mxu0 0.0
    %6648 = vmatmul.mubr.f32.gmra.mrb[0].mxu0 %v3968
    %v6649 = vpop.f32.mrb[0].mxu0
    %v6650 = vadd.f32 %v6566, %v6649
    %v6651 = vpop.f32.mrb[0].mxu0
    %6652 = vdwg.mxu0
    %s6653 = scalar_lea.vmem %s10, 896
    %v6654 = vld [vmem:[%s6653] sm:$0xff]
    %v6655 = vld [vmem:[%s6653 + $0x8] sm:$0xff]
    %v6656 = vld [vmem:[%s6653 + $0x10] sm:$0xff]
    %v6657 = vld [vmem:[%s6653 + $0x18] sm:$0xff]
    %v6658 = vld [vmem:[%s6653 + $0x20] sm:$0xff]
    %v6659 = vld [vmem:[%s6653 + $0x28] sm:$0xff]
    %v6660 = vld [vmem:[%s6653 + $0x30] sm:$0xff]
    %v6661 = vld [vmem:[%s6653 + $0x38] sm:$0xff]
    %v6662 = vld [vmem:[%s6653 + $0x40] sm:$0xff]
    %v6663 = vld [vmem:[%s6653 + $0x48] sm:$0xff]
    %v6664 = vld [vmem:[%s6653 + $0x50] sm:$0xff]
    %v6665 = vld [vmem:[%s6653 + $0x58] sm:$0xff]
    %v6666 = vld [vmem:[%s6653 + $0x60] sm:$0xff]
    %v6667 = vld [vmem:[%s6653 + $0x68] sm:$0xff]
    %v6668 = vld [vmem:[%s6653 + $0x70] sm:$0xff]
    %v6669 = vld [vmem:[%s6653 + $0x78] sm:$0xff]
    %s6670 = scalar_lea.vmem %s11, 7
    %v6671 = vld [vmem:[%s6670] sm:$0x1]
    %v6673 = vlaneseq
    %v6674 = vshrl.u32 %v6673, 7
    %v6675 = vsub.s32 0, %v6674
    %v6676 = vrot.slane %v6671, %v6675
    %6678 = vmatprep.subr.mxu0 0.0
    %6679 = vmatpush1.msra.mxu0 %v6654
    %6680 = vmatprep.subr.mxu0 0.0
    %6681 = vmatpush1.msra.mxu0 %v6655
    %6682 = vmatprep.subr.mxu0 0.0
    %6683 = vmatpush1.msra.mxu0 %v6656
    %6684 = vmatprep.subr.mxu0 0.0
    %6685 = vmatpush1.msra.mxu0 %v6657
    %6686 = vmatprep.subr.mxu0 0.0
    %6687 = vmatpush1.msra.mxu0 %v6658
    %6688 = vmatprep.subr.mxu0 0.0
    %6689 = vmatpush1.msra.mxu0 %v6659
    %6690 = vmatprep.subr.mxu0 0.0
    %6691 = vmatpush1.msra.mxu0 %v6660
    %6692 = vmatprep.subr.mxu0 0.0
    %6693 = vmatpush1.msra.mxu0 %v6661
    %6694 = vmatprep.subr.mxu0 0.0
    %6695 = vmatpush1.msra.mxu0 %v6662
    %6696 = vmatprep.subr.mxu0 0.0
    %6697 = vmatpush1.msra.mxu0 %v6663
    %6698 = vmatprep.subr.mxu0 0.0
    %6699 = vmatpush1.msra.mxu0 %v6664
    %6700 = vmatprep.subr.mxu0 0.0
    %6701 = vmatpush1.msra.mxu0 %v6665
    %6702 = vmatprep.subr.mxu0 0.0
    %6703 = vmatpush1.msra.mxu0 %v6666
    %6704 = vmatprep.subr.mxu0 0.0
    %6705 = vmatpush1.msra.mxu0 %v6667
    %6706 = vmatprep.subr.mxu0 0.0
    %6707 = vmatpush1.msra.mxu0 %v6668
    %6708 = vmatprep.subr.mxu0 0.0
    %6709 = vmatpush1.msra.mxu0 %v6669
    %6710 = vmatprep.subr.mxu0 0.0
    %6711 = vmatpush1.msra.mxu0 0.0
    %6712 = vmatprep.subr.mxu0 0.0
    %6713 = vmatpush1.msra.mxu0 0.0
    %6714 = vmatprep.subr.mxu0 0.0
    %6715 = vmatpush1.msra.mxu0 0.0
    %6716 = vmatprep.subr.mxu0 0.0
    %6717 = vmatpush1.msra.mxu0 0.0
    %6718 = vmatprep.subr.mxu0 0.0
    %6719 = vmatpush1.msra.mxu0 0.0
    %6720 = vmatprep.subr.mxu0 0.0
    %6721 = vmatpush1.msra.mxu0 0.0
    %6722 = vmatprep.subr.mxu0 0.0
    %6723 = vmatpush1.msra.mxu0 0.0
    %6724 = vmatprep.subr.mxu0 0.0
    %6725 = vmatpush1.msra.mxu0 0.0
    %6726 = vmatprep.subr.mxu0 0.0
    %6727 = vmatpush1.msra.mxu0 0.0
    %6728 = vmatprep.subr.mxu0 0.0
    %6729 = vmatpush1.msra.mxu0 0.0
    %6730 = vmatprep.subr.mxu0 0.0
    %6731 = vmatpush1.msra.mxu0 0.0
    %6732 = vmatprep.subr.mxu0 0.0
    %6733 = vmatpush1.msra.mxu0 0.0
    %6734 = vmatprep.subr.mxu0 0.0
    %6735 = vmatpush1.msra.mxu0 0.0
    %6736 = vmatprep.subr.mxu0 0.0
    %6737 = vmatpush1.msra.mxu0 0.0
    %6738 = vmatprep.subr.mxu0 0.0
    %6739 = vmatpush1.msra.mxu0 0.0
    %6740 = vmatprep.subr.mxu0 0.0
    %6741 = vmatpush1.msra.mxu0 0.0
    %6742 = vmatprep.mubr.f32.mxu0 0.0
    %6743 = vmatmul.mubr.f32.gmra.mrb[0].mxu0 %v3965
    %v6744 = vpop.f32.mrb[0].mxu0
    %v6745 = vadd.f32 %v6676, %v6744
    %v6746 = vpop.f32.mrb[0].mxu0
    %6747 = vmatprep.mubr.f32.mxu0 0.0
    %6748 = vmatmul.mubr.f32.gmra.mrb[0].mxu0 %v3966
    %v6749 = vpop.f32.mrb[0].mxu0
    %v6750 = vadd.f32 %v6676, %v6749
    %v6751 = vpop.f32.mrb[0].mxu0
    %6752 = vmatprep.mubr.f32.mxu0 0.0
    %6753 = vmatmul.mubr.f32.gmra.mrb[0].mxu0 %v3967
    %v6754 = vpop.f32.mrb[0].mxu0
    %v6755 = vadd.f32 %v6676, %v6754
    %v6756 = vpop.f32.mrb[0].mxu0
    %6757 = vmatprep.mubr.f32.mxu0 0.0
    %6758 = vmatmul.mubr.f32.gmra.mrb[0].mxu0 %v3968
    %v6759 = vpop.f32.mrb[0].mxu0
    %v6760 = vadd.f32 %v6676, %v6759
    %v6761 = vpop.f32.mrb[0].mxu0
    %6762 = vdwg.mxu0
    %v6764 = vsel %vm582, %v6525, 0
    %v6767 = vsel %vm582, %v6530, 0
    %v6770 = vsel %vm582, %v6635, 0
    %v6773 = vsel %vm582, %v6640, 0
    %6775 = vmatprep.subr.mxu0 0.0
    %6776 = vmatpush1.xpose.msra.mxu0 %v6770
    %6777 = vmatprep.subr.mxu0 0.0
    %6778 = vmatpush1.xpose.msra.mxu0 %v6773
    %6779 = vmatprep.subr.mxu0 0.0
    %6780 = vmatpush1.xpose.msra.mxu0 0.0
    %6781 = vmatprep.subr.mxu0 0.0
    %6782 = vmatpush1.xpose.msra.mxu0 0.0
    %6783 = vmatprep.subr.mxu0 0.0
    %6784 = vmatpush1.xpose.msra.mxu0 0.0
    %6785 = vmatprep.subr.mxu0 0.0
    %6786 = vmatpush1.xpose.msra.mxu0 0.0
    %6787 = vmatprep.subr.mxu0 0.0
    %6788 = vmatpush1.xpose.msra.mxu0 0.0
    %6789 = vmatprep.subr.mxu0 0.0
    %6790 = vmatpush1.xpose.msra.mxu0 0.0
    %6791 = vmatprep.subr.mxu0 0.0
    %6792 = vmatpush1.xpose.msra.mxu0 0.0
    %6793 = vmatprep.subr.mxu0 0.0
    %6794 = vmatpush1.xpose.msra.mxu0 0.0
    %6795 = vmatprep.subr.mxu0 0.0
    %6796 = vmatpush1.xpose.msra.mxu0 0.0
    %6797 = vmatprep.subr.mxu0 0.0
    %6798 = vmatpush1.xpose.msra.mxu0 0.0
    %6799 = vmatprep.subr.mxu0 0.0
    %6800 = vmatpush1.xpose.msra.mxu0 0.0
    %6801 = vmatprep.subr.mxu0 0.0
    %6802 = vmatpush1.xpose.msra.mxu0 0.0
    %6803 = vmatprep.subr.mxu0 0.0
    %6804 = vmatpush1.xpose.msra.mxu0 0.0
    %6805 = vmatprep.subr.mxu0 0.0
    %6806 = vmatpush1.xpose.msra.mxu0 0.0
    %6807 = vmatprep.subr.mxu0 0.0
    %6808 = vmatpush1.xpose.msra.mxu0 0.0
    %6809 = vmatprep.subr.mxu0 0.0
    %6810 = vmatpush1.xpose.msra.mxu0 0.0
    %6811 = vmatprep.subr.mxu0 0.0
    %6812 = vmatpush1.xpose.msra.mxu0 0.0
    %6813 = vmatprep.subr.mxu0 0.0
    %6814 = vmatpush1.xpose.msra.mxu0 0.0
    %6815 = vmatprep.subr.mxu0 0.0
    %6816 = vmatpush1.xpose.msra.mxu0 0.0
    %6817 = vmatprep.subr.mxu0 0.0
    %6818 = vmatpush1.xpose.msra.mxu0 0.0
    %6819 = vmatprep.subr.mxu0 0.0
    %6820 = vmatpush1.xpose.msra.mxu0 0.0
    %6821 = vmatprep.subr.mxu0 0.0
    %6822 = vmatpush1.xpose.msra.mxu0 0.0
    %6823 = vmatprep.subr.mxu0 0.0
    %6824 = vmatpush1.xpose.msra.mxu0 0.0
    %6825 = vmatprep.subr.mxu0 0.0
    %6826 = vmatpush1.xpose.msra.mxu0 0.0
    %6827 = vmatprep.subr.mxu0 0.0
    %6828 = vmatpush1.xpose.msra.mxu0 0.0
    %6829 = vmatprep.subr.mxu0 0.0
    %6830 = vmatpush1.xpose.msra.mxu0 0.0
    %6831 = vmatprep.subr.mxu0 0.0
    %6832 = vmatpush1.xpose.msra.mxu0 0.0
    %6833 = vmatprep.subr.mxu0 0.0
    %6834 = vmatpush1.xpose.msra.mxu0 0.0
    %6835 = vmatprep.subr.mxu0 0.0
    %6836 = vmatpush1.xpose.msra.mxu0 0.0
    %6837 = vmatprep.subr.mxu0 0.0
    %6838 = vmatpush1.xpose.msra.mxu0 0.0
    %6839 = vmatprep.mubr.f32.mxu0 0.0
    %6840 = vmatmul.mubr.f32.gmra.mrb[0].mxu0 %v6764
    %v6841 = vpop.f32.mrb[0].mxu0
    %v6842 = vadd.f32 0.0, %v6841
    %v6843 = vpop.f32.mrb[0].mxu0
    %6844 = vmatprep.mubr.f32.mxu0 0.0
    %6845 = vmatmul.mubr.f32.gmra.mrb[0].mxu0 %v6767
    %v6846 = vpop.f32.mrb[0].mxu0
    %v6847 = vadd.f32 0.0, %v6846
    %v6848 = vpop.f32.mrb[0].mxu0
    %6849 = vdwg.mxu0
    %v6851 = vsel %vm582, %v6535, 0
    %v6854 = vsel %vm582, %v6540, 0
    %v6857 = vsel %vm582, %v6645, 0
    %v6860 = vsel %vm582, %v6650, 0
    %6862 = vmatprep.subr.mxu0 0.0
    %6863 = vmatpush1.xpose.msra.mxu0 %v6857
    %6864 = vmatprep.subr.mxu0 0.0
    %6865 = vmatpush1.xpose.msra.mxu0 %v6860
    %6866 = vmatprep.subr.mxu0 0.0
    %6867 = vmatpush1.xpose.msra.mxu0 0.0
    %6868 = vmatprep.subr.mxu0 0.0
    %6869 = vmatpush1.xpose.msra.mxu0 0.0
    %6870 = vmatprep.subr.mxu0 0.0
    %6871 = vmatpush1.xpose.msra.mxu0 0.0
    %6872 = vmatprep.subr.mxu0 0.0
    %6873 = vmatpush1.xpose.msra.mxu0 0.0
    %6874 = vmatprep.subr.mxu0 0.0
    %6875 = vmatpush1.xpose.msra.mxu0 0.0
    %6876 = vmatprep.subr.mxu0 0.0
    %6877 = vmatpush1.xpose.msra.mxu0 0.0
    %6878 = vmatprep.subr.mxu0 0.0
    %6879 = vmatpush1.xpose.msra.mxu0 0.0
    %6880 = vmatprep.subr.mxu0 0.0
    %6881 = vmatpush1.xpose.msra.mxu0 0.0
    %6882 = vmatprep.subr.mxu0 0.0
    %6883 = vmatpush1.xpose.msra.mxu0 0.0
    %6884 = vmatprep.subr.mxu0 0.0
    %6885 = vmatpush1.xpose.msra.mxu0 0.0
    %6886 = vmatprep.subr.mxu0 0.0
    %6887 = vmatpush1.xpose.msra.mxu0 0.0
    %6888 = vmatprep.subr.mxu0 0.0
    %6889 = vmatpush1.xpose.msra.mxu0 0.0
    %6890 = vmatprep.subr.mxu0 0.0
    %6891 = vmatpush1.xpose.msra.mxu0 0.0
    %6892 = vmatprep.subr.mxu0 0.0
    %6893 = vmatpush1.xpose.msra.mxu0 0.0
    %6894 = vmatprep.subr.mxu0 0.0
    %6895 = vmatpush1.xpose.msra.mxu0 0.0
    %6896 = vmatprep.subr.mxu0 0.0
    %6897 = vmatpush1.xpose.msra.mxu0 0.0
    %6898 = vmatprep.subr.mxu0 0.0
    %6899 = vmatpush1.xpose.msra.mxu0 0.0
    %6900 = vmatprep.subr.mxu0 0.0
    %6901 = vmatpush1.xpose.msra.mxu0 0.0
    %6902 = vmatprep.subr.mxu0 0.0
    %6903 = vmatpush1.xpose.msra.mxu0 0.0
    %6904 = vmatprep.subr.mxu0 0.0
    %6905 = vmatpush1.xpose.msra.mxu0 0.0
    %6906 = vmatprep.subr.mxu0 0.0
    %6907 = vmatpush1.xpose.msra.mxu0 0.0
    %6908 = vmatprep.subr.mxu0 0.0
    %6909 = vmatpush1.xpose.msra.mxu0 0.0
    %6910 = vmatprep.subr.mxu0 0.0
    %6911 = vmatpush1.xpose.msra.mxu0 0.0
    %6912 = vmatprep.subr.mxu0 0.0
    %6913 = vmatpush1.xpose.msra.mxu0 0.0
    %6914 = vmatprep.subr.mxu0 0.0
    %6915 = vmatpush1.xpose.msra.mxu0 0.0
    %6916 = vmatprep.subr.mxu0 0.0
    %6917 = vmatpush1.xpose.msra.mxu0 0.0
    %6918 = vmatprep.subr.mxu0 0.0
    %6919 = vmatpush1.xpose.msra.mxu0 0.0
    %6920 = vmatprep.subr.mxu0 0.0
    %6921 = vmatpush1.xpose.msra.mxu0 0.0
    %6922 = vmatprep.subr.mxu0 0.0
    %6923 = vmatpush1.xpose.msra.mxu0 0.0
    %6924 = vmatprep.subr.mxu0 0.0
    %6925 = vmatpush1.xpose.msra.mxu0 0.0
    %6926 = vmatprep.mubr.f32.mxu0 0.0
    %6927 = vmatmul.mubr.f32.gmra.mrb[0].mxu0 %v6851
    %v6928 = vpop.f32.mrb[0].mxu0
    %v6929 = vadd.f32 0.0, %v6928
    %v6930 = vpop.f32.mrb[0].mxu0
    %6931 = vmatprep.mubr.f32.mxu0 0.0
    %6932 = vmatmul.mubr.f32.gmra.mrb[0].mxu0 %v6854
    %v6933 = vpop.f32.mrb[0].mxu0
    %v6934 = vadd.f32 0.0, %v6933
    %v6935 = vpop.f32.mrb[0].mxu0
    %6936 = vdwg.mxu0
    %v6937 = vmul.f32 %v6842, 0.17677669
    %v6938 = vmul.f32 %v6847, 0.17677669
    %v6939 = vmul.f32 %v6929, 0.17677669
    %v6940 = vmul.f32 %v6934, 0.17677669
    %v6941 = vadd.f32 %v6937, %v766
    %v6942 = vadd.f32 %v6938, %v766
    %v6943 = vadd.f32 %v6939, %v770
    %v6944 = vadd.f32 %v6940, %v770
    %v6945 = vsel %vm777, %v6941, -inf
    %6946 = vmax.xlane.f32.xlu0 %v6945
    %v6947 = vpop.xlane.xlu0 %6946
    %v6948 = vsel %vm777, %v6942, -inf
    %6949 = vmax.xlane.f32.xlu0 %v6948
    %v6950 = vpop.xlane.xlu0 %6949
    %v6951 = vsel %vm777, %v6943, -inf
    %6952 = vmax.xlane.f32.xlu0 %v6951
    %v6953 = vpop.xlane.xlu0 %6952
    %v6954 = vsel %vm777, %v6944, -inf
    %6955 = vmax.xlane.f32.xlu0 %v6954
    %v6956 = vpop.xlane.xlu0 %6955
    %v6957 = vsub.f32 %v6941, %v6947
    %v6958 = vsub.f32 %v6942, %v6950
    %v6959 = vsub.f32 %v6943, %v6953
    %v6960 = vsub.f32 %v6944, %v6956
    %v6961 = vmul.f32 %v6957, 1.442695
    %v6962 = vpow.pop %v6961
    %v6963 = vmul.f32 %v6958, 1.442695
    %v6964 = vpow.pop %v6963
    %v6965 = vmul.f32 %v6959, 1.442695
    %v6966 = vpow.pop %v6965
    %v6967 = vmul.f32 %v6960, 1.442695
    %v6968 = vpow.pop %v6967
    %v6969 = vsel %vm777, %v6962, 0.0
    %6970 = vadd.xlane.f32.xlu0 %v6969
    %v6971 = vpop.xlane.xlu0 %6970
    %v6972 = vsel %vm777, %v6964, 0.0
    %6973 = vadd.xlane.f32.xlu0 %v6972
    %v6974 = vpop.xlane.xlu0 %6973
    %v6975 = vsel %vm777, %v6966, 0.0
    %6976 = vadd.xlane.f32.xlu0 %v6975
    %v6977 = vpop.xlane.xlu0 %6976
    %v6978 = vsel %vm777, %v6968, 0.0
    %6979 = vadd.xlane.f32.xlu0 %v6978
    %v6980 = vpop.xlane.xlu0 %6979
    %v6981 = vrcp.pop %v6971
    %v6982 = vmul.f32 %v6962, %v6981
    %v6983 = vrcp.pop %v6974
    %v6984 = vmul.f32 %v6964, %v6983
    %v6985 = vrcp.pop %v6977
    %v6986 = vmul.f32 %v6966, %v6985
    %v6987 = vrcp.pop %v6980
    %v6988 = vmul.f32 %v6968, %v6987
    %v6990 = vsel %vm777, %v6982, 0
    %v6993 = vsel %vm777, %v6984, 0
    %6995 = vmatprep.subr.mxu0 0.0
    %6996 = vmatpush1.msra.mxu0 %v6745
    %6997 = vmatprep.subr.mxu0 0.0
    %6998 = vmatpush1.msra.mxu0 %v6750
    %6999 = vmatprep.subr.mxu0 0.0
    %7000 = vmatpush1.msra.mxu0 0.0
    %7001 = vmatprep.subr.mxu0 0.0
    %7002 = vmatpush1.msra.mxu0 0.0
    %7003 = vmatprep.subr.mxu0 0.0
    %7004 = vmatpush1.msra.mxu0 0.0
    %7005 = vmatprep.subr.mxu0 0.0
    %7006 = vmatpush1.msra.mxu0 0.0
    %7007 = vmatprep.subr.mxu0 0.0
    %7008 = vmatpush1.msra.mxu0 0.0
    %7009 = vmatprep.subr.mxu0 0.0
    %7010 = vmatpush1.msra.mxu0 0.0
    %7011 = vmatprep.subr.mxu0 0.0
    %7012 = vmatpush1.msra.mxu0 0.0
    %7013 = vmatprep.subr.mxu0 0.0
    %7014 = vmatpush1.msra.mxu0 0.0
    %7015 = vmatprep.subr.mxu0 0.0
    %7016 = vmatpush1.msra.mxu0 0.0
    %7017 = vmatprep.subr.mxu0 0.0
    %7018 = vmatpush1.msra.mxu0 0.0
    %7019 = vmatprep.subr.mxu0 0.0
    %7020 = vmatpush1.msra.mxu0 0.0
    %7021 = vmatprep.subr.mxu0 0.0
    %7022 = vmatpush1.msra.mxu0 0.0
    %7023 = vmatprep.subr.mxu0 0.0
    %7024 = vmatpush1.msra.mxu0 0.0
    %7025 = vmatprep.subr.mxu0 0.0
    %7026 = vmatpush1.msra.mxu0 0.0
    %7027 = vmatprep.subr.mxu0 0.0
    %7028 = vmatpush1.msra.mxu0 0.0
    %7029 = vmatprep.subr.mxu0 0.0
    %7030 = vmatpush1.msra.mxu0 0.0
    %7031 = vmatprep.subr.mxu0 0.0
    %7032 = vmatpush1.msra.mxu0 0.0
    %7033 = vmatprep.subr.mxu0 0.0
    %7034 = vmatpush1.msra.mxu0 0.0
    %7035 = vmatprep.subr.mxu0 0.0
    %7036 = vmatpush1.msra.mxu0 0.0
    %7037 = vmatprep.subr.mxu0 0.0
    %7038 = vmatpush1.msra.mxu0 0.0
    %7039 = vmatprep.subr.mxu0 0.0
    %7040 = vmatpush1.msra.mxu0 0.0
    %7041 = vmatprep.subr.mxu0 0.0
    %7042 = vmatpush1.msra.mxu0 0.0
    %7043 = vmatprep.subr.mxu0 0.0
    %7044 = vmatpush1.msra.mxu0 0.0
    %7045 = vmatprep.subr.mxu0 0.0
    %7046 = vmatpush1.msra.mxu0 0.0
    %7047 = vmatprep.subr.mxu0 0.0
    %7048 = vmatpush1.msra.mxu0 0.0
    %7049 = vmatprep.subr.mxu0 0.0
    %7050 = vmatpush1.msra.mxu0 0.0
    %7051 = vmatprep.subr.mxu0 0.0
    %7052 = vmatpush1.msra.mxu0 0.0
    %7053 = vmatprep.subr.mxu0 0.0
    %7054 = vmatpush1.msra.mxu0 0.0
    %7055 = vmatprep.subr.mxu0 0.0
    %7056 = vmatpush1.msra.mxu0 0.0
    %7057 = vmatprep.subr.mxu0 0.0
    %7058 = vmatpush1.msra.mxu0 0.0
    %7059 = vmatprep.mubr.f32.mxu0 0.0
    %7060 = vmatmul.mubr.f32.gmra.mrb[0].mxu0 %v6990
    %v7061 = vpop.f32.mrb[0].mxu0
    %v7062 = vadd.f32 0.0, %v7061
    %v7063 = vpop.f32.mrb[0].mxu0
    %7064 = vmatprep.mubr.f32.mxu0 0.0
    %7065 = vmatmul.mubr.f32.gmra.mrb[0].mxu0 %v6993
    %v7066 = vpop.f32.mrb[0].mxu0
    %v7067 = vadd.f32 0.0, %v7066
    %v7068 = vpop.f32.mrb[0].mxu0
    %7069 = vdwg.mxu0
    %v7071 = vsel %vm777, %v6986, 0
    %v7074 = vsel %vm777, %v6988, 0
    %7076 = vmatprep.subr.mxu0 0.0
    %7077 = vmatpush1.msra.mxu0 %v6755
    %7078 = vmatprep.subr.mxu0 0.0
    %7079 = vmatpush1.msra.mxu0 %v6760
    %7080 = vmatprep.subr.mxu0 0.0
    %7081 = vmatpush1.msra.mxu0 0.0
    %7082 = vmatprep.subr.mxu0 0.0
    %7083 = vmatpush1.msra.mxu0 0.0
    %7084 = vmatprep.subr.mxu0 0.0
    %7085 = vmatpush1.msra.mxu0 0.0
    %7086 = vmatprep.subr.mxu0 0.0
    %7087 = vmatpush1.msra.mxu0 0.0
    %7088 = vmatprep.subr.mxu0 0.0
    %7089 = vmatpush1.msra.mxu0 0.0
    %7090 = vmatprep.subr.mxu0 0.0
    %7091 = vmatpush1.msra.mxu0 0.0
    %7092 = vmatprep.subr.mxu0 0.0
    %7093 = vmatpush1.msra.mxu0 0.0
    %7094 = vmatprep.subr.mxu0 0.0
    %7095 = vmatpush1.msra.mxu0 0.0
    %7096 = vmatprep.subr.mxu0 0.0
    %7097 = vmatpush1.msra.mxu0 0.0
    %7098 = vmatprep.subr.mxu0 0.0
    %7099 = vmatpush1.msra.mxu0 0.0
    %7100 = vmatprep.subr.mxu0 0.0
    %7101 = vmatpush1.msra.mxu0 0.0
    %7102 = vmatprep.subr.mxu0 0.0
    %7103 = vmatpush1.msra.mxu0 0.0
    %7104 = vmatprep.subr.mxu0 0.0
    %7105 = vmatpush1.msra.mxu0 0.0
    %7106 = vmatprep.subr.mxu0 0.0
    %7107 = vmatpush1.msra.mxu0 0.0
    %7108 = vmatprep.subr.mxu0 0.0
    %7109 = vmatpush1.msra.mxu0 0.0
    %7110 = vmatprep.subr.mxu0 0.0
    %7111 = vmatpush1.msra.mxu0 0.0
    %7112 = vmatprep.subr.mxu0 0.0
    %7113 = vmatpush1.msra.mxu0 0.0
    %7114 = vmatprep.subr.mxu0 0.0
    %7115 = vmatpush1.msra.mxu0 0.0
    %7116 = vmatprep.subr.mxu0 0.0
    %7117 = vmatpush1.msra.mxu0 0.0
    %7118 = vmatprep.subr.mxu0 0.0
    %7119 = vmatpush1.msra.mxu0 0.0
    %7120 = vmatprep.subr.mxu0 0.0
    %7121 = vmatpush1.msra.mxu0 0.0
    %7122 = vmatprep.subr.mxu0 0.0
    %7123 = vmatpush1.msra.mxu0 0.0
    %7124 = vmatprep.subr.mxu0 0.0
    %7125 = vmatpush1.msra.mxu0 0.0
    %7126 = vmatprep.subr.mxu0 0.0
    %7127 = vmatpush1.msra.mxu0 0.0
    %7128 = vmatprep.subr.mxu0 0.0
    %7129 = vmatpush1.msra.mxu0 0.0
    %7130 = vmatprep.subr.mxu0 0.0
    %7131 = vmatpush1.msra.mxu0 0.0
    %7132 = vmatprep.subr.mxu0 0.0
    %7133 = vmatpush1.msra.mxu0 0.0
    %7134 = vmatprep.subr.mxu0 0.0
    %7135 = vmatpush1.msra.mxu0 0.0
    %7136 = vmatprep.subr.mxu0 0.0
    %7137 = vmatpush1.msra.mxu0 0.0
    %7138 = vmatprep.subr.mxu0 0.0
    %7139 = vmatpush1.msra.mxu0 0.0
    %7140 = vmatprep.mubr.f32.mxu0 0.0
    %7141 = vmatmul.mubr.f32.gmra.mrb[0].mxu0 %v7071
    %v7142 = vpop.f32.mrb[0].mxu0
    %v7143 = vadd.f32 0.0, %v7142
    %v7144 = vpop.f32.mrb[0].mxu0
    %7145 = vmatprep.mubr.f32.mxu0 0.0
    %7146 = vmatmul.mubr.f32.gmra.mrb[0].mxu0 %v7074
    %v7147 = vpop.f32.mrb[0].mxu0
    %v7148 = vadd.f32 0.0, %v7147
    %v7149 = vpop.f32.mrb[0].mxu0
    %7150 = vdwg.mxu0
    %s7151 = scalar_lea.vmem %s12, 224
    %v7152 = vld [vmem:[%s7151] sm:$0xff]
    %v7153 = vld [vmem:[%s7151 + $0x8] sm:$0xff]
    %v7154 = vld [vmem:[%s7151 + $0x10] sm:$0xff]
    %v7155 = vld [vmem:[%s7151 + $0x18] sm:$0xff]
    %v7157 = vsel %vm582, %v7062, 0
    %v7160 = vsel %vm582, %v7067, 0
    %v7163 = vsel %vm582, %v7143, 0
    %v7166 = vsel %vm582, %v7148, 0
    %7168 = vmatprep.subr.mxu0 0.0
    %7169 = vmatpush1.msra.mxu0 %v7152
    %7170 = vmatprep.subr.mxu0 0.0
    %7171 = vmatpush1.msra.mxu0 %v7153
    %7172 = vmatprep.subr.mxu0 0.0
    %7173 = vmatpush1.msra.mxu0 %v7154
    %7174 = vmatprep.subr.mxu0 0.0
    %7175 = vmatpush1.msra.mxu0 %v7155
    %7176 = vmatprep.subr.mxu0 0.0
    %7177 = vmatpush1.msra.mxu0 0.0
    %7178 = vmatprep.subr.mxu0 0.0
    %7179 = vmatpush1.msra.mxu0 0.0
    %7180 = vmatprep.subr.mxu0 0.0
    %7181 = vmatpush1.msra.mxu0 0.0
    %7182 = vmatprep.subr.mxu0 0.0
    %7183 = vmatpush1.msra.mxu0 0.0
    %7184 = vmatprep.subr.mxu0 0.0
    %7185 = vmatpush1.msra.mxu0 0.0
    %7186 = vmatprep.subr.mxu0 0.0
    %7187 = vmatpush1.msra.mxu0 0.0
    %7188 = vmatprep.subr.mxu0 0.0
    %7189 = vmatpush1.msra.mxu0 0.0
    %7190 = vmatprep.subr.mxu0 0.0
    %7191 = vmatpush1.msra.mxu0 0.0
    %7192 = vmatprep.subr.mxu0 0.0
    %7193 = vmatpush1.msra.mxu0 0.0
    %7194 = vmatprep.subr.mxu0 0.0
    %7195 = vmatpush1.msra.mxu0 0.0
    %7196 = vmatprep.subr.mxu0 0.0
    %7197 = vmatpush1.msra.mxu0 0.0
    %7198 = vmatprep.subr.mxu0 0.0
    %7199 = vmatpush1.msra.mxu0 0.0
    %7200 = vmatprep.subr.mxu0 0.0
    %7201 = vmatpush1.msra.mxu0 0.0
    %7202 = vmatprep.subr.mxu0 0.0
    %7203 = vmatpush1.msra.mxu0 0.0
    %7204 = vmatprep.subr.mxu0 0.0
    %7205 = vmatpush1.msra.mxu0 0.0
    %7206 = vmatprep.subr.mxu0 0.0
    %7207 = vmatpush1.msra.mxu0 0.0
    %7208 = vmatprep.subr.mxu0 0.0
    %7209 = vmatpush1.msra.mxu0 0.0
    %7210 = vmatprep.subr.mxu0 0.0
    %7211 = vmatpush1.msra.mxu0 0.0
    %7212 = vmatprep.subr.mxu0 0.0
    %7213 = vmatpush1.msra.mxu0 0.0
    %7214 = vmatprep.subr.mxu0 0.0
    %7215 = vmatpush1.msra.mxu0 0.0
    %7216 = vmatprep.subr.mxu0 0.0
    %7217 = vmatpush1.msra.mxu0 0.0
    %7218 = vmatprep.subr.mxu0 0.0
    %7219 = vmatpush1.msra.mxu0 0.0
    %7220 = vmatprep.subr.mxu0 0.0
    %7221 = vmatpush1.msra.mxu0 0.0
    %7222 = vmatprep.subr.mxu0 0.0
    %7223 = vmatpush1.msra.mxu0 0.0
    %7224 = vmatprep.subr.mxu0 0.0
    %7225 = vmatpush1.msra.mxu0 0.0
    %7226 = vmatprep.subr.mxu0 0.0
    %7227 = vmatpush1.msra.mxu0 0.0
    %7228 = vmatprep.subr.mxu0 0.0
    %7229 = vmatpush1.msra.mxu0 0.0
    %7230 = vmatprep.subr.mxu0 0.0
    %7231 = vmatpush1.msra.mxu0 0.0
    %7232 = vmatprep.mubr.f32.mxu0 0.0
    %7233 = vmatmul.mubr.f32.gmra.mrb[0].mxu0 %v7157
    %v7234 = vpop.f32.mrb[0].mxu0
    %v7235 = vadd.f32 0.0, %v7234
    %v7236 = vpop.f32.mrb[0].mxu0
    %7237 = vmatprep.mubr.f32.mxu0 0.0
    %7238 = vmatmul.mubr.f32.gmra.mrb[0].mxu0 %v7160
    %v7239 = vpop.f32.mrb[0].mxu0
    %v7240 = vadd.f32 0.0, %v7239
    %v7241 = vpop.f32.mrb[0].mxu0
    %7242 = vmatprep.mubr.f32.mxu0 0.0
    %7243 = vmatmul.mubr.f32.gmra.mrb[0].mxu0 %v7163
    %v7244 = vpop.f32.mrb[0].mxu0
    %v7245 = vadd.f32 0.0, %v7244
    %v7246 = vpop.f32.mrb[0].mxu0
    %7247 = vmatprep.mubr.f32.mxu0 0.0
    %7248 = vmatmul.mubr.f32.gmra.mrb[0].mxu0 %v7166
    %v7249 = vpop.f32.mrb[0].mxu0
    %v7250 = vadd.f32 0.0, %v7249
    %v7251 = vpop.f32.mrb[0].mxu0
    %7252 = vdwg.mxu0
    %v7253 = vadd.f32 %v6429, %v7235
    %v7254 = vadd.f32 %v6430, %v7240
    %v7255 = vadd.f32 %v6431, %v7245
    %v7256 = vadd.f32 %v6432, %v7250
    %s7257 = scalar_lea.vmem %s13, 1
    %v7258 = vld [vmem:[%s7257] sm:$0x1]
    %v7260 = vlaneseq
    %v7261 = vshrl.u32 %v7260, 7
    %v7262 = vsub.s32 0, %v7261
    %v7263 = vrot.slane %v7258, %v7262
    %v7265 = vadd.f32 %v7253, %v7263
    %v7266 = vadd.f32 %v7254, %v7263
    %v7267 = vadd.f32 %v7255, %v7263
    %v7268 = vadd.f32 %v7256, %v7263
    %v7269 = vadd.f32 %v3965, %v7265
    %v7270 = vadd.f32 %v3966, %v7266
    %v7271 = vadd.f32 %v3967, %v7267
    %v7272 = vadd.f32 %v3968, %v7268
    %s7273 = scalar_lea.vmem %s18, 1
    %v7274 = vld [vmem:[%s7273] sm:$0x1]
    %s7275 = scalar_lea.vmem %s19, 1
    %v7276 = vld [vmem:[%s7275] sm:$0x1]
    %7277 = vadd.xlane.f32.xlu0 %v7269
    %v7278 = vpop.xlane.xlu0 %7277
    %7279 = vadd.xlane.f32.xlu0 %v7270
    %v7280 = vpop.xlane.xlu0 %7279
    %7281 = vadd.xlane.f32.xlu0 %v7271
    %v7282 = vpop.xlane.xlu0 %7281
    %7283 = vadd.xlane.f32.xlu0 %v7272
    %v7284 = vpop.xlane.xlu0 %7283
    %v7285 = vmul.f32 %v7278, %v199
    %v7286 = vmul.f32 %v7280, %v199
    %v7287 = vmul.f32 %v7282, %v199
    %v7288 = vmul.f32 %v7284, %v199
    %v7289 = vsub.f32 %v7269, %v7285
    %v7290 = vsub.f32 %v7270, %v7286
    %v7291 = vsub.f32 %v7271, %v7287
    %v7292 = vsub.f32 %v7272, %v7288
    %v7293 = vmul.f32 %v7289, %v7289
    %v7294 = vmul.f32 %v7290, %v7290
    %v7295 = vmul.f32 %v7291, %v7291
    %v7296 = vmul.f32 %v7292, %v7292
    %7297 = vadd.xlane.f32.xlu0 %v7293
    %v7298 = vpop.xlane.xlu0 %7297
    %7299 = vadd.xlane.f32.xlu0 %v7294
    %v7300 = vpop.xlane.xlu0 %7299
    %7301 = vadd.xlane.f32.xlu0 %v7295
    %v7302 = vpop.xlane.xlu0 %7301
    %7303 = vadd.xlane.f32.xlu0 %v7296
    %v7304 = vpop.xlane.xlu0 %7303
    %v7305 = vmul.f32 %v7298, %v199
    %v7306 = vmul.f32 %v7300, %v199
    %v7307 = vmul.f32 %v7302, %v199
    %v7308 = vmul.f32 %v7304, %v199
    %v7309 = vadd.f32 %v7305, 1e-05
    %v7310 = vadd.f32 %v7306, 1e-05
    %v7311 = vadd.f32 %v7307, 1e-05
    %v7312 = vadd.f32 %v7308, 1e-05
    %v7313 = vrsqrt.pop %v7309
    %v7314 = vrsqrt.pop %v7310
    %v7315 = vrsqrt.pop %v7311
    %v7316 = vrsqrt.pop %v7312
    %v7317 = vmul.f32 %v7289, %v7313
    %v7318 = vmul.f32 %v7290, %v7314
    %v7319 = vmul.f32 %v7291, %v7315
    %v7320 = vmul.f32 %v7292, %v7316
    %v7322 = vlaneseq
    %v7323 = vshrl.u32 %v7322, 7
    %v7324 = vsub.s32 0, %v7323
    %v7325 = vrot.slane %v7274, %v7324
    %v7327 = vmul.f32 %v7317, %v7325
    %v7328 = vmul.f32 %v7318, %v7325
    %v7329 = vmul.f32 %v7319, %v7325
    %v7330 = vmul.f32 %v7320, %v7325
    %v7332 = vlaneseq
    %v7333 = vshrl.u32 %v7332, 7
    %v7334 = vsub.s32 0, %v7333
    %v7335 = vrot.slane %v7276, %v7334
    %v7337 = vadd.f32 %v7327, %v7335
    %v7338 = vadd.f32 %v7328, %v7335
    %v7339 = vadd.f32 %v7329, %v7335
    %v7340 = vadd.f32 %v7330, %v7335
    %s7341 = scalar_lea.vmem %s14, 256
    %v7342 = vld [vmem:[%s7341] sm:$0xff]
    %v7343 = vld [vmem:[%s7341 + $0x8] sm:$0xff]
    %v7344 = vld [vmem:[%s7341 + $0x10] sm:$0xff]
    %v7345 = vld [vmem:[%s7341 + $0x18] sm:$0xff]
    %v7346 = vld [vmem:[%s7341 + $0x20] sm:$0xff]
    %v7347 = vld [vmem:[%s7341 + $0x28] sm:$0xff]
    %v7348 = vld [vmem:[%s7341 + $0x30] sm:$0xff]
    %v7349 = vld [vmem:[%s7341 + $0x38] sm:$0xff]
    %v7350 = vld [vmem:[%s7341 + $0x40] sm:$0xff]
    %v7351 = vld [vmem:[%s7341 + $0x48] sm:$0xff]
    %v7352 = vld [vmem:[%s7341 + $0x50] sm:$0xff]
    %v7353 = vld [vmem:[%s7341 + $0x58] sm:$0xff]
    %v7354 = vld [vmem:[%s7341 + $0x60] sm:$0xff]
    %v7355 = vld [vmem:[%s7341 + $0x68] sm:$0xff]
    %v7356 = vld [vmem:[%s7341 + $0x70] sm:$0xff]
    %v7357 = vld [vmem:[%s7341 + $0x78] sm:$0xff]
    %v7358 = vld [vmem:[%s7341 + $0x80] sm:$0xff]
    %v7359 = vld [vmem:[%s7341 + $0x88] sm:$0xff]
    %v7360 = vld [vmem:[%s7341 + $0x90] sm:$0xff]
    %v7361 = vld [vmem:[%s7341 + $0x98] sm:$0xff]
    %v7362 = vld [vmem:[%s7341 + $0xa0] sm:$0xff]
    %v7363 = vld [vmem:[%s7341 + $0xa8] sm:$0xff]
    %v7364 = vld [vmem:[%s7341 + $0xb0] sm:$0xff]
    %v7365 = vld [vmem:[%s7341 + $0xb8] sm:$0xff]
    %v7366 = vld [vmem:[%s7341 + $0xc0] sm:$0xff]
    %v7367 = vld [vmem:[%s7341 + $0xc8] sm:$0xff]
    %v7368 = vld [vmem:[%s7341 + $0xd0] sm:$0xff]
    %v7369 = vld [vmem:[%s7341 + $0xd8] sm:$0xff]
    %v7370 = vld [vmem:[%s7341 + $0xe0] sm:$0xff]
    %v7371 = vld [vmem:[%s7341 + $0xe8] sm:$0xff]
    %v7372 = vld [vmem:[%s7341 + $0xf0] sm:$0xff]
    %v7373 = vld [vmem:[%s7341 + $0xf8] sm:$0xff]
    %s7374 = scalar_lea.vmem %s15, 2
    %v7375 = vld [vmem:[%s7374] sm:$0x3]
    %v7377 = vlaneseq
    %v7378 = vshrl.u32 %v7377, 7
    %v7379 = vsub.s32 0, %v7378
    %v7380 = vrot.slane %v7375, %v7379
    %v7381 = vlaneseq
    %v7382 = vshrl.u32 %v7381, 7
    %v7383 = vsub.s32 1, %v7382
    %v7384 = vrot.slane %v7375, %v7383
    %7387 = vmatprep.subr.mxu0 %v7343
    %7388 = vmatpush1.msra.mxu0 %v7342
    %7389 = vmatprep.subr.mxu0 %v7345
    %7390 = vmatpush1.msra.mxu0 %v7344
    %7391 = vmatprep.subr.mxu0 %v7347
    %7392 = vmatpush1.msra.mxu0 %v7346
    %7393 = vmatprep.subr.mxu0 %v7349
    %7394 = vmatpush1.msra.mxu0 %v7348
    %7395 = vmatprep.subr.mxu0 %v7351
    %7396 = vmatpush1.msra.mxu0 %v7350
    %7397 = vmatprep.subr.mxu0 %v7353
    %7398 = vmatpush1.msra.mxu0 %v7352
    %7399 = vmatprep.subr.mxu0 %v7355
    %7400 = vmatpush1.msra.mxu0 %v7354
    %7401 = vmatprep.subr.mxu0 %v7357
    %7402 = vmatpush1.msra.mxu0 %v7356
    %7403 = vmatprep.subr.mxu0 %v7359
    %7404 = vmatpush1.msra.mxu0 %v7358
    %7405 = vmatprep.subr.mxu0 %v7361
    %7406 = vmatpush1.msra.mxu0 %v7360
    %7407 = vmatprep.subr.mxu0 %v7363
    %7408 = vmatpush1.msra.mxu0 %v7362
    %7409 = vmatprep.subr.mxu0 %v7365
    %7410 = vmatpush1.msra.mxu0 %v7364
    %7411 = vmatprep.subr.mxu0 %v7367
    %7412 = vmatpush1.msra.mxu0 %v7366
    %7413 = vmatprep.subr.mxu0 %v7369
    %7414 = vmatpush1.msra.mxu0 %v7368
    %7415 = vmatprep.subr.mxu0 %v7371
    %7416 = vmatpush1.msra.mxu0 %v7370
    %7417 = vmatprep.subr.mxu0 %v7373
    %7418 = vmatpush1.msra.mxu0 %v7372
    %7419 = vmatprep.subr.mxu0 0.0
    %7420 = vmatpush1.msra.mxu0 0.0
    %7421 = vmatprep.subr.mxu0 0.0
    %7422 = vmatpush1.msra.mxu0 0.0
    %7423 = vmatprep.subr.mxu0 0.0
    %7424 = vmatpush1.msra.mxu0 0.0
    %7425 = vmatprep.subr.mxu0 0.0
    %7426 = vmatpush1.msra.mxu0 0.0
    %7427 = vmatprep.subr.mxu0 0.0
    %7428 = vmatpush1.msra.mxu0 0.0
    %7429 = vmatprep.subr.mxu0 0.0
    %7430 = vmatpush1.msra.mxu0 0.0
    %7431 = vmatprep.subr.mxu0 0.0
    %7432 = vmatpush1.msra.mxu0 0.0
    %7433 = vmatprep.subr.mxu0 0.0
    %7434 = vmatpush1.msra.mxu0 0.0
    %7435 = vmatprep.subr.mxu0 0.0
    %7436 = vmatpush1.msra.mxu0 0.0
    %7437 = vmatprep.subr.mxu0 0.0
    %7438 = vmatpush1.msra.mxu0 0.0
    %7439 = vmatprep.subr.mxu0 0.0
    %7440 = vmatpush1.msra.mxu0 0.0
    %7441 = vmatprep.subr.mxu0 0.0
    %7442 = vmatpush1.msra.mxu0 0.0
    %7443 = vmatprep.subr.mxu0 0.0
    %7444 = vmatpush1.msra.mxu0 0.0
    %7445 = vmatprep.subr.mxu0 0.0
    %7446 = vmatpush1.msra.mxu0 0.0
    %7447 = vmatprep.subr.mxu0 0.0
    %7448 = vmatpush1.msra.mxu0 0.0
    %7449 = vmatprep.subr.mxu0 0.0
    %7450 = vmatpush1.msra.mxu0 0.0
    %7451 = vmatprep.mubr.f32.mxu0 0.0
    %7452 = vmatmul.mubr.f32.gmra.mrb[0].mxu0 %v7337
    %v7453 = vpop.f32.mrb[0].mxu0
    %v7454 = vadd.f32 %v7380, %v7453
    %v7455 = vpop.f32.mrb[0].mxu0
    %v7456 = vadd.f32 %v7384, %v7455
    %7457 = vmatprep.mubr.f32.mxu0 0.0
    %7458 = vmatmul.mubr.f32.gmra.mrb[0].mxu0 %v7338
    %v7459 = vpop.f32.mrb[0].mxu0
    %v7460 = vadd.f32 %v7380, %v7459
    %v7461 = vpop.f32.mrb[0].mxu0
    %v7462 = vadd.f32 %v7384, %v7461
    %7463 = vmatprep.mubr.f32.mxu0 0.0
    %7464 = vmatmul.mubr.f32.gmra.mrb[0].mxu0 %v7339
    %v7465 = vpop.f32.mrb[0].mxu0
    %v7466 = vadd.f32 %v7380, %v7465
    %v7467 = vpop.f32.mrb[0].mxu0
    %v7468 = vadd.f32 %v7384, %v7467
    %7469 = vmatprep.mubr.f32.mxu0 0.0
    %7470 = vmatmul.mubr.f32.gmra.mrb[0].mxu0 %v7340
    %v7471 = vpop.f32.mrb[0].mxu0
    %v7472 = vadd.f32 %v7380, %v7471
    %v7473 = vpop.f32.mrb[0].mxu0
    %v7474 = vadd.f32 %v7384, %v7473
    %7475 = vdwg.mxu0
    %v7476 = vmax.f32 %v7454, 0.0
    %v7477 = vmax.f32 %v7456, 0.0
    %v7478 = vmax.f32 %v7460, 0.0
    %v7479 = vmax.f32 %v7462, 0.0
    %v7480 = vmax.f32 %v7466, 0.0
    %v7481 = vmax.f32 %v7468, 0.0
    %v7482 = vmax.f32 %v7472, 0.0
    %v7483 = vmax.f32 %v7474, 0.0
    %s7484 = scalar_lea.vmem %s16, 256
    %v7485 = vld [vmem:[%s7484] sm:$0xff]
    %v7486 = vld [vmem:[%s7484 + $0x8] sm:$0xff]
    %v7487 = vld [vmem:[%s7484 + $0x10] sm:$0xff]
    %v7488 = vld [vmem:[%s7484 + $0x18] sm:$0xff]
    %v7489 = vld [vmem:[%s7484 + $0x20] sm:$0xff]
    %v7490 = vld [vmem:[%s7484 + $0x28] sm:$0xff]
    %v7491 = vld [vmem:[%s7484 + $0x30] sm:$0xff]
    %v7492 = vld [vmem:[%s7484 + $0x38] sm:$0xff]
    %v7493 = vld [vmem:[%s7484 + $0x40] sm:$0xff]
    %v7494 = vld [vmem:[%s7484 + $0x48] sm:$0xff]
    %v7495 = vld [vmem:[%s7484 + $0x50] sm:$0xff]
    %v7496 = vld [vmem:[%s7484 + $0x58] sm:$0xff]
    %v7497 = vld [vmem:[%s7484 + $0x60] sm:$0xff]
    %v7498 = vld [vmem:[%s7484 + $0x68] sm:$0xff]
    %v7499 = vld [vmem:[%s7484 + $0x70] sm:$0xff]
    %v7500 = vld [vmem:[%s7484 + $0x78] sm:$0xff]
    %v7501 = vld [vmem:[%s7484 + $0x80] sm:$0xff]
    %v7502 = vld [vmem:[%s7484 + $0x88] sm:$0xff]
    %v7503 = vld [vmem:[%s7484 + $0x90] sm:$0xff]
    %v7504 = vld [vmem:[%s7484 + $0x98] sm:$0xff]
    %v7505 = vld [vmem:[%s7484 + $0xa0] sm:$0xff]
    %v7506 = vld [vmem:[%s7484 + $0xa8] sm:$0xff]
    %v7507 = vld [vmem:[%s7484 + $0xb0] sm:$0xff]
    %v7508 = vld [vmem:[%s7484 + $0xb8] sm:$0xff]
    %v7509 = vld [vmem:[%s7484 + $0xc0] sm:$0xff]
    %v7510 = vld [vmem:[%s7484 + $0xc8] sm:$0xff]
    %v7511 = vld [vmem:[%s7484 + $0xd0] sm:$0xff]
    %v7512 = vld [vmem:[%s7484 + $0xd8] sm:$0xff]
    %v7513 = vld [vmem:[%s7484 + $0xe0] sm:$0xff]
    %v7514 = vld [vmem:[%s7484 + $0xe8] sm:$0xff]
    %v7515 = vld [vmem:[%s7484 + $0xf0] sm:$0xff]
    %v7516 = vld [vmem:[%s7484 + $0xf8] sm:$0xff]
    %s7517 = scalar_lea.vmem %s17, 1
    %v7518 = vld [vmem:[%s7517] sm:$0x1]
    %v7520 = vlaneseq
    %v7521 = vshrl.u32 %v7520, 7
    %v7522 = vsub.s32 0, %v7521
    %v7523 = vrot.slane %v7518, %v7522
    %7525 = vmatprep.subr.mxu0 0.0
    %7526 = vmatpush1.msra.mxu0 %v7485
    %7527 = vmatprep.subr.mxu0 0.0
    %7528 = vmatpush1.msra.mxu0 %v7486
    %7529 = vmatprep.subr.mxu0 0.0
    %7530 = vmatpush1.msra.mxu0 %v7487
    %7531 = vmatprep.subr.mxu0 0.0
    %7532 = vmatpush1.msra.mxu0 %v7488
    %7533 = vmatprep.subr.mxu0 0.0
    %7534 = vmatpush1.msra.mxu0 %v7489
    %7535 = vmatprep.subr.mxu0 0.0
    %7536 = vmatpush1.msra.mxu0 %v7490
    %7537 = vmatprep.subr.mxu0 0.0
    %7538 = vmatpush1.msra.mxu0 %v7491
    %7539 = vmatprep.subr.mxu0 0.0
    %7540 = vmatpush1.msra.mxu0 %v7492
    %7541 = vmatprep.subr.mxu0 0.0
    %7542 = vmatpush1.msra.mxu0 %v7493
    %7543 = vmatprep.subr.mxu0 0.0
    %7544 = vmatpush1.msra.mxu0 %v7494
    %7545 = vmatprep.subr.mxu0 0.0
    %7546 = vmatpush1.msra.mxu0 %v7495
    %7547 = vmatprep.subr.mxu0 0.0
    %7548 = vmatpush1.msra.mxu0 %v7496
    %7549 = vmatprep.subr.mxu0 0.0
    %7550 = vmatpush1.msra.mxu0 %v7497
    %7551 = vmatprep.subr.mxu0 0.0
    %7552 = vmatpush1.msra.mxu0 %v7498
    %7553 = vmatprep.subr.mxu0 0.0
    %7554 = vmatpush1.msra.mxu0 %v7499
    %7555 = vmatprep.subr.mxu0 0.0
    %7556 = vmatpush1.msra.mxu0 %v7500
    %7557 = vmatprep.subr.mxu0 0.0
    %7558 = vmatpush1.msra.mxu0 %v7501
    %7559 = vmatprep.subr.mxu0 0.0
    %7560 = vmatpush1.msra.mxu0 %v7502
    %7561 = vmatprep.subr.mxu0 0.0
    %7562 = vmatpush1.msra.mxu0 %v7503
    %7563 = vmatprep.subr.mxu0 0.0
    %7564 = vmatpush1.msra.mxu0 %v7504
    %7565 = vmatprep.subr.mxu0 0.0
    %7566 = vmatpush1.msra.mxu0 %v7505
    %7567 = vmatprep.subr.mxu0 0.0
    %7568 = vmatpush1.msra.mxu0 %v7506
    %7569 = vmatprep.subr.mxu0 0.0
    %7570 = vmatpush1.msra.mxu0 %v7507
    %7571 = vmatprep.subr.mxu0 0.0
    %7572 = vmatpush1.msra.mxu0 %v7508
    %7573 = vmatprep.subr.mxu0 0.0
    %7574 = vmatpush1.msra.mxu0 %v7509
    %7575 = vmatprep.subr.mxu0 0.0
    %7576 = vmatpush1.msra.mxu0 %v7510
    %7577 = vmatprep.subr.mxu0 0.0
    %7578 = vmatpush1.msra.mxu0 %v7511
    %7579 = vmatprep.subr.mxu0 0.0
    %7580 = vmatpush1.msra.mxu0 %v7512
    %7581 = vmatprep.subr.mxu0 0.0
    %7582 = vmatpush1.msra.mxu0 %v7513
    %7583 = vmatprep.subr.mxu0 0.0
    %7584 = vmatpush1.msra.mxu0 %v7514
    %7585 = vmatprep.subr.mxu0 0.0
    %7586 = vmatpush1.msra.mxu0 %v7515
    %7587 = vmatprep.subr.mxu0 0.0
    %7588 = vmatpush1.msra.mxu0 %v7516
    %7589 = vmatprep.mubr.f32.mxu0 %v7477
    %7590 = vmatmul.mubr.f32.gmra.mrb[0].mxu0 %v7476
    %v7591 = vpop.f32.mrb[0].mxu0
    %v7592 = vadd.f32 %v7523, %v7591
    %v7593 = vpop.f32.mrb[0].mxu0
    %7594 = vmatprep.mubr.f32.mxu0 %v7479
    %7595 = vmatmul.mubr.f32.gmra.mrb[0].mxu0 %v7478
    %v7596 = vpop.f32.mrb[0].mxu0
    %v7597 = vadd.f32 %v7523, %v7596
    %v7598 = vpop.f32.mrb[0].mxu0
    %7599 = vmatprep.mubr.f32.mxu0 %v7481
    %7600 = vmatmul.mubr.f32.gmra.mrb[0].mxu0 %v7480
    %v7601 = vpop.f32.mrb[0].mxu0
    %v7602 = vadd.f32 %v7523, %v7601
    %v7603 = vpop.f32.mrb[0].mxu0
    %7604 = vmatprep.mubr.f32.mxu0 %v7483
    %7605 = vmatmul.mubr.f32.gmra.mrb[0].mxu0 %v7482
    %v7606 = vpop.f32.mrb[0].mxu0
    %v7607 = vadd.f32 %v7523, %v7606
    %v7608 = vpop.f32.mrb[0].mxu0
    %7609 = vdwg.mxu0
    %v7610 = vadd.f32 %v7337, %v7592
    %v7611 = vadd.f32 %v7338, %v7597
    %v7612 = vadd.f32 %v7339, %v7602
    %v7613 = vadd.f32 %v7340, %v7607
    %s7614 = scalar_lea.vmem %s20, 1
    %v7615 = vld [vmem:[%s7614] sm:$0x1]
    %s7616 = scalar_lea.vmem %s21, 1
    %v7617 = vld [vmem:[%s7616] sm:$0x1]
    %7618 = vadd.xlane.f32.xlu0 %v7610
    %v7619 = vpop.xlane.xlu0 %7618
    %7620 = vadd.xlane.f32.xlu0 %v7611
    %v7621 = vpop.xlane.xlu0 %7620
    %7622 = vadd.xlane.f32.xlu0 %v7612
    %v7623 = vpop.xlane.xlu0 %7622
    %7624 = vadd.xlane.f32.xlu0 %v7613
    %v7625 = vpop.xlane.xlu0 %7624
    %v7626 = vmul.f32 %v7619, %v199
    %v7627 = vmul.f32 %v7621, %v199
    %v7628 = vmul.f32 %v7623, %v199
    %v7629 = vmul.f32 %v7625, %v199
    %v7630 = vsub.f32 %v7610, %v7626
    %v7631 = vsub.f32 %v7611, %v7627
    %v7632 = vsub.f32 %v7612, %v7628
    %v7633 = vsub.f32 %v7613, %v7629
    %v7634 = vmul.f32 %v7630, %v7630
    %v7635 = vmul.f32 %v7631, %v7631
    %v7636 = vmul.f32 %v7632, %v7632
    %v7637 = vmul.f32 %v7633, %v7633
    %7638 = vadd.xlane.f32.xlu0 %v7634
    %v7639 = vpop.xlane.xlu0 %7638
    %7640 = vadd.xlane.f32.xlu0 %v7635
    %v7641 = vpop.xlane.xlu0 %7640
    %7642 = vadd.xlane.f32.xlu0 %v7636
    %v7643 = vpop.xlane.xlu0 %7642
    %7644 = vadd.xlane.f32.xlu0 %v7637
    %v7645 = vpop.xlane.xlu0 %7644
    %v7646 = vmul.f32 %v7639, %v199
    %v7647 = vmul.f32 %v7641, %v199
    %v7648 = vmul.f32 %v7643, %v199
    %v7649 = vmul.f32 %v7645, %v199
    %v7650 = vadd.f32 %v7646, 1e-05
    %v7651 = vadd.f32 %v7647, 1e-05
    %v7652 = vadd.f32 %v7648, 1e-05
    %v7653 = vadd.f32 %v7649, 1e-05
    %v7654 = vrsqrt.pop %v7650
    %v7655 = vrsqrt.pop %v7651
    %v7656 = vrsqrt.pop %v7652
    %v7657 = vrsqrt.pop %v7653
    %v7658 = vmul.f32 %v7630, %v7654
    %v7659 = vmul.f32 %v7631, %v7655
    %v7660 = vmul.f32 %v7632, %v7656
    %v7661 = vmul.f32 %v7633, %v7657
    %v7663 = vlaneseq
    %v7664 = vshrl.u32 %v7663, 7
    %v7665 = vsub.s32 0, %v7664
    %v7666 = vrot.slane %v7615, %v7665
    %v7668 = vmul.f32 %v7658, %v7666
    %v7669 = vmul.f32 %v7659, %v7666
    %v7670 = vmul.f32 %v7660, %v7666
    %v7671 = vmul.f32 %v7661, %v7666
    %v7673 = vlaneseq
    %v7674 = vshrl.u32 %v7673, 7
    %v7675 = vsub.s32 0, %v7674
    %v7676 = vrot.slane %v7617, %v7675
    %v7678 = vadd.f32 %v7668, %v7676
    %v7679 = vadd.f32 %v7669, %v7676
    %v7680 = vadd.f32 %v7670, %v7676
    %v7681 = vadd.f32 %v7671, %v7676
    %7682 = vst [vmem:[#allocation2] sm:$0xff] %v7678
    %7683 = vst [vmem:[#allocation2 + $0x8] sm:$0xff] %v7679
    %7684 = vst [vmem:[#allocation2 + $0x10] sm:$0xff] %v7680
    %7685 = vst [vmem:[#allocation2 + $0x18] sm:$0xff] %v7681
    // Predicated region
    $region90: #{self_attention_forward_pallas.1} parent=1 // pred_check
      _
    $region91: #{self_attention_forward_pallas.1} parent=1 // pred_check_branch
      %7687 = sbr.rel (0) target = $region93
    $region92: #{self_attention_forward_pallas.1} parent=1 // pred_region
      %s7689 = ssub.s32 512, 512
      %7690 = vsyncadd [#allocation3], %s7689
      %s7691 = sshll.u32 [#allocation2], 4
      %s7692 = int_to_ptr.vmem [resolvable:$true] %s7691
      %7697 = dma.vmem_to_hbm [thread:$0]  %s7692, 512, %s22, [#allocation3], 128, 128, 8
    $region93: #{self_attention_forward_pallas.1} parent=1 // pred_fallthru
      _
    // Predicated region
    $region94: #{self_attention_forward_pallas.1} parent=1 // pred_check
      _
    $region95: #{self_attention_forward_pallas.1} parent=1 // pred_check_branch
      %7699 = sbr.rel (0) target = $region97
    $region96: #{self_attention_forward_pallas.1} parent=1 // pred_region
      %7700 = dma.done [#allocation3], 512
    $region97: #{self_attention_forward_pallas.1} parent=1 // pred_fallthru
      _
    %7701 = vsyncpa [#allocation3], 1

</llo_original>
